<compile_context>
chip_gen: v7x
topology: tpu7x:2x2x1
jax: 0.10.0
libtpu: 0.0.40
codegen_flags: <defaults>
</compile_context>

<pallas_src>
import functools
import math

import jax
import jax.numpy as jnp
from jax.experimental import pallas as pl
from jax.experimental.pallas import tpu as pltpu


# ----------------------------------------------------------------------------
# Tile selection helpers
# ----------------------------------------------------------------------------
def _pick_tile_n(n, candidates=(1024, 512, 256, 128)):
    # Lane-axis tile: multiple of 128 that divides N, else full N (toy shapes).
    for t in candidates:
        if n % t == 0:
            return t
    return n


def _pick_tile_rows(rows, candidates=(512, 256, 128, 64, 32, 16, 8)):
    # Sublane-axis tile for the row-flattened residual matmul.
    for t in candidates:
        if rows % t == 0:
            return t
    return rows


# ----------------------------------------------------------------------------
# Pallas kernels
# ----------------------------------------------------------------------------
def _conv_bn_act_kernel(*refs, groups, relu):
    """Fused (split-input) 1x1 conv + folded BN (+ReLU).

    refs = [x_0..x_{nx-1}, w_0..w_{nw-1}, scale, bias, o_ref].
    `groups[i]` inputs are summed, then multiplied by w_i; partial products are
    accumulated in f32 (the MXU accumulator does the channel "concat" / the
    activation "add" for free).
    """
    n_x = sum(groups)
    n_w = len(groups)
    xs = refs[:n_x]
    ws = refs[n_x:n_x + n_w]
    scale_ref, bias_ref, o_ref = refs[n_x + n_w], refs[n_x + n_w + 1], refs[n_x + n_w + 2]

    acc = None
    xi = 0
    for g, w_ref in zip(groups, ws):
        x = xs[xi][0]                                       # (C_i, TILE_N)
        for j in range(1, g):
            x = x + xs[xi + j][0]
        xi += g
        part = jnp.dot(w_ref[...], x.astype(w_ref.dtype),
                       preferred_element_type=jnp.float32)  # (C_out, TILE_N) f32
        acc = part if acc is None else acc + part

    y = acc * scale_ref[...] + bias_ref[...]                # per-channel epilogue (f32)
    if relu:
        y = jnp.maximum(y, 0.0)
    o_ref[0] = y.astype(o_ref.dtype)


def _residual_kernel(x_ref, wT_ref, scale_ref, bias_ref, o_ref):
    """ResidualConnection: contract over the points axis on row-flattened input.

    x_ref:  (TILE_R, P_in)   (rows = B*feature_dim, no transposes needed)
    wT_ref: (P_in, P_out)    (weight stored pre-transposed)
    """
    x = x_ref[...].astype(wT_ref.dtype)
    y = jnp.dot(x, wT_ref[...], preferred_element_type=jnp.float32)  # (TILE_R, P_out)
    y = jnp.maximum(y * scale_ref[...] + bias_ref[...], 0.0)
    o_ref[...] = y.astype(o_ref.dtype)


def _seg_head_kernel(x_ref, x1_ref, w1, s1, b1, w2, s2, b2, w3, s3, b3, w4, b4,
                     o_ref):
    """Fused segmentation head: (x + x1) -> conv1..conv3 (+BN+ReLU) -> conv4 -> softmax.

    All intermediates stay in VMEM; only the F-channel inputs and the
    (num_classes+1)-channel softmax output touch HBM.
    """
    x = (x_ref[0] + x1_ref[0]).astype(w1.dtype)             # (F, TILE_N) bf16
    h = jnp.dot(w1[...], x, preferred_element_type=jnp.float32)
    h = jnp.maximum(h * s1[...] + b1[...], 0.0).astype(w2.dtype)
    h = jnp.dot(w2[...], h, preferred_element_type=jnp.float32)
    h = jnp.maximum(h * s2[...] + b2[...], 0.0).astype(w3.dtype)
    h = jnp.dot(w3[...], h, preferred_element_type=jnp.float32)
    h = jnp.maximum(h * s3[...] + b3[...], 0.0).astype(w4.dtype)
    y = jnp.dot(w4[...], h, preferred_element_type=jnp.float32) + b4[...]
    # numerically-stable softmax over the class (channel) axis, in f32
    m = jnp.max(y, axis=0, keepdims=True)
    e = jnp.exp(y - m)
    o_ref[0] = (e / jnp.sum(e, axis=0, keepdims=True)).astype(o_ref.dtype)


# ----------------------------------------------------------------------------
# Kernel wrappers
# ----------------------------------------------------------------------------
def conv_bn_act(inputs, weights, scale, bias, *, groups, relu=True,
                out_dtype=jnp.bfloat16):
    """Fused 1x1 conv + folded BN (+ReLU) over channel-major inputs.

    inputs:  list of (B, C_i, N) arrays (channel splits and/or summed groups)
    weights: list of (C_out, C_i) bf16 weight column-splits (len == len(groups))
    """
    B, _, n = inputs[0].shape
    c_out = weights[0].shape[0]
    tn = _pick_tile_n(n)

    in_specs = []
    for x in inputs:
        ci = x.shape[1]
        in_specs.append(pl.BlockSpec((1, ci, tn), lambda b, t: (b, 0, t)))
    for w in weights:
        in_specs.append(pl.BlockSpec(w.shape, lambda b, t: (0, 0)))
    in_specs += [pl.BlockSpec((c_out, 1), lambda b, t: (0, 0)),
                 pl.BlockSpec((c_out, 1), lambda b, t: (0, 0))]

    kern = functools.partial(_conv_bn_act_kernel, groups=tuple(groups), relu=relu)
    return pl.pallas_call(
        kern,
        out_shape=jax.ShapeDtypeStruct((B, c_out, n), out_dtype),
        grid=(B, n // tn),
        in_specs=in_specs,
        out_specs=pl.BlockSpec((1, c_out, tn), lambda b, t: (b, 0, t)),
        compiler_params=pltpu.CompilerParams(
            dimension_semantics=("parallel", "parallel")),
    )(*inputs, *weights, scale, bias)


def residual_forward(p, x):
    """ResidualConnection: x (B, F, P_in) -> (B, F, P_out), conv over points axis.

    Implemented as a row-tiled (B*F, P_in) @ (P_in, P_out) matmul -> no activation
    transposes (reshape is layout-free).
    """
    # TODO(synk): at full resolution (P_in=8160, P_out=4080) the resident weight
    # needs P_out/K tiling; full-extent weight block is fine at these sizes.
    B, F_, p_in = x.shape
    wT = p["wT"]                                            # (P_in, P_out) bf16
    p_out = wT.shape[1]
    rows = B * F_
    tr = _pick_tile_rows(rows)
    xf = x.reshape(rows, p_in)
    y = pl.pallas_call(
        _residual_kernel,
        out_shape=jax.ShapeDtypeStruct((rows, p_out), x.dtype),
        grid=(rows // tr,),
        in_specs=[pl.BlockSpec((tr, p_in), lambda r: (r, 0)),
                  pl.BlockSpec((p_in, p_out), lambda r: (0, 0)),
                  pl.BlockSpec((1, p_out), lambda r: (0, 0)),
                  pl.BlockSpec((1, p_out), lambda r: (0, 0))],
        out_specs=pl.BlockSpec((tr, p_out), lambda r: (r, 0)),
        compiler_params=pltpu.CompilerParams(dimension_semantics=("parallel",)),
    )(xf, wT, p["scale"], p["bias"])
    return y.reshape(B, F_, p_out)


def seg_head(x, x1, hp):
    """Fused (x + x1) -> conv1/bn1/relu -> conv2/bn2/relu -> conv3/bn3/relu ->
    conv4 -> channel softmax.  Output channel-major (B, nc+1, N) f32."""
    B, F_, n = x.shape
    nc1 = hp["w4"].shape[0]
    tn = _pick_tile_n(n)

    consts = [hp["w1"], hp["s1"], hp["b1"],
              hp["w2"], hp["s2"], hp["b2"],
              hp["w3"], hp["s3"], hp["b3"],
              hp["w4"], hp["b4"]]
    in_specs = [pl.BlockSpec((1, F_, tn), lambda b, t: (b, 0, t)),
                pl.BlockSpec((1, F_, tn), lambda b, t: (b, 0, t))]
    for a in consts:
        in_specs.append(pl.BlockSpec(a.shape, lambda b, t: (0, 0)))

    return pl.pallas_call(
        _seg_head_kernel,
        out_shape=jax.ShapeDtypeStruct((B, nc1, n), jnp.float32),
        grid=(B, n // tn),
        in_specs=in_specs,
        out_specs=pl.BlockSpec((1, nc1, tn), lambda b, t: (b, 0, t)),
        compiler_params=pltpu.CompilerParams(
            dimension_semantics=("parallel", "parallel")),
    )(x, x1, *consts)


# ----------------------------------------------------------------------------
# Deterministic parameter construction (Conv1d + BatchNorm1d folded, eval mode)
# ----------------------------------------------------------------------------
def init_conv_bn(key, c_in, c_out, eps=1e-5):
    ks = jax.random.split(key, 6)
    w = jax.random.normal(ks[0], (c_out, c_in), jnp.float32) / math.sqrt(c_in)
    b = 0.01 * jax.random.normal(ks[1], (c_out,), jnp.float32)
    gamma = 1.0 + 0.1 * jax.random.normal(ks[2], (c_out,), jnp.float32)
    beta = 0.1 * jax.random.normal(ks[3], (c_out,), jnp.float32)
    mean = 0.1 * jax.random.normal(ks[4], (c_out,), jnp.float32)
    var = 1.0 + 0.1 * jnp.abs(jax.random.normal(ks[5], (c_out,), jnp.float32))
    a = gamma / jnp.sqrt(var + eps)
    scale = a.reshape(c_out, 1).astype(jnp.float32)
    bias = (beta + a * (b - mean)).reshape(c_out, 1).astype(jnp.float32)
    return dict(w=w.astype(jnp.bfloat16), scale=scale, bias=bias)


def init_conv(key, c_in, c_out):
    k1, k2 = jax.random.split(key)
    w = jax.random.normal(k1, (c_out, c_in), jnp.float32) / math.sqrt(c_in)
    b = 0.01 * jax.random.normal(k2, (c_out,), jnp.float32).reshape(c_out, 1)
    return dict(w=w.astype(jnp.bfloat16), b=b)


def init_residual(key, in_points, out_points, eps=1e-5):
    p = init_conv_bn(key, in_points, out_points, eps)
    return dict(wT=jnp.transpose(p["w"], (1, 0)),          # (in, out) bf16
                scale=jnp.transpose(p["scale"], (1, 0)),   # (1, out) f32
                bias=jnp.transpose(p["bias"], (1, 0)))     # (1, out) f32


# TODO(synk): NDTNet source is unavailable; stand-in = PointNet-style shared
# pointwise MLP over [points | extra features] (same as the reference impl).
def init_ndtnet(key, in_ch, hidden, feature_dim):
    k1, k2 = jax.random.split(key)
    return dict(l1=init_conv_bn(k1, in_ch, hidden),
                l2=init_conv_bn(k2, hidden, feature_dim))


def _split_weight(w, channel_counts):
    outs, off = [], 0
    for c in channel_counts:
        outs.append(w[:, off:off + c])
        off += c
    return outs


def ndtnet_forward(p, inputs_cm):
    """inputs_cm: list of channel-major (B, C_i, N); sum(C_i) == l1 in_ch.
    The channel concat is never materialized: weight columns are split instead."""
    ws = _split_weight(p["l1"]["w"], [a.shape[1] for a in inputs_cm])
    h = conv_bn_act(inputs_cm, ws, p["l1"]["scale"], p["l1"]["bias"],
                    groups=(1,) * len(inputs_cm), relu=True)
    return conv_bn_act([h], [p["l2"]["w"]], p["l2"]["scale"], p["l2"]["bias"],
                       groups=(1,), relu=True)


# ----------------------------------------------------------------------------
# ndnet + ndnetSegmentation forward passes
# ----------------------------------------------------------------------------
def init_params(key, point_dim, num_classes, fine_res, coarse_res, feature_dim,
                hidden):
    cov_dim = point_dim * point_dim
    ks = jax.random.split(key, 9)
    c1 = init_conv_bn(ks[5], feature_dim, 512)
    c2 = init_conv_bn(ks[6], 512, 256)
    c3 = init_conv_bn(ks[7], 256, 128)
    c4 = init_conv(ks[8], 128, num_classes + 1)
    head = dict(w1=c1["w"], s1=c1["scale"], b1=c1["bias"],
                w2=c2["w"], s2=c2["scale"], b2=c2["bias"],
                w3=c3["w"], s3=c3["scale"], b3=c3["bias"],
                w4=c4["w"], b4=c4["b"])
    return dict(
        ndtnet1=init_ndtnet(ks[0], point_dim + cov_dim, hidden, feature_dim),
        ndtnet2=init_ndtnet(ks[1], point_dim + (point_dim + cov_dim + feature_dim),
                            hidden, feature_dim),
        ndnet_res=init_residual(ks[2], fine_res, coarse_res),
        ndnet_conv1=init_conv_bn(ks[3], feature_dim, feature_dim),
        seg_res=init_residual(ks[4], coarse_res, fine_res),
        head=head,
    )


def ndnet_forward(params, points1, cov1, points2, cov2_cm, coarse_res):
    # Channel-major views of the small point/cov tensors (3 / 9 channels).
    p1_cm = jnp.transpose(points1, (0, 2, 1))                       # (B, 3, fine)
    c1_cm = jnp.transpose(cov1, (0, 2, 1))                          # (B, 9, fine)
    # ndtnet1 over the fine cloud (extra = covariances).
    feat1 = ndtnet_forward(params["ndtnet1"], [p1_cm, c1_cm])       # (B, F, fine)
    # TODO(synk): NDT_Sampler.prune unavailable; deterministic stand-in keeps
    # the first `coarse_res` points / covariances.
    d1_cm = p1_cm[:, :, :coarse_res]                                # (B, 3, coarse)
    dc1_cm = c1_cm[:, :, :coarse_res]                               # (B, 9, coarse)
    feat1r = residual_forward(params["ndnet_res"], feat1)           # (B, F, coarse)
    # extra1 = [down1 | downcov1 | feat1r] is consumed as split inputs — no concat.
    feat1_ = ndtnet_forward(params["ndtnet2"],
                            [d1_cm, d1_cm, dc1_cm, feat1r])         # (B, F, coarse)
    p2_cm = jnp.transpose(points2, (0, 2, 1))                       # (B, 3, coarse)
    feat2 = ndtnet_forward(params["ndtnet2"], [p2_cm, cov2_cm])     # (B, F, coarse)
    # ndnet: feat = bn1(conv1(feat1_ + feat2)) — NO ReLU; the "+" is folded into
    # the MXU accumulation of conv1 (groups=(2,) with a shared weight).
    feat = conv_bn_act([feat1_, feat2], [params["ndnet_conv1"]["w"]],
                       params["ndnet_conv1"]["scale"],
                       params["ndnet_conv1"]["bias"],
                       groups=(2,), relu=False)                     # (B, F, coarse)
    return feat, feat1


def ndnet_segmentation_forward(params, points1, cov1, points2, cov2_cm,
                               coarse_res):
    x, x1 = ndnet_forward(params, points1, cov1, points2, cov2_cm, coarse_res)
    x = residual_forward(params["seg_res"], x)                      # (B, F, fine)
    # (x + x1) -> conv1..conv3 (+BN+ReLU) -> conv4 -> softmax, fully fused.
    out_cm = seg_head(x, x1, params["head"])                        # (B, nc+1, fine)
    # Module contract: (B, fine, nc+1).  Kept as plain-JAX transpose so the
    # kernel's store stays lane-dense (last dim = N, not nc+1=5).
    return jnp.transpose(out_cm, (0, 2, 1))


# ----------------------------------------------------------------------------
if __name__ == "__main__":
    B, point_dim, num_classes = 2, 3, 4
    fine_res, coarse_res, feature_dim, hidden = 16, 8, 32, 64
    cov_dim = point_dim * point_dim

    key = jax.random.PRNGKey(0)
    kp, kx = jax.random.split(key)
    params = init_params(kp, point_dim, num_classes, fine_res, coarse_res,
                         feature_dim, hidden)

    k1, k2, k3, k4 = jax.random.split(kx, 4)
    points1 = jax.random.normal(k1, (B, fine_res, point_dim), jnp.float32)
    cov1 = jax.random.normal(k2, (B, fine_res, cov_dim), jnp.float32)
    # Second cloud consumed at coarse resolution; its "covariances" carry the
    # FEATURE_VECTOR-style extra channels (point_dim + cov_dim + feature_dim).
    points2 = jax.random.normal(k3, (B, coarse_res, point_dim), jnp.float32)
    cov2_cm = jax.random.normal(
        k4, (B, point_dim + cov_dim + feature_dim, coarse_res), jnp.float32)

    fwd = jax.jit(ndnet_segmentation_forward, static_argnames=("coarse_res",))
    out = fwd(params, points1, cov1, points2, cov2_cm, coarse_res=coarse_res)
    out = jax.block_until_ready(out)

    assert out.shape == (B, fine_res, num_classes + 1), out.shape
    assert bool(jnp.all(jnp.isfinite(out)))
    # softmax over classes must sum to 1 per point
    assert bool(jnp.allclose(jnp.sum(out, axis=-1), 1.0, atol=1e-5))
    print("KERNEL_OK")
</pallas_src>

<mosaic_0001>
module attributes {stable_mosaic.version = 11 : i64} {
  func.func @_conv_bn_act_kernel(%arg0: i32, %arg1: i32, %arg2: memref<1x64x16xbf16, #tpu.memory_space<vmem>>, %arg3: memref<32x64xbf16, #tpu.memory_space<vmem>>, %arg4: memref<32x1xf32, #tpu.memory_space<vmem>>, %arg5: memref<32x1xf32, #tpu.memory_space<vmem>>, %arg6: memref<1x32x16xbf16, #tpu.memory_space<vmem>>) attributes {dimension_semantics = [#tpu.dimension_semantics<parallel>, #tpu.dimension_semantics<parallel>], iteration_bounds = array<i64: 2, 1>, scalar_prefetch = 0 : i64, scratch_operands = 0 : i64, tpu.core_type = #tpu.core_type<tc>, window_params = [{transform_indices = @transform_0, window_bounds = array<i64: 1, 64, 16>}, {pipeline_mode = #tpu.pipeline_mode<synchronous>, transform_indices = @transform_1, window_bounds = array<i64: 32, 64>}, {pipeline_mode = #tpu.pipeline_mode<synchronous>, transform_indices = @transform_2, window_bounds = array<i64: 32, 1>}, {pipeline_mode = #tpu.pipeline_mode<synchronous>, transform_indices = @transform_3, window_bounds = array<i64: 32, 1>}, {transform_indices = @transform_4, window_bounds = array<i64: 1, 32, 16>}]} {
    %c0 = arith.constant 0 : index
    %c0_0 = arith.constant 0 : index
    %c0_1 = arith.constant 0 : index
    %0 = vector.load %arg2[%c0, %c0_0, %c0_1] : memref<1x64x16xbf16, #tpu.memory_space<vmem>>, vector<1x64x16xbf16>
    %1 = vector.shape_cast %0 : vector<1x64x16xbf16> to vector<64x16xbf16>
    %c0_2 = arith.constant 0 : index
    %c0_3 = arith.constant 0 : index
    %2 = vector.load %arg3[%c0_2, %c0_3] : memref<32x64xbf16, #tpu.memory_space<vmem>>, vector<32x64xbf16>
    %cst = arith.constant dense<0.000000e+00> : vector<32x16xf32>
    %3 = tpu.matmul %2, %1, %cst {dimension_numbers = #tpu.dot_dimension_numbers<[1], [0], [0], [1], [0, 0, 1, 1], [], []>} : vector<32x64xbf16>, vector<64x16xbf16>, vector<32x16xf32> -> vector<32x16xf32>
    %c0_4 = arith.constant 0 : index
    %c0_5 = arith.constant 0 : index
    %4 = vector.load %arg4[%c0_4, %c0_5] : memref<32x1xf32, #tpu.memory_space<vmem>>, vector<32x1xf32>
    %5 = vector.broadcast %4 : vector<32x1xf32> to vector<32x16xf32>
    %6 = arith.mulf %3, %5 : vector<32x16xf32>
    %c0_6 = arith.constant 0 : index
    %c0_7 = arith.constant 0 : index
    %7 = vector.load %arg5[%c0_6, %c0_7] : memref<32x1xf32, #tpu.memory_space<vmem>>, vector<32x1xf32>
    %8 = vector.broadcast %7 : vector<32x1xf32> to vector<32x16xf32>
    %9 = arith.addf %6, %8 : vector<32x16xf32>
    %cst_8 = arith.constant 0.000000e+00 : f32
    %10 = vector.broadcast %cst_8 : f32 to vector<32x16xf32>
    %11 = arith.maximumf %9, %10 : vector<32x16xf32>
    %12 = arith.truncf %11 : vector<32x16xf32> to vector<32x16xbf16>
    %c0_9 = arith.constant 0 : index
    %c0_10 = arith.constant 0 : index
    %c0_11 = arith.constant 0 : index
    %13 = vector.load %arg6[%c0_9, %c0_10, %c0_11] : memref<1x32x16xbf16, #tpu.memory_space<vmem>>, vector<1x32x16xbf16>
    %14 = vector.shape_cast %13 : vector<1x32x16xbf16> to vector<32x16xbf16>
    %15 = vector.shape_cast %12 : vector<32x16xbf16> to vector<1x32x16xbf16>
    tpu.vector_store %arg6[%c0_9, %c0_10, %c0_11], %15 {strides = array<i32>} : memref<1x32x16xbf16, #tpu.memory_space<vmem>>, vector<1x32x16xbf16>,
    return
  }
  func.func @transform_0(%arg0: i32, %arg1: i32) -> (i32, i32, i32) {
    %c0_i32 = arith.constant 0 : i32
    %c0_i32_0 = arith.constant 0 : i32
    return %arg0, %c0_i32, %arg1 : i32, i32, i32
  }
  func.func @transform_1(%arg0: i32, %arg1: i32) -> (i32, i32) {
    %c0_i32 = arith.constant 0 : i32
    %c0_i32_0 = arith.constant 0 : i32
    %c0_i32_1 = arith.constant 0 : i32
    return %c0_i32, %c0_i32_0 : i32, i32
  }
  func.func @transform_2(%arg0: i32, %arg1: i32) -> (i32, i32) {
    %c0_i32 = arith.constant 0 : i32
    %c0_i32_0 = arith.constant 0 : i32
    %c0_i32_1 = arith.constant 0 : i32
    return %c0_i32, %c0_i32_0 : i32, i32
  }
  func.func @transform_3(%arg0: i32, %arg1: i32) -> (i32, i32) {
    %c0_i32 = arith.constant 0 : i32
    %c0_i32_0 = arith.constant 0 : i32
    %c0_i32_1 = arith.constant 0 : i32
    return %c0_i32, %c0_i32_0 : i32, i32
  }
  func.func @transform_4(%arg0: i32, %arg1: i32) -> (i32, i32, i32) {
    %c0_i32 = arith.constant 0 : i32
    %c0_i32_0 = arith.constant 0 : i32
    return %arg0, %c0_i32, %arg1 : i32, i32, i32
  }
}

module attributes {stable_mosaic.version = 11 : i64} {
  func.func @_conv_bn_act_kernel(%arg0: i32, %arg1: i32, %arg2: memref<1x3x8xf32, #tpu.memory_space<vmem>>, %arg3: memref<1x3x8xf32, #tpu.memory_space<vmem>>, %arg4: memref<1x9x8xf32, #tpu.memory_space<vmem>>, %arg5: memref<1x32x8xbf16, #tpu.memory_space<vmem>>, %arg6: memref<64x3xbf16, #tpu.memory_space<vmem>>, %arg7: memref<64x3xbf16, #tpu.memory_space<vmem>>, %arg8: memref<64x9xbf16, #tpu.memory_space<vmem>>, %arg9: memref<64x32xbf16, #tpu.memory_space<vmem>>, %arg10: memref<64x1xf32, #tpu.memory_space<vmem>>, %arg11: memref<64x1xf32, #tpu.memory_space<vmem>>, %arg12: memref<1x64x8xbf16, #tpu.memory_space<vmem>>) attributes {dimension_semantics = [#tpu.dimension_semantics<parallel>, #tpu.dimension_semantics<parallel>], iteration_bounds = array<i64: 2, 1>, scalar_prefetch = 0 : i64, scratch_operands = 0 : i64, tpu.core_type = #tpu.core_type<tc>, window_params = [{transform_indices = @transform_0, window_bounds = array<i64: 1, 3, 8>}, {transform_indices = @transform_1, window_bounds = array<i64: 1, 3, 8>}, {transform_indices = @transform_2, window_bounds = array<i64: 1, 9, 8>}, {transform_indices = @transform_3, window_bounds = array<i64: 1, 32, 8>}, {pipeline_mode = #tpu.pipeline_mode<synchronous>, transform_indices = @transform_4, window_bounds = array<i64: 64, 3>}, {pipeline_mode = #tpu.pipeline_mode<synchronous>, transform_indices = @transform_5, window_bounds = array<i64: 64, 3>}, {pipeline_mode = #tpu.pipeline_mode<synchronous>, transform_indices = @transform_6, window_bounds = array<i64: 64, 9>}, {pipeline_mode = #tpu.pipeline_mode<synchronous>, transform_indices = @transform_7, window_bounds = array<i64: 64, 32>}, {pipeline_mode = #tpu.pipeline_mode<synchronous>, transform_indices = @transform_8, window_bounds = array<i64: 64, 1>}, {pipeline_mode = #tpu.pipeline_mode<synchronous>, transform_indices = @transform_9, window_bounds = array<i64: 64, 1>}, {transform_indices = @transform_10, window_bounds = array<i64: 1, 64, 8>}]} {
    %c0 = arith.constant 0 : index
    %c0_0 = arith.constant 0 : index
    %c0_1 = arith.constant 0 : index
    %0 = vector.load %arg2[%c0, %c0_0, %c0_1] : memref<1x3x8xf32, #tpu.memory_space<vmem>>, vector<1x3x8xf32>
    %1 = vector.shape_cast %0 : vector<1x3x8xf32> to vector<3x8xf32>
    %c0_2 = arith.constant 0 : index
    %c0_3 = arith.constant 0 : index
    %2 = vector.load %arg6[%c0_2, %c0_3] : memref<64x3xbf16, #tpu.memory_space<vmem>>, vector<64x3xbf16>
    %3 = arith.truncf %1 : vector<3x8xf32> to vector<3x8xbf16>
    %cst = arith.constant dense<0.000000e+00> : vector<64x8xf32>
    %4 = tpu.matmul %2, %3, %cst {dimension_numbers = #tpu.dot_dimension_numbers<[1], [0], [0], [1], [0, 0, 1, 1], [], []>} : vector<64x3xbf16>, vector<3x8xbf16>, vector<64x8xf32> -> vector<64x8xf32>
    %c0_4 = arith.constant 0 : index
    %c0_5 = arith.constant 0 : index
    %c0_6 = arith.constant 0 : index
    %5 = vector.load %arg3[%c0_4, %c0_5, %c0_6] : memref<1x3x8xf32, #tpu.memory_space<vmem>>, vector<1x3x8xf32>
    %6 = vector.shape_cast %5 : vector<1x3x8xf32> to vector<3x8xf32>
    %c0_7 = arith.constant 0 : index
    %c0_8 = arith.constant 0 : index
    %7 = vector.load %arg7[%c0_7, %c0_8] : memref<64x3xbf16, #tpu.memory_space<vmem>>, vector<64x3xbf16>
    %8 = arith.truncf %6 : vector<3x8xf32> to vector<3x8xbf16>
    %cst_9 = arith.constant dense<0.000000e+00> : vector<64x8xf32>
    %9 = tpu.matmul %7, %8, %cst_9 {dimension_numbers = #tpu.dot_dimension_numbers<[1], [0], [0], [1], [0, 0, 1, 1], [], []>} : vector<64x3xbf16>, vector<3x8xbf16>, vector<64x8xf32> -> vector<64x8xf32>
    %10 = arith.addf %4, %9 : vector<64x8xf32>
    %c0_10 = arith.constant 0 : index
    %c0_11 = arith.constant 0 : index
    %c0_12 = arith.constant 0 : index
    %11 = vector.load %arg4[%c0_10, %c0_11, %c0_12] : memref<1x9x8xf32, #tpu.memory_space<vmem>>, vector<1x9x8xf32>
    %12 = vector.shape_cast %11 : vector<1x9x8xf32> to vector<9x8xf32>
    %c0_13 = arith.constant 0 : index
    %c0_14 = arith.constant 0 : index
    %13 = vector.load %arg8[%c0_13, %c0_14] : memref<64x9xbf16, #tpu.memory_space<vmem>>, vector<64x9xbf16>
    %14 = arith.truncf %12 : vector<9x8xf32> to vector<9x8xbf16>
    %cst_15 = arith.constant dense<0.000000e+00> : vector<64x8xf32>
    %15 = tpu.matmul %13, %14, %cst_15 {dimension_numbers = #tpu.dot_dimension_numbers<[1], [0], [0], [1], [0, 0, 1, 1], [], []>} : vector<64x9xbf16>, vector<9x8xbf16>, vector<64x8xf32> -> vector<64x8xf32>
    %16 = arith.addf %10, %15 : vector<64x8xf32>
    %c0_16 = arith.constant 0 : index
    %c0_17 = arith.constant 0 : index
    %c0_18 = arith.constant 0 : index
    %17 = vector.load %arg5[%c0_16, %c0_17, %c0_18] : memref<1x32x8xbf16, #tpu.memory_space<vmem>>, vector<1x32x8xbf16>
    %18 = vector.shape_cast %17 : vector<1x32x8xbf16> to vector<32x8xbf16>
    %c0_19 = arith.constant 0 : index
    %c0_20 = arith.constant 0 : index
    %19 = vector.load %arg9[%c0_19, %c0_20] : memref<64x32xbf16, #tpu.memory_space<vmem>>, vector<64x32xbf16>
    %cst_21 = arith.constant dense<0.000000e+00> : vector<64x8xf32>
    %20 = tpu.matmul %19, %18, %cst_21 {dimension_numbers = #tpu.dot_dimension_numbers<[1], [0], [0], [1], [0, 0, 1, 1], [], []>} : vector<64x32xbf16>, vector<32x8xbf16>, vector<64x8xf32> -> vector<64x8xf32>
    %21 = arith.addf %16, %20 : vector<64x8xf32>
    %c0_22 = arith.constant 0 : index
    %c0_23 = arith.constant 0 : index
    %22 = vector.load %arg10[%c0_22, %c0_23] : memref<64x1xf32, #tpu.memory_space<vmem>>, vector<64x1xf32>
    %23 = vector.broadcast %22 : vector<64x1xf32> to vector<64x8xf32>
    %24 = arith.mulf %21, %23 : vector<64x8xf32>
    %c0_24 = arith.constant 0 : index
    %c0_25 = arith.constant 0 : index
    %25 = vector.load %arg11[%c0_24, %c0_25] : memref<64x1xf32, #tpu.memory_space<vmem>>, vector<64x1xf32>
    %26 = vector.broadcast %25 : vector<64x1xf32> to vector<64x8xf32>
    %27 = arith.addf %24, %26 : vector<64x8xf32>
    %cst_26 = arith.constant 0.000000e+00 : f32
    %28 = vector.broadcast %cst_26 : f32 to vector<64x8xf32>
    %29 = arith.maximumf %27, %28 : vector<64x8xf32>
    %30 = arith.truncf %29 : vector<64x8xf32> to vector<64x8xbf16>
    %c0_27 = arith.constant 0 : index
    %c0_28 = arith.constant 0 : index
    %c0_29 = arith.constant 0 : index
    %31 = vector.load %arg12[%c0_27, %c0_28, %c0_29] : memref<1x64x8xbf16, #tpu.memory_space<vmem>>, vector<1x64x8xbf16>
    %32 = vector.shape_cast %31 : vector<1x64x8xbf16> to vector<64x8xbf16>
    %33 = vector.shape_cast %30 : vector<64x8xbf16> to vector<1x64x8xbf16>
    tpu.vector_store %arg12[%c0_27, %c0_28, %c0_29], %33 {strides = array<i32>} : memref<1x64x8xbf16, #tpu.memory_space<vmem>>, vector<1x64x8xbf16>,
    return
  }
  func.func @transform_0(%arg0: i32, %arg1: i32) -> (i32, i32, i32) {
    %c0_i32 = arith.constant 0 : i32
    %c0_i32_0 = arith.constant 0 : i32
    return %arg0, %c0_i32, %arg1 : i32, i32, i32
  }
  func.func @transform_1(%arg0: i32, %arg1: i32) -> (i32, i32, i32) {
    %c0_i32 = arith.constant 0 : i32
    %c0_i32_0 = arith.constant 0 : i32
    return %arg0, %c0_i32, %arg1 : i32, i32, i32
  }
  func.func @transform_2(%arg0: i32, %arg1: i32) -> (i32, i32, i32) {
    %c0_i32 = arith.constant 0 : i32
    %c0_i32_0 = arith.constant 0 : i32
    return %arg0, %c0_i32, %arg1 : i32, i32, i32
  }
  func.func @transform_3(%arg0: i32, %arg1: i32) -> (i32, i32, i32) {
    %c0_i32 = arith.constant 0 : i32
    %c0_i32_0 = arith.constant 0 : i32
    return %arg0, %c0_i32, %arg1 : i32, i32, i32
  }
  func.func @transform_4(%arg0: i32, %arg1: i32) -> (i32, i32) {
    %c0_i32 = arith.constant 0 : i32
    %c0_i32_0 = arith.constant 0 : i32
    %c0_i32_1 = arith.constant 0 : i32
    return %c0_i32, %c0_i32_0 : i32, i32
  }
  func.func @transform_5(%arg0: i32, %arg1: i32) -> (i32, i32) {
    %c0_i32 = arith.constant 0 : i32
    %c0_i32_0 = arith.constant 0 : i32
    %c0_i32_1 = arith.constant 0 : i32
    return %c0_i32, %c0_i32_0 : i32, i32
  }
  func.func @transform_6(%arg0: i32, %arg1: i32) -> (i32, i32) {
    %c0_i32 = arith.constant 0 : i32
    %c0_i32_0 = arith.constant 0 : i32
    %c0_i32_1 = arith.constant 0 : i32
    return %c0_i32, %c0_i32_0 : i32, i32
  }
  func.func @transform_7(%arg0: i32, %arg1: i32) -> (i32, i32) {
    %c0_i32 = arith.constant 0 : i32
    %c0_i32_0 = arith.constant 0 : i32
    %c0_i32_1 = arith.constant 0 : i32
    return %c0_i32, %c0_i32_0 : i32, i32
  }
  func.func @transform_8(%arg0: i32, %arg1: i32) -> (i32, i32) {
    %c0_i32 = arith.constant 0 : i32
    %c0_i32_0 = arith.constant 0 : i32
    %c0_i32_1 = arith.constant 0 : i32
    return %c0_i32, %c0_i32_0 : i32, i32
  }
  func.func @transform_9(%arg0: i32, %arg1: i32) -> (i32, i32) {
    %c0_i32 = arith.constant 0 : i32
    %c0_i32_0 = arith.constant 0 : i32
    %c0_i32_1 = arith.constant 0 : i32
    return %c0_i32, %c0_i32_0 : i32, i32
  }
  func.func @transform_10(%arg0: i32, %arg1: i32) -> (i32, i32, i32) {
    %c0_i32 = arith.constant 0 : i32
    %c0_i32_0 = arith.constant 0 : i32
    return %arg0, %c0_i32, %arg1 : i32, i32, i32
  }
}

module attributes {stable_mosaic.version = 11 : i64} {
  func.func @_conv_bn_act_kernel(%arg0: i32, %arg1: i32, %arg2: memref<1x3x16xf32, #tpu.memory_space<vmem>>, %arg3: memref<1x9x16xf32, #tpu.memory_space<vmem>>, %arg4: memref<64x3xbf16, #tpu.memory_space<vmem>>, %arg5: memref<64x9xbf16, #tpu.memory_space<vmem>>, %arg6: memref<64x1xf32, #tpu.memory_space<vmem>>, %arg7: memref<64x1xf32, #tpu.memory_space<vmem>>, %arg8: memref<1x64x16xbf16, #tpu.memory_space<vmem>>) attributes {dimension_semantics = [#tpu.dimension_semantics<parallel>, #tpu.dimension_semantics<parallel>], iteration_bounds = array<i64: 2, 1>, scalar_prefetch = 0 : i64, scratch_operands = 0 : i64, tpu.core_type = #tpu.core_type<tc>, window_params = [{transform_indices = @transform_0, window_bounds = array<i64: 1, 3, 16>}, {transform_indices = @transform_1, window_bounds = array<i64: 1, 9, 16>}, {pipeline_mode = #tpu.pipeline_mode<synchronous>, transform_indices = @transform_2, window_bounds = array<i64: 64, 3>}, {pipeline_mode = #tpu.pipeline_mode<synchronous>, transform_indices = @transform_3, window_bounds = array<i64: 64, 9>}, {pipeline_mode = #tpu.pipeline_mode<synchronous>, transform_indices = @transform_4, window_bounds = array<i64: 64, 1>}, {pipeline_mode = #tpu.pipeline_mode<synchronous>, transform_indices = @transform_5, window_bounds = array<i64: 64, 1>}, {transform_indices = @transform_6, window_bounds = array<i64: 1, 64, 16>}]} {
    %c0 = arith.constant 0 : index
    %c0_0 = arith.constant 0 : index
    %c0_1 = arith.constant 0 : index
    %0 = vector.load %arg2[%c0, %c0_0, %c0_1] : memref<1x3x16xf32, #tpu.memory_space<vmem>>, vector<1x3x16xf32>
    %1 = vector.shape_cast %0 : vector<1x3x16xf32> to vector<3x16xf32>
    %c0_2 = arith.constant 0 : index
    %c0_3 = arith.constant 0 : index
    %2 = vector.load %arg4[%c0_2, %c0_3] : memref<64x3xbf16, #tpu.memory_space<vmem>>, vector<64x3xbf16>
    %3 = arith.truncf %1 : vector<3x16xf32> to vector<3x16xbf16>
    %cst = arith.constant dense<0.000000e+00> : vector<64x16xf32>
    %4 = tpu.matmul %2, %3, %cst {dimension_numbers = #tpu.dot_dimension_numbers<[1], [0], [0], [1], [0, 0, 1, 1], [], []>} : vector<64x3xbf16>, vector<3x16xbf16>, vector<64x16xf32> -> vector<64x16xf32>
    %c0_4 = arith.constant 0 : index
    %c0_5 = arith.constant 0 : index
    %c0_6 = arith.constant 0 : index
    %5 = vector.load %arg3[%c0_4, %c0_5, %c0_6] : memref<1x9x16xf32, #tpu.memory_space<vmem>>, vector<1x9x16xf32>
    %6 = vector.shape_cast %5 : vector<1x9x16xf32> to vector<9x16xf32>
    %c0_7 = arith.constant 0 : index
    %c0_8 = arith.constant 0 : index
    %7 = vector.load %arg5[%c0_7, %c0_8] : memref<64x9xbf16, #tpu.memory_space<vmem>>, vector<64x9xbf16>
    %8 = arith.truncf %6 : vector<9x16xf32> to vector<9x16xbf16>
    %cst_9 = arith.constant dense<0.000000e+00> : vector<64x16xf32>
    %9 = tpu.matmul %7, %8, %cst_9 {dimension_numbers = #tpu.dot_dimension_numbers<[1], [0], [0], [1], [0, 0, 1, 1], [], []>} : vector<64x9xbf16>, vector<9x16xbf16>, vector<64x16xf32> -> vector<64x16xf32>
    %10 = arith.addf %4, %9 : vector<64x16xf32>
    %c0_10 = arith.constant 0 : index
    %c0_11 = arith.constant 0 : index
    %11 = vector.load %arg6[%c0_10, %c0_11] : memref<64x1xf32, #tpu.memory_space<vmem>>, vector<64x1xf32>
    %12 = vector.broadcast %11 : vector<64x1xf32> to vector<64x16xf32>
    %13 = arith.mulf %10, %12 : vector<64x16xf32>
    %c0_12 = arith.constant 0 : index
    %c0_13 = arith.constant 0 : index
    %14 = vector.load %arg7[%c0_12, %c0_13] : memref<64x1xf32, #tpu.memory_space<vmem>>, vector<64x1xf32>
    %15 = vector.broadcast %14 : vector<64x1xf32> to vector<64x16xf32>
    %16 = arith.addf %13, %15 : vector<64x16xf32>
    %cst_14 = arith.constant 0.000000e+00 : f32
    %17 = vector.broadcast %cst_14 : f32 to vector<64x16xf32>
    %18 = arith.maximumf %16, %17 : vector<64x16xf32>
    %19 = arith.truncf %18 : vector<64x16xf32> to vector<64x16xbf16>
    %c0_15 = arith.constant 0 : index
    %c0_16 = arith.constant 0 : index
    %c0_17 = arith.constant 0 : index
    %20 = vector.load %arg8[%c0_15, %c0_16, %c0_17] : memref<1x64x16xbf16, #tpu.memory_space<vmem>>, vector<1x64x16xbf16>
    %21 = vector.shape_cast %20 : vector<1x64x16xbf16> to vector<64x16xbf16>
    %22 = vector.shape_cast %19 : vector<64x16xbf16> to vector<1x64x16xbf16>
    tpu.vector_store %arg8[%c0_15, %c0_16, %c0_17], %22 {strides = array<i32>} : memref<1x64x16xbf16, #tpu.memory_space<vmem>>, vector<1x64x16xbf16>,
    return
  }
  func.func @transform_0(%arg0: i32, %arg1: i32) -> (i32, i32, i32) {
    %c0_i32 = arith.constant 0 : i32
    %c0_i32_0 = arith.constant 0 : i32
    return %arg0, %c0_i32, %arg1 : i32, i32, i32
  }
  func.func @transform_1(%arg0: i32, %arg1: i32) -> (i32, i32, i32) {
    %c0_i32 = arith.constant 0 : i32
    %c0_i32_0 = arith.constant 0 : i32
    return %arg0, %c0_i32, %arg1 : i32, i32, i32
  }
  func.func @transform_2(%arg0: i32, %arg1: i32) -> (i32, i32) {
    %c0_i32 = arith.constant 0 : i32
    %c0_i32_0 = arith.constant 0 : i32
    %c0_i32_1 = arith.constant 0 : i32
    return %c0_i32, %c0_i32_0 : i32, i32
  }
  func.func @transform_3(%arg0: i32, %arg1: i32) -> (i32, i32) {
    %c0_i32 = arith.constant 0 : i32
    %c0_i32_0 = arith.constant 0 : i32
    %c0_i32_1 = arith.constant 0 : i32
    return %c0_i32, %c0_i32_0 : i32, i32
  }
  func.func @transform_4(%arg0: i32, %arg1: i32) -> (i32, i32) {
    %c0_i32 = arith.constant 0 : i32
    %c0_i32_0 = arith.constant 0 : i32
    %c0_i32_1 = arith.constant 0 : i32
    return %c0_i32, %c0_i32_0 : i32, i32
  }
  func.func @transform_5(%arg0: i32, %arg1: i32) -> (i32, i32) {
    %c0_i32 = arith.constant 0 : i32
    %c0_i32_0 = arith.constant 0 : i32
    %c0_i32_1 = arith.constant 0 : i32
    return %c0_i32, %c0_i32_0 : i32, i32
  }
  func.func @transform_6(%arg0: i32, %arg1: i32) -> (i32, i32, i32) {
    %c0_i32 = arith.constant 0 : i32
    %c0_i32_0 = arith.constant 0 : i32
    return %arg0, %c0_i32, %arg1 : i32, i32, i32
  }
}

module attributes {stable_mosaic.version = 11 : i64} {
  func.func @_residual_kernel(%arg0: i32, %arg1: memref<64x16xbf16, #tpu.memory_space<vmem>>, %arg2: memref<16x8xbf16, #tpu.memory_space<vmem>>, %arg3: memref<1x8xf32, #tpu.memory_space<vmem>>, %arg4: memref<1x8xf32, #tpu.memory_space<vmem>>, %arg5: memref<64x8xbf16, #tpu.memory_space<vmem>>) attributes {dimension_semantics = [#tpu.dimension_semantics<parallel>], iteration_bounds = array<i64: 1>, scalar_prefetch = 0 : i64, scratch_operands = 0 : i64, tpu.core_type = #tpu.core_type<tc>, window_params = [{transform_indices = @transform_0, window_bounds = array<i64: 64, 16>}, {pipeline_mode = #tpu.pipeline_mode<synchronous>, transform_indices = @transform_1, window_bounds = array<i64: 16, 8>}, {pipeline_mode = #tpu.pipeline_mode<synchronous>, transform_indices = @transform_2, window_bounds = array<i64: 1, 8>}, {pipeline_mode = #tpu.pipeline_mode<synchronous>, transform_indices = @transform_3, window_bounds = array<i64: 1, 8>}, {transform_indices = @transform_4, window_bounds = array<i64: 64, 8>}]} {
    %c0 = arith.constant 0 : index
    %c0_0 = arith.constant 0 : index
    %0 = vector.load %arg1[%c0, %c0_0] : memref<64x16xbf16, #tpu.memory_space<vmem>>, vector<64x16xbf16>
    %c0_1 = arith.constant 0 : index
    %c0_2 = arith.constant 0 : index
    %1 = vector.load %arg2[%c0_1, %c0_2] : memref<16x8xbf16, #tpu.memory_space<vmem>>, vector<16x8xbf16>
    %cst = arith.constant dense<0.000000e+00> : vector<64x8xf32>
    %2 = tpu.matmul %0, %1, %cst {dimension_numbers = #tpu.dot_dimension_numbers<[1], [0], [0], [1], [0, 0, 1, 1], [], []>} : vector<64x16xbf16>, vector<16x8xbf16>, vector<64x8xf32> -> vector<64x8xf32>
    %c0_3 = arith.constant 0 : index
    %c0_4 = arith.constant 0 : index
    %3 = vector.load %arg3[%c0_3, %c0_4] : memref<1x8xf32, #tpu.memory_space<vmem>>, vector<1x8xf32>
    %4 = vector.broadcast %3 : vector<1x8xf32> to vector<64x8xf32>
    %5 = arith.mulf %2, %4 : vector<64x8xf32>
    %c0_5 = arith.constant 0 : index
    %c0_6 = arith.constant 0 : index
    %6 = vector.load %arg4[%c0_5, %c0_6] : memref<1x8xf32, #tpu.memory_space<vmem>>, vector<1x8xf32>
    %7 = vector.broadcast %6 : vector<1x8xf32> to vector<64x8xf32>
    %8 = arith.addf %5, %7 : vector<64x8xf32>
    %cst_7 = arith.constant 0.000000e+00 : f32
    %9 = vector.broadcast %cst_7 : f32 to vector<64x8xf32>
    %10 = arith.maximumf %8, %9 : vector<64x8xf32>
    %11 = arith.truncf %10 : vector<64x8xf32> to vector<64x8xbf16>
    %c0_8 = arith.constant 0 : index
    %c0_9 = arith.constant 0 : index
    %12 = vector.load %arg5[%c0_8, %c0_9] : memref<64x8xbf16, #tpu.memory_space<vmem>>, vector<64x8xbf16>
    tpu.vector_store %arg5[%c0_8, %c0_9], %11 {strides = array<i32>} : memref<64x8xbf16, #tpu.memory_space<vmem>>, vector<64x8xbf16>,
    return
  }
  func.func @transform_0(%arg0: i32) -> (i32, i32) {
    %c0_i32 = arith.constant 0 : i32
    %c0_i32_0 = arith.constant 0 : i32
    return %arg0, %c0_i32 : i32, i32
  }
  func.func @transform_1(%arg0: i32) -> (i32, i32) {
    %c0_i32 = arith.constant 0 : i32
    %c0_i32_0 = arith.constant 0 : i32
    %c0_i32_1 = arith.constant 0 : i32
    return %c0_i32, %c0_i32_0 : i32, i32
  }
  func.func @transform_2(%arg0: i32) -> (i32, i32) {
    %c0_i32 = arith.constant 0 : i32
    %c0_i32_0 = arith.constant 0 : i32
    %c0_i32_1 = arith.constant 0 : i32
    return %c0_i32, %c0_i32_0 : i32, i32
  }
  func.func @transform_3(%arg0: i32) -> (i32, i32) {
    %c0_i32 = arith.constant 0 : i32
    %c0_i32_0 = arith.constant 0 : i32
    %c0_i32_1 = arith.constant 0 : i32
    return %c0_i32, %c0_i32_0 : i32, i32
  }
  func.func @transform_4(%arg0: i32) -> (i32, i32) {
    %c0_i32 = arith.constant 0 : i32
    %c0_i32_0 = arith.constant 0 : i32
    return %arg0, %c0_i32 : i32, i32
  }
}

module attributes {stable_mosaic.version = 11 : i64} {
  func.func @_conv_bn_act_kernel(%arg0: i32, %arg1: i32, %arg2: memref<1x64x8xbf16, #tpu.memory_space<vmem>>, %arg3: memref<32x64xbf16, #tpu.memory_space<vmem>>, %arg4: memref<32x1xf32, #tpu.memory_space<vmem>>, %arg5: memref<32x1xf32, #tpu.memory_space<vmem>>, %arg6: memref<1x32x8xbf16, #tpu.memory_space<vmem>>) attributes {dimension_semantics = [#tpu.dimension_semantics<parallel>, #tpu.dimension_semantics<parallel>], iteration_bounds = array<i64: 2, 1>, scalar_prefetch = 0 : i64, scratch_operands = 0 : i64, tpu.core_type = #tpu.core_type<tc>, window_params = [{transform_indices = @transform_0, window_bounds = array<i64: 1, 64, 8>}, {pipeline_mode = #tpu.pipeline_mode<synchronous>, transform_indices = @transform_1, window_bounds = array<i64: 32, 64>}, {pipeline_mode = #tpu.pipeline_mode<synchronous>, transform_indices = @transform_2, window_bounds = array<i64: 32, 1>}, {pipeline_mode = #tpu.pipeline_mode<synchronous>, transform_indices = @transform_3, window_bounds = array<i64: 32, 1>}, {transform_indices = @transform_4, window_bounds = array<i64: 1, 32, 8>}]} {
    %c0 = arith.constant 0 : index
    %c0_0 = arith.constant 0 : index
    %c0_1 = arith.constant 0 : index
    %0 = vector.load %arg2[%c0, %c0_0, %c0_1] : memref<1x64x8xbf16, #tpu.memory_space<vmem>>, vector<1x64x8xbf16>
    %1 = vector.shape_cast %0 : vector<1x64x8xbf16> to vector<64x8xbf16>
    %c0_2 = arith.constant 0 : index
    %c0_3 = arith.constant 0 : index
    %2 = vector.load %arg3[%c0_2, %c0_3] : memref<32x64xbf16, #tpu.memory_space<vmem>>, vector<32x64xbf16>
    %cst = arith.constant dense<0.000000e+00> : vector<32x8xf32>
    %3 = tpu.matmul %2, %1, %cst {dimension_numbers = #tpu.dot_dimension_numbers<[1], [0], [0], [1], [0, 0, 1, 1], [], []>} : vector<32x64xbf16>, vector<64x8xbf16>, vector<32x8xf32> -> vector<32x8xf32>
    %c0_4 = arith.constant 0 : index
    %c0_5 = arith.constant 0 : index
    %4 = vector.load %arg4[%c0_4, %c0_5] : memref<32x1xf32, #tpu.memory_space<vmem>>, vector<32x1xf32>
    %5 = vector.broadcast %4 : vector<32x1xf32> to vector<32x8xf32>
    %6 = arith.mulf %3, %5 : vector<32x8xf32>
    %c0_6 = arith.constant 0 : index
    %c0_7 = arith.constant 0 : index
    %7 = vector.load %arg5[%c0_6, %c0_7] : memref<32x1xf32, #tpu.memory_space<vmem>>, vector<32x1xf32>
    %8 = vector.broadcast %7 : vector<32x1xf32> to vector<32x8xf32>
    %9 = arith.addf %6, %8 : vector<32x8xf32>
    %cst_8 = arith.constant 0.000000e+00 : f32
    %10 = vector.broadcast %cst_8 : f32 to vector<32x8xf32>
    %11 = arith.maximumf %9, %10 : vector<32x8xf32>
    %12 = arith.truncf %11 : vector<32x8xf32> to vector<32x8xbf16>
    %c0_9 = arith.constant 0 : index
    %c0_10 = arith.constant 0 : index
    %c0_11 = arith.constant 0 : index
    %13 = vector.load %arg6[%c0_9, %c0_10, %c0_11] : memref<1x32x8xbf16, #tpu.memory_space<vmem>>, vector<1x32x8xbf16>
    %14 = vector.shape_cast %13 : vector<1x32x8xbf16> to vector<32x8xbf16>
    %15 = vector.shape_cast %12 : vector<32x8xbf16> to vector<1x32x8xbf16>
    tpu.vector_store %arg6[%c0_9, %c0_10, %c0_11], %15 {strides = array<i32>} : memref<1x32x8xbf16, #tpu.memory_space<vmem>>, vector<1x32x8xbf16>,
    return
  }
  func.func @transform_0(%arg0: i32, %arg1: i32) -> (i32, i32, i32) {
    %c0_i32 = arith.constant 0 : i32
    %c0_i32_0 = arith.constant 0 : i32
    return %arg0, %c0_i32, %arg1 : i32, i32, i32
  }
  func.func @transform_1(%arg0: i32, %arg1: i32) -> (i32, i32) {
    %c0_i32 = arith.constant 0 : i32
    %c0_i32_0 = arith.constant 0 : i32
    %c0_i32_1 = arith.constant 0 : i32
    return %c0_i32, %c0_i32_0 : i32, i32
  }
  func.func @transform_2(%arg0: i32, %arg1: i32) -> (i32, i32) {
    %c0_i32 = arith.constant 0 : i32
    %c0_i32_0 = arith.constant 0 : i32
    %c0_i32_1 = arith.constant 0 : i32
    return %c0_i32, %c0_i32_0 : i32, i32
  }
  func.func @transform_3(%arg0: i32, %arg1: i32) -> (i32, i32) {
    %c0_i32 = arith.constant 0 : i32
    %c0_i32_0 = arith.constant 0 : i32
    %c0_i32_1 = arith.constant 0 : i32
    return %c0_i32, %c0_i32_0 : i32, i32
  }
  func.func @transform_4(%arg0: i32, %arg1: i32) -> (i32, i32, i32) {
    %c0_i32 = arith.constant 0 : i32
    %c0_i32_0 = arith.constant 0 : i32
    return %arg0, %c0_i32, %arg1 : i32, i32, i32
  }
}

module attributes {stable_mosaic.version = 11 : i64} {
  func.func @_residual_kernel(%arg0: i32, %arg1: memref<64x8xbf16, #tpu.memory_space<vmem>>, %arg2: memref<8x16xbf16, #tpu.memory_space<vmem>>, %arg3: memref<1x16xf32, #tpu.memory_space<vmem>>, %arg4: memref<1x16xf32, #tpu.memory_space<vmem>>, %arg5: memref<64x16xbf16, #tpu.memory_space<vmem>>) attributes {dimension_semantics = [#tpu.dimension_semantics<parallel>], iteration_bounds = array<i64: 1>, scalar_prefetch = 0 : i64, scratch_operands = 0 : i64, tpu.core_type = #tpu.core_type<tc>, window_params = [{transform_indices = @transform_0, window_bounds = array<i64: 64, 8>}, {pipeline_mode = #tpu.pipeline_mode<synchronous>, transform_indices = @transform_1, window_bounds = array<i64: 8, 16>}, {pipeline_mode = #tpu.pipeline_mode<synchronous>, transform_indices = @transform_2, window_bounds = array<i64: 1, 16>}, {pipeline_mode = #tpu.pipeline_mode<synchronous>, transform_indices = @transform_3, window_bounds = array<i64: 1, 16>}, {transform_indices = @transform_4, window_bounds = array<i64: 64, 16>}]} {
    %c0 = arith.constant 0 : index
    %c0_0 = arith.constant 0 : index
    %0 = vector.load %arg1[%c0, %c0_0] : memref<64x8xbf16, #tpu.memory_space<vmem>>, vector<64x8xbf16>
    %c0_1 = arith.constant 0 : index
    %c0_2 = arith.constant 0 : index
    %1 = vector.load %arg2[%c0_1, %c0_2] : memref<8x16xbf16, #tpu.memory_space<vmem>>, vector<8x16xbf16>
    %cst = arith.constant dense<0.000000e+00> : vector<64x16xf32>
    %2 = tpu.matmul %0, %1, %cst {dimension_numbers = #tpu.dot_dimension_numbers<[1], [0], [0], [1], [0, 0, 1, 1], [], []>} : vector<64x8xbf16>, vector<8x16xbf16>, vector<64x16xf32> -> vector<64x16xf32>
    %c0_3 = arith.constant 0 : index
    %c0_4 = arith.constant 0 : index
    %3 = vector.load %arg3[%c0_3, %c0_4] : memref<1x16xf32, #tpu.memory_space<vmem>>, vector<1x16xf32>
    %4 = vector.broadcast %3 : vector<1x16xf32> to vector<64x16xf32>
    %5 = arith.mulf %2, %4 : vector<64x16xf32>
    %c0_5 = arith.constant 0 : index
    %c0_6 = arith.constant 0 : index
    %6 = vector.load %arg4[%c0_5, %c0_6] : memref<1x16xf32, #tpu.memory_space<vmem>>, vector<1x16xf32>
    %7 = vector.broadcast %6 : vector<1x16xf32> to vector<64x16xf32>
    %8 = arith.addf %5, %7 : vector<64x16xf32>
    %cst_7 = arith.constant 0.000000e+00 : f32
    %9 = vector.broadcast %cst_7 : f32 to vector<64x16xf32>
    %10 = arith.maximumf %8, %9 : vector<64x16xf32>
    %11 = arith.truncf %10 : vector<64x16xf32> to vector<64x16xbf16>
    %c0_8 = arith.constant 0 : index
    %c0_9 = arith.constant 0 : index
    %12 = vector.load %arg5[%c0_8, %c0_9] : memref<64x16xbf16, #tpu.memory_space<vmem>>, vector<64x16xbf16>
    tpu.vector_store %arg5[%c0_8, %c0_9], %11 {strides = array<i32>} : memref<64x16xbf16, #tpu.memory_space<vmem>>, vector<64x16xbf16>,
    return
  }
  func.func @transform_0(%arg0: i32) -> (i32, i32) {
    %c0_i32 = arith.constant 0 : i32
    %c0_i32_0 = arith.constant 0 : i32
    return %arg0, %c0_i32 : i32, i32
  }
  func.func @transform_1(%arg0: i32) -> (i32, i32) {
    %c0_i32 = arith.constant 0 : i32
    %c0_i32_0 = arith.constant 0 : i32
    %c0_i32_1 = arith.constant 0 : i32
    return %c0_i32, %c0_i32_0 : i32, i32
  }
  func.func @transform_2(%arg0: i32) -> (i32, i32) {
    %c0_i32 = arith.constant 0 : i32
    %c0_i32_0 = arith.constant 0 : i32
    %c0_i32_1 = arith.constant 0 : i32
    return %c0_i32, %c0_i32_0 : i32, i32
  }
  func.func @transform_3(%arg0: i32) -> (i32, i32) {
    %c0_i32 = arith.constant 0 : i32
    %c0_i32_0 = arith.constant 0 : i32
    %c0_i32_1 = arith.constant 0 : i32
    return %c0_i32, %c0_i32_0 : i32, i32
  }
  func.func @transform_4(%arg0: i32) -> (i32, i32) {
    %c0_i32 = arith.constant 0 : i32
    %c0_i32_0 = arith.constant 0 : i32
    return %arg0, %c0_i32 : i32, i32
  }
}

module attributes {stable_mosaic.version = 11 : i64} {
  func.func @_conv_bn_act_kernel(%arg0: i32, %arg1: i32, %arg2: memref<1x3x8xf32, #tpu.memory_space<vmem>>, %arg3: memref<1x44x8xf32, #tpu.memory_space<vmem>>, %arg4: memref<64x3xbf16, #tpu.memory_space<vmem>>, %arg5: memref<64x44xbf16, #tpu.memory_space<vmem>>, %arg6: memref<64x1xf32, #tpu.memory_space<vmem>>, %arg7: memref<64x1xf32, #tpu.memory_space<vmem>>, %arg8: memref<1x64x8xbf16, #tpu.memory_space<vmem>>) attributes {dimension_semantics = [#tpu.dimension_semantics<parallel>, #tpu.dimension_semantics<parallel>], iteration_bounds = array<i64: 2, 1>, scalar_prefetch = 0 : i64, scratch_operands = 0 : i64, tpu.core_type = #tpu.core_type<tc>, window_params = [{transform_indices = @transform_0, window_bounds = array<i64: 1, 3, 8>}, {transform_indices = @transform_1, window_bounds = array<i64: 1, 44, 8>}, {pipeline_mode = #tpu.pipeline_mode<synchronous>, transform_indices = @transform_2, window_bounds = array<i64: 64, 3>}, {pipeline_mode = #tpu.pipeline_mode<synchronous>, transform_indices = @transform_3, window_bounds = array<i64: 64, 44>}, {pipeline_mode = #tpu.pipeline_mode<synchronous>, transform_indices = @transform_4, window_bounds = array<i64: 64, 1>}, {pipeline_mode = #tpu.pipeline_mode<synchronous>, transform_indices = @transform_5, window_bounds = array<i64: 64, 1>}, {transform_indices = @transform_6, window_bounds = array<i64: 1, 64, 8>}]} {
    %c0 = arith.constant 0 : index
    %c0_0 = arith.constant 0 : index
    %c0_1 = arith.constant 0 : index
    %0 = vector.load %arg2[%c0, %c0_0, %c0_1] : memref<1x3x8xf32, #tpu.memory_space<vmem>>, vector<1x3x8xf32>
    %1 = vector.shape_cast %0 : vector<1x3x8xf32> to vector<3x8xf32>
    %c0_2 = arith.constant 0 : index
    %c0_3 = arith.constant 0 : index
    %2 = vector.load %arg4[%c0_2, %c0_3] : memref<64x3xbf16, #tpu.memory_space<vmem>>, vector<64x3xbf16>
    %3 = arith.truncf %1 : vector<3x8xf32> to vector<3x8xbf16>
    %cst = arith.constant dense<0.000000e+00> : vector<64x8xf32>
    %4 = tpu.matmul %2, %3, %cst {dimension_numbers = #tpu.dot_dimension_numbers<[1], [0], [0], [1], [0, 0, 1, 1], [], []>} : vector<64x3xbf16>, vector<3x8xbf16>, vector<64x8xf32> -> vector<64x8xf32>
    %c0_4 = arith.constant 0 : index
    %c0_5 = arith.constant 0 : index
    %c0_6 = arith.constant 0 : index
    %5 = vector.load %arg3[%c0_4, %c0_5, %c0_6] : memref<1x44x8xf32, #tpu.memory_space<vmem>>, vector<1x44x8xf32>
    %6 = vector.shape_cast %5 : vector<1x44x8xf32> to vector<44x8xf32>
    %c0_7 = arith.constant 0 : index
    %c0_8 = arith.constant 0 : index
    %7 = vector.load %arg5[%c0_7, %c0_8] : memref<64x44xbf16, #tpu.memory_space<vmem>>, vector<64x44xbf16>
    %8 = arith.truncf %6 : vector<44x8xf32> to vector<44x8xbf16>
    %cst_9 = arith.constant dense<0.000000e+00> : vector<64x8xf32>
    %9 = tpu.matmul %7, %8, %cst_9 {dimension_numbers = #tpu.dot_dimension_numbers<[1], [0], [0], [1], [0, 0, 1, 1], [], []>} : vector<64x44xbf16>, vector<44x8xbf16>, vector<64x8xf32> -> vector<64x8xf32>
    %10 = arith.addf %4, %9 : vector<64x8xf32>
    %c0_10 = arith.constant 0 : index
    %c0_11 = arith.constant 0 : index
    %11 = vector.load %arg6[%c0_10, %c0_11] : memref<64x1xf32, #tpu.memory_space<vmem>>, vector<64x1xf32>
    %12 = vector.broadcast %11 : vector<64x1xf32> to vector<64x8xf32>
    %13 = arith.mulf %10, %12 : vector<64x8xf32>
    %c0_12 = arith.constant 0 : index
    %c0_13 = arith.constant 0 : index
    %14 = vector.load %arg7[%c0_12, %c0_13] : memref<64x1xf32, #tpu.memory_space<vmem>>, vector<64x1xf32>
    %15 = vector.broadcast %14 : vector<64x1xf32> to vector<64x8xf32>
    %16 = arith.addf %13, %15 : vector<64x8xf32>
    %cst_14 = arith.constant 0.000000e+00 : f32
    %17 = vector.broadcast %cst_14 : f32 to vector<64x8xf32>
    %18 = arith.maximumf %16, %17 : vector<64x8xf32>
    %19 = arith.truncf %18 : vector<64x8xf32> to vector<64x8xbf16>
    %c0_15 = arith.constant 0 : index
    %c0_16 = arith.constant 0 : index
    %c0_17 = arith.constant 0 : index
    %20 = vector.load %arg8[%c0_15, %c0_16, %c0_17] : memref<1x64x8xbf16, #tpu.memory_space<vmem>>, vector<1x64x8xbf16>
    %21 = vector.shape_cast %20 : vector<1x64x8xbf16> to vector<64x8xbf16>
    %22 = vector.shape_cast %19 : vector<64x8xbf16> to vector<1x64x8xbf16>
    tpu.vector_store %arg8[%c0_15, %c0_16, %c0_17], %22 {strides = array<i32>} : memref<1x64x8xbf16, #tpu.memory_space<vmem>>, vector<1x64x8xbf16>,
    return
  }
  func.func @transform_0(%arg0: i32, %arg1: i32) -> (i32, i32, i32) {
    %c0_i32 = arith.constant 0 : i32
    %c0_i32_0 = arith.constant 0 : i32
    return %arg0, %c0_i32, %arg1 : i32, i32, i32
  }
  func.func @transform_1(%arg0: i32, %arg1: i32) -> (i32, i32, i32) {
    %c0_i32 = arith.constant 0 : i32
    %c0_i32_0 = arith.constant 0 : i32
    return %arg0, %c0_i32, %arg1 : i32, i32, i32
  }
  func.func @transform_2(%arg0: i32, %arg1: i32) -> (i32, i32) {
    %c0_i32 = arith.constant 0 : i32
    %c0_i32_0 = arith.constant 0 : i32
    %c0_i32_1 = arith.constant 0 : i32
    return %c0_i32, %c0_i32_0 : i32, i32
  }
  func.func @transform_3(%arg0: i32, %arg1: i32) -> (i32, i32) {
    %c0_i32 = arith.constant 0 : i32
    %c0_i32_0 = arith.constant 0 : i32
    %c0_i32_1 = arith.constant 0 : i32
    return %c0_i32, %c0_i32_0 : i32, i32
  }
  func.func @transform_4(%arg0: i32, %arg1: i32) -> (i32, i32) {
    %c0_i32 = arith.constant 0 : i32
    %c0_i32_0 = arith.constant 0 : i32
    %c0_i32_1 = arith.constant 0 : i32
    return %c0_i32, %c0_i32_0 : i32, i32
  }
  func.func @transform_5(%arg0: i32, %arg1: i32) -> (i32, i32) {
    %c0_i32 = arith.constant 0 : i32
    %c0_i32_0 = arith.constant 0 : i32
    %c0_i32_1 = arith.constant 0 : i32
    return %c0_i32, %c0_i32_0 : i32, i32
  }
  func.func @transform_6(%arg0: i32, %arg1: i32) -> (i32, i32, i32) {
    %c0_i32 = arith.constant 0 : i32
    %c0_i32_0 = arith.constant 0 : i32
    return %arg0, %c0_i32, %arg1 : i32, i32, i32
  }
}

module attributes {stable_mosaic.version = 11 : i64} {
  func.func @_conv_bn_act_kernel(%arg0: i32, %arg1: i32, %arg2: memref<1x32x8xbf16, #tpu.memory_space<vmem>>, %arg3: memref<1x32x8xbf16, #tpu.memory_space<vmem>>, %arg4: memref<32x32xbf16, #tpu.memory_space<vmem>>, %arg5: memref<32x1xf32, #tpu.memory_space<vmem>>, %arg6: memref<32x1xf32, #tpu.memory_space<vmem>>, %arg7: memref<1x32x8xbf16, #tpu.memory_space<vmem>>) attributes {dimension_semantics = [#tpu.dimension_semantics<parallel>, #tpu.dimension_semantics<parallel>], iteration_bounds = array<i64: 2, 1>, scalar_prefetch = 0 : i64, scratch_operands = 0 : i64, tpu.core_type = #tpu.core_type<tc>, window_params = [{transform_indices = @transform_0, window_bounds = array<i64: 1, 32, 8>}, {transform_indices = @transform_1, window_bounds = array<i64: 1, 32, 8>}, {pipeline_mode = #tpu.pipeline_mode<synchronous>, transform_indices = @transform_2, window_bounds = array<i64: 32, 32>}, {pipeline_mode = #tpu.pipeline_mode<synchronous>, transform_indices = @transform_3, window_bounds = array<i64: 32, 1>}, {pipeline_mode = #tpu.pipeline_mode<synchronous>, transform_indices = @transform_4, window_bounds = array<i64: 32, 1>}, {transform_indices = @transform_5, window_bounds = array<i64: 1, 32, 8>}]} {
    %c0 = arith.constant 0 : index
    %c0_0 = arith.constant 0 : index
    %c0_1 = arith.constant 0 : index
    %0 = vector.load %arg2[%c0, %c0_0, %c0_1] : memref<1x32x8xbf16, #tpu.memory_space<vmem>>, vector<1x32x8xbf16>
    %1 = vector.shape_cast %0 : vector<1x32x8xbf16> to vector<32x8xbf16>
    %c0_2 = arith.constant 0 : index
    %c0_3 = arith.constant 0 : index
    %c0_4 = arith.constant 0 : index
    %2 = vector.load %arg3[%c0_2, %c0_3, %c0_4] : memref<1x32x8xbf16, #tpu.memory_space<vmem>>, vector<1x32x8xbf16>
    %3 = vector.shape_cast %2 : vector<1x32x8xbf16> to vector<32x8xbf16>
    %4 = arith.addf %1, %3 : vector<32x8xbf16>
    %c0_5 = arith.constant 0 : index
    %c0_6 = arith.constant 0 : index
    %5 = vector.load %arg4[%c0_5, %c0_6] : memref<32x32xbf16, #tpu.memory_space<vmem>>, vector<32x32xbf16>
    %cst = arith.constant dense<0.000000e+00> : vector<32x8xf32>
    %6 = tpu.matmul %5, %4, %cst {dimension_numbers = #tpu.dot_dimension_numbers<[1], [0], [0], [1], [0, 0, 1, 1], [], []>} : vector<32x32xbf16>, vector<32x8xbf16>, vector<32x8xf32> -> vector<32x8xf32>
    %c0_7 = arith.constant 0 : index
    %c0_8 = arith.constant 0 : index
    %7 = vector.load %arg5[%c0_7, %c0_8] : memref<32x1xf32, #tpu.memory_space<vmem>>, vector<32x1xf32>
    %8 = vector.broadcast %7 : vector<32x1xf32> to vector<32x8xf32>
    %9 = arith.mulf %6, %8 : vector<32x8xf32>
    %c0_9 = arith.constant 0 : index
    %c0_10 = arith.constant 0 : index
    %10 = vector.load %arg6[%c0_9, %c0_10] : memref<32x1xf32, #tpu.memory_space<vmem>>, vector<32x1xf32>
    %11 = vector.broadcast %10 : vector<32x1xf32> to vector<32x8xf32>
    %12 = arith.addf %9, %11 : vector<32x8xf32>
    %13 = arith.truncf %12 : vector<32x8xf32> to vector<32x8xbf16>
    %c0_11 = arith.constant 0 : index
    %c0_12 = arith.constant 0 : index
    %c0_13 = arith.constant 0 : index
    %14 = vector.load %arg7[%c0_11, %c0_12, %c0_13] : memref<1x32x8xbf16, #tpu.memory_space<vmem>>, vector<1x32x8xbf16>
    %15 = vector.shape_cast %14 : vector<1x32x8xbf16> to vector<32x8xbf16>
    %16 = vector.shape_cast %13 : vector<32x8xbf16> to vector<1x32x8xbf16>
    tpu.vector_store %arg7[%c0_11, %c0_12, %c0_13], %16 {strides = array<i32>} : memref<1x32x8xbf16, #tpu.memory_space<vmem>>, vector<1x32x8xbf16>,
    return
  }
  func.func @transform_0(%arg0: i32, %arg1: i32) -> (i32, i32, i32) {
    %c0_i32 = arith.constant 0 : i32
    %c0_i32_0 = arith.constant 0 : i32
    return %arg0, %c0_i32, %arg1 : i32, i32, i32
  }
  func.func @transform_1(%arg0: i32, %arg1: i32) -> (i32, i32, i32) {
    %c0_i32 = arith.constant 0 : i32
    %c0_i32_0 = arith.constant 0 : i32
    return %arg0, %c0_i32, %arg1 : i32, i32, i32
  }
  func.func @transform_2(%arg0: i32, %arg1: i32) -> (i32, i32) {
    %c0_i32 = arith.constant 0 : i32
    %c0_i32_0 = arith.constant 0 : i32
    %c0_i32_1 = arith.constant 0 : i32
    return %c0_i32, %c0_i32_0 : i32, i32
  }
  func.func @transform_3(%arg0: i32, %arg1: i32) -> (i32, i32) {
    %c0_i32 = arith.constant 0 : i32
    %c0_i32_0 = arith.constant 0 : i32
    %c0_i32_1 = arith.constant 0 : i32
    return %c0_i32, %c0_i32_0 : i32, i32
  }
  func.func @transform_4(%arg0: i32, %arg1: i32) -> (i32, i32) {
    %c0_i32 = arith.constant 0 : i32
    %c0_i32_0 = arith.constant 0 : i32
    %c0_i32_1 = arith.constant 0 : i32
    return %c0_i32, %c0_i32_0 : i32, i32
  }
  func.func @transform_5(%arg0: i32, %arg1: i32) -> (i32, i32, i32) {
    %c0_i32 = arith.constant 0 : i32
    %c0_i32_0 = arith.constant 0 : i32
    return %arg0, %c0_i32, %arg1 : i32, i32, i32
  }
}

module attributes {stable_mosaic.version = 11 : i64} {
  func.func @_seg_head_kernel(%arg0: i32, %arg1: i32, %arg2: memref<1x32x16xbf16, #tpu.memory_space<vmem>>, %arg3: memref<1x32x16xbf16, #tpu.memory_space<vmem>>, %arg4: memref<512x32xbf16, #tpu.memory_space<vmem>>, %arg5: memref<512x1xf32, #tpu.memory_space<vmem>>, %arg6: memref<512x1xf32, #tpu.memory_space<vmem>>, %arg7: memref<256x512xbf16, #tpu.memory_space<vmem>>, %arg8: memref<256x1xf32, #tpu.memory_space<vmem>>, %arg9: memref<256x1xf32, #tpu.memory_space<vmem>>, %arg10: memref<128x256xbf16, #tpu.memory_space<vmem>>, %arg11: memref<128x1xf32, #tpu.memory_space<vmem>>, %arg12: memref<128x1xf32, #tpu.memory_space<vmem>>, %arg13: memref<5x128xbf16, #tpu.memory_space<vmem>>, %arg14: memref<5x1xf32, #tpu.memory_space<vmem>>, %arg15: memref<1x5x16xf32, #tpu.memory_space<vmem>>) attributes {dimension_semantics = [#tpu.dimension_semantics<parallel>, #tpu.dimension_semantics<parallel>], iteration_bounds = array<i64: 2, 1>, scalar_prefetch = 0 : i64, scratch_operands = 0 : i64, tpu.core_type = #tpu.core_type<tc>, window_params = [{transform_indices = @transform_0, window_bounds = array<i64: 1, 32, 16>}, {transform_indices = @transform_1, window_bounds = array<i64: 1, 32, 16>}, {pipeline_mode = #tpu.pipeline_mode<synchronous>, transform_indices = @transform_2, window_bounds = array<i64: 512, 32>}, {pipeline_mode = #tpu.pipeline_mode<synchronous>, transform_indices = @transform_3, window_bounds = array<i64: 512, 1>}, {pipeline_mode = #tpu.pipeline_mode<synchronous>, transform_indices = @transform_4, window_bounds = array<i64: 512, 1>}, {pipeline_mode = #tpu.pipeline_mode<synchronous>, transform_indices = @transform_5, window_bounds = array<i64: 256, 512>}, {pipeline_mode = #tpu.pipeline_mode<synchronous>, transform_indices = @transform_6, window_bounds = array<i64: 256, 1>}, {pipeline_mode = #tpu.pipeline_mode<synchronous>, transform_indices = @transform_7, window_bounds = array<i64: 256, 1>}, {pipeline_mode = #tpu.pipeline_mode<synchronous>, transform_indices = @transform_8, window_bounds = array<i64: 128, 256>}, {pipeline_mode = #tpu.pipeline_mode<synchronous>, transform_indices = @transform_9, window_bounds = array<i64: 128, 1>}, {pipeline_mode = #tpu.pipeline_mode<synchronous>, transform_indices = @transform_10, window_bounds = array<i64: 128, 1>}, {pipeline_mode = #tpu.pipeline_mode<synchronous>, transform_indices = @transform_11, window_bounds = array<i64: 5, 128>}, {pipeline_mode = #tpu.pipeline_mode<synchronous>, transform_indices = @transform_12, window_bounds = array<i64: 5, 1>}, {transform_indices = @transform_13, window_bounds = array<i64: 1, 5, 16>}]} {
    %c0 = arith.constant 0 : index
    %c0_0 = arith.constant 0 : index
    %c0_1 = arith.constant 0 : index
    %0 = vector.load %arg2[%c0, %c0_0, %c0_1] : memref<1x32x16xbf16, #tpu.memory_space<vmem>>, vector<1x32x16xbf16>
    %1 = vector.shape_cast %0 : vector<1x32x16xbf16> to vector<32x16xbf16>
    %c0_2 = arith.constant 0 : index
    %c0_3 = arith.constant 0 : index
    %c0_4 = arith.constant 0 : index
    %2 = vector.load %arg3[%c0_2, %c0_3, %c0_4] : memref<1x32x16xbf16, #tpu.memory_space<vmem>>, vector<1x32x16xbf16>
    %3 = vector.shape_cast %2 : vector<1x32x16xbf16> to vector<32x16xbf16>
    %4 = arith.addf %1, %3 : vector<32x16xbf16>
    %c0_5 = arith.constant 0 : index
    %c0_6 = arith.constant 0 : index
    %5 = vector.load %arg4[%c0_5, %c0_6] : memref<512x32xbf16, #tpu.memory_space<vmem>>, vector<512x32xbf16>
    %cst = arith.constant dense<0.000000e+00> : vector<512x16xf32>
    %6 = tpu.matmul %5, %4, %cst {dimension_numbers = #tpu.dot_dimension_numbers<[1], [0], [0], [1], [0, 0, 1, 1], [], []>} : vector<512x32xbf16>, vector<32x16xbf16>, vector<512x16xf32> -> vector<512x16xf32>
    %c0_7 = arith.constant 0 : index
    %c0_8 = arith.constant 0 : index
    %7 = vector.load %arg5[%c0_7, %c0_8] : memref<512x1xf32, #tpu.memory_space<vmem>>, vector<512x1xf32>
    %8 = vector.broadcast %7 : vector<512x1xf32> to vector<512x16xf32>
    %9 = arith.mulf %6, %8 : vector<512x16xf32>
    %c0_9 = arith.constant 0 : index
    %c0_10 = arith.constant 0 : index
    %10 = vector.load %arg6[%c0_9, %c0_10] : memref<512x1xf32, #tpu.memory_space<vmem>>, vector<512x1xf32>
    %11 = vector.broadcast %10 : vector<512x1xf32> to vector<512x16xf32>
    %12 = arith.addf %9, %11 : vector<512x16xf32>
    %cst_11 = arith.constant 0.000000e+00 : f32
    %13 = vector.broadcast %cst_11 : f32 to vector<512x16xf32>
    %14 = arith.maximumf %12, %13 : vector<512x16xf32>
    %15 = arith.truncf %14 : vector<512x16xf32> to vector<512x16xbf16>
    %c0_12 = arith.constant 0 : index
    %c0_13 = arith.constant 0 : index
    %16 = vector.load %arg7[%c0_12, %c0_13] : memref<256x512xbf16, #tpu.memory_space<vmem>>, vector<256x512xbf16>
    %cst_14 = arith.constant dense<0.000000e+00> : vector<256x16xf32>
    %17 = tpu.matmul %16, %15, %cst_14 {dimension_numbers = #tpu.dot_dimension_numbers<[1], [0], [0], [1], [0, 0, 1, 1], [], []>} : vector<256x512xbf16>, vector<512x16xbf16>, vector<256x16xf32> -> vector<256x16xf32>
    %c0_15 = arith.constant 0 : index
    %c0_16 = arith.constant 0 : index
    %18 = vector.load %arg8[%c0_15, %c0_16] : memref<256x1xf32, #tpu.memory_space<vmem>>, vector<256x1xf32>
    %19 = vector.broadcast %18 : vector<256x1xf32> to vector<256x16xf32>
    %20 = arith.mulf %17, %19 : vector<256x16xf32>
    %c0_17 = arith.constant 0 : index
    %c0_18 = arith.constant 0 : index
    %21 = vector.load %arg9[%c0_17, %c0_18] : memref<256x1xf32, #tpu.memory_space<vmem>>, vector<256x1xf32>
    %22 = vector.broadcast %21 : vector<256x1xf32> to vector<256x16xf32>
    %23 = arith.addf %20, %22 : vector<256x16xf32>
    %cst_19 = arith.constant 0.000000e+00 : f32
    %24 = vector.broadcast %cst_19 : f32 to vector<256x16xf32>
    %25 = arith.maximumf %23, %24 : vector<256x16xf32>
    %26 = arith.truncf %25 : vector<256x16xf32> to vector<256x16xbf16>
    %c0_20 = arith.constant 0 : index
    %c0_21 = arith.constant 0 : index
    %27 = vector.load %arg10[%c0_20, %c0_21] : memref<128x256xbf16, #tpu.memory_space<vmem>>, vector<128x256xbf16>
    %cst_22 = arith.constant dense<0.000000e+00> : vector<128x16xf32>
    %28 = tpu.matmul %27, %26, %cst_22 {dimension_numbers = #tpu.dot_dimension_numbers<[1], [0], [0], [1], [0, 0, 1, 1], [], []>} : vector<128x256xbf16>, vector<256x16xbf16>, vector<128x16xf32> -> vector<128x16xf32>
    %c0_23 = arith.constant 0 : index
    %c0_24 = arith.constant 0 : index
    %29 = vector.load %arg11[%c0_23, %c0_24] : memref<128x1xf32, #tpu.memory_space<vmem>>, vector<128x1xf32>
    %30 = vector.broadcast %29 : vector<128x1xf32> to vector<128x16xf32>
    %31 = arith.mulf %28, %30 : vector<128x16xf32>
    %c0_25 = arith.constant 0 : index
    %c0_26 = arith.constant 0 : index
    %32 = vector.load %arg12[%c0_25, %c0_26] : memref<128x1xf32, #tpu.memory_space<vmem>>, vector<128x1xf32>
    %33 = vector.broadcast %32 : vector<128x1xf32> to vector<128x16xf32>
    %34 = arith.addf %31, %33 : vector<128x16xf32>
    %cst_27 = arith.constant 0.000000e+00 : f32
    %35 = vector.broadcast %cst_27 : f32 to vector<128x16xf32>
    %36 = arith.maximumf %34, %35 : vector<128x16xf32>
    %37 = arith.truncf %36 : vector<128x16xf32> to vector<128x16xbf16>
    %c0_28 = arith.constant 0 : index
    %c0_29 = arith.constant 0 : index
    %38 = vector.load %arg13[%c0_28, %c0_29] : memref<5x128xbf16, #tpu.memory_space<vmem>>, vector<5x128xbf16>
    %cst_30 = arith.constant dense<0.000000e+00> : vector<5x16xf32>
    %39 = tpu.matmul %38, %37, %cst_30 {dimension_numbers = #tpu.dot_dimension_numbers<[1], [0], [0], [1], [0, 0, 1, 1], [], []>} : vector<5x128xbf16>, vector<128x16xbf16>, vector<5x16xf32> -> vector<5x16xf32>
    %c0_31 = arith.constant 0 : index
    %c0_32 = arith.constant 0 : index
    %40 = vector.load %arg14[%c0_31, %c0_32] : memref<5x1xf32, #tpu.memory_space<vmem>>, vector<5x1xf32>
    %41 = vector.broadcast %40 : vector<5x1xf32> to vector<5x16xf32>
    %42 = arith.addf %39, %41 : vector<5x16xf32>
    %cst_33 = arith.constant dense<0xFF800000> : vector<16xf32>
    %43 = vector.multi_reduction <maximumf>, %42, %cst_33 [0] : vector<5x16xf32> to vector<16xf32>
    %44 = vector.shape_cast %43 : vector<16xf32> to vector<1x16xf32>
    %45 = vector.broadcast %44 : vector<1x16xf32> to vector<5x16xf32>
    %46 = arith.subf %42, %45 : vector<5x16xf32>
    %47 = math.exp %46 : vector<5x16xf32>
    %cst_34 = arith.constant dense<0.000000e+00> : vector<16xf32>
    %48 = vector.multi_reduction <add>, %47, %cst_34 [0] : vector<5x16xf32> to vector<16xf32>
    %49 = vector.shape_cast %48 : vector<16xf32> to vector<1x16xf32>
    %50 = vector.broadcast %49 : vector<1x16xf32> to vector<5x16xf32>
    %51 = arith.divf %47, %50 : vector<5x16xf32>
    %c0_35 = arith.constant 0 : index
    %c0_36 = arith.constant 0 : index
    %c0_37 = arith.constant 0 : index
    %52 = vector.load %arg15[%c0_35, %c0_36, %c0_37] : memref<1x5x16xf32, #tpu.memory_space<vmem>>, vector<1x5x16xf32>
    %53 = vector.shape_cast %52 : vector<1x5x16xf32> to vector<5x16xf32>
    %54 = vector.shape_cast %51 : vector<5x16xf32> to vector<1x5x16xf32>
    tpu.vector_store %arg15[%c0_35, %c0_36, %c0_37], %54 {strides = array<i32>} : memref<1x5x16xf32, #tpu.memory_space<vmem>>, vector<1x5x16xf32>,
    return
  }
  func.func @transform_0(%arg0: i32, %arg1: i32) -> (i32, i32, i32) {
    %c0_i32 = arith.constant 0 : i32
    %c0_i32_0 = arith.constant 0 : i32
    return %arg0, %c0_i32, %arg1 : i32, i32, i32
  }
  func.func @transform_1(%arg0: i32, %arg1: i32) -> (i32, i32, i32) {
    %c0_i32 = arith.constant 0 : i32
    %c0_i32_0 = arith.constant 0 : i32
    return %arg0, %c0_i32, %arg1 : i32, i32, i32
  }
  func.func @transform_2(%arg0: i32, %arg1: i32) -> (i32, i32) {
    %c0_i32 = arith.constant 0 : i32
    %c0_i32_0 = arith.constant 0 : i32
    %c0_i32_1 = arith.constant 0 : i32
    return %c0_i32, %c0_i32_0 : i32, i32
  }
  func.func @transform_3(%arg0: i32, %arg1: i32) -> (i32, i32) {
    %c0_i32 = arith.constant 0 : i32
    %c0_i32_0 = arith.constant 0 : i32
    %c0_i32_1 = arith.constant 0 : i32
    return %c0_i32, %c0_i32_0 : i32, i32
  }
  func.func @transform_4(%arg0: i32, %arg1: i32) -> (i32, i32) {
    %c0_i32 = arith.constant 0 : i32
    %c0_i32_0 = arith.constant 0 : i32
    %c0_i32_1 = arith.constant 0 : i32
    return %c0_i32, %c0_i32_0 : i32, i32
  }
  func.func @transform_5(%arg0: i32, %arg1: i32) -> (i32, i32) {
    %c0_i32 = arith.constant 0 : i32
    %c0_i32_0 = arith.constant 0 : i32
    %c0_i32_1 = arith.constant 0 : i32
    return %c0_i32, %c0_i32_0 : i32, i32
  }
  func.func @transform_6(%arg0: i32, %arg1: i32) -> (i32, i32) {
    %c0_i32 = arith.constant 0 : i32
    %c0_i32_0 = arith.constant 0 : i32
    %c0_i32_1 = arith.constant 0 : i32
    return %c0_i32, %c0_i32_0 : i32, i32
  }
  func.func @transform_7(%arg0: i32, %arg1: i32) -> (i32, i32) {
    %c0_i32 = arith.constant 0 : i32
    %c0_i32_0 = arith.constant 0 : i32
    %c0_i32_1 = arith.constant 0 : i32
    return %c0_i32, %c0_i32_0 : i32, i32
  }
  func.func @transform_8(%arg0: i32, %arg1: i32) -> (i32, i32) {
    %c0_i32 = arith.constant 0 : i32
    %c0_i32_0 = arith.constant 0 : i32
    %c0_i32_1 = arith.constant 0 : i32
    return %c0_i32, %c0_i32_0 : i32, i32
  }
  func.func @transform_9(%arg0: i32, %arg1: i32) -> (i32, i32) {
    %c0_i32 = arith.constant 0 : i32
    %c0_i32_0 = arith.constant 0 : i32
    %c0_i32_1 = arith.constant 0 : i32
    return %c0_i32, %c0_i32_0 : i32, i32
  }
  func.func @transform_10(%arg0: i32, %arg1: i32) -> (i32, i32) {
    %c0_i32 = arith.constant 0 : i32
    %c0_i32_0 = arith.constant 0 : i32
    %c0_i32_1 = arith.constant 0 : i32
    return %c0_i32, %c0_i32_0 : i32, i32
  }
  func.func @transform_11(%arg0: i32, %arg1: i32) -> (i32, i32) {
    %c0_i32 = arith.constant 0 : i32
    %c0_i32_0 = arith.constant 0 : i32
    %c0_i32_1 = arith.constant 0 : i32
    return %c0_i32, %c0_i32_0 : i32, i32
  }
  func.func @transform_12(%arg0: i32, %arg1: i32) -> (i32, i32) {
    %c0_i32 = arith.constant 0 : i32
    %c0_i32_0 = arith.constant 0 : i32
    %c0_i32_1 = arith.constant 0 : i32
    return %c0_i32, %c0_i32_0 : i32, i32
  }
  func.func @transform_13(%arg0: i32, %arg1: i32) -> (i32, i32, i32) {
    %c0_i32 = arith.constant 0 : i32
    %c0_i32_0 = arith.constant 0 : i32
    return %arg0, %c0_i32, %arg1 : i32, i32, i32
  }
}

</mosaic_0001>

<llo_original>
// kernel: ndnet_segmentation_forward.12
$region0: #{ndnet_segmentation_forward.12}
  #allocation0 [shape = 'u32[]', space=smem, size = 0x4, offset = 0x4, fixed_abs, tag = 'smem constant byte address 0x4 - core index']
  #allocation1 [shape = 'u32[144,128]{1,0:T(1,128)}', space=vmem, size = 0x12000, scoped, tag = 'internal scratch']
  %s0 = inlined_call_operand.vmem [shape: bf16[64,16], index: 0, kind: input, shape index: {}]
  %s1 = inlined_call_operand.vmem [shape: bf16[16,8], index: 1, kind: input, shape index: {}]
  %s2 = inlined_call_operand.vmem [shape: f32[1,8], index: 2, kind: input, shape index: {}]
  %s3 = inlined_call_operand.vmem [shape: f32[1,8], index: 3, kind: input, shape index: {}]
  %s4 = inlined_call_operand.vmem [shape: bf16[64,8], index: 4, kind: output, shape index: {}]
  %s5 = sld [smem:[#allocation0]]
  $region26: #{ndnet_segmentation_forward.12} parent=0
    _
  %s7 = ssub.s32 1, %s5
  %s8 = scalar_select 0, %s7, %s5
  // Predicated region
  $region2: #{ndnet_segmentation_forward.12} parent=0 // pred_check
    _
  $region3: #{ndnet_segmentation_forward.12} parent=0 // pred_check_branch
    %10 = sbr.rel (0) target = $region5
  $region4: #{ndnet_segmentation_forward.12} parent=0 // pred_region
    _
  $region5: #{ndnet_segmentation_forward.12} parent=0 // pred_fallthru
    _
  // Predicated region
  $region6: #{ndnet_segmentation_forward.12} parent=0 // pred_check
    _
  $region7: #{ndnet_segmentation_forward.12} parent=0 // pred_check_branch
    %12 = sbr.rel (0) target = $region9
  $region8: #{ndnet_segmentation_forward.12} parent=0 // pred_region
    _
  $region9: #{ndnet_segmentation_forward.12} parent=0 // pred_fallthru
    _
  // Predicated region
  $region10: #{ndnet_segmentation_forward.12} parent=0 // pred_check
    _
  $region11: #{ndnet_segmentation_forward.12} parent=0 // pred_check_branch
    %14 = sbr.rel (0) target = $region13
  $region12: #{ndnet_segmentation_forward.12} parent=0 // pred_region
    _
  $region13: #{ndnet_segmentation_forward.12} parent=0 // pred_fallthru
    _
  // Predicated region
  $region14: #{ndnet_segmentation_forward.12} parent=0 // pred_check
    _
  $region15: #{ndnet_segmentation_forward.12} parent=0 // pred_check_branch
    %16 = sbr.rel (0) target = $region17
  $region16: #{ndnet_segmentation_forward.12} parent=0 // pred_region
    _
  $region17: #{ndnet_segmentation_forward.12} parent=0 // pred_fallthru
    _
  %v18 = vld [vmem:[%s0] sm:$0xf]
  %v19 = vld [vmem:[%s0 + $0x4] sm:$0xf]
  %v20 = vld [vmem:[%s0 + $0x8] sm:$0xf]
  %v21 = vld [vmem:[%s0 + $0xc] sm:$0xf]
  %v22 = vld [vmem:[%s0 + $0x10] sm:$0xf]
  %v23 = vld [vmem:[%s0 + $0x14] sm:$0xf]
  %v24 = vld [vmem:[%s0 + $0x18] sm:$0xf]
  %v25 = vld [vmem:[%s0 + $0x1c] sm:$0xf]
  %v26 = vld [vmem:[%s1] sm:$0xf]
  %v27 = vld [vmem:[%s1 + $0x4] sm:$0xf]
  %v36 = vunpack.c.l.b16 %v18
  %v37 = vunpack.c.l.b16 %v19
  %v38 = vunpack.c.l.b16 %v20
  %v39 = vunpack.c.l.b16 %v21
  %v40 = vunpack.c.l.b16 %v22
  %v41 = vunpack.c.l.b16 %v23
  %v42 = vunpack.c.l.b16 %v24
  %v43 = vunpack.c.l.b16 %v25
  %v44 = vpack.c.b16 %v37, %v36
  %v45 = vpack.c.b16 %v39, %v38
  %v46 = vpack.c.b16 %v41, %v40
  %v47 = vpack.c.b16 %v43, %v42
  %v50 = vunpack.c.l.b16 %v26
  %v51 = vunpack.c.l.b16 %v27
  %v52 = vpack.c.b16 %v51, %v50
  %vm54 = vcmask 130048
  %v56 = vsel %vm54, %v44, 0
  %v59 = vsel %vm54, %v45, 0
  %v62 = vsel %vm54, %v46, 0
  %v65 = vsel %vm54, %v47, 0
  %67 = vmatprep.subr.bf16.mxu0 0
  %68 = vmatpush1.bf16.msra.mxu0 %v52
  %69 = vmatprep.subr.bf16.mxu0 0
  %70 = vmatpush1.bf16.msra.mxu0 0
  %71 = vmatprep.subr.bf16.mxu0 0
  %72 = vmatpush1.bf16.msra.mxu0 0
  %73 = vmatprep.subr.bf16.mxu0 0
  %74 = vmatpush1.bf16.msra.mxu0 0
  %75 = vmatprep.subr.bf16.mxu0 0
  %76 = vmatpush1.bf16.msra.mxu0 0
  %77 = vmatprep.subr.bf16.mxu0 0
  %78 = vmatpush1.bf16.msra.mxu0 0
  %79 = vmatprep.subr.bf16.mxu0 0
  %80 = vmatpush1.bf16.msra.mxu0 0
  %81 = vmatprep.subr.bf16.mxu0 0
  %82 = vmatpush1.bf16.msra.mxu0 0
  %83 = vmatprep.subr.bf16.mxu0 0
  %84 = vmatpush1.bf16.msra.mxu0 0
  %85 = vmatprep.subr.bf16.mxu0 0
  %86 = vmatpush1.bf16.msra.mxu0 0
  %87 = vmatprep.subr.bf16.mxu0 0
  %88 = vmatpush1.bf16.msra.mxu0 0
  %89 = vmatprep.subr.bf16.mxu0 0
  %90 = vmatpush1.bf16.msra.mxu0 0
  %91 = vmatprep.subr.bf16.mxu0 0
  %92 = vmatpush1.bf16.msra.mxu0 0
  %93 = vmatprep.subr.bf16.mxu0 0
  %94 = vmatpush1.bf16.msra.mxu0 0
  %95 = vmatprep.subr.bf16.mxu0 0
  %96 = vmatpush1.bf16.msra.mxu0 0
  %97 = vmatprep.subr.bf16.mxu0 0
  %98 = vmatpush1.bf16.msra.mxu0 0
  %99 = vmatprep.mubr.bf16.mxu0 0
  %100 = vmatmul.mubr.bf16.gmra.mrb[0].mxu0 %v56
  %v101 = vpop.f32.mrb[0].mxu0
  %v102 = vadd.f32 0.0, %v101
  %v103 = vpop.f32.mrb[0].mxu0
  %v104 = vpop.f32.mrb[0].mxu0
  %v105 = vadd.f32 0.0, %v104
  %v106 = vpop.f32.mrb[0].mxu0
  %107 = vmatprep.mubr.bf16.mxu0 0
  %108 = vmatmul.mubr.bf16.gmra.mrb[0].mxu0 %v59
  %v109 = vpop.f32.mrb[0].mxu0
  %v110 = vadd.f32 0.0, %v109
  %v111 = vpop.f32.mrb[0].mxu0
  %v112 = vpop.f32.mrb[0].mxu0
  %v113 = vadd.f32 0.0, %v112
  %v114 = vpop.f32.mrb[0].mxu0
  %115 = vmatprep.mubr.bf16.mxu0 0
  %116 = vmatmul.mubr.bf16.gmra.mrb[0].mxu0 %v62
  %v117 = vpop.f32.mrb[0].mxu0
  %v118 = vadd.f32 0.0, %v117
  %v119 = vpop.f32.mrb[0].mxu0
  %v120 = vpop.f32.mrb[0].mxu0
  %v121 = vadd.f32 0.0, %v120
  %v122 = vpop.f32.mrb[0].mxu0
  %123 = vmatprep.mubr.bf16.mxu0 0
  %124 = vmatmul.mubr.bf16.gmra.mrb[0].mxu0 %v65
  %v125 = vpop.f32.mrb[0].mxu0
  %v126 = vadd.f32 0.0, %v125
  %v127 = vpop.f32.mrb[0].mxu0
  %v128 = vpop.f32.mrb[0].mxu0
  %v129 = vadd.f32 0.0, %v128
  %v130 = vpop.f32.mrb[0].mxu0
  %131 = vdwg.mxu0
  %v132 = vld [vmem:[%s2] sm:$0x1]
  %v134 = vlaneseq
  %v135 = vshrl.u32 %v134, 7
  %v136 = vsub.s32 0, %v135
  %v137 = vrot.slane %v132, %v136
  %v139 = vmul.f32 %v102, %v137
  %v140 = vmul.f32 %v105, %v137
  %v141 = vmul.f32 %v110, %v137
  %v142 = vmul.f32 %v113, %v137
  %v143 = vmul.f32 %v118, %v137
  %v144 = vmul.f32 %v121, %v137
  %v145 = vmul.f32 %v126, %v137
  %v146 = vmul.f32 %v129, %v137
  %v147 = vld [vmem:[%s3] sm:$0x1]
  %v149 = vlaneseq
  %v150 = vshrl.u32 %v149, 7
  %v151 = vsub.s32 0, %v150
  %v152 = vrot.slane %v147, %v151
  %v154 = vadd.f32 %v139, %v152
  %v155 = vadd.f32 %v140, %v152
  %v156 = vadd.f32 %v141, %v152
  %v157 = vadd.f32 %v142, %v152
  %v158 = vadd.f32 %v143, %v152
  %v159 = vadd.f32 %v144, %v152
  %v160 = vadd.f32 %v145, %v152
  %v161 = vadd.f32 %v146, %v152
  %v162 = vmax.f32 %v154, 0.0
  %v163 = vmax.f32 %v155, 0.0
  %v164 = vmax.f32 %v156, 0.0
  %v165 = vmax.f32 %v157, 0.0
  %v166 = vmax.f32 %v158, 0.0
  %v167 = vmax.f32 %v159, 0.0
  %v168 = vmax.f32 %v160, 0.0
  %v169 = vmax.f32 %v161, 0.0
  %v170 = vpack.c.bf16 %v163, %v162
  %v171 = vpack.c.bf16 %v165, %v164
  %v172 = vpack.c.bf16 %v167, %v166
  %v173 = vpack.c.bf16 %v169, %v168
  %v178 = vunpack.c.l.b16 %v170
  %v179 = vunpack.c.h.b16 %v170
  %v180 = vunpack.c.l.b16 %v171
  %v181 = vunpack.c.h.b16 %v171
  %v182 = vunpack.c.l.b16 %v172
  %v183 = vunpack.c.h.b16 %v172
  %v184 = vunpack.c.l.b16 %v173
  %v185 = vunpack.c.h.b16 %v173
  %v186 = vpack.c.b16 %v178, %v178
  %v187 = vpack.c.b16 %v179, %v179
  %v188 = vpack.c.b16 %v180, %v180
  %v189 = vpack.c.b16 %v181, %v181
  %v190 = vpack.c.b16 %v182, %v182
  %v191 = vpack.c.b16 %v183, %v183
  %v192 = vpack.c.b16 %v184, %v184
  %v193 = vpack.c.b16 %v185, %v185
  %vm202 = vcmask 60416
  %203 = vst.msk [vmem:[%s4] sm:$0xf] %vm202, %v186
  %204 = vst.msk [vmem:[%s4 + $0x4] sm:$0xf] %vm202, %v187
  %205 = vst.msk [vmem:[%s4 + $0x8] sm:$0xf] %vm202, %v188
  %206 = vst.msk [vmem:[%s4 + $0xc] sm:$0xf] %vm202, %v189
  %207 = vst.msk [vmem:[%s4 + $0x10] sm:$0xf] %vm202, %v190
  %208 = vst.msk [vmem:[%s4 + $0x14] sm:$0xf] %vm202, %v191
  %209 = vst.msk [vmem:[%s4 + $0x18] sm:$0xf] %vm202, %v192
  %210 = vst.msk [vmem:[%s4 + $0x1c] sm:$0xf] %vm202, %v193
  // Predicated region
  $region18: #{ndnet_segmentation_forward.12} parent=0 // pred_check
    _
  $region19: #{ndnet_segmentation_forward.12} parent=0 // pred_check_branch
    %212 = sbr.rel (0) target = $region21
  $region20: #{ndnet_segmentation_forward.12} parent=0 // pred_region
    _
  $region21: #{ndnet_segmentation_forward.12} parent=0 // pred_fallthru
    _
  // Predicated region
  $region22: #{ndnet_segmentation_forward.12} parent=0 // pred_check
    _
  $region23: #{ndnet_segmentation_forward.12} parent=0 // pred_check_branch
    %214 = sbr.rel (0) target = $region25
  $region24: #{ndnet_segmentation_forward.12} parent=0 // pred_region
    _
  $region25: #{ndnet_segmentation_forward.12} parent=0 // pred_fallthru
    _

// kernel: ndnet_segmentation_forward.11
$region0: #{ndnet_segmentation_forward.11}
  #allocation0 [shape = 'u32[]', space=smem, size = 0x4, offset = 0x4, fixed_abs, tag = 'smem constant byte address 0x4 - core index']
  #allocation1 [shape = 'u32[144,128]{1,0:T(1,128)}', space=vmem, size = 0x12000, scoped, tag = 'internal scratch']
  %s0 = inlined_call_operand.vmem [shape: bf16[2,64,16], index: 0, kind: input, shape index: {}]
  %s1 = inlined_call_operand.vmem [shape: bf16[32,64], index: 1, kind: input, shape index: {}]
  %s2 = inlined_call_operand.vmem [shape: f32[32,1], index: 2, kind: input, shape index: {}]
  %s3 = inlined_call_operand.vmem [shape: f32[32,1], index: 3, kind: input, shape index: {}]
  %s4 = inlined_call_operand.vmem [shape: bf16[2,32,16], index: 4, kind: output, shape index: {}]
  %s5 = sld [smem:[#allocation0]]
  $region49: #{ndnet_segmentation_forward.11} parent=0
    _
  %s7 = ssub.s32 1, %s5
  %s8 = scalar_select 0, %s7, %s5
  loop: start=0, step=1, limit=4
  $region2: #{ndnet_segmentation_forward.11} parent=0 // loop_pre_header
    _
  $region3: #{ndnet_segmentation_forward.11} parent=0 // loop_header
    %s10 = sphi 0, %s14
    %p11 = scmp.ge.s32.totalorder %s10, 4
    %s17 = sphi 0, %s29
    %s18 = sphi 0, %s25
    %s19 = sphi 0, %s17
    %s20 = sphi 0, %s18
    %s21 = sphi 0, %s19
    %s22 = sphi 0, %s20
    %s34 = sphi 0, %s36
    %s37 = sphi 0, %s34
    %s38 = sphi 0, %s37
    %s54 = sphi 0, %s38
    %s58 = sphi 0, %s58
    %s60 = sphi 0, %s58
    %s61 = sphi 0, %s60
    %s75 = sphi 0, %s61
    %s79 = sphi 0, %s79
    %s81 = sphi 0, %s79
    %s82 = sphi 0, %s81
    %s96 = sphi 0, %s82
    %s100 = sphi 0, %s100
    %s102 = sphi 0, %s100
    %s103 = sphi 0, %s102
    %s117 = sphi 0, %s103
    %s125 = sphi 0, %s127
    %s128 = sphi 0, %s125
    %s129 = sphi 0, %s128
    %s145 = sphi 0, %s129
  $region4: #{ndnet_segmentation_forward.11} parent=0 // loop_header_branch
    %13 = sbr.rel (%p11) target = $region8
  $region5: #{ndnet_segmentation_forward.11} parent=0 // loop_body
    %s15 = ssub.s32 %s10, 1
    %s16 = ssub.s32 %s10, 2
    %s23 = sadd.s32 1, %s18
    %p24 = scmp.ge.s32.totalorder %s23, 1
    %s25 = scalar_select %p24, 0, %s23
    %s26 = sadd.s32 1, %s17
    %s27 = scalar_select %p24, %s26, %s17
    %p28 = scmp.ge.s32.totalorder %s27, 2
    %s29 = scalar_select %p28, 0, %s27
    %s30 = ssub.s32 %s17, %s29
    %s31 = ssub.s32 %s18, %s25
    %s32 = sor.u32 %s30, %s31
    %p33 = scmp.eq.s32.totalorder %s32, 0
    %s35 = sadd.s32 %s34, 1
    %s36 = scalar_select %p33, %s34, %s35
    %p39 = pneg %p33
    %p40 = scmp.eq.s32.totalorder %s10, 1
    %p41 = por %p39, %p40
    %p42 = scmp.ne.s32.totalorder %s34, %s37
    %p43 = scmp.eq.s32.totalorder %s10, 0
    %p44 = por %p42, %p43
    %p45 = scmp.ne.s32.totalorder %s34, %s37
    %p46 = scmp.eq.s32.totalorder %s15, 1
    %p47 = por %p45, %p46
    %p48 = scmp.ne.s32.totalorder %s37, %s38
    %p49 = scmp.eq.s32.totalorder %s15, 0
    %p50 = por %p48, %p49
    %p51 = scmp.ne.s32.totalorder %s37, %s38
    %p52 = scmp.eq.s32.totalorder %s16, 1
    %p53 = por %p51, %p52
    %p55 = scmp.ne.s32.totalorder %s38, %s54
    %p56 = scmp.eq.s32.totalorder %s16, 0
    %p57 = por %p55, %p56
    %s59 = sadd.s32 %s58, 1
    %p62 = scmp.eq.s32.totalorder %s10, 1
    %p63 = scmp.ne.s32.totalorder %s58, %s60
    %p64 = scmp.eq.s32.totalorder %s10, 0
    %p65 = por %p63, %p64
    %p66 = scmp.ne.s32.totalorder %s58, %s60
    %p67 = scmp.eq.s32.totalorder %s15, 1
    %p68 = por %p66, %p67
    %p69 = scmp.ne.s32.totalorder %s60, %s61
    %p70 = scmp.eq.s32.totalorder %s15, 0
    %p71 = por %p69, %p70
    %p72 = scmp.ne.s32.totalorder %s60, %s61
    %p73 = scmp.eq.s32.totalorder %s16, 1
    %p74 = por %p72, %p73
    %p76 = scmp.ne.s32.totalorder %s61, %s75
    %p77 = scmp.eq.s32.totalorder %s16, 0
    %p78 = por %p76, %p77
    %s80 = sadd.s32 %s79, 1
    %p83 = scmp.eq.s32.totalorder %s10, 1
    %p84 = scmp.ne.s32.totalorder %s79, %s81
    %p85 = scmp.eq.s32.totalorder %s10, 0
    %p86 = por %p84, %p85
    %p87 = scmp.ne.s32.totalorder %s79, %s81
    %p88 = scmp.eq.s32.totalorder %s15, 1
    %p89 = por %p87, %p88
    %p90 = scmp.ne.s32.totalorder %s81, %s82
    %p91 = scmp.eq.s32.totalorder %s15, 0
    %p92 = por %p90, %p91
    %p93 = scmp.ne.s32.totalorder %s81, %s82
    %p94 = scmp.eq.s32.totalorder %s16, 1
    %p95 = por %p93, %p94
    %p97 = scmp.ne.s32.totalorder %s82, %s96
    %p98 = scmp.eq.s32.totalorder %s16, 0
    %p99 = por %p97, %p98
    %s101 = sadd.s32 %s100, 1
    %p104 = scmp.eq.s32.totalorder %s10, 1
    %p105 = scmp.ne.s32.totalorder %s100, %s102
    %p106 = scmp.eq.s32.totalorder %s10, 0
    %p107 = por %p105, %p106
    %p108 = scmp.ne.s32.totalorder %s100, %s102
    %p109 = scmp.eq.s32.totalorder %s15, 1
    %p110 = por %p108, %p109
    %p111 = scmp.ne.s32.totalorder %s102, %s103
    %p112 = scmp.eq.s32.totalorder %s15, 0
    %p113 = por %p111, %p112
    %p114 = scmp.ne.s32.totalorder %s102, %s103
    %p115 = scmp.eq.s32.totalorder %s16, 1
    %p116 = por %p114, %p115
    %p118 = scmp.ne.s32.totalorder %s103, %s117
    %p119 = scmp.eq.s32.totalorder %s16, 0
    %p120 = por %p118, %p119
    %s121 = ssub.s32 %s17, %s29
    %s122 = ssub.s32 %s18, %s25
    %s123 = sor.u32 %s121, %s122
    %p124 = scmp.eq.s32.totalorder %s123, 0
    %s126 = sadd.s32 %s125, 1
    %s127 = scalar_select %p124, %s125, %s126
    %p130 = pneg %p124
    %p131 = scmp.eq.s32.totalorder %s10, 1
    %p132 = por %p130, %p131
    %p133 = scmp.ne.s32.totalorder %s125, %s128
    %p134 = scmp.eq.s32.totalorder %s10, 0
    %p135 = por %p133, %p134
    %p136 = scmp.ne.s32.totalorder %s125, %s128
    %p137 = scmp.eq.s32.totalorder %s15, 1
    %p138 = por %p136, %p137
    %p139 = scmp.ne.s32.totalorder %s128, %s129
    %p140 = scmp.eq.s32.totalorder %s15, 0
    %p141 = por %p139, %p140
    %p142 = scmp.ne.s32.totalorder %s128, %s129
    %p143 = scmp.eq.s32.totalorder %s16, 1
    %p144 = por %p142, %p143
    %p146 = scmp.ne.s32.totalorder %s129, %s145
    %p147 = scmp.eq.s32.totalorder %s16, 0
    %p148 = por %p146, %p147
    %p149 = scmp.le.s32.totalorder 1, %s10
    %p150 = scmp.lt.s32.totalorder %s10, 3
    %p151 = pnand %p149, %p150
    %p152 = pneg %p151
    // Predicated region
    $region9: #{ndnet_segmentation_forward.11} parent=5 // pred_check
      _
    $region10: #{ndnet_segmentation_forward.11} parent=5 // pred_check_branch
      %154 = sbr.rel (%p151) target = $region12
    $region11: #{ndnet_segmentation_forward.11} parent=5 // pred_region
      %s155 = ssub.s32 %s10, 1
      // Predicated region
      $region13: #{ndnet_segmentation_forward.11} parent=11 // pred_check
        %p156 = pneg %p71
      $region14: #{ndnet_segmentation_forward.11} parent=11 // pred_check_branch
        %158 = sbr.rel (%p156) target = $region16
      $region15: #{ndnet_segmentation_forward.11} parent=11 // pred_region
        _
      $region16: #{ndnet_segmentation_forward.11} parent=11 // pred_fallthru
        _
      // Predicated region
      $region17: #{ndnet_segmentation_forward.11} parent=11 // pred_check
        %p159 = pneg %p92
      $region18: #{ndnet_segmentation_forward.11} parent=11 // pred_check_branch
        %161 = sbr.rel (%p159) target = $region20
      $region19: #{ndnet_segmentation_forward.11} parent=11 // pred_region
        _
      $region20: #{ndnet_segmentation_forward.11} parent=11 // pred_fallthru
        _
      // Predicated region
      $region21: #{ndnet_segmentation_forward.11} parent=11 // pred_check
        %p162 = pneg %p113
      $region22: #{ndnet_segmentation_forward.11} parent=11 // pred_check_branch
        %164 = sbr.rel (%p162) target = $region24
      $region23: #{ndnet_segmentation_forward.11} parent=11 // pred_region
        _
      $region24: #{ndnet_segmentation_forward.11} parent=11 // pred_fallthru
        _
    $region12: #{ndnet_segmentation_forward.11} parent=5 // pred_fallthru
      _
    %p165 = scmp.lt.s32.totalorder %s10, 2
    // Predicated region
    $region25: #{ndnet_segmentation_forward.11} parent=5 // pred_check
      %p166 = pneg %p165
    $region26: #{ndnet_segmentation_forward.11} parent=5 // pred_check_branch
      %168 = sbr.rel (%p166) target = $region28
    $region27: #{ndnet_segmentation_forward.11} parent=5 // pred_region
      // Predicated region
      $region29: #{ndnet_segmentation_forward.11} parent=27 // pred_check
        %p169 = pneg %p44
      $region30: #{ndnet_segmentation_forward.11} parent=27 // pred_check_branch
        %171 = sbr.rel (%p169) target = $region32
      $region31: #{ndnet_segmentation_forward.11} parent=27 // pred_region
        %p172 = scmp.lt.s32.totalorder %s17, 1
        %s173 = scalar_select %p172, %s17, 1
        %p174 = scmp.lt.s32.totalorder %s18, 0
        %s175 = scalar_select %p174, %s18, 0
        %s176 = smul.addr %s173, 8
        %s177 = sadd.s32 %s175, %s176
        %s178 = smul.addr %s177, 4
        %s179 = scalar_lea.vmem %s0, %s178
      $region32: #{ndnet_segmentation_forward.11} parent=27 // pred_fallthru
        _
    $region28: #{ndnet_segmentation_forward.11} parent=5 // pred_fallthru
      _
    %p180 = scmp.le.s32.totalorder 1, %s10
    %p181 = scmp.lt.s32.totalorder %s10, 3
    %p182 = pnand %p180, %p181
    %p183 = pneg %p182
    // Predicated region
    $region33: #{ndnet_segmentation_forward.11} parent=5 // pred_check
      _
    $region34: #{ndnet_segmentation_forward.11} parent=5 // pred_check_branch
      %185 = sbr.rel (%p182) target = $region36
    $region35: #{ndnet_segmentation_forward.11} parent=5 // pred_region
      %s186 = ssub.s32 %s10, 1
      %p187 = scmp.lt.s32.totalorder %s19, 1
      %s188 = scalar_select %p187, %s19, 1
      %p189 = scmp.lt.s32.totalorder %s20, 0
      %s190 = scalar_select %p189, %s20, 0
      %s191 = smul.addr %s188, 8
      %s192 = sadd.s32 %s190, %s191
      %s193 = smul.addr %s192, 4
      %s194 = scalar_lea.vmem %s0, %s193
      %p195 = pneg %p50
      %p196 = pneg %p47
      %p197 = pneg %p71
      %p198 = pneg %p68
      %p199 = pneg %p92
      %p200 = pneg %p89
      %p201 = pneg %p113
      %p202 = pneg %p110
      %p203 = pneg %p141
      %p204 = pneg %p138
      %p205 = scmp.lt.s32.totalorder %s19, 1
      %s206 = scalar_select %p205, %s19, 1
      %p207 = scmp.lt.s32.totalorder %s20, 0
      %s208 = scalar_select %p207, %s20, 0
      %s209 = smul.addr %s206, 4
      %s210 = sadd.s32 %s208, %s209
      %s211 = smul.addr %s210, 4
      %s212 = scalar_lea.vmem %s4, %s211
      %p213 = scmp.lt.s32.totalorder %s19, 1
      %s214 = scalar_select %p213, %s19, 1
      %p215 = scmp.lt.s32.totalorder %s20, 0
      %s216 = scalar_select %p215, %s20, 0
      %s217 = smul.addr %s214, 8
      %s218 = sadd.s32 %s216, %s217
      %s219 = smul.addr %s218, 4
      %s220 = scalar_lea.vmem %s0, %s219
      %p221 = scmp.lt.s32.totalorder %s19, 1
      %s222 = scalar_select %p221, %s19, 1
      %p223 = scmp.lt.s32.totalorder %s20, 0
      %s224 = scalar_select %p223, %s20, 0
      %s225 = smul.addr %s222, 4
      %s226 = sadd.s32 %s224, %s225
      %s227 = smul.addr %s226, 4
      %s228 = scalar_lea.vmem %s4, %s227
      %v230 = vld [vmem:[%s220] sm:$0xf]
      %v231 = vld [vmem:[%s220 + $0x4] sm:$0xf]
      %v232 = vld [vmem:[%s220 + $0x8] sm:$0xf]
      %v233 = vld [vmem:[%s220 + $0xc] sm:$0xf]
      %v234 = vld [vmem:[%s220 + $0x10] sm:$0xf]
      %v235 = vld [vmem:[%s220 + $0x14] sm:$0xf]
      %v236 = vld [vmem:[%s220 + $0x18] sm:$0xf]
      %v237 = vld [vmem:[%s220 + $0x1c] sm:$0xf]
      %v238 = vld [vmem:[%s1] sm:$0xf]
      %v239 = vld [vmem:[%s1 + $0x4] sm:$0xf]
      %v240 = vld [vmem:[%s1 + $0x8] sm:$0xf]
      %v241 = vld [vmem:[%s1 + $0xc] sm:$0xf]
      %v246 = vunpack.c.l.b16 %v238
      %v247 = vunpack.c.l.b16 %v239
      %v248 = vunpack.c.l.b16 %v240
      %v249 = vunpack.c.l.b16 %v241
      %v250 = vpack.c.b16 %v247, %v246
      %v251 = vpack.c.b16 %v249, %v248
      %v260 = vunpack.c.l.b16 %v230
      %v261 = vunpack.c.l.b16 %v231
      %v262 = vunpack.c.l.b16 %v232
      %v263 = vunpack.c.l.b16 %v233
      %v264 = vunpack.c.l.b16 %v234
      %v265 = vunpack.c.l.b16 %v235
      %v266 = vunpack.c.l.b16 %v236
      %v267 = vunpack.c.l.b16 %v237
      %v268 = vpack.c.b16 %v261, %v260
      %v269 = vpack.c.b16 %v263, %v262
      %v270 = vpack.c.b16 %v265, %v264
      %v271 = vpack.c.b16 %v267, %v266
      %vm276 = vcmask 523264
      %v278 = vsel %vm276, %v250, 0
      %v281 = vsel %vm276, %v251, 0
      %283 = vmatprep.subr.bf16.mxu0 0
      %284 = vmatpush1.bf16.msra.mxu0 %v268
      %285 = vmatprep.subr.bf16.mxu0 0
      %286 = vmatpush1.bf16.msra.mxu0 %v269
      %287 = vmatprep.subr.bf16.mxu0 0
      %288 = vmatpush1.bf16.msra.mxu0 %v270
      %289 = vmatprep.subr.bf16.mxu0 0
      %290 = vmatpush1.bf16.msra.mxu0 %v271
      %291 = vmatprep.subr.bf16.mxu0 0
      %292 = vmatpush1.bf16.msra.mxu0 0
      %293 = vmatprep.subr.bf16.mxu0 0
      %294 = vmatpush1.bf16.msra.mxu0 0
      %295 = vmatprep.subr.bf16.mxu0 0
      %296 = vmatpush1.bf16.msra.mxu0 0
      %297 = vmatprep.subr.bf16.mxu0 0
      %298 = vmatpush1.bf16.msra.mxu0 0
      %299 = vmatprep.subr.bf16.mxu0 0
      %300 = vmatpush1.bf16.msra.mxu0 0
      %301 = vmatprep.subr.bf16.mxu0 0
      %302 = vmatpush1.bf16.msra.mxu0 0
      %303 = vmatprep.subr.bf16.mxu0 0
      %304 = vmatpush1.bf16.msra.mxu0 0
      %305 = vmatprep.subr.bf16.mxu0 0
      %306 = vmatpush1.bf16.msra.mxu0 0
      %307 = vmatprep.subr.bf16.mxu0 0
      %308 = vmatpush1.bf16.msra.mxu0 0
      %309 = vmatprep.subr.bf16.mxu0 0
      %310 = vmatpush1.bf16.msra.mxu0 0
      %311 = vmatprep.subr.bf16.mxu0 0
      %312 = vmatpush1.bf16.msra.mxu0 0
      %313 = vmatprep.subr.bf16.mxu0 0
      %314 = vmatpush1.bf16.msra.mxu0 0
      %315 = vmatprep.mubr.bf16.mxu0 0
      %316 = vmatmul.mubr.bf16.gmra.mrb[0].mxu0 %v278
      %v317 = vpop.f32.mrb[0].mxu0
      %v318 = vadd.f32 0.0, %v317
      %v319 = vpop.f32.mrb[0].mxu0
      %v320 = vpop.f32.mrb[0].mxu0
      %v321 = vadd.f32 0.0, %v320
      %v322 = vpop.f32.mrb[0].mxu0
      %323 = vmatprep.mubr.bf16.mxu0 0
      %324 = vmatmul.mubr.bf16.gmra.mrb[0].mxu0 %v281
      %v325 = vpop.f32.mrb[0].mxu0
      %v326 = vadd.f32 0.0, %v325
      %v327 = vpop.f32.mrb[0].mxu0
      %v328 = vpop.f32.mrb[0].mxu0
      %v329 = vadd.f32 0.0, %v328
      %v330 = vpop.f32.mrb[0].mxu0
      %331 = vdwg.mxu0
      %v332 = vld [vmem:[%s2] sm:$0xff]
      %v333 = vld [vmem:[%s2 + $0x8] sm:$0xff]
      %v334 = vld [vmem:[%s2 + $0x10] sm:$0xff]
      %v335 = vld [vmem:[%s2 + $0x18] sm:$0xff]
      %337 = vset.pattern.permute.xlu0 0
      %338 = vperm.xlu0 %337, %v332
      %v339 = vpop.permute.xlu0 %338
      %342 = vset.pattern.permute.xlu0 0
      %343 = vperm.xlu0 %342, %v333
      %v344 = vpop.permute.xlu0 %343
      %347 = vset.pattern.permute.xlu0 0
      %348 = vperm.xlu0 %347, %v334
      %v349 = vpop.permute.xlu0 %348
      %352 = vset.pattern.permute.xlu0 0
      %353 = vperm.xlu0 %352, %v335
      %v354 = vpop.permute.xlu0 %353
      %v356 = vmul.f32 %v318, %v339
      %v357 = vmul.f32 %v321, %v344
      %v358 = vmul.f32 %v326, %v349
      %v359 = vmul.f32 %v329, %v354
      %v360 = vld [vmem:[%s3] sm:$0xff]
      %v361 = vld [vmem:[%s3 + $0x8] sm:$0xff]
      %v362 = vld [vmem:[%s3 + $0x10] sm:$0xff]
      %v363 = vld [vmem:[%s3 + $0x18] sm:$0xff]
      %365 = vset.pattern.permute.xlu0 0
      %366 = vperm.xlu0 %365, %v360
      %v367 = vpop.permute.xlu0 %366
      %370 = vset.pattern.permute.xlu0 0
      %371 = vperm.xlu0 %370, %v361
      %v372 = vpop.permute.xlu0 %371
      %375 = vset.pattern.permute.xlu0 0
      %376 = vperm.xlu0 %375, %v362
      %v377 = vpop.permute.xlu0 %376
      %380 = vset.pattern.permute.xlu0 0
      %381 = vperm.xlu0 %380, %v363
      %v382 = vpop.permute.xlu0 %381
      %v384 = vadd.f32 %v356, %v367
      %v385 = vadd.f32 %v357, %v372
      %v386 = vadd.f32 %v358, %v377
      %v387 = vadd.f32 %v359, %v382
      %v388 = vmax.f32 %v384, 0.0
      %v389 = vmax.f32 %v385, 0.0
      %v390 = vmax.f32 %v386, 0.0
      %v391 = vmax.f32 %v387, 0.0
      %v392 = vpack.c.bf16 %v389, %v388
      %v393 = vpack.c.bf16 %v391, %v390
      %v396 = vunpack.c.l.b16 %v392
      %v397 = vunpack.c.h.b16 %v392
      %v398 = vunpack.c.l.b16 %v393
      %v399 = vunpack.c.h.b16 %v393
      %v400 = vpack.c.b16 %v396, %v396
      %v401 = vpack.c.b16 %v397, %v397
      %v402 = vpack.c.b16 %v398, %v398
      %v403 = vpack.c.b16 %v399, %v399
      %vm408 = vcmask 125952
      %409 = vst.msk [vmem:[%s228] sm:$0xf] %vm408, %v400
      %410 = vst.msk [vmem:[%s228 + $0x4] sm:$0xf] %vm408, %v401
      %411 = vst.msk [vmem:[%s228 + $0x8] sm:$0xf] %vm408, %v402
      %412 = vst.msk [vmem:[%s228 + $0xc] sm:$0xf] %vm408, %v403
      %p413 = scmp.lt.s32.totalorder %s19, 1
      %s414 = scalar_select %p413, %s19, 1
      %p415 = scmp.lt.s32.totalorder %s20, 0
      %s416 = scalar_select %p415, %s20, 0
      %s417 = smul.addr %s414, 4
      %s418 = sadd.s32 %s416, %s417
      %s419 = smul.addr %s418, 4
      %s420 = scalar_lea.vmem %s4, %s419
      // Predicated region
      $region37: #{ndnet_segmentation_forward.11} parent=35 // pred_check
        %p421 = pneg %p138
      $region38: #{ndnet_segmentation_forward.11} parent=35 // pred_check_branch
        %423 = sbr.rel (%p421) target = $region40
      $region39: #{ndnet_segmentation_forward.11} parent=35 // pred_region
        _
      $region40: #{ndnet_segmentation_forward.11} parent=35 // pred_fallthru
        _
    $region36: #{ndnet_segmentation_forward.11} parent=5 // pred_fallthru
      _
    %p424 = scmp.le.s32.totalorder 2, %s10
    // Predicated region
    $region41: #{ndnet_segmentation_forward.11} parent=5 // pred_check
      %p425 = pneg %p424
    $region42: #{ndnet_segmentation_forward.11} parent=5 // pred_check_branch
      %427 = sbr.rel (%p425) target = $region44
    $region43: #{ndnet_segmentation_forward.11} parent=5 // pred_region
      %s428 = ssub.s32 %s10, 2
      // Predicated region
      $region45: #{ndnet_segmentation_forward.11} parent=43 // pred_check
        %p429 = pneg %p144
      $region46: #{ndnet_segmentation_forward.11} parent=43 // pred_check_branch
        %431 = sbr.rel (%p429) target = $region48
      $region47: #{ndnet_segmentation_forward.11} parent=43 // pred_region
        %p432 = scmp.lt.s32.totalorder %s21, 1
        %s433 = scalar_select %p432, %s21, 1
        %p434 = scmp.lt.s32.totalorder %s22, 0
        %s435 = scalar_select %p434, %s22, 0
        %s436 = smul.addr %s433, 4
        %s437 = sadd.s32 %s435, %s436
        %s438 = smul.addr %s437, 4
        %s439 = scalar_lea.vmem %s4, %s438
      $region48: #{ndnet_segmentation_forward.11} parent=43 // pred_fallthru
        _
    $region44: #{ndnet_segmentation_forward.11} parent=5 // pred_fallthru
      _
  $region6: #{ndnet_segmentation_forward.11} parent=0 // loop_footer
    %s14 = sadd.s32 1, %s10
  $region7: #{ndnet_segmentation_forward.11} parent=0 // loop_footer_branch
    %9 = sbr.rel target = $region3
  $region8: #{ndnet_segmentation_forward.11} parent=0 // loop_exit
    _

// kernel: ndnet_segmentation_forward.10
$region0: #{ndnet_segmentation_forward.10}
  #allocation0 [shape = 'u32[]', space=smem, size = 0x4, offset = 0x4, fixed_abs, tag = 'smem constant byte address 0x4 - core index']
  #allocation1 [shape = 'u32[144,128]{1,0:T(1,128)}', space=vmem, size = 0x12000, scoped, tag = 'internal scratch']
  %s0 = inlined_call_operand.vmem [shape: f32[2,3,16], index: 0, kind: input, shape index: {}]
  %s1 = inlined_call_operand.vmem [shape: f32[2,9,16], index: 1, kind: input, shape index: {}]
  %s2 = inlined_call_operand.vmem [shape: bf16[64,3], index: 2, kind: input, shape index: {}]
  %s3 = inlined_call_operand.vmem [shape: bf16[64,9], index: 3, kind: input, shape index: {}]
  %s4 = inlined_call_operand.vmem [shape: f32[64,1], index: 4, kind: input, shape index: {}]
  %s5 = inlined_call_operand.vmem [shape: f32[64,1], index: 5, kind: input, shape index: {}]
  %s6 = inlined_call_operand.vmem [shape: bf16[2,64,16], index: 6, kind: output, shape index: {}]
  %s7 = sld [smem:[#allocation0]]
  $region57: #{ndnet_segmentation_forward.10} parent=0
    _
  %s9 = ssub.s32 1, %s7
  %s10 = scalar_select 0, %s9, %s7
  loop: start=0, step=1, limit=4
  $region2: #{ndnet_segmentation_forward.10} parent=0 // loop_pre_header
    _
  $region3: #{ndnet_segmentation_forward.10} parent=0 // loop_header
    %s12 = sphi 0, %s16
    %p13 = scmp.ge.s32.totalorder %s12, 4
    %s19 = sphi 0, %s31
    %s20 = sphi 0, %s27
    %s21 = sphi 0, %s19
    %s22 = sphi 0, %s20
    %s23 = sphi 0, %s21
    %s24 = sphi 0, %s22
    %s36 = sphi 0, %s38
    %s39 = sphi 0, %s36
    %s40 = sphi 0, %s39
    %s56 = sphi 0, %s40
    %s64 = sphi 0, %s66
    %s67 = sphi 0, %s64
    %s68 = sphi 0, %s67
    %s84 = sphi 0, %s68
    %s88 = sphi 0, %s88
    %s90 = sphi 0, %s88
    %s91 = sphi 0, %s90
    %s105 = sphi 0, %s91
    %s109 = sphi 0, %s109
    %s111 = sphi 0, %s109
    %s112 = sphi 0, %s111
    %s126 = sphi 0, %s112
    %s130 = sphi 0, %s130
    %s132 = sphi 0, %s130
    %s133 = sphi 0, %s132
    %s147 = sphi 0, %s133
    %s151 = sphi 0, %s151
    %s153 = sphi 0, %s151
    %s154 = sphi 0, %s153
    %s168 = sphi 0, %s154
    %s176 = sphi 0, %s178
    %s179 = sphi 0, %s176
    %s180 = sphi 0, %s179
    %s196 = sphi 0, %s180
  $region4: #{ndnet_segmentation_forward.10} parent=0 // loop_header_branch
    %15 = sbr.rel (%p13) target = $region8
  $region5: #{ndnet_segmentation_forward.10} parent=0 // loop_body
    %s17 = ssub.s32 %s12, 1
    %s18 = ssub.s32 %s12, 2
    %s25 = sadd.s32 1, %s20
    %p26 = scmp.ge.s32.totalorder %s25, 1
    %s27 = scalar_select %p26, 0, %s25
    %s28 = sadd.s32 1, %s19
    %s29 = scalar_select %p26, %s28, %s19
    %p30 = scmp.ge.s32.totalorder %s29, 2
    %s31 = scalar_select %p30, 0, %s29
    %s32 = ssub.s32 %s19, %s31
    %s33 = ssub.s32 %s20, %s27
    %s34 = sor.u32 %s32, %s33
    %p35 = scmp.eq.s32.totalorder %s34, 0
    %s37 = sadd.s32 %s36, 1
    %s38 = scalar_select %p35, %s36, %s37
    %p41 = pneg %p35
    %p42 = scmp.eq.s32.totalorder %s12, 1
    %p43 = por %p41, %p42
    %p44 = scmp.ne.s32.totalorder %s36, %s39
    %p45 = scmp.eq.s32.totalorder %s12, 0
    %p46 = por %p44, %p45
    %p47 = scmp.ne.s32.totalorder %s36, %s39
    %p48 = scmp.eq.s32.totalorder %s17, 1
    %p49 = por %p47, %p48
    %p50 = scmp.ne.s32.totalorder %s39, %s40
    %p51 = scmp.eq.s32.totalorder %s17, 0
    %p52 = por %p50, %p51
    %p53 = scmp.ne.s32.totalorder %s39, %s40
    %p54 = scmp.eq.s32.totalorder %s18, 1
    %p55 = por %p53, %p54
    %p57 = scmp.ne.s32.totalorder %s40, %s56
    %p58 = scmp.eq.s32.totalorder %s18, 0
    %p59 = por %p57, %p58
    %s60 = ssub.s32 %s19, %s31
    %s61 = ssub.s32 %s20, %s27
    %s62 = sor.u32 %s60, %s61
    %p63 = scmp.eq.s32.totalorder %s62, 0
    %s65 = sadd.s32 %s64, 1
    %s66 = scalar_select %p63, %s64, %s65
    %p69 = pneg %p63
    %p70 = scmp.eq.s32.totalorder %s12, 1
    %p71 = por %p69, %p70
    %p72 = scmp.ne.s32.totalorder %s64, %s67
    %p73 = scmp.eq.s32.totalorder %s12, 0
    %p74 = por %p72, %p73
    %p75 = scmp.ne.s32.totalorder %s64, %s67
    %p76 = scmp.eq.s32.totalorder %s17, 1
    %p77 = por %p75, %p76
    %p78 = scmp.ne.s32.totalorder %s67, %s68
    %p79 = scmp.eq.s32.totalorder %s17, 0
    %p80 = por %p78, %p79
    %p81 = scmp.ne.s32.totalorder %s67, %s68
    %p82 = scmp.eq.s32.totalorder %s18, 1
    %p83 = por %p81, %p82
    %p85 = scmp.ne.s32.totalorder %s68, %s84
    %p86 = scmp.eq.s32.totalorder %s18, 0
    %p87 = por %p85, %p86
    %s89 = sadd.s32 %s88, 1
    %p92 = scmp.eq.s32.totalorder %s12, 1
    %p93 = scmp.ne.s32.totalorder %s88, %s90
    %p94 = scmp.eq.s32.totalorder %s12, 0
    %p95 = por %p93, %p94
    %p96 = scmp.ne.s32.totalorder %s88, %s90
    %p97 = scmp.eq.s32.totalorder %s17, 1
    %p98 = por %p96, %p97
    %p99 = scmp.ne.s32.totalorder %s90, %s91
    %p100 = scmp.eq.s32.totalorder %s17, 0
    %p101 = por %p99, %p100
    %p102 = scmp.ne.s32.totalorder %s90, %s91
    %p103 = scmp.eq.s32.totalorder %s18, 1
    %p104 = por %p102, %p103
    %p106 = scmp.ne.s32.totalorder %s91, %s105
    %p107 = scmp.eq.s32.totalorder %s18, 0
    %p108 = por %p106, %p107
    %s110 = sadd.s32 %s109, 1
    %p113 = scmp.eq.s32.totalorder %s12, 1
    %p114 = scmp.ne.s32.totalorder %s109, %s111
    %p115 = scmp.eq.s32.totalorder %s12, 0
    %p116 = por %p114, %p115
    %p117 = scmp.ne.s32.totalorder %s109, %s111
    %p118 = scmp.eq.s32.totalorder %s17, 1
    %p119 = por %p117, %p118
    %p120 = scmp.ne.s32.totalorder %s111, %s112
    %p121 = scmp.eq.s32.totalorder %s17, 0
    %p122 = por %p120, %p121
    %p123 = scmp.ne.s32.totalorder %s111, %s112
    %p124 = scmp.eq.s32.totalorder %s18, 1
    %p125 = por %p123, %p124
    %p127 = scmp.ne.s32.totalorder %s112, %s126
    %p128 = scmp.eq.s32.totalorder %s18, 0
    %p129 = por %p127, %p128
    %s131 = sadd.s32 %s130, 1
    %p134 = scmp.eq.s32.totalorder %s12, 1
    %p135 = scmp.ne.s32.totalorder %s130, %s132
    %p136 = scmp.eq.s32.totalorder %s12, 0
    %p137 = por %p135, %p136
    %p138 = scmp.ne.s32.totalorder %s130, %s132
    %p139 = scmp.eq.s32.totalorder %s17, 1
    %p140 = por %p138, %p139
    %p141 = scmp.ne.s32.totalorder %s132, %s133
    %p142 = scmp.eq.s32.totalorder %s17, 0
    %p143 = por %p141, %p142
    %p144 = scmp.ne.s32.totalorder %s132, %s133
    %p145 = scmp.eq.s32.totalorder %s18, 1
    %p146 = por %p144, %p145
    %p148 = scmp.ne.s32.totalorder %s133, %s147
    %p149 = scmp.eq.s32.totalorder %s18, 0
    %p150 = por %p148, %p149
    %s152 = sadd.s32 %s151, 1
    %p155 = scmp.eq.s32.totalorder %s12, 1
    %p156 = scmp.ne.s32.totalorder %s151, %s153
    %p157 = scmp.eq.s32.totalorder %s12, 0
    %p158 = por %p156, %p157
    %p159 = scmp.ne.s32.totalorder %s151, %s153
    %p160 = scmp.eq.s32.totalorder %s17, 1
    %p161 = por %p159, %p160
    %p162 = scmp.ne.s32.totalorder %s153, %s154
    %p163 = scmp.eq.s32.totalorder %s17, 0
    %p164 = por %p162, %p163
    %p165 = scmp.ne.s32.totalorder %s153, %s154
    %p166 = scmp.eq.s32.totalorder %s18, 1
    %p167 = por %p165, %p166
    %p169 = scmp.ne.s32.totalorder %s154, %s168
    %p170 = scmp.eq.s32.totalorder %s18, 0
    %p171 = por %p169, %p170
    %s172 = ssub.s32 %s19, %s31
    %s173 = ssub.s32 %s20, %s27
    %s174 = sor.u32 %s172, %s173
    %p175 = scmp.eq.s32.totalorder %s174, 0
    %s177 = sadd.s32 %s176, 1
    %s178 = scalar_select %p175, %s176, %s177
    %p181 = pneg %p175
    %p182 = scmp.eq.s32.totalorder %s12, 1
    %p183 = por %p181, %p182
    %p184 = scmp.ne.s32.totalorder %s176, %s179
    %p185 = scmp.eq.s32.totalorder %s12, 0
    %p186 = por %p184, %p185
    %p187 = scmp.ne.s32.totalorder %s176, %s179
    %p188 = scmp.eq.s32.totalorder %s17, 1
    %p189 = por %p187, %p188
    %p190 = scmp.ne.s32.totalorder %s179, %s180
    %p191 = scmp.eq.s32.totalorder %s17, 0
    %p192 = por %p190, %p191
    %p193 = scmp.ne.s32.totalorder %s179, %s180
    %p194 = scmp.eq.s32.totalorder %s18, 1
    %p195 = por %p193, %p194
    %p197 = scmp.ne.s32.totalorder %s180, %s196
    %p198 = scmp.eq.s32.totalorder %s18, 0
    %p199 = por %p197, %p198
    %p200 = scmp.le.s32.totalorder 1, %s12
    %p201 = scmp.lt.s32.totalorder %s12, 3
    %p202 = pnand %p200, %p201
    %p203 = pneg %p202
    // Predicated region
    $region9: #{ndnet_segmentation_forward.10} parent=5 // pred_check
      _
    $region10: #{ndnet_segmentation_forward.10} parent=5 // pred_check_branch
      %205 = sbr.rel (%p202) target = $region12
    $region11: #{ndnet_segmentation_forward.10} parent=5 // pred_region
      %s206 = ssub.s32 %s12, 1
      // Predicated region
      $region13: #{ndnet_segmentation_forward.10} parent=11 // pred_check
        %p207 = pneg %p101
      $region14: #{ndnet_segmentation_forward.10} parent=11 // pred_check_branch
        %209 = sbr.rel (%p207) target = $region16
      $region15: #{ndnet_segmentation_forward.10} parent=11 // pred_region
        _
      $region16: #{ndnet_segmentation_forward.10} parent=11 // pred_fallthru
        _
      // Predicated region
      $region17: #{ndnet_segmentation_forward.10} parent=11 // pred_check
        %p210 = pneg %p122
      $region18: #{ndnet_segmentation_forward.10} parent=11 // pred_check_branch
        %212 = sbr.rel (%p210) target = $region20
      $region19: #{ndnet_segmentation_forward.10} parent=11 // pred_region
        _
      $region20: #{ndnet_segmentation_forward.10} parent=11 // pred_fallthru
        _
      // Predicated region
      $region21: #{ndnet_segmentation_forward.10} parent=11 // pred_check
        %p213 = pneg %p143
      $region22: #{ndnet_segmentation_forward.10} parent=11 // pred_check_branch
        %215 = sbr.rel (%p213) target = $region24
      $region23: #{ndnet_segmentation_forward.10} parent=11 // pred_region
        _
      $region24: #{ndnet_segmentation_forward.10} parent=11 // pred_fallthru
        _
      // Predicated region
      $region25: #{ndnet_segmentation_forward.10} parent=11 // pred_check
        %p216 = pneg %p164
      $region26: #{ndnet_segmentation_forward.10} parent=11 // pred_check_branch
        %218 = sbr.rel (%p216) target = $region28
      $region27: #{ndnet_segmentation_forward.10} parent=11 // pred_region
        _
      $region28: #{ndnet_segmentation_forward.10} parent=11 // pred_fallthru
        _
    $region12: #{ndnet_segmentation_forward.10} parent=5 // pred_fallthru
      _
    %p219 = scmp.lt.s32.totalorder %s12, 2
    // Predicated region
    $region29: #{ndnet_segmentation_forward.10} parent=5 // pred_check
      %p220 = pneg %p219
    $region30: #{ndnet_segmentation_forward.10} parent=5 // pred_check_branch
      %222 = sbr.rel (%p220) target = $region32
    $region31: #{ndnet_segmentation_forward.10} parent=5 // pred_region
      // Predicated region
      $region33: #{ndnet_segmentation_forward.10} parent=31 // pred_check
        %p223 = pneg %p46
      $region34: #{ndnet_segmentation_forward.10} parent=31 // pred_check_branch
        %225 = sbr.rel (%p223) target = $region36
      $region35: #{ndnet_segmentation_forward.10} parent=31 // pred_region
        %p226 = scmp.lt.s32.totalorder %s19, 1
        %s227 = scalar_select %p226, %s19, 1
        %p228 = scmp.lt.s32.totalorder %s20, 0
        %s229 = scalar_select %p228, %s20, 0
        %s230 = sadd.s32 %s229, %s227
        %s231 = smul.addr %s230, 4
        %s232 = scalar_lea.vmem %s0, %s231
      $region36: #{ndnet_segmentation_forward.10} parent=31 // pred_fallthru
        _
      // Predicated region
      $region37: #{ndnet_segmentation_forward.10} parent=31 // pred_check
        %p233 = pneg %p74
      $region38: #{ndnet_segmentation_forward.10} parent=31 // pred_check_branch
        %235 = sbr.rel (%p233) target = $region40
      $region39: #{ndnet_segmentation_forward.10} parent=31 // pred_region
        %p236 = scmp.lt.s32.totalorder %s19, 1
        %s237 = scalar_select %p236, %s19, 1
        %p238 = scmp.lt.s32.totalorder %s20, 0
        %s239 = scalar_select %p238, %s20, 0
        %s240 = smul.addr %s237, 2
        %s241 = sadd.s32 %s239, %s240
        %s242 = smul.addr %s241, 8
        %s243 = scalar_lea.vmem %s1, %s242
      $region40: #{ndnet_segmentation_forward.10} parent=31 // pred_fallthru
        _
    $region32: #{ndnet_segmentation_forward.10} parent=5 // pred_fallthru
      _
    %p244 = scmp.le.s32.totalorder 1, %s12
    %p245 = scmp.lt.s32.totalorder %s12, 3
    %p246 = pnand %p244, %p245
    %p247 = pneg %p246
    // Predicated region
    $region41: #{ndnet_segmentation_forward.10} parent=5 // pred_check
      _
    $region42: #{ndnet_segmentation_forward.10} parent=5 // pred_check_branch
      %249 = sbr.rel (%p246) target = $region44
    $region43: #{ndnet_segmentation_forward.10} parent=5 // pred_region
      %s250 = ssub.s32 %s12, 1
      %p251 = scmp.lt.s32.totalorder %s21, 1
      %s252 = scalar_select %p251, %s21, 1
      %p253 = scmp.lt.s32.totalorder %s22, 0
      %s254 = scalar_select %p253, %s22, 0
      %s255 = sadd.s32 %s254, %s252
      %s256 = smul.addr %s255, 4
      %s257 = scalar_lea.vmem %s0, %s256
      %p258 = pneg %p52
      %p259 = pneg %p49
      %p260 = scmp.lt.s32.totalorder %s21, 1
      %s261 = scalar_select %p260, %s21, 1
      %p262 = scmp.lt.s32.totalorder %s22, 0
      %s263 = scalar_select %p262, %s22, 0
      %s264 = smul.addr %s261, 2
      %s265 = sadd.s32 %s263, %s264
      %s266 = smul.addr %s265, 8
      %s267 = scalar_lea.vmem %s1, %s266
      %p268 = pneg %p80
      %p269 = pneg %p77
      %p270 = pneg %p101
      %p271 = pneg %p98
      %p272 = pneg %p122
      %p273 = pneg %p119
      %p274 = pneg %p143
      %p275 = pneg %p140
      %p276 = pneg %p164
      %p277 = pneg %p161
      %p278 = pneg %p192
      %p279 = pneg %p189
      %p280 = scmp.lt.s32.totalorder %s21, 1
      %s281 = scalar_select %p280, %s21, 1
      %p282 = scmp.lt.s32.totalorder %s22, 0
      %s283 = scalar_select %p282, %s22, 0
      %s284 = smul.addr %s281, 8
      %s285 = sadd.s32 %s283, %s284
      %s286 = smul.addr %s285, 4
      %s287 = scalar_lea.vmem %s6, %s286
      %p288 = scmp.lt.s32.totalorder %s21, 1
      %s289 = scalar_select %p288, %s21, 1
      %p290 = scmp.lt.s32.totalorder %s22, 0
      %s291 = scalar_select %p290, %s22, 0
      %s292 = sadd.s32 %s291, %s289
      %s293 = smul.addr %s292, 4
      %s294 = scalar_lea.vmem %s0, %s293
      %p295 = scmp.lt.s32.totalorder %s21, 1
      %s296 = scalar_select %p295, %s21, 1
      %p297 = scmp.lt.s32.totalorder %s22, 0
      %s298 = scalar_select %p297, %s22, 0
      %s299 = smul.addr %s296, 2
      %s300 = sadd.s32 %s298, %s299
      %s301 = smul.addr %s300, 8
      %s302 = scalar_lea.vmem %s1, %s301
      %p303 = scmp.lt.s32.totalorder %s21, 1
      %s304 = scalar_select %p303, %s21, 1
      %p305 = scmp.lt.s32.totalorder %s22, 0
      %s306 = scalar_select %p305, %s22, 0
      %s307 = smul.addr %s304, 8
      %s308 = sadd.s32 %s306, %s307
      %s309 = smul.addr %s308, 4
      %s310 = scalar_lea.vmem %s6, %s309
      %v312 = vld [vmem:[%s294] sm:$0x7]
      %v313 = vld [vmem:[%s2] sm:$0xf]
      %v314 = vld [vmem:[%s2 + $0x4] sm:$0xf]
      %v315 = vld [vmem:[%s2 + $0x8] sm:$0xf]
      %v316 = vld [vmem:[%s2 + $0xc] sm:$0xf]
      %v317 = vld [vmem:[%s2 + $0x10] sm:$0xf]
      %v318 = vld [vmem:[%s2 + $0x14] sm:$0xf]
      %v319 = vld [vmem:[%s2 + $0x18] sm:$0xf]
      %v320 = vld [vmem:[%s2 + $0x1c] sm:$0xf]
      %v321 = vpack.c.bf16 %v312, %v312
      %v322 = vld [vmem:[%s302] sm:$0xff]
      %v323 = vld [vmem:[%s302 + $0x8] sm:$0x1]
      %v324 = vld [vmem:[%s3] sm:$0xf]
      %v325 = vld [vmem:[%s3 + $0x4] sm:$0xf]
      %v326 = vld [vmem:[%s3 + $0x8] sm:$0xf]
      %v327 = vld [vmem:[%s3 + $0xc] sm:$0xf]
      %v328 = vld [vmem:[%s3 + $0x10] sm:$0xf]
      %v329 = vld [vmem:[%s3 + $0x14] sm:$0xf]
      %v330 = vld [vmem:[%s3 + $0x18] sm:$0xf]
      %v331 = vld [vmem:[%s3 + $0x1c] sm:$0xf]
      %v332 = vpack.c.bf16 %v323, %v322
      %v341 = vunpack.c.l.b16 %v324
      %v342 = vunpack.c.l.b16 %v325
      %v343 = vunpack.c.l.b16 %v326
      %v344 = vunpack.c.l.b16 %v327
      %v345 = vunpack.c.l.b16 %v328
      %v346 = vunpack.c.l.b16 %v329
      %v347 = vunpack.c.l.b16 %v330
      %v348 = vunpack.c.l.b16 %v331
      %v349 = vpack.c.b16 %v342, %v341
      %v350 = vpack.c.b16 %v344, %v343
      %v351 = vpack.c.b16 %v346, %v345
      %v352 = vpack.c.b16 %v348, %v347
      %vm353 = vcmask 72704
      %v355 = vsel %vm353, %v349, 0
      %v358 = vsel %vm353, %v350, 0
      %v361 = vsel %vm353, %v351, 0
      %v364 = vsel %vm353, %v352, 0
      %vm366 = vcmask 1043456
      %vm367 = vcmask 1044480
      %v368 = vsel %vm366, 4294967295, 65535
      %v369 = vsel %vm367, %v368, 0
      %v371 = vand.u32 %v332, %v369
      %373 = vmatprep.subr.bf16.mxu0 0
      %374 = vmatpush1.bf16.msra.mxu0 %v371
      %375 = vmatprep.subr.bf16.mxu0 0
      %376 = vmatpush1.bf16.msra.mxu0 0
      %377 = vmatprep.subr.bf16.mxu0 0
      %378 = vmatpush1.bf16.msra.mxu0 0
      %379 = vmatprep.subr.bf16.mxu0 0
      %380 = vmatpush1.bf16.msra.mxu0 0
      %381 = vmatprep.subr.bf16.mxu0 0
      %382 = vmatpush1.bf16.msra.mxu0 0
      %383 = vmatprep.subr.bf16.mxu0 0
      %384 = vmatpush1.bf16.msra.mxu0 0
      %385 = vmatprep.subr.bf16.mxu0 0
      %386 = vmatpush1.bf16.msra.mxu0 0
      %387 = vmatprep.subr.bf16.mxu0 0
      %388 = vmatpush1.bf16.msra.mxu0 0
      %389 = vmatprep.subr.bf16.mxu0 0
      %390 = vmatpush1.bf16.msra.mxu0 0
      %391 = vmatprep.subr.bf16.mxu0 0
      %392 = vmatpush1.bf16.msra.mxu0 0
      %393 = vmatprep.subr.bf16.mxu0 0
      %394 = vmatpush1.bf16.msra.mxu0 0
      %395 = vmatprep.subr.bf16.mxu0 0
      %396 = vmatpush1.bf16.msra.mxu0 0
      %397 = vmatprep.subr.bf16.mxu0 0
      %398 = vmatpush1.bf16.msra.mxu0 0
      %399 = vmatprep.subr.bf16.mxu0 0
      %400 = vmatpush1.bf16.msra.mxu0 0
      %401 = vmatprep.subr.bf16.mxu0 0
      %402 = vmatpush1.bf16.msra.mxu0 0
      %403 = vmatprep.subr.bf16.mxu0 0
      %404 = vmatpush1.bf16.msra.mxu0 0
      %405 = vmatprep.mubr.bf16.mxu0 0
      %406 = vmatmul.mubr.bf16.gmra.mrb[0].mxu0 %v355
      %v407 = vpop.f32.mrb[0].mxu0
      %v408 = vadd.f32 0.0, %v407
      %v409 = vpop.f32.mrb[0].mxu0
      %v410 = vpop.f32.mrb[0].mxu0
      %v411 = vadd.f32 0.0, %v410
      %v412 = vpop.f32.mrb[0].mxu0
      %413 = vmatprep.mubr.bf16.mxu0 0
      %414 = vmatmul.mubr.bf16.gmra.mrb[0].mxu0 %v358
      %v415 = vpop.f32.mrb[0].mxu0
      %v416 = vadd.f32 0.0, %v415
      %v417 = vpop.f32.mrb[0].mxu0
      %v418 = vpop.f32.mrb[0].mxu0
      %v419 = vadd.f32 0.0, %v418
      %v420 = vpop.f32.mrb[0].mxu0
      %421 = vmatprep.mubr.bf16.mxu0 0
      %422 = vmatmul.mubr.bf16.gmra.mrb[0].mxu0 %v361
      %v423 = vpop.f32.mrb[0].mxu0
      %v424 = vadd.f32 0.0, %v423
      %v425 = vpop.f32.mrb[0].mxu0
      %v426 = vpop.f32.mrb[0].mxu0
      %v427 = vadd.f32 0.0, %v426
      %v428 = vpop.f32.mrb[0].mxu0
      %429 = vmatprep.mubr.bf16.mxu0 0
      %430 = vmatmul.mubr.bf16.gmra.mrb[0].mxu0 %v364
      %v431 = vpop.f32.mrb[0].mxu0
      %v432 = vadd.f32 0.0, %v431
      %v433 = vpop.f32.mrb[0].mxu0
      %v434 = vpop.f32.mrb[0].mxu0
      %v435 = vadd.f32 0.0, %v434
      %v436 = vpop.f32.mrb[0].mxu0
      %437 = vdwg.mxu0
      %v446 = vunpack.c.l.b16 %v313
      %v447 = vunpack.c.l.b16 %v314
      %v448 = vunpack.c.l.b16 %v315
      %v449 = vunpack.c.l.b16 %v316
      %v450 = vunpack.c.l.b16 %v317
      %v451 = vunpack.c.l.b16 %v318
      %v452 = vunpack.c.l.b16 %v319
      %v453 = vunpack.c.l.b16 %v320
      %v454 = vpack.c.b16 %v447, %v446
      %v455 = vpack.c.b16 %v449, %v448
      %v456 = vpack.c.b16 %v451, %v450
      %v457 = vpack.c.b16 %v453, %v452
      %vm458 = vcmask 23552
      %v460 = vsel %vm458, %v454, 0
      %v463 = vsel %vm458, %v455, 0
      %v466 = vsel %vm458, %v456, 0
      %v469 = vsel %vm458, %v457, 0
      %vm471 = vcmask 1040384
      %vm472 = vcmask 1041408
      %v473 = vsel %vm471, 4294967295, 65535
      %v474 = vsel %vm472, %v473, 0
      %v476 = vand.u32 %v321, %v474
      %478 = vmatprep.subr.bf16.mxu0 0
      %479 = vmatpush1.bf16.msra.mxu0 %v476
      %480 = vmatprep.subr.bf16.mxu0 0
      %481 = vmatpush1.bf16.msra.mxu0 0
      %482 = vmatprep.subr.bf16.mxu0 0
      %483 = vmatpush1.bf16.msra.mxu0 0
      %484 = vmatprep.subr.bf16.mxu0 0
      %485 = vmatpush1.bf16.msra.mxu0 0
      %486 = vmatprep.subr.bf16.mxu0 0
      %487 = vmatpush1.bf16.msra.mxu0 0
      %488 = vmatprep.subr.bf16.mxu0 0
      %489 = vmatpush1.bf16.msra.mxu0 0
      %490 = vmatprep.subr.bf16.mxu0 0
      %491 = vmatpush1.bf16.msra.mxu0 0
      %492 = vmatprep.subr.bf16.mxu0 0
      %493 = vmatpush1.bf16.msra.mxu0 0
      %494 = vmatprep.subr.bf16.mxu0 0
      %495 = vmatpush1.bf16.msra.mxu0 0
      %496 = vmatprep.subr.bf16.mxu0 0
      %497 = vmatpush1.bf16.msra.mxu0 0
      %498 = vmatprep.subr.bf16.mxu0 0
      %499 = vmatpush1.bf16.msra.mxu0 0
      %500 = vmatprep.subr.bf16.mxu0 0
      %501 = vmatpush1.bf16.msra.mxu0 0
      %502 = vmatprep.subr.bf16.mxu0 0
      %503 = vmatpush1.bf16.msra.mxu0 0
      %504 = vmatprep.subr.bf16.mxu0 0
      %505 = vmatpush1.bf16.msra.mxu0 0
      %506 = vmatprep.subr.bf16.mxu0 0
      %507 = vmatpush1.bf16.msra.mxu0 0
      %508 = vmatprep.subr.bf16.mxu0 0
      %509 = vmatpush1.bf16.msra.mxu0 0
      %510 = vmatprep.mubr.bf16.mxu0 0
      %511 = vmatmul.mubr.bf16.gmra.mrb[0].mxu0 %v460
      %v512 = vpop.f32.mrb[0].mxu0
      %v513 = vadd.f32 %v408, %v512
      %v514 = vpop.f32.mrb[0].mxu0
      %v515 = vpop.f32.mrb[0].mxu0
      %v516 = vadd.f32 %v411, %v515
      %v517 = vpop.f32.mrb[0].mxu0
      %518 = vmatprep.mubr.bf16.mxu0 0
      %519 = vmatmul.mubr.bf16.gmra.mrb[0].mxu0 %v463
      %v520 = vpop.f32.mrb[0].mxu0
      %v521 = vadd.f32 %v416, %v520
      %v522 = vpop.f32.mrb[0].mxu0
      %v523 = vpop.f32.mrb[0].mxu0
      %v524 = vadd.f32 %v419, %v523
      %v525 = vpop.f32.mrb[0].mxu0
      %526 = vmatprep.mubr.bf16.mxu0 0
      %527 = vmatmul.mubr.bf16.gmra.mrb[0].mxu0 %v466
      %v528 = vpop.f32.mrb[0].mxu0
      %v529 = vadd.f32 %v424, %v528
      %v530 = vpop.f32.mrb[0].mxu0
      %v531 = vpop.f32.mrb[0].mxu0
      %v532 = vadd.f32 %v427, %v531
      %v533 = vpop.f32.mrb[0].mxu0
      %534 = vmatprep.mubr.bf16.mxu0 0
      %535 = vmatmul.mubr.bf16.gmra.mrb[0].mxu0 %v469
      %v536 = vpop.f32.mrb[0].mxu0
      %v537 = vadd.f32 %v432, %v536
      %v538 = vpop.f32.mrb[0].mxu0
      %v539 = vpop.f32.mrb[0].mxu0
      %v540 = vadd.f32 %v435, %v539
      %v541 = vpop.f32.mrb[0].mxu0
      %542 = vdwg.mxu0
      %v543 = vld [vmem:[%s4] sm:$0xff]
      %v544 = vld [vmem:[%s4 + $0x8] sm:$0xff]
      %v545 = vld [vmem:[%s4 + $0x10] sm:$0xff]
      %v546 = vld [vmem:[%s4 + $0x18] sm:$0xff]
      %v547 = vld [vmem:[%s4 + $0x20] sm:$0xff]
      %v548 = vld [vmem:[%s4 + $0x28] sm:$0xff]
      %v549 = vld [vmem:[%s4 + $0x30] sm:$0xff]
      %v550 = vld [vmem:[%s4 + $0x38] sm:$0xff]
      %552 = vset.pattern.permute.xlu0 0
      %553 = vperm.xlu0 %552, %v543
      %v554 = vpop.permute.xlu0 %553
      %557 = vset.pattern.permute.xlu0 0
      %558 = vperm.xlu0 %557, %v544
      %v559 = vpop.permute.xlu0 %558
      %562 = vset.pattern.permute.xlu0 0
      %563 = vperm.xlu0 %562, %v545
      %v564 = vpop.permute.xlu0 %563
      %567 = vset.pattern.permute.xlu0 0
      %568 = vperm.xlu0 %567, %v546
      %v569 = vpop.permute.xlu0 %568
      %572 = vset.pattern.permute.xlu0 0
      %573 = vperm.xlu0 %572, %v547
      %v574 = vpop.permute.xlu0 %573
      %577 = vset.pattern.permute.xlu0 0
      %578 = vperm.xlu0 %577, %v548
      %v579 = vpop.permute.xlu0 %578
      %582 = vset.pattern.permute.xlu0 0
      %583 = vperm.xlu0 %582, %v549
      %v584 = vpop.permute.xlu0 %583
      %587 = vset.pattern.permute.xlu0 0
      %588 = vperm.xlu0 %587, %v550
      %v589 = vpop.permute.xlu0 %588
      %v591 = vmul.f32 %v513, %v554
      %v592 = vmul.f32 %v516, %v559
      %v593 = vmul.f32 %v521, %v564
      %v594 = vmul.f32 %v524, %v569
      %v595 = vmul.f32 %v529, %v574
      %v596 = vmul.f32 %v532, %v579
      %v597 = vmul.f32 %v537, %v584
      %v598 = vmul.f32 %v540, %v589
      %v599 = vld [vmem:[%s5] sm:$0xff]
      %v600 = vld [vmem:[%s5 + $0x8] sm:$0xff]
      %v601 = vld [vmem:[%s5 + $0x10] sm:$0xff]
      %v602 = vld [vmem:[%s5 + $0x18] sm:$0xff]
      %v603 = vld [vmem:[%s5 + $0x20] sm:$0xff]
      %v604 = vld [vmem:[%s5 + $0x28] sm:$0xff]
      %v605 = vld [vmem:[%s5 + $0x30] sm:$0xff]
      %v606 = vld [vmem:[%s5 + $0x38] sm:$0xff]
      %608 = vset.pattern.permute.xlu0 0
      %609 = vperm.xlu0 %608, %v599
      %v610 = vpop.permute.xlu0 %609
      %613 = vset.pattern.permute.xlu0 0
      %614 = vperm.xlu0 %613, %v600
      %v615 = vpop.permute.xlu0 %614
      %618 = vset.pattern.permute.xlu0 0
      %619 = vperm.xlu0 %618, %v601
      %v620 = vpop.permute.xlu0 %619
      %623 = vset.pattern.permute.xlu0 0
      %624 = vperm.xlu0 %623, %v602
      %v625 = vpop.permute.xlu0 %624
      %628 = vset.pattern.permute.xlu0 0
      %629 = vperm.xlu0 %628, %v603
      %v630 = vpop.permute.xlu0 %629
      %633 = vset.pattern.permute.xlu0 0
      %634 = vperm.xlu0 %633, %v604
      %v635 = vpop.permute.xlu0 %634
      %638 = vset.pattern.permute.xlu0 0
      %639 = vperm.xlu0 %638, %v605
      %v640 = vpop.permute.xlu0 %639
      %643 = vset.pattern.permute.xlu0 0
      %644 = vperm.xlu0 %643, %v606
      %v645 = vpop.permute.xlu0 %644
      %v647 = vadd.f32 %v591, %v610
      %v648 = vadd.f32 %v592, %v615
      %v649 = vadd.f32 %v593, %v620
      %v650 = vadd.f32 %v594, %v625
      %v651 = vadd.f32 %v595, %v630
      %v652 = vadd.f32 %v596, %v635
      %v653 = vadd.f32 %v597, %v640
      %v654 = vadd.f32 %v598, %v645
      %v655 = vmax.f32 %v647, 0.0
      %v656 = vmax.f32 %v648, 0.0
      %v657 = vmax.f32 %v649, 0.0
      %v658 = vmax.f32 %v650, 0.0
      %v659 = vmax.f32 %v651, 0.0
      %v660 = vmax.f32 %v652, 0.0
      %v661 = vmax.f32 %v653, 0.0
      %v662 = vmax.f32 %v654, 0.0
      %v663 = vpack.c.bf16 %v656, %v655
      %v664 = vpack.c.bf16 %v658, %v657
      %v665 = vpack.c.bf16 %v660, %v659
      %v666 = vpack.c.bf16 %v662, %v661
      %v671 = vunpack.c.l.b16 %v663
      %v672 = vunpack.c.h.b16 %v663
      %v673 = vunpack.c.l.b16 %v664
      %v674 = vunpack.c.h.b16 %v664
      %v675 = vunpack.c.l.b16 %v665
      %v676 = vunpack.c.h.b16 %v665
      %v677 = vunpack.c.l.b16 %v666
      %v678 = vunpack.c.h.b16 %v666
      %v679 = vpack.c.b16 %v671, %v671
      %v680 = vpack.c.b16 %v672, %v672
      %v681 = vpack.c.b16 %v673, %v673
      %v682 = vpack.c.b16 %v674, %v674
      %v683 = vpack.c.b16 %v675, %v675
      %v684 = vpack.c.b16 %v676, %v676
      %v685 = vpack.c.b16 %v677, %v677
      %v686 = vpack.c.b16 %v678, %v678
      %vm695 = vcmask 125952
      %696 = vst.msk [vmem:[%s310] sm:$0xf] %vm695, %v679
      %697 = vst.msk [vmem:[%s310 + $0x4] sm:$0xf] %vm695, %v680
      %698 = vst.msk [vmem:[%s310 + $0x8] sm:$0xf] %vm695, %v681
      %699 = vst.msk [vmem:[%s310 + $0xc] sm:$0xf] %vm695, %v682
      %700 = vst.msk [vmem:[%s310 + $0x10] sm:$0xf] %vm695, %v683
      %701 = vst.msk [vmem:[%s310 + $0x14] sm:$0xf] %vm695, %v684
      %702 = vst.msk [vmem:[%s310 + $0x18] sm:$0xf] %vm695, %v685
      %703 = vst.msk [vmem:[%s310 + $0x1c] sm:$0xf] %vm695, %v686
      %p704 = scmp.lt.s32.totalorder %s21, 1
      %s705 = scalar_select %p704, %s21, 1
      %p706 = scmp.lt.s32.totalorder %s22, 0
      %s707 = scalar_select %p706, %s22, 0
      %s708 = smul.addr %s705, 8
      %s709 = sadd.s32 %s707, %s708
      %s710 = smul.addr %s709, 4
      %s711 = scalar_lea.vmem %s6, %s710
      // Predicated region
      $region45: #{ndnet_segmentation_forward.10} parent=43 // pred_check
        %p712 = pneg %p189
      $region46: #{ndnet_segmentation_forward.10} parent=43 // pred_check_branch
        %714 = sbr.rel (%p712) target = $region48
      $region47: #{ndnet_segmentation_forward.10} parent=43 // pred_region
        _
      $region48: #{ndnet_segmentation_forward.10} parent=43 // pred_fallthru
        _
    $region44: #{ndnet_segmentation_forward.10} parent=5 // pred_fallthru
      _
    %p715 = scmp.le.s32.totalorder 2, %s12
    // Predicated region
    $region49: #{ndnet_segmentation_forward.10} parent=5 // pred_check
      %p716 = pneg %p715
    $region50: #{ndnet_segmentation_forward.10} parent=5 // pred_check_branch
      %718 = sbr.rel (%p716) target = $region52
    $region51: #{ndnet_segmentation_forward.10} parent=5 // pred_region
      %s719 = ssub.s32 %s12, 2
      // Predicated region
      $region53: #{ndnet_segmentation_forward.10} parent=51 // pred_check
        %p720 = pneg %p195
      $region54: #{ndnet_segmentation_forward.10} parent=51 // pred_check_branch
        %722 = sbr.rel (%p720) target = $region56
      $region55: #{ndnet_segmentation_forward.10} parent=51 // pred_region
        %p723 = scmp.lt.s32.totalorder %s23, 1
        %s724 = scalar_select %p723, %s23, 1
        %p725 = scmp.lt.s32.totalorder %s24, 0
        %s726 = scalar_select %p725, %s24, 0
        %s727 = smul.addr %s724, 8
        %s728 = sadd.s32 %s726, %s727
        %s729 = smul.addr %s728, 4
        %s730 = scalar_lea.vmem %s6, %s729
      $region56: #{ndnet_segmentation_forward.10} parent=51 // pred_fallthru
        _
    $region52: #{ndnet_segmentation_forward.10} parent=5 // pred_fallthru
      _
  $region6: #{ndnet_segmentation_forward.10} parent=0 // loop_footer
    %s16 = sadd.s32 1, %s12
  $region7: #{ndnet_segmentation_forward.10} parent=0 // loop_footer_branch
    %11 = sbr.rel target = $region3
  $region8: #{ndnet_segmentation_forward.10} parent=0 // loop_exit
    _

// kernel: ndnet_segmentation_forward.13
$region0: #{ndnet_segmentation_forward.13}
  #allocation0 [shape = 'u32[]', space=smem, size = 0x4, offset = 0x4, fixed_abs, tag = 'smem constant byte address 0x4 - core index']
  #allocation1 [shape = 'u32[144,128]{1,0:T(1,128)}', space=vmem, size = 0x12000, scoped, tag = 'internal scratch']
  %s0 = inlined_call_operand.vmem [shape: f32[2,3,8], index: 0, kind: input, shape index: {}, may-alias: {0,1}]
  %s1 = inlined_call_operand.vmem [shape: f32[2,3,8], index: 1, kind: input, shape index: {}, may-alias: {0,1}]
  %s2 = inlined_call_operand.vmem [shape: f32[2,9,8], index: 2, kind: input, shape index: {}]
  %s3 = inlined_call_operand.vmem [shape: bf16[2,32,8], index: 3, kind: input, shape index: {}]
  %s4 = inlined_call_operand.vmem [shape: bf16[64,3], index: 4, kind: input, shape index: {}]
  %s5 = inlined_call_operand.vmem [shape: bf16[64,3], index: 5, kind: input, shape index: {}]
  %s6 = inlined_call_operand.vmem [shape: bf16[64,9], index: 6, kind: input, shape index: {}]
  %s7 = inlined_call_operand.vmem [shape: bf16[64,32], index: 7, kind: input, shape index: {}]
  %s8 = inlined_call_operand.vmem [shape: f32[64,1], index: 8, kind: input, shape index: {}]
  %s9 = inlined_call_operand.vmem [shape: f32[64,1], index: 9, kind: input, shape index: {}]
  %s10 = inlined_call_operand.vmem [shape: bf16[2,64,8], index: 10, kind: output, shape index: {}]
  %s11 = sld [smem:[#allocation0]]
  $region73: #{ndnet_segmentation_forward.13} parent=0
    _
  %s13 = ssub.s32 1, %s11
  %s14 = scalar_select 0, %s13, %s11
  loop: start=0, step=1, limit=4
  $region2: #{ndnet_segmentation_forward.13} parent=0 // loop_pre_header
    _
  $region3: #{ndnet_segmentation_forward.13} parent=0 // loop_header
    %s16 = sphi 0, %s20
    %p17 = scmp.ge.s32.totalorder %s16, 4
    %s23 = sphi 0, %s35
    %s24 = sphi 0, %s31
    %s25 = sphi 0, %s23
    %s26 = sphi 0, %s24
    %s27 = sphi 0, %s25
    %s28 = sphi 0, %s26
    %s40 = sphi 0, %s42
    %s43 = sphi 0, %s40
    %s44 = sphi 0, %s43
    %s60 = sphi 0, %s44
    %s68 = sphi 0, %s70
    %s71 = sphi 0, %s68
    %s72 = sphi 0, %s71
    %s88 = sphi 0, %s72
    %s96 = sphi 0, %s98
    %s99 = sphi 0, %s96
    %s100 = sphi 0, %s99
    %s116 = sphi 0, %s100
    %s124 = sphi 0, %s126
    %s127 = sphi 0, %s124
    %s128 = sphi 0, %s127
    %s144 = sphi 0, %s128
    %s148 = sphi 0, %s148
    %s150 = sphi 0, %s148
    %s151 = sphi 0, %s150
    %s165 = sphi 0, %s151
    %s169 = sphi 0, %s169
    %s171 = sphi 0, %s169
    %s172 = sphi 0, %s171
    %s186 = sphi 0, %s172
    %s190 = sphi 0, %s190
    %s192 = sphi 0, %s190
    %s193 = sphi 0, %s192
    %s207 = sphi 0, %s193
    %s211 = sphi 0, %s211
    %s213 = sphi 0, %s211
    %s214 = sphi 0, %s213
    %s228 = sphi 0, %s214
    %s232 = sphi 0, %s232
    %s234 = sphi 0, %s232
    %s235 = sphi 0, %s234
    %s249 = sphi 0, %s235
    %s253 = sphi 0, %s253
    %s255 = sphi 0, %s253
    %s256 = sphi 0, %s255
    %s270 = sphi 0, %s256
    %s278 = sphi 0, %s280
    %s281 = sphi 0, %s278
    %s282 = sphi 0, %s281
    %s298 = sphi 0, %s282
  $region4: #{ndnet_segmentation_forward.13} parent=0 // loop_header_branch
    %19 = sbr.rel (%p17) target = $region8
  $region5: #{ndnet_segmentation_forward.13} parent=0 // loop_body
    %s21 = ssub.s32 %s16, 1
    %s22 = ssub.s32 %s16, 2
    %s29 = sadd.s32 1, %s24
    %p30 = scmp.ge.s32.totalorder %s29, 1
    %s31 = scalar_select %p30, 0, %s29
    %s32 = sadd.s32 1, %s23
    %s33 = scalar_select %p30, %s32, %s23
    %p34 = scmp.ge.s32.totalorder %s33, 2
    %s35 = scalar_select %p34, 0, %s33
    %s36 = ssub.s32 %s23, %s35
    %s37 = ssub.s32 %s24, %s31
    %s38 = sor.u32 %s36, %s37
    %p39 = scmp.eq.s32.totalorder %s38, 0
    %s41 = sadd.s32 %s40, 1
    %s42 = scalar_select %p39, %s40, %s41
    %p45 = pneg %p39
    %p46 = scmp.eq.s32.totalorder %s16, 1
    %p47 = por %p45, %p46
    %p48 = scmp.ne.s32.totalorder %s40, %s43
    %p49 = scmp.eq.s32.totalorder %s16, 0
    %p50 = por %p48, %p49
    %p51 = scmp.ne.s32.totalorder %s40, %s43
    %p52 = scmp.eq.s32.totalorder %s21, 1
    %p53 = por %p51, %p52
    %p54 = scmp.ne.s32.totalorder %s43, %s44
    %p55 = scmp.eq.s32.totalorder %s21, 0
    %p56 = por %p54, %p55
    %p57 = scmp.ne.s32.totalorder %s43, %s44
    %p58 = scmp.eq.s32.totalorder %s22, 1
    %p59 = por %p57, %p58
    %p61 = scmp.ne.s32.totalorder %s44, %s60
    %p62 = scmp.eq.s32.totalorder %s22, 0
    %p63 = por %p61, %p62
    %s64 = ssub.s32 %s23, %s35
    %s65 = ssub.s32 %s24, %s31
    %s66 = sor.u32 %s64, %s65
    %p67 = scmp.eq.s32.totalorder %s66, 0
    %s69 = sadd.s32 %s68, 1
    %s70 = scalar_select %p67, %s68, %s69
    %p73 = pneg %p67
    %p74 = scmp.eq.s32.totalorder %s16, 1
    %p75 = por %p73, %p74
    %p76 = scmp.ne.s32.totalorder %s68, %s71
    %p77 = scmp.eq.s32.totalorder %s16, 0
    %p78 = por %p76, %p77
    %p79 = scmp.ne.s32.totalorder %s68, %s71
    %p80 = scmp.eq.s32.totalorder %s21, 1
    %p81 = por %p79, %p80
    %p82 = scmp.ne.s32.totalorder %s71, %s72
    %p83 = scmp.eq.s32.totalorder %s21, 0
    %p84 = por %p82, %p83
    %p85 = scmp.ne.s32.totalorder %s71, %s72
    %p86 = scmp.eq.s32.totalorder %s22, 1
    %p87 = por %p85, %p86
    %p89 = scmp.ne.s32.totalorder %s72, %s88
    %p90 = scmp.eq.s32.totalorder %s22, 0
    %p91 = por %p89, %p90
    %s92 = ssub.s32 %s23, %s35
    %s93 = ssub.s32 %s24, %s31
    %s94 = sor.u32 %s92, %s93
    %p95 = scmp.eq.s32.totalorder %s94, 0
    %s97 = sadd.s32 %s96, 1
    %s98 = scalar_select %p95, %s96, %s97
    %p101 = pneg %p95
    %p102 = scmp.eq.s32.totalorder %s16, 1
    %p103 = por %p101, %p102
    %p104 = scmp.ne.s32.totalorder %s96, %s99
    %p105 = scmp.eq.s32.totalorder %s16, 0
    %p106 = por %p104, %p105
    %p107 = scmp.ne.s32.totalorder %s96, %s99
    %p108 = scmp.eq.s32.totalorder %s21, 1
    %p109 = por %p107, %p108
    %p110 = scmp.ne.s32.totalorder %s99, %s100
    %p111 = scmp.eq.s32.totalorder %s21, 0
    %p112 = por %p110, %p111
    %p113 = scmp.ne.s32.totalorder %s99, %s100
    %p114 = scmp.eq.s32.totalorder %s22, 1
    %p115 = por %p113, %p114
    %p117 = scmp.ne.s32.totalorder %s100, %s116
    %p118 = scmp.eq.s32.totalorder %s22, 0
    %p119 = por %p117, %p118
    %s120 = ssub.s32 %s23, %s35
    %s121 = ssub.s32 %s24, %s31
    %s122 = sor.u32 %s120, %s121
    %p123 = scmp.eq.s32.totalorder %s122, 0
    %s125 = sadd.s32 %s124, 1
    %s126 = scalar_select %p123, %s124, %s125
    %p129 = pneg %p123
    %p130 = scmp.eq.s32.totalorder %s16, 1
    %p131 = por %p129, %p130
    %p132 = scmp.ne.s32.totalorder %s124, %s127
    %p133 = scmp.eq.s32.totalorder %s16, 0
    %p134 = por %p132, %p133
    %p135 = scmp.ne.s32.totalorder %s124, %s127
    %p136 = scmp.eq.s32.totalorder %s21, 1
    %p137 = por %p135, %p136
    %p138 = scmp.ne.s32.totalorder %s127, %s128
    %p139 = scmp.eq.s32.totalorder %s21, 0
    %p140 = por %p138, %p139
    %p141 = scmp.ne.s32.totalorder %s127, %s128
    %p142 = scmp.eq.s32.totalorder %s22, 1
    %p143 = por %p141, %p142
    %p145 = scmp.ne.s32.totalorder %s128, %s144
    %p146 = scmp.eq.s32.totalorder %s22, 0
    %p147 = por %p145, %p146
    %s149 = sadd.s32 %s148, 1
    %p152 = scmp.eq.s32.totalorder %s16, 1
    %p153 = scmp.ne.s32.totalorder %s148, %s150
    %p154 = scmp.eq.s32.totalorder %s16, 0
    %p155 = por %p153, %p154
    %p156 = scmp.ne.s32.totalorder %s148, %s150
    %p157 = scmp.eq.s32.totalorder %s21, 1
    %p158 = por %p156, %p157
    %p159 = scmp.ne.s32.totalorder %s150, %s151
    %p160 = scmp.eq.s32.totalorder %s21, 0
    %p161 = por %p159, %p160
    %p162 = scmp.ne.s32.totalorder %s150, %s151
    %p163 = scmp.eq.s32.totalorder %s22, 1
    %p164 = por %p162, %p163
    %p166 = scmp.ne.s32.totalorder %s151, %s165
    %p167 = scmp.eq.s32.totalorder %s22, 0
    %p168 = por %p166, %p167
    %s170 = sadd.s32 %s169, 1
    %p173 = scmp.eq.s32.totalorder %s16, 1
    %p174 = scmp.ne.s32.totalorder %s169, %s171
    %p175 = scmp.eq.s32.totalorder %s16, 0
    %p176 = por %p174, %p175
    %p177 = scmp.ne.s32.totalorder %s169, %s171
    %p178 = scmp.eq.s32.totalorder %s21, 1
    %p179 = por %p177, %p178
    %p180 = scmp.ne.s32.totalorder %s171, %s172
    %p181 = scmp.eq.s32.totalorder %s21, 0
    %p182 = por %p180, %p181
    %p183 = scmp.ne.s32.totalorder %s171, %s172
    %p184 = scmp.eq.s32.totalorder %s22, 1
    %p185 = por %p183, %p184
    %p187 = scmp.ne.s32.totalorder %s172, %s186
    %p188 = scmp.eq.s32.totalorder %s22, 0
    %p189 = por %p187, %p188
    %s191 = sadd.s32 %s190, 1
    %p194 = scmp.eq.s32.totalorder %s16, 1
    %p195 = scmp.ne.s32.totalorder %s190, %s192
    %p196 = scmp.eq.s32.totalorder %s16, 0
    %p197 = por %p195, %p196
    %p198 = scmp.ne.s32.totalorder %s190, %s192
    %p199 = scmp.eq.s32.totalorder %s21, 1
    %p200 = por %p198, %p199
    %p201 = scmp.ne.s32.totalorder %s192, %s193
    %p202 = scmp.eq.s32.totalorder %s21, 0
    %p203 = por %p201, %p202
    %p204 = scmp.ne.s32.totalorder %s192, %s193
    %p205 = scmp.eq.s32.totalorder %s22, 1
    %p206 = por %p204, %p205
    %p208 = scmp.ne.s32.totalorder %s193, %s207
    %p209 = scmp.eq.s32.totalorder %s22, 0
    %p210 = por %p208, %p209
    %s212 = sadd.s32 %s211, 1
    %p215 = scmp.eq.s32.totalorder %s16, 1
    %p216 = scmp.ne.s32.totalorder %s211, %s213
    %p217 = scmp.eq.s32.totalorder %s16, 0
    %p218 = por %p216, %p217
    %p219 = scmp.ne.s32.totalorder %s211, %s213
    %p220 = scmp.eq.s32.totalorder %s21, 1
    %p221 = por %p219, %p220
    %p222 = scmp.ne.s32.totalorder %s213, %s214
    %p223 = scmp.eq.s32.totalorder %s21, 0
    %p224 = por %p222, %p223
    %p225 = scmp.ne.s32.totalorder %s213, %s214
    %p226 = scmp.eq.s32.totalorder %s22, 1
    %p227 = por %p225, %p226
    %p229 = scmp.ne.s32.totalorder %s214, %s228
    %p230 = scmp.eq.s32.totalorder %s22, 0
    %p231 = por %p229, %p230
    %s233 = sadd.s32 %s232, 1
    %p236 = scmp.eq.s32.totalorder %s16, 1
    %p237 = scmp.ne.s32.totalorder %s232, %s234
    %p238 = scmp.eq.s32.totalorder %s16, 0
    %p239 = por %p237, %p238
    %p240 = scmp.ne.s32.totalorder %s232, %s234
    %p241 = scmp.eq.s32.totalorder %s21, 1
    %p242 = por %p240, %p241
    %p243 = scmp.ne.s32.totalorder %s234, %s235
    %p244 = scmp.eq.s32.totalorder %s21, 0
    %p245 = por %p243, %p244
    %p246 = scmp.ne.s32.totalorder %s234, %s235
    %p247 = scmp.eq.s32.totalorder %s22, 1
    %p248 = por %p246, %p247
    %p250 = scmp.ne.s32.totalorder %s235, %s249
    %p251 = scmp.eq.s32.totalorder %s22, 0
    %p252 = por %p250, %p251
    %s254 = sadd.s32 %s253, 1
    %p257 = scmp.eq.s32.totalorder %s16, 1
    %p258 = scmp.ne.s32.totalorder %s253, %s255
    %p259 = scmp.eq.s32.totalorder %s16, 0
    %p260 = por %p258, %p259
    %p261 = scmp.ne.s32.totalorder %s253, %s255
    %p262 = scmp.eq.s32.totalorder %s21, 1
    %p263 = por %p261, %p262
    %p264 = scmp.ne.s32.totalorder %s255, %s256
    %p265 = scmp.eq.s32.totalorder %s21, 0
    %p266 = por %p264, %p265
    %p267 = scmp.ne.s32.totalorder %s255, %s256
    %p268 = scmp.eq.s32.totalorder %s22, 1
    %p269 = por %p267, %p268
    %p271 = scmp.ne.s32.totalorder %s256, %s270
    %p272 = scmp.eq.s32.totalorder %s22, 0
    %p273 = por %p271, %p272
    %s274 = ssub.s32 %s23, %s35
    %s275 = ssub.s32 %s24, %s31
    %s276 = sor.u32 %s274, %s275
    %p277 = scmp.eq.s32.totalorder %s276, 0
    %s279 = sadd.s32 %s278, 1
    %s280 = scalar_select %p277, %s278, %s279
    %p283 = pneg %p277
    %p284 = scmp.eq.s32.totalorder %s16, 1
    %p285 = por %p283, %p284
    %p286 = scmp.ne.s32.totalorder %s278, %s281
    %p287 = scmp.eq.s32.totalorder %s16, 0
    %p288 = por %p286, %p287
    %p289 = scmp.ne.s32.totalorder %s278, %s281
    %p290 = scmp.eq.s32.totalorder %s21, 1
    %p291 = por %p289, %p290
    %p292 = scmp.ne.s32.totalorder %s281, %s282
    %p293 = scmp.eq.s32.totalorder %s21, 0
    %p294 = por %p292, %p293
    %p295 = scmp.ne.s32.totalorder %s281, %s282
    %p296 = scmp.eq.s32.totalorder %s22, 1
    %p297 = por %p295, %p296
    %p299 = scmp.ne.s32.totalorder %s282, %s298
    %p300 = scmp.eq.s32.totalorder %s22, 0
    %p301 = por %p299, %p300
    %p302 = scmp.le.s32.totalorder 1, %s16
    %p303 = scmp.lt.s32.totalorder %s16, 3
    %p304 = pnand %p302, %p303
    %p305 = pneg %p304
    // Predicated region
    $region9: #{ndnet_segmentation_forward.13} parent=5 // pred_check
      _
    $region10: #{ndnet_segmentation_forward.13} parent=5 // pred_check_branch
      %307 = sbr.rel (%p304) target = $region12
    $region11: #{ndnet_segmentation_forward.13} parent=5 // pred_region
      %s308 = ssub.s32 %s16, 1
      // Predicated region
      $region13: #{ndnet_segmentation_forward.13} parent=11 // pred_check
        %p309 = pneg %p161
      $region14: #{ndnet_segmentation_forward.13} parent=11 // pred_check_branch
        %311 = sbr.rel (%p309) target = $region16
      $region15: #{ndnet_segmentation_forward.13} parent=11 // pred_region
        _
      $region16: #{ndnet_segmentation_forward.13} parent=11 // pred_fallthru
        _
      // Predicated region
      $region17: #{ndnet_segmentation_forward.13} parent=11 // pred_check
        %p312 = pneg %p182
      $region18: #{ndnet_segmentation_forward.13} parent=11 // pred_check_branch
        %314 = sbr.rel (%p312) target = $region20
      $region19: #{ndnet_segmentation_forward.13} parent=11 // pred_region
        _
      $region20: #{ndnet_segmentation_forward.13} parent=11 // pred_fallthru
        _
      // Predicated region
      $region21: #{ndnet_segmentation_forward.13} parent=11 // pred_check
        %p315 = pneg %p203
      $region22: #{ndnet_segmentation_forward.13} parent=11 // pred_check_branch
        %317 = sbr.rel (%p315) target = $region24
      $region23: #{ndnet_segmentation_forward.13} parent=11 // pred_region
        _
      $region24: #{ndnet_segmentation_forward.13} parent=11 // pred_fallthru
        _
      // Predicated region
      $region25: #{ndnet_segmentation_forward.13} parent=11 // pred_check
        %p318 = pneg %p224
      $region26: #{ndnet_segmentation_forward.13} parent=11 // pred_check_branch
        %320 = sbr.rel (%p318) target = $region28
      $region27: #{ndnet_segmentation_forward.13} parent=11 // pred_region
        _
      $region28: #{ndnet_segmentation_forward.13} parent=11 // pred_fallthru
        _
      // Predicated region
      $region29: #{ndnet_segmentation_forward.13} parent=11 // pred_check
        %p321 = pneg %p245
      $region30: #{ndnet_segmentation_forward.13} parent=11 // pred_check_branch
        %323 = sbr.rel (%p321) target = $region32
      $region31: #{ndnet_segmentation_forward.13} parent=11 // pred_region
        _
      $region32: #{ndnet_segmentation_forward.13} parent=11 // pred_fallthru
        _
      // Predicated region
      $region33: #{ndnet_segmentation_forward.13} parent=11 // pred_check
        %p324 = pneg %p266
      $region34: #{ndnet_segmentation_forward.13} parent=11 // pred_check_branch
        %326 = sbr.rel (%p324) target = $region36
      $region35: #{ndnet_segmentation_forward.13} parent=11 // pred_region
        _
      $region36: #{ndnet_segmentation_forward.13} parent=11 // pred_fallthru
        _
    $region12: #{ndnet_segmentation_forward.13} parent=5 // pred_fallthru
      _
    %p327 = scmp.lt.s32.totalorder %s16, 2
    // Predicated region
    $region37: #{ndnet_segmentation_forward.13} parent=5 // pred_check
      %p328 = pneg %p327
    $region38: #{ndnet_segmentation_forward.13} parent=5 // pred_check_branch
      %330 = sbr.rel (%p328) target = $region40
    $region39: #{ndnet_segmentation_forward.13} parent=5 // pred_region
      // Predicated region
      $region41: #{ndnet_segmentation_forward.13} parent=39 // pred_check
        %p331 = pneg %p50
      $region42: #{ndnet_segmentation_forward.13} parent=39 // pred_check_branch
        %333 = sbr.rel (%p331) target = $region44
      $region43: #{ndnet_segmentation_forward.13} parent=39 // pred_region
        %p334 = scmp.lt.s32.totalorder %s23, 1
        %s335 = scalar_select %p334, %s23, 1
        %p336 = scmp.lt.s32.totalorder %s24, 0
        %s337 = scalar_select %p336, %s24, 0
        %s338 = sadd.s32 %s337, %s335
        %s339 = smul.addr %s338, 4
        %s340 = scalar_lea.vmem %s0, %s339
      $region44: #{ndnet_segmentation_forward.13} parent=39 // pred_fallthru
        _
      // Predicated region
      $region45: #{ndnet_segmentation_forward.13} parent=39 // pred_check
        %p341 = pneg %p78
      $region46: #{ndnet_segmentation_forward.13} parent=39 // pred_check_branch
        %343 = sbr.rel (%p341) target = $region48
      $region47: #{ndnet_segmentation_forward.13} parent=39 // pred_region
        %p344 = scmp.lt.s32.totalorder %s23, 1
        %s345 = scalar_select %p344, %s23, 1
        %p346 = scmp.lt.s32.totalorder %s24, 0
        %s347 = scalar_select %p346, %s24, 0
        %s348 = sadd.s32 %s347, %s345
        %s349 = smul.addr %s348, 4
        %s350 = scalar_lea.vmem %s1, %s349
      $region48: #{ndnet_segmentation_forward.13} parent=39 // pred_fallthru
        _
      // Predicated region
      $region49: #{ndnet_segmentation_forward.13} parent=39 // pred_check
        %p351 = pneg %p106
      $region50: #{ndnet_segmentation_forward.13} parent=39 // pred_check_branch
        %353 = sbr.rel (%p351) target = $region52
      $region51: #{ndnet_segmentation_forward.13} parent=39 // pred_region
        %p354 = scmp.lt.s32.totalorder %s23, 1
        %s355 = scalar_select %p354, %s23, 1
        %p356 = scmp.lt.s32.totalorder %s24, 0
        %s357 = scalar_select %p356, %s24, 0
        %s358 = smul.addr %s355, 2
        %s359 = sadd.s32 %s357, %s358
        %s360 = smul.addr %s359, 8
        %s361 = scalar_lea.vmem %s2, %s360
      $region52: #{ndnet_segmentation_forward.13} parent=39 // pred_fallthru
        _
      // Predicated region
      $region53: #{ndnet_segmentation_forward.13} parent=39 // pred_check
        %p362 = pneg %p134
      $region54: #{ndnet_segmentation_forward.13} parent=39 // pred_check_branch
        %364 = sbr.rel (%p362) target = $region56
      $region55: #{ndnet_segmentation_forward.13} parent=39 // pred_region
        %p365 = scmp.lt.s32.totalorder %s23, 1
        %s366 = scalar_select %p365, %s23, 1
        %p367 = scmp.lt.s32.totalorder %s24, 0
        %s368 = scalar_select %p367, %s24, 0
        %s369 = smul.addr %s366, 4
        %s370 = sadd.s32 %s368, %s369
        %s371 = smul.addr %s370, 4
        %s372 = scalar_lea.vmem %s3, %s371
      $region56: #{ndnet_segmentation_forward.13} parent=39 // pred_fallthru
        _
    $region40: #{ndnet_segmentation_forward.13} parent=5 // pred_fallthru
      _
    %p373 = scmp.le.s32.totalorder 1, %s16
    %p374 = scmp.lt.s32.totalorder %s16, 3
    %p375 = pnand %p373, %p374
    %p376 = pneg %p375
    // Predicated region
    $region57: #{ndnet_segmentation_forward.13} parent=5 // pred_check
      _
    $region58: #{ndnet_segmentation_forward.13} parent=5 // pred_check_branch
      %378 = sbr.rel (%p375) target = $region60
    $region59: #{ndnet_segmentation_forward.13} parent=5 // pred_region
      %s379 = ssub.s32 %s16, 1
      %p380 = scmp.lt.s32.totalorder %s25, 1
      %s381 = scalar_select %p380, %s25, 1
      %p382 = scmp.lt.s32.totalorder %s26, 0
      %s383 = scalar_select %p382, %s26, 0
      %s384 = sadd.s32 %s383, %s381
      %s385 = smul.addr %s384, 4
      %s386 = scalar_lea.vmem %s0, %s385
      %p387 = pneg %p56
      %p388 = pneg %p53
      %p389 = scmp.lt.s32.totalorder %s25, 1
      %s390 = scalar_select %p389, %s25, 1
      %p391 = scmp.lt.s32.totalorder %s26, 0
      %s392 = scalar_select %p391, %s26, 0
      %s393 = sadd.s32 %s392, %s390
      %s394 = smul.addr %s393, 4
      %s395 = scalar_lea.vmem %s1, %s394
      %p396 = pneg %p84
      %p397 = pneg %p81
      %p398 = scmp.lt.s32.totalorder %s25, 1
      %s399 = scalar_select %p398, %s25, 1
      %p400 = scmp.lt.s32.totalorder %s26, 0
      %s401 = scalar_select %p400, %s26, 0
      %s402 = smul.addr %s399, 2
      %s403 = sadd.s32 %s401, %s402
      %s404 = smul.addr %s403, 8
      %s405 = scalar_lea.vmem %s2, %s404
      %p406 = pneg %p112
      %p407 = pneg %p109
      %p408 = scmp.lt.s32.totalorder %s25, 1
      %s409 = scalar_select %p408, %s25, 1
      %p410 = scmp.lt.s32.totalorder %s26, 0
      %s411 = scalar_select %p410, %s26, 0
      %s412 = smul.addr %s409, 4
      %s413 = sadd.s32 %s411, %s412
      %s414 = smul.addr %s413, 4
      %s415 = scalar_lea.vmem %s3, %s414
      %p416 = pneg %p140
      %p417 = pneg %p137
      %p418 = pneg %p161
      %p419 = pneg %p158
      %p420 = pneg %p182
      %p421 = pneg %p179
      %p422 = pneg %p203
      %p423 = pneg %p200
      %p424 = pneg %p224
      %p425 = pneg %p221
      %p426 = pneg %p245
      %p427 = pneg %p242
      %p428 = pneg %p266
      %p429 = pneg %p263
      %p430 = pneg %p294
      %p431 = pneg %p291
      %p432 = scmp.lt.s32.totalorder %s25, 1
      %s433 = scalar_select %p432, %s25, 1
      %p434 = scmp.lt.s32.totalorder %s26, 0
      %s435 = scalar_select %p434, %s26, 0
      %s436 = smul.addr %s433, 8
      %s437 = sadd.s32 %s435, %s436
      %s438 = smul.addr %s437, 4
      %s439 = scalar_lea.vmem %s10, %s438
      %p440 = scmp.lt.s32.totalorder %s25, 1
      %s441 = scalar_select %p440, %s25, 1
      %p442 = scmp.lt.s32.totalorder %s26, 0
      %s443 = scalar_select %p442, %s26, 0
      %s444 = sadd.s32 %s443, %s441
      %s445 = smul.addr %s444, 4
      %s446 = scalar_lea.vmem %s0, %s445
      %p447 = scmp.lt.s32.totalorder %s25, 1
      %s448 = scalar_select %p447, %s25, 1
      %p449 = scmp.lt.s32.totalorder %s26, 0
      %s450 = scalar_select %p449, %s26, 0
      %s451 = sadd.s32 %s450, %s448
      %s452 = smul.addr %s451, 4
      %s453 = scalar_lea.vmem %s1, %s452
      %p454 = scmp.lt.s32.totalorder %s25, 1
      %s455 = scalar_select %p454, %s25, 1
      %p456 = scmp.lt.s32.totalorder %s26, 0
      %s457 = scalar_select %p456, %s26, 0
      %s458 = smul.addr %s455, 2
      %s459 = sadd.s32 %s457, %s458
      %s460 = smul.addr %s459, 8
      %s461 = scalar_lea.vmem %s2, %s460
      %p462 = scmp.lt.s32.totalorder %s25, 1
      %s463 = scalar_select %p462, %s25, 1
      %p464 = scmp.lt.s32.totalorder %s26, 0
      %s465 = scalar_select %p464, %s26, 0
      %s466 = smul.addr %s463, 4
      %s467 = sadd.s32 %s465, %s466
      %s468 = smul.addr %s467, 4
      %s469 = scalar_lea.vmem %s3, %s468
      %p470 = scmp.lt.s32.totalorder %s25, 1
      %s471 = scalar_select %p470, %s25, 1
      %p472 = scmp.lt.s32.totalorder %s26, 0
      %s473 = scalar_select %p472, %s26, 0
      %s474 = smul.addr %s471, 8
      %s475 = sadd.s32 %s473, %s474
      %s476 = smul.addr %s475, 4
      %s477 = scalar_lea.vmem %s10, %s476
      %v479 = vld [vmem:[%s446] sm:$0x7]
      %v480 = vld [vmem:[%s4] sm:$0xf]
      %v481 = vld [vmem:[%s4 + $0x4] sm:$0xf]
      %v482 = vld [vmem:[%s4 + $0x8] sm:$0xf]
      %v483 = vld [vmem:[%s4 + $0xc] sm:$0xf]
      %v484 = vld [vmem:[%s4 + $0x10] sm:$0xf]
      %v485 = vld [vmem:[%s4 + $0x14] sm:$0xf]
      %v486 = vld [vmem:[%s4 + $0x18] sm:$0xf]
      %v487 = vld [vmem:[%s4 + $0x1c] sm:$0xf]
      %v488 = vpack.c.bf16 %v479, %v479
      %v489 = vld [vmem:[%s453] sm:$0x7]
      %v490 = vld [vmem:[%s5] sm:$0xf]
      %v491 = vld [vmem:[%s5 + $0x4] sm:$0xf]
      %v492 = vld [vmem:[%s5 + $0x8] sm:$0xf]
      %v493 = vld [vmem:[%s5 + $0xc] sm:$0xf]
      %v494 = vld [vmem:[%s5 + $0x10] sm:$0xf]
      %v495 = vld [vmem:[%s5 + $0x14] sm:$0xf]
      %v496 = vld [vmem:[%s5 + $0x18] sm:$0xf]
      %v497 = vld [vmem:[%s5 + $0x1c] sm:$0xf]
      %v498 = vpack.c.bf16 %v489, %v489
      %v507 = vunpack.c.l.b16 %v490
      %v508 = vunpack.c.l.b16 %v491
      %v509 = vunpack.c.l.b16 %v492
      %v510 = vunpack.c.l.b16 %v493
      %v511 = vunpack.c.l.b16 %v494
      %v512 = vunpack.c.l.b16 %v495
      %v513 = vunpack.c.l.b16 %v496
      %v514 = vunpack.c.l.b16 %v497
      %v515 = vpack.c.b16 %v508, %v507
      %v516 = vpack.c.b16 %v510, %v509
      %v517 = vpack.c.b16 %v512, %v511
      %v518 = vpack.c.b16 %v514, %v513
      %vm519 = vcmask 23552
      %v521 = vsel %vm519, %v515, 0
      %v524 = vsel %vm519, %v516, 0
      %v527 = vsel %vm519, %v517, 0
      %v530 = vsel %vm519, %v518, 0
      %vm532 = vcmask 1040384
      %vm533 = vcmask 1041408
      %v534 = vsel %vm532, 4294967295, 65535
      %v535 = vsel %vm533, %v534, 0
      %v537 = vand.u32 %v498, %v535
      %539 = vmatprep.subr.bf16.mxu0 0
      %540 = vmatpush1.bf16.msra.mxu0 %v537
      %541 = vmatprep.subr.bf16.mxu0 0
      %542 = vmatpush1.bf16.msra.mxu0 0
      %543 = vmatprep.subr.bf16.mxu0 0
      %544 = vmatpush1.bf16.msra.mxu0 0
      %545 = vmatprep.subr.bf16.mxu0 0
      %546 = vmatpush1.bf16.msra.mxu0 0
      %547 = vmatprep.subr.bf16.mxu0 0
      %548 = vmatpush1.bf16.msra.mxu0 0
      %549 = vmatprep.subr.bf16.mxu0 0
      %550 = vmatpush1.bf16.msra.mxu0 0
      %551 = vmatprep.subr.bf16.mxu0 0
      %552 = vmatpush1.bf16.msra.mxu0 0
      %553 = vmatprep.subr.bf16.mxu0 0
      %554 = vmatpush1.bf16.msra.mxu0 0
      %555 = vmatprep.subr.bf16.mxu0 0
      %556 = vmatpush1.bf16.msra.mxu0 0
      %557 = vmatprep.subr.bf16.mxu0 0
      %558 = vmatpush1.bf16.msra.mxu0 0
      %559 = vmatprep.subr.bf16.mxu0 0
      %560 = vmatpush1.bf16.msra.mxu0 0
      %561 = vmatprep.subr.bf16.mxu0 0
      %562 = vmatpush1.bf16.msra.mxu0 0
      %563 = vmatprep.subr.bf16.mxu0 0
      %564 = vmatpush1.bf16.msra.mxu0 0
      %565 = vmatprep.subr.bf16.mxu0 0
      %566 = vmatpush1.bf16.msra.mxu0 0
      %567 = vmatprep.subr.bf16.mxu0 0
      %568 = vmatpush1.bf16.msra.mxu0 0
      %569 = vmatprep.subr.bf16.mxu0 0
      %570 = vmatpush1.bf16.msra.mxu0 0
      %571 = vmatprep.mubr.bf16.mxu0 0
      %572 = vmatmul.mubr.bf16.gmra.mrb[0].mxu0 %v521
      %v573 = vpop.f32.mrb[0].mxu0
      %v574 = vadd.f32 0.0, %v573
      %v575 = vpop.f32.mrb[0].mxu0
      %v576 = vpop.f32.mrb[0].mxu0
      %v577 = vadd.f32 0.0, %v576
      %v578 = vpop.f32.mrb[0].mxu0
      %579 = vmatprep.mubr.bf16.mxu0 0
      %580 = vmatmul.mubr.bf16.gmra.mrb[0].mxu0 %v524
      %v581 = vpop.f32.mrb[0].mxu0
      %v582 = vadd.f32 0.0, %v581
      %v583 = vpop.f32.mrb[0].mxu0
      %v584 = vpop.f32.mrb[0].mxu0
      %v585 = vadd.f32 0.0, %v584
      %v586 = vpop.f32.mrb[0].mxu0
      %587 = vmatprep.mubr.bf16.mxu0 0
      %588 = vmatmul.mubr.bf16.gmra.mrb[0].mxu0 %v527
      %v589 = vpop.f32.mrb[0].mxu0
      %v590 = vadd.f32 0.0, %v589
      %v591 = vpop.f32.mrb[0].mxu0
      %v592 = vpop.f32.mrb[0].mxu0
      %v593 = vadd.f32 0.0, %v592
      %v594 = vpop.f32.mrb[0].mxu0
      %595 = vmatprep.mubr.bf16.mxu0 0
      %596 = vmatmul.mubr.bf16.gmra.mrb[0].mxu0 %v530
      %v597 = vpop.f32.mrb[0].mxu0
      %v598 = vadd.f32 0.0, %v597
      %v599 = vpop.f32.mrb[0].mxu0
      %v600 = vpop.f32.mrb[0].mxu0
      %v601 = vadd.f32 0.0, %v600
      %v602 = vpop.f32.mrb[0].mxu0
      %603 = vdwg.mxu0
      %v612 = vunpack.c.l.b16 %v480
      %v613 = vunpack.c.l.b16 %v481
      %v614 = vunpack.c.l.b16 %v482
      %v615 = vunpack.c.l.b16 %v483
      %v616 = vunpack.c.l.b16 %v484
      %v617 = vunpack.c.l.b16 %v485
      %v618 = vunpack.c.l.b16 %v486
      %v619 = vunpack.c.l.b16 %v487
      %v620 = vpack.c.b16 %v613, %v612
      %v621 = vpack.c.b16 %v615, %v614
      %v622 = vpack.c.b16 %v617, %v616
      %v623 = vpack.c.b16 %v619, %v618
      %v625 = vsel %vm519, %v620, 0
      %v628 = vsel %vm519, %v621, 0
      %v631 = vsel %vm519, %v622, 0
      %v634 = vsel %vm519, %v623, 0
      %v637 = vand.u32 %v488, %v535
      %639 = vmatprep.subr.bf16.mxu0 0
      %640 = vmatpush1.bf16.msra.mxu0 %v637
      %641 = vmatprep.subr.bf16.mxu0 0
      %642 = vmatpush1.bf16.msra.mxu0 0
      %643 = vmatprep.subr.bf16.mxu0 0
      %644 = vmatpush1.bf16.msra.mxu0 0
      %645 = vmatprep.subr.bf16.mxu0 0
      %646 = vmatpush1.bf16.msra.mxu0 0
      %647 = vmatprep.subr.bf16.mxu0 0
      %648 = vmatpush1.bf16.msra.mxu0 0
      %649 = vmatprep.subr.bf16.mxu0 0
      %650 = vmatpush1.bf16.msra.mxu0 0
      %651 = vmatprep.subr.bf16.mxu0 0
      %652 = vmatpush1.bf16.msra.mxu0 0
      %653 = vmatprep.subr.bf16.mxu0 0
      %654 = vmatpush1.bf16.msra.mxu0 0
      %655 = vmatprep.subr.bf16.mxu0 0
      %656 = vmatpush1.bf16.msra.mxu0 0
      %657 = vmatprep.subr.bf16.mxu0 0
      %658 = vmatpush1.bf16.msra.mxu0 0
      %659 = vmatprep.subr.bf16.mxu0 0
      %660 = vmatpush1.bf16.msra.mxu0 0
      %661 = vmatprep.subr.bf16.mxu0 0
      %662 = vmatpush1.bf16.msra.mxu0 0
      %663 = vmatprep.subr.bf16.mxu0 0
      %664 = vmatpush1.bf16.msra.mxu0 0
      %665 = vmatprep.subr.bf16.mxu0 0
      %666 = vmatpush1.bf16.msra.mxu0 0
      %667 = vmatprep.subr.bf16.mxu0 0
      %668 = vmatpush1.bf16.msra.mxu0 0
      %669 = vmatprep.subr.bf16.mxu0 0
      %670 = vmatpush1.bf16.msra.mxu0 0
      %671 = vmatprep.mubr.bf16.mxu0 0
      %672 = vmatmul.mubr.bf16.gmra.mrb[0].mxu0 %v625
      %v673 = vpop.f32.mrb[0].mxu0
      %v674 = vadd.f32 %v574, %v673
      %v675 = vpop.f32.mrb[0].mxu0
      %v676 = vpop.f32.mrb[0].mxu0
      %v677 = vadd.f32 %v577, %v676
      %v678 = vpop.f32.mrb[0].mxu0
      %679 = vmatprep.mubr.bf16.mxu0 0
      %680 = vmatmul.mubr.bf16.gmra.mrb[0].mxu0 %v628
      %v681 = vpop.f32.mrb[0].mxu0
      %v682 = vadd.f32 %v582, %v681
      %v683 = vpop.f32.mrb[0].mxu0
      %v684 = vpop.f32.mrb[0].mxu0
      %v685 = vadd.f32 %v585, %v684
      %v686 = vpop.f32.mrb[0].mxu0
      %687 = vmatprep.mubr.bf16.mxu0 0
      %688 = vmatmul.mubr.bf16.gmra.mrb[0].mxu0 %v631
      %v689 = vpop.f32.mrb[0].mxu0
      %v690 = vadd.f32 %v590, %v689
      %v691 = vpop.f32.mrb[0].mxu0
      %v692 = vpop.f32.mrb[0].mxu0
      %v693 = vadd.f32 %v593, %v692
      %v694 = vpop.f32.mrb[0].mxu0
      %695 = vmatprep.mubr.bf16.mxu0 0
      %696 = vmatmul.mubr.bf16.gmra.mrb[0].mxu0 %v634
      %v697 = vpop.f32.mrb[0].mxu0
      %v698 = vadd.f32 %v598, %v697
      %v699 = vpop.f32.mrb[0].mxu0
      %v700 = vpop.f32.mrb[0].mxu0
      %v701 = vadd.f32 %v601, %v700
      %v702 = vpop.f32.mrb[0].mxu0
      %703 = vdwg.mxu0
      %v704 = vld [vmem:[%s461] sm:$0xff]
      %v705 = vld [vmem:[%s461 + $0x8] sm:$0x1]
      %v706 = vld [vmem:[%s6] sm:$0xf]
      %v707 = vld [vmem:[%s6 + $0x4] sm:$0xf]
      %v708 = vld [vmem:[%s6 + $0x8] sm:$0xf]
      %v709 = vld [vmem:[%s6 + $0xc] sm:$0xf]
      %v710 = vld [vmem:[%s6 + $0x10] sm:$0xf]
      %v711 = vld [vmem:[%s6 + $0x14] sm:$0xf]
      %v712 = vld [vmem:[%s6 + $0x18] sm:$0xf]
      %v713 = vld [vmem:[%s6 + $0x1c] sm:$0xf]
      %v714 = vpack.c.bf16 %v705, %v704
      %v723 = vunpack.c.l.b16 %v706
      %v724 = vunpack.c.l.b16 %v707
      %v725 = vunpack.c.l.b16 %v708
      %v726 = vunpack.c.l.b16 %v709
      %v727 = vunpack.c.l.b16 %v710
      %v728 = vunpack.c.l.b16 %v711
      %v729 = vunpack.c.l.b16 %v712
      %v730 = vunpack.c.l.b16 %v713
      %v731 = vpack.c.b16 %v724, %v723
      %v732 = vpack.c.b16 %v726, %v725
      %v733 = vpack.c.b16 %v728, %v727
      %v734 = vpack.c.b16 %v730, %v729
      %vm735 = vcmask 72704
      %v737 = vsel %vm735, %v731, 0
      %v740 = vsel %vm735, %v732, 0
      %v743 = vsel %vm735, %v733, 0
      %v746 = vsel %vm735, %v734, 0
      %vm748 = vcmask 1043456
      %vm749 = vcmask 1044480
      %v750 = vsel %vm748, 4294967295, 65535
      %v751 = vsel %vm749, %v750, 0
      %v753 = vand.u32 %v714, %v751
      %755 = vmatprep.subr.bf16.mxu0 0
      %756 = vmatpush1.bf16.msra.mxu0 %v753
      %757 = vmatprep.subr.bf16.mxu0 0
      %758 = vmatpush1.bf16.msra.mxu0 0
      %759 = vmatprep.subr.bf16.mxu0 0
      %760 = vmatpush1.bf16.msra.mxu0 0
      %761 = vmatprep.subr.bf16.mxu0 0
      %762 = vmatpush1.bf16.msra.mxu0 0
      %763 = vmatprep.subr.bf16.mxu0 0
      %764 = vmatpush1.bf16.msra.mxu0 0
      %765 = vmatprep.subr.bf16.mxu0 0
      %766 = vmatpush1.bf16.msra.mxu0 0
      %767 = vmatprep.subr.bf16.mxu0 0
      %768 = vmatpush1.bf16.msra.mxu0 0
      %769 = vmatprep.subr.bf16.mxu0 0
      %770 = vmatpush1.bf16.msra.mxu0 0
      %771 = vmatprep.subr.bf16.mxu0 0
      %772 = vmatpush1.bf16.msra.mxu0 0
      %773 = vmatprep.subr.bf16.mxu0 0
      %774 = vmatpush1.bf16.msra.mxu0 0
      %775 = vmatprep.subr.bf16.mxu0 0
      %776 = vmatpush1.bf16.msra.mxu0 0
      %777 = vmatprep.subr.bf16.mxu0 0
      %778 = vmatpush1.bf16.msra.mxu0 0
      %779 = vmatprep.subr.bf16.mxu0 0
      %780 = vmatpush1.bf16.msra.mxu0 0
      %781 = vmatprep.subr.bf16.mxu0 0
      %782 = vmatpush1.bf16.msra.mxu0 0
      %783 = vmatprep.subr.bf16.mxu0 0
      %784 = vmatpush1.bf16.msra.mxu0 0
      %785 = vmatprep.subr.bf16.mxu0 0
      %786 = vmatpush1.bf16.msra.mxu0 0
      %787 = vmatprep.mubr.bf16.mxu0 0
      %788 = vmatmul.mubr.bf16.gmra.mrb[0].mxu0 %v737
      %v789 = vpop.f32.mrb[0].mxu0
      %v790 = vadd.f32 0.0, %v789
      %v791 = vpop.f32.mrb[0].mxu0
      %v792 = vpop.f32.mrb[0].mxu0
      %v793 = vadd.f32 0.0, %v792
      %v794 = vpop.f32.mrb[0].mxu0
      %795 = vmatprep.mubr.bf16.mxu0 0
      %796 = vmatmul.mubr.bf16.gmra.mrb[0].mxu0 %v740
      %v797 = vpop.f32.mrb[0].mxu0
      %v798 = vadd.f32 0.0, %v797
      %v799 = vpop.f32.mrb[0].mxu0
      %v800 = vpop.f32.mrb[0].mxu0
      %v801 = vadd.f32 0.0, %v800
      %v802 = vpop.f32.mrb[0].mxu0
      %803 = vmatprep.mubr.bf16.mxu0 0
      %804 = vmatmul.mubr.bf16.gmra.mrb[0].mxu0 %v743
      %v805 = vpop.f32.mrb[0].mxu0
      %v806 = vadd.f32 0.0, %v805
      %v807 = vpop.f32.mrb[0].mxu0
      %v808 = vpop.f32.mrb[0].mxu0
      %v809 = vadd.f32 0.0, %v808
      %v810 = vpop.f32.mrb[0].mxu0
      %811 = vmatprep.mubr.bf16.mxu0 0
      %812 = vmatmul.mubr.bf16.gmra.mrb[0].mxu0 %v746
      %v813 = vpop.f32.mrb[0].mxu0
      %v814 = vadd.f32 0.0, %v813
      %v815 = vpop.f32.mrb[0].mxu0
      %v816 = vpop.f32.mrb[0].mxu0
      %v817 = vadd.f32 0.0, %v816
      %v818 = vpop.f32.mrb[0].mxu0
      %819 = vdwg.mxu0
      %v820 = vadd.f32 %v674, %v790
      %v821 = vadd.f32 %v677, %v793
      %v822 = vadd.f32 %v682, %v798
      %v823 = vadd.f32 %v685, %v801
      %v824 = vadd.f32 %v690, %v806
      %v825 = vadd.f32 %v693, %v809
      %v826 = vadd.f32 %v698, %v814
      %v827 = vadd.f32 %v701, %v817
      %v828 = vld [vmem:[%s469] sm:$0xf]
      %v829 = vld [vmem:[%s469 + $0x4] sm:$0xf]
      %v830 = vld [vmem:[%s469 + $0x8] sm:$0xf]
      %v831 = vld [vmem:[%s469 + $0xc] sm:$0xf]
      %v832 = vld [vmem:[%s7] sm:$0xf]
      %v833 = vld [vmem:[%s7 + $0x4] sm:$0xf]
      %v834 = vld [vmem:[%s7 + $0x8] sm:$0xf]
      %v835 = vld [vmem:[%s7 + $0xc] sm:$0xf]
      %v836 = vld [vmem:[%s7 + $0x10] sm:$0xf]
      %v837 = vld [vmem:[%s7 + $0x14] sm:$0xf]
      %v838 = vld [vmem:[%s7 + $0x18] sm:$0xf]
      %v839 = vld [vmem:[%s7 + $0x1c] sm:$0xf]
      %v848 = vunpack.c.l.b16 %v832
      %v849 = vunpack.c.l.b16 %v833
      %v850 = vunpack.c.l.b16 %v834
      %v851 = vunpack.c.l.b16 %v835
      %v852 = vunpack.c.l.b16 %v836
      %v853 = vunpack.c.l.b16 %v837
      %v854 = vunpack.c.l.b16 %v838
      %v855 = vunpack.c.l.b16 %v839
      %v856 = vpack.c.b16 %v849, %v848
      %v857 = vpack.c.b16 %v851, %v850
      %v858 = vpack.c.b16 %v853, %v852
      %v859 = vpack.c.b16 %v855, %v854
      %v864 = vunpack.c.l.b16 %v828
      %v865 = vunpack.c.l.b16 %v829
      %v866 = vunpack.c.l.b16 %v830
      %v867 = vunpack.c.l.b16 %v831
      %v868 = vpack.c.b16 %v865, %v864
      %v869 = vpack.c.b16 %v867, %v866
      %vm872 = vcmask 261120
      %v874 = vsel %vm872, %v856, 0
      %v877 = vsel %vm872, %v857, 0
      %v880 = vsel %vm872, %v858, 0
      %v883 = vsel %vm872, %v859, 0
      %885 = vmatprep.subr.bf16.mxu0 0
      %886 = vmatpush1.bf16.msra.mxu0 %v868
      %887 = vmatprep.subr.bf16.mxu0 0
      %888 = vmatpush1.bf16.msra.mxu0 %v869
      %889 = vmatprep.subr.bf16.mxu0 0
      %890 = vmatpush1.bf16.msra.mxu0 0
      %891 = vmatprep.subr.bf16.mxu0 0
      %892 = vmatpush1.bf16.msra.mxu0 0
      %893 = vmatprep.subr.bf16.mxu0 0
      %894 = vmatpush1.bf16.msra.mxu0 0
      %895 = vmatprep.subr.bf16.mxu0 0
      %896 = vmatpush1.bf16.msra.mxu0 0
      %897 = vmatprep.subr.bf16.mxu0 0
      %898 = vmatpush1.bf16.msra.mxu0 0
      %899 = vmatprep.subr.bf16.mxu0 0
      %900 = vmatpush1.bf16.msra.mxu0 0
      %901 = vmatprep.subr.bf16.mxu0 0
      %902 = vmatpush1.bf16.msra.mxu0 0
      %903 = vmatprep.subr.bf16.mxu0 0
      %904 = vmatpush1.bf16.msra.mxu0 0
      %905 = vmatprep.subr.bf16.mxu0 0
      %906 = vmatpush1.bf16.msra.mxu0 0
      %907 = vmatprep.subr.bf16.mxu0 0
      %908 = vmatpush1.bf16.msra.mxu0 0
      %909 = vmatprep.subr.bf16.mxu0 0
      %910 = vmatpush1.bf16.msra.mxu0 0
      %911 = vmatprep.subr.bf16.mxu0 0
      %912 = vmatpush1.bf16.msra.mxu0 0
      %913 = vmatprep.subr.bf16.mxu0 0
      %914 = vmatpush1.bf16.msra.mxu0 0
      %915 = vmatprep.subr.bf16.mxu0 0
      %916 = vmatpush1.bf16.msra.mxu0 0
      %917 = vmatprep.mubr.bf16.mxu0 0
      %918 = vmatmul.mubr.bf16.gmra.mrb[0].mxu0 %v874
      %v919 = vpop.f32.mrb[0].mxu0
      %v920 = vadd.f32 0.0, %v919
      %v921 = vpop.f32.mrb[0].mxu0
      %v922 = vpop.f32.mrb[0].mxu0
      %v923 = vadd.f32 0.0, %v922
      %v924 = vpop.f32.mrb[0].mxu0
      %925 = vmatprep.mubr.bf16.mxu0 0
      %926 = vmatmul.mubr.bf16.gmra.mrb[0].mxu0 %v877
      %v927 = vpop.f32.mrb[0].mxu0
      %v928 = vadd.f32 0.0, %v927
      %v929 = vpop.f32.mrb[0].mxu0
      %v930 = vpop.f32.mrb[0].mxu0
      %v931 = vadd.f32 0.0, %v930
      %v932 = vpop.f32.mrb[0].mxu0
      %933 = vmatprep.mubr.bf16.mxu0 0
      %934 = vmatmul.mubr.bf16.gmra.mrb[0].mxu0 %v880
      %v935 = vpop.f32.mrb[0].mxu0
      %v936 = vadd.f32 0.0, %v935
      %v937 = vpop.f32.mrb[0].mxu0
      %v938 = vpop.f32.mrb[0].mxu0
      %v939 = vadd.f32 0.0, %v938
      %v940 = vpop.f32.mrb[0].mxu0
      %941 = vmatprep.mubr.bf16.mxu0 0
      %942 = vmatmul.mubr.bf16.gmra.mrb[0].mxu0 %v883
      %v943 = vpop.f32.mrb[0].mxu0
      %v944 = vadd.f32 0.0, %v943
      %v945 = vpop.f32.mrb[0].mxu0
      %v946 = vpop.f32.mrb[0].mxu0
      %v947 = vadd.f32 0.0, %v946
      %v948 = vpop.f32.mrb[0].mxu0
      %949 = vdwg.mxu0
      %v950 = vadd.f32 %v820, %v920
      %v951 = vadd.f32 %v821, %v923
      %v952 = vadd.f32 %v822, %v928
      %v953 = vadd.f32 %v823, %v931
      %v954 = vadd.f32 %v824, %v936
      %v955 = vadd.f32 %v825, %v939
      %v956 = vadd.f32 %v826, %v944
      %v957 = vadd.f32 %v827, %v947
      %v958 = vld [vmem:[%s8] sm:$0xff]
      %v959 = vld [vmem:[%s8 + $0x8] sm:$0xff]
      %v960 = vld [vmem:[%s8 + $0x10] sm:$0xff]
      %v961 = vld [vmem:[%s8 + $0x18] sm:$0xff]
      %v962 = vld [vmem:[%s8 + $0x20] sm:$0xff]
      %v963 = vld [vmem:[%s8 + $0x28] sm:$0xff]
      %v964 = vld [vmem:[%s8 + $0x30] sm:$0xff]
      %v965 = vld [vmem:[%s8 + $0x38] sm:$0xff]
      %967 = vset.pattern.permute.xlu0 0
      %968 = vperm.xlu0 %967, %v958
      %v969 = vpop.permute.xlu0 %968
      %972 = vset.pattern.permute.xlu0 0
      %973 = vperm.xlu0 %972, %v959
      %v974 = vpop.permute.xlu0 %973
      %977 = vset.pattern.permute.xlu0 0
      %978 = vperm.xlu0 %977, %v960
      %v979 = vpop.permute.xlu0 %978
      %982 = vset.pattern.permute.xlu0 0
      %983 = vperm.xlu0 %982, %v961
      %v984 = vpop.permute.xlu0 %983
      %987 = vset.pattern.permute.xlu0 0
      %988 = vperm.xlu0 %987, %v962
      %v989 = vpop.permute.xlu0 %988
      %992 = vset.pattern.permute.xlu0 0
      %993 = vperm.xlu0 %992, %v963
      %v994 = vpop.permute.xlu0 %993
      %997 = vset.pattern.permute.xlu0 0
      %998 = vperm.xlu0 %997, %v964
      %v999 = vpop.permute.xlu0 %998
      %1002 = vset.pattern.permute.xlu0 0
      %1003 = vperm.xlu0 %1002, %v965
      %v1004 = vpop.permute.xlu0 %1003
      %v1006 = vmul.f32 %v950, %v969
      %v1007 = vmul.f32 %v951, %v974
      %v1008 = vmul.f32 %v952, %v979
      %v1009 = vmul.f32 %v953, %v984
      %v1010 = vmul.f32 %v954, %v989
      %v1011 = vmul.f32 %v955, %v994
      %v1012 = vmul.f32 %v956, %v999
      %v1013 = vmul.f32 %v957, %v1004
      %v1014 = vld [vmem:[%s9] sm:$0xff]
      %v1015 = vld [vmem:[%s9 + $0x8] sm:$0xff]
      %v1016 = vld [vmem:[%s9 + $0x10] sm:$0xff]
      %v1017 = vld [vmem:[%s9 + $0x18] sm:$0xff]
      %v1018 = vld [vmem:[%s9 + $0x20] sm:$0xff]
      %v1019 = vld [vmem:[%s9 + $0x28] sm:$0xff]
      %v1020 = vld [vmem:[%s9 + $0x30] sm:$0xff]
      %v1021 = vld [vmem:[%s9 + $0x38] sm:$0xff]
      %1023 = vset.pattern.permute.xlu0 0
      %1024 = vperm.xlu0 %1023, %v1014
      %v1025 = vpop.permute.xlu0 %1024
      %1028 = vset.pattern.permute.xlu0 0
      %1029 = vperm.xlu0 %1028, %v1015
      %v1030 = vpop.permute.xlu0 %1029
      %1033 = vset.pattern.permute.xlu0 0
      %1034 = vperm.xlu0 %1033, %v1016
      %v1035 = vpop.permute.xlu0 %1034
      %1038 = vset.pattern.permute.xlu0 0
      %1039 = vperm.xlu0 %1038, %v1017
      %v1040 = vpop.permute.xlu0 %1039
      %1043 = vset.pattern.permute.xlu0 0
      %1044 = vperm.xlu0 %1043, %v1018
      %v1045 = vpop.permute.xlu0 %1044
      %1048 = vset.pattern.permute.xlu0 0
      %1049 = vperm.xlu0 %1048, %v1019
      %v1050 = vpop.permute.xlu0 %1049
      %1053 = vset.pattern.permute.xlu0 0
      %1054 = vperm.xlu0 %1053, %v1020
      %v1055 = vpop.permute.xlu0 %1054
      %1058 = vset.pattern.permute.xlu0 0
      %1059 = vperm.xlu0 %1058, %v1021
      %v1060 = vpop.permute.xlu0 %1059
      %v1062 = vadd.f32 %v1006, %v1025
      %v1063 = vadd.f32 %v1007, %v1030
      %v1064 = vadd.f32 %v1008, %v1035
      %v1065 = vadd.f32 %v1009, %v1040
      %v1066 = vadd.f32 %v1010, %v1045
      %v1067 = vadd.f32 %v1011, %v1050
      %v1068 = vadd.f32 %v1012, %v1055
      %v1069 = vadd.f32 %v1013, %v1060
      %v1070 = vmax.f32 %v1062, 0.0
      %v1071 = vmax.f32 %v1063, 0.0
      %v1072 = vmax.f32 %v1064, 0.0
      %v1073 = vmax.f32 %v1065, 0.0
      %v1074 = vmax.f32 %v1066, 0.0
      %v1075 = vmax.f32 %v1067, 0.0
      %v1076 = vmax.f32 %v1068, 0.0
      %v1077 = vmax.f32 %v1069, 0.0
      %v1078 = vpack.c.bf16 %v1071, %v1070
      %v1079 = vpack.c.bf16 %v1073, %v1072
      %v1080 = vpack.c.bf16 %v1075, %v1074
      %v1081 = vpack.c.bf16 %v1077, %v1076
      %v1086 = vunpack.c.l.b16 %v1078
      %v1087 = vunpack.c.h.b16 %v1078
      %v1088 = vunpack.c.l.b16 %v1079
      %v1089 = vunpack.c.h.b16 %v1079
      %v1090 = vunpack.c.l.b16 %v1080
      %v1091 = vunpack.c.h.b16 %v1080
      %v1092 = vunpack.c.l.b16 %v1081
      %v1093 = vunpack.c.h.b16 %v1081
      %v1094 = vpack.c.b16 %v1086, %v1086
      %v1095 = vpack.c.b16 %v1087, %v1087
      %v1096 = vpack.c.b16 %v1088, %v1088
      %v1097 = vpack.c.b16 %v1089, %v1089
      %v1098 = vpack.c.b16 %v1090, %v1090
      %v1099 = vpack.c.b16 %v1091, %v1091
      %v1100 = vpack.c.b16 %v1092, %v1092
      %v1101 = vpack.c.b16 %v1093, %v1093
      %vm1110 = vcmask 60416
      %1111 = vst.msk [vmem:[%s477] sm:$0xf] %vm1110, %v1094
      %1112 = vst.msk [vmem:[%s477 + $0x4] sm:$0xf] %vm1110, %v1095
      %1113 = vst.msk [vmem:[%s477 + $0x8] sm:$0xf] %vm1110, %v1096
      %1114 = vst.msk [vmem:[%s477 + $0xc] sm:$0xf] %vm1110, %v1097
      %1115 = vst.msk [vmem:[%s477 + $0x10] sm:$0xf] %vm1110, %v1098
      %1116 = vst.msk [vmem:[%s477 + $0x14] sm:$0xf] %vm1110, %v1099
      %1117 = vst.msk [vmem:[%s477 + $0x18] sm:$0xf] %vm1110, %v1100
      %1118 = vst.msk [vmem:[%s477 + $0x1c] sm:$0xf] %vm1110, %v1101
      %p1119 = scmp.lt.s32.totalorder %s25, 1
      %s1120 = scalar_select %p1119, %s25, 1
      %p1121 = scmp.lt.s32.totalorder %s26, 0
      %s1122 = scalar_select %p1121, %s26, 0
      %s1123 = smul.addr %s1120, 8
      %s1124 = sadd.s32 %s1122, %s1123
      %s1125 = smul.addr %s1124, 4
      %s1126 = scalar_lea.vmem %s10, %s1125
      // Predicated region
      $region61: #{ndnet_segmentation_forward.13} parent=59 // pred_check
        %p1127 = pneg %p291
      $region62: #{ndnet_segmentation_forward.13} parent=59 // pred_check_branch
        %1129 = sbr.rel (%p1127) target = $region64
      $region63: #{ndnet_segmentation_forward.13} parent=59 // pred_region
        _
      $region64: #{ndnet_segmentation_forward.13} parent=59 // pred_fallthru
        _
    $region60: #{ndnet_segmentation_forward.13} parent=5 // pred_fallthru
      _
    %p1130 = scmp.le.s32.totalorder 2, %s16
    // Predicated region
    $region65: #{ndnet_segmentation_forward.13} parent=5 // pred_check
      %p1131 = pneg %p1130
    $region66: #{ndnet_segmentation_forward.13} parent=5 // pred_check_branch
      %1133 = sbr.rel (%p1131) target = $region68
    $region67: #{ndnet_segmentation_forward.13} parent=5 // pred_region
      %s1134 = ssub.s32 %s16, 2
      // Predicated region
      $region69: #{ndnet_segmentation_forward.13} parent=67 // pred_check
        %p1135 = pneg %p297
      $region70: #{ndnet_segmentation_forward.13} parent=67 // pred_check_branch
        %1137 = sbr.rel (%p1135) target = $region72
      $region71: #{ndnet_segmentation_forward.13} parent=67 // pred_region
        %p1138 = scmp.lt.s32.totalorder %s27, 1
        %s1139 = scalar_select %p1138, %s27, 1
        %p1140 = scmp.lt.s32.totalorder %s28, 0
        %s1141 = scalar_select %p1140, %s28, 0
        %s1142 = smul.addr %s1139, 8
        %s1143 = sadd.s32 %s1141, %s1142
        %s1144 = smul.addr %s1143, 4
        %s1145 = scalar_lea.vmem %s10, %s1144
      $region72: #{ndnet_segmentation_forward.13} parent=67 // pred_fallthru
        _
    $region68: #{ndnet_segmentation_forward.13} parent=5 // pred_fallthru
      _
  $region6: #{ndnet_segmentation_forward.13} parent=0 // loop_footer
    %s20 = sadd.s32 1, %s16
  $region7: #{ndnet_segmentation_forward.13} parent=0 // loop_footer_branch
    %15 = sbr.rel target = $region3
  $region8: #{ndnet_segmentation_forward.13} parent=0 // loop_exit
    _

// kernel: ndnet_segmentation_forward.14
$region0: #{ndnet_segmentation_forward.14}
  #allocation0 [shape = 'u32[]', space=smem, size = 0x4, offset = 0x4, fixed_abs, tag = 'smem constant byte address 0x4 - core index']
  #allocation1 [shape = 'u32[144,128]{1,0:T(1,128)}', space=vmem, size = 0x12000, scoped, tag = 'internal scratch']
  %s0 = inlined_call_operand.vmem [shape: bf16[2,64,8], index: 0, kind: input, shape index: {}]
  %s1 = inlined_call_operand.vmem [shape: bf16[32,64], index: 1, kind: input, shape index: {}]
  %s2 = inlined_call_operand.vmem [shape: f32[32,1], index: 2, kind: input, shape index: {}]
  %s3 = inlined_call_operand.vmem [shape: f32[32,1], index: 3, kind: input, shape index: {}]
  %s4 = inlined_call_operand.vmem [shape: bf16[2,32,8], index: 4, kind: output, shape index: {}]
  %s5 = sld [smem:[#allocation0]]
  $region49: #{ndnet_segmentation_forward.14} parent=0
    _
  %s7 = ssub.s32 1, %s5
  %s8 = scalar_select 0, %s7, %s5
  loop: start=0, step=1, limit=4
  $region2: #{ndnet_segmentation_forward.14} parent=0 // loop_pre_header
    _
  $region3: #{ndnet_segmentation_forward.14} parent=0 // loop_header
    %s10 = sphi 0, %s14
    %p11 = scmp.ge.s32.totalorder %s10, 4
    %s17 = sphi 0, %s29
    %s18 = sphi 0, %s25
    %s19 = sphi 0, %s17
    %s20 = sphi 0, %s18
    %s21 = sphi 0, %s19
    %s22 = sphi 0, %s20
    %s34 = sphi 0, %s36
    %s37 = sphi 0, %s34
    %s38 = sphi 0, %s37
    %s54 = sphi 0, %s38
    %s58 = sphi 0, %s58
    %s60 = sphi 0, %s58
    %s61 = sphi 0, %s60
    %s75 = sphi 0, %s61
    %s79 = sphi 0, %s79
    %s81 = sphi 0, %s79
    %s82 = sphi 0, %s81
    %s96 = sphi 0, %s82
    %s100 = sphi 0, %s100
    %s102 = sphi 0, %s100
    %s103 = sphi 0, %s102
    %s117 = sphi 0, %s103
    %s125 = sphi 0, %s127
    %s128 = sphi 0, %s125
    %s129 = sphi 0, %s128
    %s145 = sphi 0, %s129
  $region4: #{ndnet_segmentation_forward.14} parent=0 // loop_header_branch
    %13 = sbr.rel (%p11) target = $region8
  $region5: #{ndnet_segmentation_forward.14} parent=0 // loop_body
    %s15 = ssub.s32 %s10, 1
    %s16 = ssub.s32 %s10, 2
    %s23 = sadd.s32 1, %s18
    %p24 = scmp.ge.s32.totalorder %s23, 1
    %s25 = scalar_select %p24, 0, %s23
    %s26 = sadd.s32 1, %s17
    %s27 = scalar_select %p24, %s26, %s17
    %p28 = scmp.ge.s32.totalorder %s27, 2
    %s29 = scalar_select %p28, 0, %s27
    %s30 = ssub.s32 %s17, %s29
    %s31 = ssub.s32 %s18, %s25
    %s32 = sor.u32 %s30, %s31
    %p33 = scmp.eq.s32.totalorder %s32, 0
    %s35 = sadd.s32 %s34, 1
    %s36 = scalar_select %p33, %s34, %s35
    %p39 = pneg %p33
    %p40 = scmp.eq.s32.totalorder %s10, 1
    %p41 = por %p39, %p40
    %p42 = scmp.ne.s32.totalorder %s34, %s37
    %p43 = scmp.eq.s32.totalorder %s10, 0
    %p44 = por %p42, %p43
    %p45 = scmp.ne.s32.totalorder %s34, %s37
    %p46 = scmp.eq.s32.totalorder %s15, 1
    %p47 = por %p45, %p46
    %p48 = scmp.ne.s32.totalorder %s37, %s38
    %p49 = scmp.eq.s32.totalorder %s15, 0
    %p50 = por %p48, %p49
    %p51 = scmp.ne.s32.totalorder %s37, %s38
    %p52 = scmp.eq.s32.totalorder %s16, 1
    %p53 = por %p51, %p52
    %p55 = scmp.ne.s32.totalorder %s38, %s54
    %p56 = scmp.eq.s32.totalorder %s16, 0
    %p57 = por %p55, %p56
    %s59 = sadd.s32 %s58, 1
    %p62 = scmp.eq.s32.totalorder %s10, 1
    %p63 = scmp.ne.s32.totalorder %s58, %s60
    %p64 = scmp.eq.s32.totalorder %s10, 0
    %p65 = por %p63, %p64
    %p66 = scmp.ne.s32.totalorder %s58, %s60
    %p67 = scmp.eq.s32.totalorder %s15, 1
    %p68 = por %p66, %p67
    %p69 = scmp.ne.s32.totalorder %s60, %s61
    %p70 = scmp.eq.s32.totalorder %s15, 0
    %p71 = por %p69, %p70
    %p72 = scmp.ne.s32.totalorder %s60, %s61
    %p73 = scmp.eq.s32.totalorder %s16, 1
    %p74 = por %p72, %p73
    %p76 = scmp.ne.s32.totalorder %s61, %s75
    %p77 = scmp.eq.s32.totalorder %s16, 0
    %p78 = por %p76, %p77
    %s80 = sadd.s32 %s79, 1
    %p83 = scmp.eq.s32.totalorder %s10, 1
    %p84 = scmp.ne.s32.totalorder %s79, %s81
    %p85 = scmp.eq.s32.totalorder %s10, 0
    %p86 = por %p84, %p85
    %p87 = scmp.ne.s32.totalorder %s79, %s81
    %p88 = scmp.eq.s32.totalorder %s15, 1
    %p89 = por %p87, %p88
    %p90 = scmp.ne.s32.totalorder %s81, %s82
    %p91 = scmp.eq.s32.totalorder %s15, 0
    %p92 = por %p90, %p91
    %p93 = scmp.ne.s32.totalorder %s81, %s82
    %p94 = scmp.eq.s32.totalorder %s16, 1
    %p95 = por %p93, %p94
    %p97 = scmp.ne.s32.totalorder %s82, %s96
    %p98 = scmp.eq.s32.totalorder %s16, 0
    %p99 = por %p97, %p98
    %s101 = sadd.s32 %s100, 1
    %p104 = scmp.eq.s32.totalorder %s10, 1
    %p105 = scmp.ne.s32.totalorder %s100, %s102
    %p106 = scmp.eq.s32.totalorder %s10, 0
    %p107 = por %p105, %p106
    %p108 = scmp.ne.s32.totalorder %s100, %s102
    %p109 = scmp.eq.s32.totalorder %s15, 1
    %p110 = por %p108, %p109
    %p111 = scmp.ne.s32.totalorder %s102, %s103
    %p112 = scmp.eq.s32.totalorder %s15, 0
    %p113 = por %p111, %p112
    %p114 = scmp.ne.s32.totalorder %s102, %s103
    %p115 = scmp.eq.s32.totalorder %s16, 1
    %p116 = por %p114, %p115
    %p118 = scmp.ne.s32.totalorder %s103, %s117
    %p119 = scmp.eq.s32.totalorder %s16, 0
    %p120 = por %p118, %p119
    %s121 = ssub.s32 %s17, %s29
    %s122 = ssub.s32 %s18, %s25
    %s123 = sor.u32 %s121, %s122
    %p124 = scmp.eq.s32.totalorder %s123, 0
    %s126 = sadd.s32 %s125, 1
    %s127 = scalar_select %p124, %s125, %s126
    %p130 = pneg %p124
    %p131 = scmp.eq.s32.totalorder %s10, 1
    %p132 = por %p130, %p131
    %p133 = scmp.ne.s32.totalorder %s125, %s128
    %p134 = scmp.eq.s32.totalorder %s10, 0
    %p135 = por %p133, %p134
    %p136 = scmp.ne.s32.totalorder %s125, %s128
    %p137 = scmp.eq.s32.totalorder %s15, 1
    %p138 = por %p136, %p137
    %p139 = scmp.ne.s32.totalorder %s128, %s129
    %p140 = scmp.eq.s32.totalorder %s15, 0
    %p141 = por %p139, %p140
    %p142 = scmp.ne.s32.totalorder %s128, %s129
    %p143 = scmp.eq.s32.totalorder %s16, 1
    %p144 = por %p142, %p143
    %p146 = scmp.ne.s32.totalorder %s129, %s145
    %p147 = scmp.eq.s32.totalorder %s16, 0
    %p148 = por %p146, %p147
    %p149 = scmp.le.s32.totalorder 1, %s10
    %p150 = scmp.lt.s32.totalorder %s10, 3
    %p151 = pnand %p149, %p150
    %p152 = pneg %p151
    // Predicated region
    $region9: #{ndnet_segmentation_forward.14} parent=5 // pred_check
      _
    $region10: #{ndnet_segmentation_forward.14} parent=5 // pred_check_branch
      %154 = sbr.rel (%p151) target = $region12
    $region11: #{ndnet_segmentation_forward.14} parent=5 // pred_region
      %s155 = ssub.s32 %s10, 1
      // Predicated region
      $region13: #{ndnet_segmentation_forward.14} parent=11 // pred_check
        %p156 = pneg %p71
      $region14: #{ndnet_segmentation_forward.14} parent=11 // pred_check_branch
        %158 = sbr.rel (%p156) target = $region16
      $region15: #{ndnet_segmentation_forward.14} parent=11 // pred_region
        _
      $region16: #{ndnet_segmentation_forward.14} parent=11 // pred_fallthru
        _
      // Predicated region
      $region17: #{ndnet_segmentation_forward.14} parent=11 // pred_check
        %p159 = pneg %p92
      $region18: #{ndnet_segmentation_forward.14} parent=11 // pred_check_branch
        %161 = sbr.rel (%p159) target = $region20
      $region19: #{ndnet_segmentation_forward.14} parent=11 // pred_region
        _
      $region20: #{ndnet_segmentation_forward.14} parent=11 // pred_fallthru
        _
      // Predicated region
      $region21: #{ndnet_segmentation_forward.14} parent=11 // pred_check
        %p162 = pneg %p113
      $region22: #{ndnet_segmentation_forward.14} parent=11 // pred_check_branch
        %164 = sbr.rel (%p162) target = $region24
      $region23: #{ndnet_segmentation_forward.14} parent=11 // pred_region
        _
      $region24: #{ndnet_segmentation_forward.14} parent=11 // pred_fallthru
        _
    $region12: #{ndnet_segmentation_forward.14} parent=5 // pred_fallthru
      _
    %p165 = scmp.lt.s32.totalorder %s10, 2
    // Predicated region
    $region25: #{ndnet_segmentation_forward.14} parent=5 // pred_check
      %p166 = pneg %p165
    $region26: #{ndnet_segmentation_forward.14} parent=5 // pred_check_branch
      %168 = sbr.rel (%p166) target = $region28
    $region27: #{ndnet_segmentation_forward.14} parent=5 // pred_region
      // Predicated region
      $region29: #{ndnet_segmentation_forward.14} parent=27 // pred_check
        %p169 = pneg %p44
      $region30: #{ndnet_segmentation_forward.14} parent=27 // pred_check_branch
        %171 = sbr.rel (%p169) target = $region32
      $region31: #{ndnet_segmentation_forward.14} parent=27 // pred_region
        %p172 = scmp.lt.s32.totalorder %s17, 1
        %s173 = scalar_select %p172, %s17, 1
        %p174 = scmp.lt.s32.totalorder %s18, 0
        %s175 = scalar_select %p174, %s18, 0
        %s176 = smul.addr %s173, 8
        %s177 = sadd.s32 %s175, %s176
        %s178 = smul.addr %s177, 4
        %s179 = scalar_lea.vmem %s0, %s178
      $region32: #{ndnet_segmentation_forward.14} parent=27 // pred_fallthru
        _
    $region28: #{ndnet_segmentation_forward.14} parent=5 // pred_fallthru
      _
    %p180 = scmp.le.s32.totalorder 1, %s10
    %p181 = scmp.lt.s32.totalorder %s10, 3
    %p182 = pnand %p180, %p181
    %p183 = pneg %p182
    // Predicated region
    $region33: #{ndnet_segmentation_forward.14} parent=5 // pred_check
      _
    $region34: #{ndnet_segmentation_forward.14} parent=5 // pred_check_branch
      %185 = sbr.rel (%p182) target = $region36
    $region35: #{ndnet_segmentation_forward.14} parent=5 // pred_region
      %s186 = ssub.s32 %s10, 1
      %p187 = scmp.lt.s32.totalorder %s19, 1
      %s188 = scalar_select %p187, %s19, 1
      %p189 = scmp.lt.s32.totalorder %s20, 0
      %s190 = scalar_select %p189, %s20, 0
      %s191 = smul.addr %s188, 8
      %s192 = sadd.s32 %s190, %s191
      %s193 = smul.addr %s192, 4
      %s194 = scalar_lea.vmem %s0, %s193
      %p195 = pneg %p50
      %p196 = pneg %p47
      %p197 = pneg %p71
      %p198 = pneg %p68
      %p199 = pneg %p92
      %p200 = pneg %p89
      %p201 = pneg %p113
      %p202 = pneg %p110
      %p203 = pneg %p141
      %p204 = pneg %p138
      %p205 = scmp.lt.s32.totalorder %s19, 1
      %s206 = scalar_select %p205, %s19, 1
      %p207 = scmp.lt.s32.totalorder %s20, 0
      %s208 = scalar_select %p207, %s20, 0
      %s209 = smul.addr %s206, 4
      %s210 = sadd.s32 %s208, %s209
      %s211 = smul.addr %s210, 4
      %s212 = scalar_lea.vmem %s4, %s211
      %p213 = scmp.lt.s32.totalorder %s19, 1
      %s214 = scalar_select %p213, %s19, 1
      %p215 = scmp.lt.s32.totalorder %s20, 0
      %s216 = scalar_select %p215, %s20, 0
      %s217 = smul.addr %s214, 8
      %s218 = sadd.s32 %s216, %s217
      %s219 = smul.addr %s218, 4
      %s220 = scalar_lea.vmem %s0, %s219
      %p221 = scmp.lt.s32.totalorder %s19, 1
      %s222 = scalar_select %p221, %s19, 1
      %p223 = scmp.lt.s32.totalorder %s20, 0
      %s224 = scalar_select %p223, %s20, 0
      %s225 = smul.addr %s222, 4
      %s226 = sadd.s32 %s224, %s225
      %s227 = smul.addr %s226, 4
      %s228 = scalar_lea.vmem %s4, %s227
      %v230 = vld [vmem:[%s220] sm:$0xf]
      %v231 = vld [vmem:[%s220 + $0x4] sm:$0xf]
      %v232 = vld [vmem:[%s220 + $0x8] sm:$0xf]
      %v233 = vld [vmem:[%s220 + $0xc] sm:$0xf]
      %v234 = vld [vmem:[%s220 + $0x10] sm:$0xf]
      %v235 = vld [vmem:[%s220 + $0x14] sm:$0xf]
      %v236 = vld [vmem:[%s220 + $0x18] sm:$0xf]
      %v237 = vld [vmem:[%s220 + $0x1c] sm:$0xf]
      %v238 = vld [vmem:[%s1] sm:$0xf]
      %v239 = vld [vmem:[%s1 + $0x4] sm:$0xf]
      %v240 = vld [vmem:[%s1 + $0x8] sm:$0xf]
      %v241 = vld [vmem:[%s1 + $0xc] sm:$0xf]
      %v246 = vunpack.c.l.b16 %v238
      %v247 = vunpack.c.l.b16 %v239
      %v248 = vunpack.c.l.b16 %v240
      %v249 = vunpack.c.l.b16 %v241
      %v250 = vpack.c.b16 %v247, %v246
      %v251 = vpack.c.b16 %v249, %v248
      %v260 = vunpack.c.l.b16 %v230
      %v261 = vunpack.c.l.b16 %v231
      %v262 = vunpack.c.l.b16 %v232
      %v263 = vunpack.c.l.b16 %v233
      %v264 = vunpack.c.l.b16 %v234
      %v265 = vunpack.c.l.b16 %v235
      %v266 = vunpack.c.l.b16 %v236
      %v267 = vunpack.c.l.b16 %v237
      %v268 = vpack.c.b16 %v261, %v260
      %v269 = vpack.c.b16 %v263, %v262
      %v270 = vpack.c.b16 %v265, %v264
      %v271 = vpack.c.b16 %v267, %v266
      %vm276 = vcmask 523264
      %v278 = vsel %vm276, %v250, 0
      %v281 = vsel %vm276, %v251, 0
      %283 = vmatprep.subr.bf16.mxu0 0
      %284 = vmatpush1.bf16.msra.mxu0 %v268
      %285 = vmatprep.subr.bf16.mxu0 0
      %286 = vmatpush1.bf16.msra.mxu0 %v269
      %287 = vmatprep.subr.bf16.mxu0 0
      %288 = vmatpush1.bf16.msra.mxu0 %v270
      %289 = vmatprep.subr.bf16.mxu0 0
      %290 = vmatpush1.bf16.msra.mxu0 %v271
      %291 = vmatprep.subr.bf16.mxu0 0
      %292 = vmatpush1.bf16.msra.mxu0 0
      %293 = vmatprep.subr.bf16.mxu0 0
      %294 = vmatpush1.bf16.msra.mxu0 0
      %295 = vmatprep.subr.bf16.mxu0 0
      %296 = vmatpush1.bf16.msra.mxu0 0
      %297 = vmatprep.subr.bf16.mxu0 0
      %298 = vmatpush1.bf16.msra.mxu0 0
      %299 = vmatprep.subr.bf16.mxu0 0
      %300 = vmatpush1.bf16.msra.mxu0 0
      %301 = vmatprep.subr.bf16.mxu0 0
      %302 = vmatpush1.bf16.msra.mxu0 0
      %303 = vmatprep.subr.bf16.mxu0 0
      %304 = vmatpush1.bf16.msra.mxu0 0
      %305 = vmatprep.subr.bf16.mxu0 0
      %306 = vmatpush1.bf16.msra.mxu0 0
      %307 = vmatprep.subr.bf16.mxu0 0
      %308 = vmatpush1.bf16.msra.mxu0 0
      %309 = vmatprep.subr.bf16.mxu0 0
      %310 = vmatpush1.bf16.msra.mxu0 0
      %311 = vmatprep.subr.bf16.mxu0 0
      %312 = vmatpush1.bf16.msra.mxu0 0
      %313 = vmatprep.subr.bf16.mxu0 0
      %314 = vmatpush1.bf16.msra.mxu0 0
      %315 = vmatprep.mubr.bf16.mxu0 0
      %316 = vmatmul.mubr.bf16.gmra.mrb[0].mxu0 %v278
      %v317 = vpop.f32.mrb[0].mxu0
      %v318 = vadd.f32 0.0, %v317
      %v319 = vpop.f32.mrb[0].mxu0
      %v320 = vpop.f32.mrb[0].mxu0
      %v321 = vadd.f32 0.0, %v320
      %v322 = vpop.f32.mrb[0].mxu0
      %323 = vmatprep.mubr.bf16.mxu0 0
      %324 = vmatmul.mubr.bf16.gmra.mrb[0].mxu0 %v281
      %v325 = vpop.f32.mrb[0].mxu0
      %v326 = vadd.f32 0.0, %v325
      %v327 = vpop.f32.mrb[0].mxu0
      %v328 = vpop.f32.mrb[0].mxu0
      %v329 = vadd.f32 0.0, %v328
      %v330 = vpop.f32.mrb[0].mxu0
      %331 = vdwg.mxu0
      %v332 = vld [vmem:[%s2] sm:$0xff]
      %v333 = vld [vmem:[%s2 + $0x8] sm:$0xff]
      %v334 = vld [vmem:[%s2 + $0x10] sm:$0xff]
      %v335 = vld [vmem:[%s2 + $0x18] sm:$0xff]
      %337 = vset.pattern.permute.xlu0 0
      %338 = vperm.xlu0 %337, %v332
      %v339 = vpop.permute.xlu0 %338
      %342 = vset.pattern.permute.xlu0 0
      %343 = vperm.xlu0 %342, %v333
      %v344 = vpop.permute.xlu0 %343
      %347 = vset.pattern.permute.xlu0 0
      %348 = vperm.xlu0 %347, %v334
      %v349 = vpop.permute.xlu0 %348
      %352 = vset.pattern.permute.xlu0 0
      %353 = vperm.xlu0 %352, %v335
      %v354 = vpop.permute.xlu0 %353
      %v356 = vmul.f32 %v318, %v339
      %v357 = vmul.f32 %v321, %v344
      %v358 = vmul.f32 %v326, %v349
      %v359 = vmul.f32 %v329, %v354
      %v360 = vld [vmem:[%s3] sm:$0xff]
      %v361 = vld [vmem:[%s3 + $0x8] sm:$0xff]
      %v362 = vld [vmem:[%s3 + $0x10] sm:$0xff]
      %v363 = vld [vmem:[%s3 + $0x18] sm:$0xff]
      %365 = vset.pattern.permute.xlu0 0
      %366 = vperm.xlu0 %365, %v360
      %v367 = vpop.permute.xlu0 %366
      %370 = vset.pattern.permute.xlu0 0
      %371 = vperm.xlu0 %370, %v361
      %v372 = vpop.permute.xlu0 %371
      %375 = vset.pattern.permute.xlu0 0
      %376 = vperm.xlu0 %375, %v362
      %v377 = vpop.permute.xlu0 %376
      %380 = vset.pattern.permute.xlu0 0
      %381 = vperm.xlu0 %380, %v363
      %v382 = vpop.permute.xlu0 %381
      %v384 = vadd.f32 %v356, %v367
      %v385 = vadd.f32 %v357, %v372
      %v386 = vadd.f32 %v358, %v377
      %v387 = vadd.f32 %v359, %v382
      %v388 = vmax.f32 %v384, 0.0
      %v389 = vmax.f32 %v385, 0.0
      %v390 = vmax.f32 %v386, 0.0
      %v391 = vmax.f32 %v387, 0.0
      %v392 = vpack.c.bf16 %v389, %v388
      %v393 = vpack.c.bf16 %v391, %v390
      %v396 = vunpack.c.l.b16 %v392
      %v397 = vunpack.c.h.b16 %v392
      %v398 = vunpack.c.l.b16 %v393
      %v399 = vunpack.c.h.b16 %v393
      %v400 = vpack.c.b16 %v396, %v396
      %v401 = vpack.c.b16 %v397, %v397
      %v402 = vpack.c.b16 %v398, %v398
      %v403 = vpack.c.b16 %v399, %v399
      %vm408 = vcmask 60416
      %409 = vst.msk [vmem:[%s228] sm:$0xf] %vm408, %v400
      %410 = vst.msk [vmem:[%s228 + $0x4] sm:$0xf] %vm408, %v401
      %411 = vst.msk [vmem:[%s228 + $0x8] sm:$0xf] %vm408, %v402
      %412 = vst.msk [vmem:[%s228 + $0xc] sm:$0xf] %vm408, %v403
      %p413 = scmp.lt.s32.totalorder %s19, 1
      %s414 = scalar_select %p413, %s19, 1
      %p415 = scmp.lt.s32.totalorder %s20, 0
      %s416 = scalar_select %p415, %s20, 0
      %s417 = smul.addr %s414, 4
      %s418 = sadd.s32 %s416, %s417
      %s419 = smul.addr %s418, 4
      %s420 = scalar_lea.vmem %s4, %s419
      // Predicated region
      $region37: #{ndnet_segmentation_forward.14} parent=35 // pred_check
        %p421 = pneg %p138
      $region38: #{ndnet_segmentation_forward.14} parent=35 // pred_check_branch
        %423 = sbr.rel (%p421) target = $region40
      $region39: #{ndnet_segmentation_forward.14} parent=35 // pred_region
        _
      $region40: #{ndnet_segmentation_forward.14} parent=35 // pred_fallthru
        _
    $region36: #{ndnet_segmentation_forward.14} parent=5 // pred_fallthru
      _
    %p424 = scmp.le.s32.totalorder 2, %s10
    // Predicated region
    $region41: #{ndnet_segmentation_forward.14} parent=5 // pred_check
      %p425 = pneg %p424
    $region42: #{ndnet_segmentation_forward.14} parent=5 // pred_check_branch
      %427 = sbr.rel (%p425) target = $region44
    $region43: #{ndnet_segmentation_forward.14} parent=5 // pred_region
      %s428 = ssub.s32 %s10, 2
      // Predicated region
      $region45: #{ndnet_segmentation_forward.14} parent=43 // pred_check
        %p429 = pneg %p144
      $region46: #{ndnet_segmentation_forward.14} parent=43 // pred_check_branch
        %431 = sbr.rel (%p429) target = $region48
      $region47: #{ndnet_segmentation_forward.14} parent=43 // pred_region
        %p432 = scmp.lt.s32.totalorder %s21, 1
        %s433 = scalar_select %p432, %s21, 1
        %p434 = scmp.lt.s32.totalorder %s22, 0
        %s435 = scalar_select %p434, %s22, 0
        %s436 = smul.addr %s433, 4
        %s437 = sadd.s32 %s435, %s436
        %s438 = smul.addr %s437, 4
        %s439 = scalar_lea.vmem %s4, %s438
      $region48: #{ndnet_segmentation_forward.14} parent=43 // pred_fallthru
        _
    $region44: #{ndnet_segmentation_forward.14} parent=5 // pred_fallthru
      _
  $region6: #{ndnet_segmentation_forward.14} parent=0 // loop_footer
    %s14 = sadd.s32 1, %s10
  $region7: #{ndnet_segmentation_forward.14} parent=0 // loop_footer_branch
    %9 = sbr.rel target = $region3
  $region8: #{ndnet_segmentation_forward.14} parent=0 // loop_exit
    _

// kernel: ndnet_segmentation_forward.18
$region0: #{ndnet_segmentation_forward.18}
  #allocation0 [shape = 'u32[]', space=smem, size = 0x4, offset = 0x4, fixed_abs, tag = 'smem constant byte address 0x4 - core index']
  #allocation1 [shape = 'u32[144,128]{1,0:T(1,128)}', space=vmem, size = 0x12000, scoped, tag = 'internal scratch']
  %s0 = inlined_call_operand.vmem [shape: bf16[64,8], index: 0, kind: input, shape index: {}]
  %s1 = inlined_call_operand.vmem [shape: bf16[8,16], index: 1, kind: input, shape index: {}]
  %s2 = inlined_call_operand.vmem [shape: f32[1,16], index: 2, kind: input, shape index: {}]
  %s3 = inlined_call_operand.vmem [shape: f32[1,16], index: 3, kind: input, shape index: {}]
  %s4 = inlined_call_operand.vmem [shape: bf16[64,16], index: 4, kind: output, shape index: {}]
  %s5 = sld [smem:[#allocation0]]
  $region26: #{ndnet_segmentation_forward.18} parent=0
    _
  %s7 = ssub.s32 1, %s5
  %s8 = scalar_select 0, %s7, %s5
  // Predicated region
  $region2: #{ndnet_segmentation_forward.18} parent=0 // pred_check
    _
  $region3: #{ndnet_segmentation_forward.18} parent=0 // pred_check_branch
    %10 = sbr.rel (0) target = $region5
  $region4: #{ndnet_segmentation_forward.18} parent=0 // pred_region
    _
  $region5: #{ndnet_segmentation_forward.18} parent=0 // pred_fallthru
    _
  // Predicated region
  $region6: #{ndnet_segmentation_forward.18} parent=0 // pred_check
    _
  $region7: #{ndnet_segmentation_forward.18} parent=0 // pred_check_branch
    %12 = sbr.rel (0) target = $region9
  $region8: #{ndnet_segmentation_forward.18} parent=0 // pred_region
    _
  $region9: #{ndnet_segmentation_forward.18} parent=0 // pred_fallthru
    _
  // Predicated region
  $region10: #{ndnet_segmentation_forward.18} parent=0 // pred_check
    _
  $region11: #{ndnet_segmentation_forward.18} parent=0 // pred_check_branch
    %14 = sbr.rel (0) target = $region13
  $region12: #{ndnet_segmentation_forward.18} parent=0 // pred_region
    _
  $region13: #{ndnet_segmentation_forward.18} parent=0 // pred_fallthru
    _
  // Predicated region
  $region14: #{ndnet_segmentation_forward.18} parent=0 // pred_check
    _
  $region15: #{ndnet_segmentation_forward.18} parent=0 // pred_check_branch
    %16 = sbr.rel (0) target = $region17
  $region16: #{ndnet_segmentation_forward.18} parent=0 // pred_region
    _
  $region17: #{ndnet_segmentation_forward.18} parent=0 // pred_fallthru
    _
  %v18 = vld [vmem:[%s0] sm:$0xf]
  %v19 = vld [vmem:[%s0 + $0x4] sm:$0xf]
  %v20 = vld [vmem:[%s0 + $0x8] sm:$0xf]
  %v21 = vld [vmem:[%s0 + $0xc] sm:$0xf]
  %v22 = vld [vmem:[%s0 + $0x10] sm:$0xf]
  %v23 = vld [vmem:[%s0 + $0x14] sm:$0xf]
  %v24 = vld [vmem:[%s0 + $0x18] sm:$0xf]
  %v25 = vld [vmem:[%s0 + $0x1c] sm:$0xf]
  %v26 = vld [vmem:[%s1] sm:$0xf]
  %v35 = vunpack.c.l.b16 %v18
  %v36 = vunpack.c.l.b16 %v19
  %v37 = vunpack.c.l.b16 %v20
  %v38 = vunpack.c.l.b16 %v21
  %v39 = vunpack.c.l.b16 %v22
  %v40 = vunpack.c.l.b16 %v23
  %v41 = vunpack.c.l.b16 %v24
  %v42 = vunpack.c.l.b16 %v25
  %v43 = vpack.c.b16 %v36, %v35
  %v44 = vpack.c.b16 %v38, %v37
  %v45 = vpack.c.b16 %v40, %v39
  %v46 = vpack.c.b16 %v42, %v41
  %vm47 = vcmask 64512
  %v49 = vsel %vm47, %v43, 0
  %v52 = vsel %vm47, %v44, 0
  %v55 = vsel %vm47, %v45, 0
  %v58 = vsel %vm47, %v46, 0
  %vm60 = vcmask 1043456
  %v62 = vsel %vm60, %v26, 0
  %64 = vmatprep.subr.bf16.mxu0 0
  %65 = vmatpush1.bf16.msra.mxu0 %v62
  %66 = vmatprep.subr.bf16.mxu0 0
  %67 = vmatpush1.bf16.msra.mxu0 0
  %68 = vmatprep.subr.bf16.mxu0 0
  %69 = vmatpush1.bf16.msra.mxu0 0
  %70 = vmatprep.subr.bf16.mxu0 0
  %71 = vmatpush1.bf16.msra.mxu0 0
  %72 = vmatprep.subr.bf16.mxu0 0
  %73 = vmatpush1.bf16.msra.mxu0 0
  %74 = vmatprep.subr.bf16.mxu0 0
  %75 = vmatpush1.bf16.msra.mxu0 0
  %76 = vmatprep.subr.bf16.mxu0 0
  %77 = vmatpush1.bf16.msra.mxu0 0
  %78 = vmatprep.subr.bf16.mxu0 0
  %79 = vmatpush1.bf16.msra.mxu0 0
  %80 = vmatprep.subr.bf16.mxu0 0
  %81 = vmatpush1.bf16.msra.mxu0 0
  %82 = vmatprep.subr.bf16.mxu0 0
  %83 = vmatpush1.bf16.msra.mxu0 0
  %84 = vmatprep.subr.bf16.mxu0 0
  %85 = vmatpush1.bf16.msra.mxu0 0
  %86 = vmatprep.subr.bf16.mxu0 0
  %87 = vmatpush1.bf16.msra.mxu0 0
  %88 = vmatprep.subr.bf16.mxu0 0
  %89 = vmatpush1.bf16.msra.mxu0 0
  %90 = vmatprep.subr.bf16.mxu0 0
  %91 = vmatpush1.bf16.msra.mxu0 0
  %92 = vmatprep.subr.bf16.mxu0 0
  %93 = vmatpush1.bf16.msra.mxu0 0
  %94 = vmatprep.subr.bf16.mxu0 0
  %95 = vmatpush1.bf16.msra.mxu0 0
  %96 = vmatprep.mubr.bf16.mxu0 0
  %97 = vmatmul.mubr.bf16.gmra.mrb[0].mxu0 %v49
  %v98 = vpop.f32.mrb[0].mxu0
  %v99 = vadd.f32 0.0, %v98
  %v100 = vpop.f32.mrb[0].mxu0
  %v101 = vpop.f32.mrb[0].mxu0
  %v102 = vadd.f32 0.0, %v101
  %v103 = vpop.f32.mrb[0].mxu0
  %104 = vmatprep.mubr.bf16.mxu0 0
  %105 = vmatmul.mubr.bf16.gmra.mrb[0].mxu0 %v52
  %v106 = vpop.f32.mrb[0].mxu0
  %v107 = vadd.f32 0.0, %v106
  %v108 = vpop.f32.mrb[0].mxu0
  %v109 = vpop.f32.mrb[0].mxu0
  %v110 = vadd.f32 0.0, %v109
  %v111 = vpop.f32.mrb[0].mxu0
  %112 = vmatprep.mubr.bf16.mxu0 0
  %113 = vmatmul.mubr.bf16.gmra.mrb[0].mxu0 %v55
  %v114 = vpop.f32.mrb[0].mxu0
  %v115 = vadd.f32 0.0, %v114
  %v116 = vpop.f32.mrb[0].mxu0
  %v117 = vpop.f32.mrb[0].mxu0
  %v118 = vadd.f32 0.0, %v117
  %v119 = vpop.f32.mrb[0].mxu0
  %120 = vmatprep.mubr.bf16.mxu0 0
  %121 = vmatmul.mubr.bf16.gmra.mrb[0].mxu0 %v58
  %v122 = vpop.f32.mrb[0].mxu0
  %v123 = vadd.f32 0.0, %v122
  %v124 = vpop.f32.mrb[0].mxu0
  %v125 = vpop.f32.mrb[0].mxu0
  %v126 = vadd.f32 0.0, %v125
  %v127 = vpop.f32.mrb[0].mxu0
  %128 = vdwg.mxu0
  %v129 = vld [vmem:[%s2] sm:$0x1]
  %v131 = vlaneseq
  %v132 = vshrl.u32 %v131, 7
  %v133 = vsub.s32 0, %v132
  %v134 = vrot.slane %v129, %v133
  %v136 = vmul.f32 %v99, %v134
  %v137 = vmul.f32 %v102, %v134
  %v138 = vmul.f32 %v107, %v134
  %v139 = vmul.f32 %v110, %v134
  %v140 = vmul.f32 %v115, %v134
  %v141 = vmul.f32 %v118, %v134
  %v142 = vmul.f32 %v123, %v134
  %v143 = vmul.f32 %v126, %v134
  %v144 = vld [vmem:[%s3] sm:$0x1]
  %v146 = vlaneseq
  %v147 = vshrl.u32 %v146, 7
  %v148 = vsub.s32 0, %v147
  %v149 = vrot.slane %v144, %v148
  %v151 = vadd.f32 %v136, %v149
  %v152 = vadd.f32 %v137, %v149
  %v153 = vadd.f32 %v138, %v149
  %v154 = vadd.f32 %v139, %v149
  %v155 = vadd.f32 %v140, %v149
  %v156 = vadd.f32 %v141, %v149
  %v157 = vadd.f32 %v142, %v149
  %v158 = vadd.f32 %v143, %v149
  %v159 = vmax.f32 %v151, 0.0
  %v160 = vmax.f32 %v152, 0.0
  %v161 = vmax.f32 %v153, 0.0
  %v162 = vmax.f32 %v154, 0.0
  %v163 = vmax.f32 %v155, 0.0
  %v164 = vmax.f32 %v156, 0.0
  %v165 = vmax.f32 %v157, 0.0
  %v166 = vmax.f32 %v158, 0.0
  %v167 = vpack.c.bf16 %v160, %v159
  %v168 = vpack.c.bf16 %v162, %v161
  %v169 = vpack.c.bf16 %v164, %v163
  %v170 = vpack.c.bf16 %v166, %v165
  %v175 = vunpack.c.l.b16 %v167
  %v176 = vunpack.c.h.b16 %v167
  %v177 = vunpack.c.l.b16 %v168
  %v178 = vunpack.c.h.b16 %v168
  %v179 = vunpack.c.l.b16 %v169
  %v180 = vunpack.c.h.b16 %v169
  %v181 = vunpack.c.l.b16 %v170
  %v182 = vunpack.c.h.b16 %v170
  %v183 = vpack.c.b16 %v175, %v175
  %v184 = vpack.c.b16 %v176, %v176
  %v185 = vpack.c.b16 %v177, %v177
  %v186 = vpack.c.b16 %v178, %v178
  %v187 = vpack.c.b16 %v179, %v179
  %v188 = vpack.c.b16 %v180, %v180
  %v189 = vpack.c.b16 %v181, %v181
  %v190 = vpack.c.b16 %v182, %v182
  %vm199 = vcmask 125952
  %200 = vst.msk [vmem:[%s4] sm:$0xf] %vm199, %v183
  %201 = vst.msk [vmem:[%s4 + $0x4] sm:$0xf] %vm199, %v184
  %202 = vst.msk [vmem:[%s4 + $0x8] sm:$0xf] %vm199, %v185
  %203 = vst.msk [vmem:[%s4 + $0xc] sm:$0xf] %vm199, %v186
  %204 = vst.msk [vmem:[%s4 + $0x10] sm:$0xf] %vm199, %v187
  %205 = vst.msk [vmem:[%s4 + $0x14] sm:$0xf] %vm199, %v188
  %206 = vst.msk [vmem:[%s4 + $0x18] sm:$0xf] %vm199, %v189
  %207 = vst.msk [vmem:[%s4 + $0x1c] sm:$0xf] %vm199, %v190
  // Predicated region
  $region18: #{ndnet_segmentation_forward.18} parent=0 // pred_check
    _
  $region19: #{ndnet_segmentation_forward.18} parent=0 // pred_check_branch
    %209 = sbr.rel (0) target = $region21
  $region20: #{ndnet_segmentation_forward.18} parent=0 // pred_region
    _
  $region21: #{ndnet_segmentation_forward.18} parent=0 // pred_fallthru
    _
  // Predicated region
  $region22: #{ndnet_segmentation_forward.18} parent=0 // pred_check
    _
  $region23: #{ndnet_segmentation_forward.18} parent=0 // pred_check_branch
    %211 = sbr.rel (0) target = $region25
  $region24: #{ndnet_segmentation_forward.18} parent=0 // pred_region
    _
  $region25: #{ndnet_segmentation_forward.18} parent=0 // pred_fallthru
    _

// kernel: ndnet_segmentation_forward.15
$region0: #{ndnet_segmentation_forward.15}
  #allocation0 [shape = 'u32[]', space=smem, size = 0x4, offset = 0x4, fixed_abs, tag = 'smem constant byte address 0x4 - core index']
  #allocation1 [shape = 'u32[144,128]{1,0:T(1,128)}', space=vmem, size = 0x12000, scoped, tag = 'internal scratch']
  %s0 = inlined_call_operand.vmem [shape: f32[2,3,8], index: 0, kind: input, shape index: {}]
  %s1 = inlined_call_operand.vmem [shape: f32[2,44,8], index: 1, kind: input, shape index: {}]
  %s2 = inlined_call_operand.vmem [shape: bf16[64,3], index: 2, kind: input, shape index: {}]
  %s3 = inlined_call_operand.vmem [shape: bf16[64,44], index: 3, kind: input, shape index: {}]
  %s4 = inlined_call_operand.vmem [shape: f32[64,1], index: 4, kind: input, shape index: {}]
  %s5 = inlined_call_operand.vmem [shape: f32[64,1], index: 5, kind: input, shape index: {}]
  %s6 = inlined_call_operand.vmem [shape: bf16[2,64,8], index: 6, kind: output, shape index: {}]
  %s7 = sld [smem:[#allocation0]]
  $region57: #{ndnet_segmentation_forward.15} parent=0
    _
  %s9 = ssub.s32 1, %s7
  %s10 = scalar_select 0, %s9, %s7
  loop: start=0, step=1, limit=4
  $region2: #{ndnet_segmentation_forward.15} parent=0 // loop_pre_header
    _
  $region3: #{ndnet_segmentation_forward.15} parent=0 // loop_header
    %s12 = sphi 0, %s16
    %p13 = scmp.ge.s32.totalorder %s12, 4
    %s19 = sphi 0, %s31
    %s20 = sphi 0, %s27
    %s21 = sphi 0, %s19
    %s22 = sphi 0, %s20
    %s23 = sphi 0, %s21
    %s24 = sphi 0, %s22
    %s36 = sphi 0, %s38
    %s39 = sphi 0, %s36
    %s40 = sphi 0, %s39
    %s56 = sphi 0, %s40
    %s64 = sphi 0, %s66
    %s67 = sphi 0, %s64
    %s68 = sphi 0, %s67
    %s84 = sphi 0, %s68
    %s88 = sphi 0, %s88
    %s90 = sphi 0, %s88
    %s91 = sphi 0, %s90
    %s105 = sphi 0, %s91
    %s109 = sphi 0, %s109
    %s111 = sphi 0, %s109
    %s112 = sphi 0, %s111
    %s126 = sphi 0, %s112
    %s130 = sphi 0, %s130
    %s132 = sphi 0, %s130
    %s133 = sphi 0, %s132
    %s147 = sphi 0, %s133
    %s151 = sphi 0, %s151
    %s153 = sphi 0, %s151
    %s154 = sphi 0, %s153
    %s168 = sphi 0, %s154
    %s176 = sphi 0, %s178
    %s179 = sphi 0, %s176
    %s180 = sphi 0, %s179
    %s196 = sphi 0, %s180
  $region4: #{ndnet_segmentation_forward.15} parent=0 // loop_header_branch
    %15 = sbr.rel (%p13) target = $region8
  $region5: #{ndnet_segmentation_forward.15} parent=0 // loop_body
    %s17 = ssub.s32 %s12, 1
    %s18 = ssub.s32 %s12, 2
    %s25 = sadd.s32 1, %s20
    %p26 = scmp.ge.s32.totalorder %s25, 1
    %s27 = scalar_select %p26, 0, %s25
    %s28 = sadd.s32 1, %s19
    %s29 = scalar_select %p26, %s28, %s19
    %p30 = scmp.ge.s32.totalorder %s29, 2
    %s31 = scalar_select %p30, 0, %s29
    %s32 = ssub.s32 %s19, %s31
    %s33 = ssub.s32 %s20, %s27
    %s34 = sor.u32 %s32, %s33
    %p35 = scmp.eq.s32.totalorder %s34, 0
    %s37 = sadd.s32 %s36, 1
    %s38 = scalar_select %p35, %s36, %s37
    %p41 = pneg %p35
    %p42 = scmp.eq.s32.totalorder %s12, 1
    %p43 = por %p41, %p42
    %p44 = scmp.ne.s32.totalorder %s36, %s39
    %p45 = scmp.eq.s32.totalorder %s12, 0
    %p46 = por %p44, %p45
    %p47 = scmp.ne.s32.totalorder %s36, %s39
    %p48 = scmp.eq.s32.totalorder %s17, 1
    %p49 = por %p47, %p48
    %p50 = scmp.ne.s32.totalorder %s39, %s40
    %p51 = scmp.eq.s32.totalorder %s17, 0
    %p52 = por %p50, %p51
    %p53 = scmp.ne.s32.totalorder %s39, %s40
    %p54 = scmp.eq.s32.totalorder %s18, 1
    %p55 = por %p53, %p54
    %p57 = scmp.ne.s32.totalorder %s40, %s56
    %p58 = scmp.eq.s32.totalorder %s18, 0
    %p59 = por %p57, %p58
    %s60 = ssub.s32 %s19, %s31
    %s61 = ssub.s32 %s20, %s27
    %s62 = sor.u32 %s60, %s61
    %p63 = scmp.eq.s32.totalorder %s62, 0
    %s65 = sadd.s32 %s64, 1
    %s66 = scalar_select %p63, %s64, %s65
    %p69 = pneg %p63
    %p70 = scmp.eq.s32.totalorder %s12, 1
    %p71 = por %p69, %p70
    %p72 = scmp.ne.s32.totalorder %s64, %s67
    %p73 = scmp.eq.s32.totalorder %s12, 0
    %p74 = por %p72, %p73
    %p75 = scmp.ne.s32.totalorder %s64, %s67
    %p76 = scmp.eq.s32.totalorder %s17, 1
    %p77 = por %p75, %p76
    %p78 = scmp.ne.s32.totalorder %s67, %s68
    %p79 = scmp.eq.s32.totalorder %s17, 0
    %p80 = por %p78, %p79
    %p81 = scmp.ne.s32.totalorder %s67, %s68
    %p82 = scmp.eq.s32.totalorder %s18, 1
    %p83 = por %p81, %p82
    %p85 = scmp.ne.s32.totalorder %s68, %s84
    %p86 = scmp.eq.s32.totalorder %s18, 0
    %p87 = por %p85, %p86
    %s89 = sadd.s32 %s88, 1
    %p92 = scmp.eq.s32.totalorder %s12, 1
    %p93 = scmp.ne.s32.totalorder %s88, %s90
    %p94 = scmp.eq.s32.totalorder %s12, 0
    %p95 = por %p93, %p94
    %p96 = scmp.ne.s32.totalorder %s88, %s90
    %p97 = scmp.eq.s32.totalorder %s17, 1
    %p98 = por %p96, %p97
    %p99 = scmp.ne.s32.totalorder %s90, %s91
    %p100 = scmp.eq.s32.totalorder %s17, 0
    %p101 = por %p99, %p100
    %p102 = scmp.ne.s32.totalorder %s90, %s91
    %p103 = scmp.eq.s32.totalorder %s18, 1
    %p104 = por %p102, %p103
    %p106 = scmp.ne.s32.totalorder %s91, %s105
    %p107 = scmp.eq.s32.totalorder %s18, 0
    %p108 = por %p106, %p107
    %s110 = sadd.s32 %s109, 1
    %p113 = scmp.eq.s32.totalorder %s12, 1
    %p114 = scmp.ne.s32.totalorder %s109, %s111
    %p115 = scmp.eq.s32.totalorder %s12, 0
    %p116 = por %p114, %p115
    %p117 = scmp.ne.s32.totalorder %s109, %s111
    %p118 = scmp.eq.s32.totalorder %s17, 1
    %p119 = por %p117, %p118
    %p120 = scmp.ne.s32.totalorder %s111, %s112
    %p121 = scmp.eq.s32.totalorder %s17, 0
    %p122 = por %p120, %p121
    %p123 = scmp.ne.s32.totalorder %s111, %s112
    %p124 = scmp.eq.s32.totalorder %s18, 1
    %p125 = por %p123, %p124
    %p127 = scmp.ne.s32.totalorder %s112, %s126
    %p128 = scmp.eq.s32.totalorder %s18, 0
    %p129 = por %p127, %p128
    %s131 = sadd.s32 %s130, 1
    %p134 = scmp.eq.s32.totalorder %s12, 1
    %p135 = scmp.ne.s32.totalorder %s130, %s132
    %p136 = scmp.eq.s32.totalorder %s12, 0
    %p137 = por %p135, %p136
    %p138 = scmp.ne.s32.totalorder %s130, %s132
    %p139 = scmp.eq.s32.totalorder %s17, 1
    %p140 = por %p138, %p139
    %p141 = scmp.ne.s32.totalorder %s132, %s133
    %p142 = scmp.eq.s32.totalorder %s17, 0
    %p143 = por %p141, %p142
    %p144 = scmp.ne.s32.totalorder %s132, %s133
    %p145 = scmp.eq.s32.totalorder %s18, 1
    %p146 = por %p144, %p145
    %p148 = scmp.ne.s32.totalorder %s133, %s147
    %p149 = scmp.eq.s32.totalorder %s18, 0
    %p150 = por %p148, %p149
    %s152 = sadd.s32 %s151, 1
    %p155 = scmp.eq.s32.totalorder %s12, 1
    %p156 = scmp.ne.s32.totalorder %s151, %s153
    %p157 = scmp.eq.s32.totalorder %s12, 0
    %p158 = por %p156, %p157
    %p159 = scmp.ne.s32.totalorder %s151, %s153
    %p160 = scmp.eq.s32.totalorder %s17, 1
    %p161 = por %p159, %p160
    %p162 = scmp.ne.s32.totalorder %s153, %s154
    %p163 = scmp.eq.s32.totalorder %s17, 0
    %p164 = por %p162, %p163
    %p165 = scmp.ne.s32.totalorder %s153, %s154
    %p166 = scmp.eq.s32.totalorder %s18, 1
    %p167 = por %p165, %p166
    %p169 = scmp.ne.s32.totalorder %s154, %s168
    %p170 = scmp.eq.s32.totalorder %s18, 0
    %p171 = por %p169, %p170
    %s172 = ssub.s32 %s19, %s31
    %s173 = ssub.s32 %s20, %s27
    %s174 = sor.u32 %s172, %s173
    %p175 = scmp.eq.s32.totalorder %s174, 0
    %s177 = sadd.s32 %s176, 1
    %s178 = scalar_select %p175, %s176, %s177
    %p181 = pneg %p175
    %p182 = scmp.eq.s32.totalorder %s12, 1
    %p183 = por %p181, %p182
    %p184 = scmp.ne.s32.totalorder %s176, %s179
    %p185 = scmp.eq.s32.totalorder %s12, 0
    %p186 = por %p184, %p185
    %p187 = scmp.ne.s32.totalorder %s176, %s179
    %p188 = scmp.eq.s32.totalorder %s17, 1
    %p189 = por %p187, %p188
    %p190 = scmp.ne.s32.totalorder %s179, %s180
    %p191 = scmp.eq.s32.totalorder %s17, 0
    %p192 = por %p190, %p191
    %p193 = scmp.ne.s32.totalorder %s179, %s180
    %p194 = scmp.eq.s32.totalorder %s18, 1
    %p195 = por %p193, %p194
    %p197 = scmp.ne.s32.totalorder %s180, %s196
    %p198 = scmp.eq.s32.totalorder %s18, 0
    %p199 = por %p197, %p198
    %p200 = scmp.le.s32.totalorder 1, %s12
    %p201 = scmp.lt.s32.totalorder %s12, 3
    %p202 = pnand %p200, %p201
    %p203 = pneg %p202
    // Predicated region
    $region9: #{ndnet_segmentation_forward.15} parent=5 // pred_check
      _
    $region10: #{ndnet_segmentation_forward.15} parent=5 // pred_check_branch
      %205 = sbr.rel (%p202) target = $region12
    $region11: #{ndnet_segmentation_forward.15} parent=5 // pred_region
      %s206 = ssub.s32 %s12, 1
      // Predicated region
      $region13: #{ndnet_segmentation_forward.15} parent=11 // pred_check
        %p207 = pneg %p101
      $region14: #{ndnet_segmentation_forward.15} parent=11 // pred_check_branch
        %209 = sbr.rel (%p207) target = $region16
      $region15: #{ndnet_segmentation_forward.15} parent=11 // pred_region
        _
      $region16: #{ndnet_segmentation_forward.15} parent=11 // pred_fallthru
        _
      // Predicated region
      $region17: #{ndnet_segmentation_forward.15} parent=11 // pred_check
        %p210 = pneg %p122
      $region18: #{ndnet_segmentation_forward.15} parent=11 // pred_check_branch
        %212 = sbr.rel (%p210) target = $region20
      $region19: #{ndnet_segmentation_forward.15} parent=11 // pred_region
        _
      $region20: #{ndnet_segmentation_forward.15} parent=11 // pred_fallthru
        _
      // Predicated region
      $region21: #{ndnet_segmentation_forward.15} parent=11 // pred_check
        %p213 = pneg %p143
      $region22: #{ndnet_segmentation_forward.15} parent=11 // pred_check_branch
        %215 = sbr.rel (%p213) target = $region24
      $region23: #{ndnet_segmentation_forward.15} parent=11 // pred_region
        _
      $region24: #{ndnet_segmentation_forward.15} parent=11 // pred_fallthru
        _
      // Predicated region
      $region25: #{ndnet_segmentation_forward.15} parent=11 // pred_check
        %p216 = pneg %p164
      $region26: #{ndnet_segmentation_forward.15} parent=11 // pred_check_branch
        %218 = sbr.rel (%p216) target = $region28
      $region27: #{ndnet_segmentation_forward.15} parent=11 // pred_region
        _
      $region28: #{ndnet_segmentation_forward.15} parent=11 // pred_fallthru
        _
    $region12: #{ndnet_segmentation_forward.15} parent=5 // pred_fallthru
      _
    %p219 = scmp.lt.s32.totalorder %s12, 2
    // Predicated region
    $region29: #{ndnet_segmentation_forward.15} parent=5 // pred_check
      %p220 = pneg %p219
    $region30: #{ndnet_segmentation_forward.15} parent=5 // pred_check_branch
      %222 = sbr.rel (%p220) target = $region32
    $region31: #{ndnet_segmentation_forward.15} parent=5 // pred_region
      // Predicated region
      $region33: #{ndnet_segmentation_forward.15} parent=31 // pred_check
        %p223 = pneg %p46
      $region34: #{ndnet_segmentation_forward.15} parent=31 // pred_check_branch
        %225 = sbr.rel (%p223) target = $region36
      $region35: #{ndnet_segmentation_forward.15} parent=31 // pred_region
        %p226 = scmp.lt.s32.totalorder %s19, 1
        %s227 = scalar_select %p226, %s19, 1
        %p228 = scmp.lt.s32.totalorder %s20, 0
        %s229 = scalar_select %p228, %s20, 0
        %s230 = sadd.s32 %s229, %s227
        %s231 = smul.addr %s230, 4
        %s232 = scalar_lea.vmem %s0, %s231
      $region36: #{ndnet_segmentation_forward.15} parent=31 // pred_fallthru
        _
      // Predicated region
      $region37: #{ndnet_segmentation_forward.15} parent=31 // pred_check
        %p233 = pneg %p74
      $region38: #{ndnet_segmentation_forward.15} parent=31 // pred_check_branch
        %235 = sbr.rel (%p233) target = $region40
      $region39: #{ndnet_segmentation_forward.15} parent=31 // pred_region
        %p236 = scmp.lt.s32.totalorder %s19, 1
        %s237 = scalar_select %p236, %s19, 1
        %p238 = scmp.lt.s32.totalorder %s20, 0
        %s239 = scalar_select %p238, %s20, 0
        %s240 = smul.addr %s237, 6
        %s241 = sadd.s32 %s239, %s240
        %s242 = smul.addr %s241, 8
        %s243 = scalar_lea.vmem %s1, %s242
      $region40: #{ndnet_segmentation_forward.15} parent=31 // pred_fallthru
        _
    $region32: #{ndnet_segmentation_forward.15} parent=5 // pred_fallthru
      _
    %p244 = scmp.le.s32.totalorder 1, %s12
    %p245 = scmp.lt.s32.totalorder %s12, 3
    %p246 = pnand %p244, %p245
    %p247 = pneg %p246
    // Predicated region
    $region41: #{ndnet_segmentation_forward.15} parent=5 // pred_check
      _
    $region42: #{ndnet_segmentation_forward.15} parent=5 // pred_check_branch
      %249 = sbr.rel (%p246) target = $region44
    $region43: #{ndnet_segmentation_forward.15} parent=5 // pred_region
      %s250 = ssub.s32 %s12, 1
      %p251 = scmp.lt.s32.totalorder %s21, 1
      %s252 = scalar_select %p251, %s21, 1
      %p253 = scmp.lt.s32.totalorder %s22, 0
      %s254 = scalar_select %p253, %s22, 0
      %s255 = sadd.s32 %s254, %s252
      %s256 = smul.addr %s255, 4
      %s257 = scalar_lea.vmem %s0, %s256
      %p258 = pneg %p52
      %p259 = pneg %p49
      %p260 = scmp.lt.s32.totalorder %s21, 1
      %s261 = scalar_select %p260, %s21, 1
      %p262 = scmp.lt.s32.totalorder %s22, 0
      %s263 = scalar_select %p262, %s22, 0
      %s264 = smul.addr %s261, 6
      %s265 = sadd.s32 %s263, %s264
      %s266 = smul.addr %s265, 8
      %s267 = scalar_lea.vmem %s1, %s266
      %p268 = pneg %p80
      %p269 = pneg %p77
      %p270 = pneg %p101
      %p271 = pneg %p98
      %p272 = pneg %p122
      %p273 = pneg %p119
      %p274 = pneg %p143
      %p275 = pneg %p140
      %p276 = pneg %p164
      %p277 = pneg %p161
      %p278 = pneg %p192
      %p279 = pneg %p189
      %p280 = scmp.lt.s32.totalorder %s21, 1
      %s281 = scalar_select %p280, %s21, 1
      %p282 = scmp.lt.s32.totalorder %s22, 0
      %s283 = scalar_select %p282, %s22, 0
      %s284 = smul.addr %s281, 8
      %s285 = sadd.s32 %s283, %s284
      %s286 = smul.addr %s285, 4
      %s287 = scalar_lea.vmem %s6, %s286
      %p288 = scmp.lt.s32.totalorder %s21, 1
      %s289 = scalar_select %p288, %s21, 1
      %p290 = scmp.lt.s32.totalorder %s22, 0
      %s291 = scalar_select %p290, %s22, 0
      %s292 = sadd.s32 %s291, %s289
      %s293 = smul.addr %s292, 4
      %s294 = scalar_lea.vmem %s0, %s293
      %p295 = scmp.lt.s32.totalorder %s21, 1
      %s296 = scalar_select %p295, %s21, 1
      %p297 = scmp.lt.s32.totalorder %s22, 0
      %s298 = scalar_select %p297, %s22, 0
      %s299 = smul.addr %s296, 6
      %s300 = sadd.s32 %s298, %s299
      %s301 = smul.addr %s300, 8
      %s302 = scalar_lea.vmem %s1, %s301
      %p303 = scmp.lt.s32.totalorder %s21, 1
      %s304 = scalar_select %p303, %s21, 1
      %p305 = scmp.lt.s32.totalorder %s22, 0
      %s306 = scalar_select %p305, %s22, 0
      %s307 = smul.addr %s304, 8
      %s308 = sadd.s32 %s306, %s307
      %s309 = smul.addr %s308, 4
      %s310 = scalar_lea.vmem %s6, %s309
      %v312 = vld [vmem:[%s294] sm:$0x7]
      %v313 = vld [vmem:[%s2] sm:$0xf]
      %v314 = vld [vmem:[%s2 + $0x4] sm:$0xf]
      %v315 = vld [vmem:[%s2 + $0x8] sm:$0xf]
      %v316 = vld [vmem:[%s2 + $0xc] sm:$0xf]
      %v317 = vld [vmem:[%s2 + $0x10] sm:$0xf]
      %v318 = vld [vmem:[%s2 + $0x14] sm:$0xf]
      %v319 = vld [vmem:[%s2 + $0x18] sm:$0xf]
      %v320 = vld [vmem:[%s2 + $0x1c] sm:$0xf]
      %v321 = vpack.c.bf16 %v312, %v312
      %v322 = vld [vmem:[%s302] sm:$0xff]
      %v323 = vld [vmem:[%s302 + $0x8] sm:$0xff]
      %v324 = vld [vmem:[%s302 + $0x10] sm:$0xff]
      %v325 = vld [vmem:[%s302 + $0x18] sm:$0xff]
      %v326 = vld [vmem:[%s302 + $0x20] sm:$0xff]
      %v327 = vld [vmem:[%s302 + $0x28] sm:$0xf]
      %v328 = vld [vmem:[%s3] sm:$0xf]
      %v329 = vld [vmem:[%s3 + $0x4] sm:$0xf]
      %v330 = vld [vmem:[%s3 + $0x8] sm:$0xf]
      %v331 = vld [vmem:[%s3 + $0xc] sm:$0xf]
      %v332 = vld [vmem:[%s3 + $0x10] sm:$0xf]
      %v333 = vld [vmem:[%s3 + $0x14] sm:$0xf]
      %v334 = vld [vmem:[%s3 + $0x18] sm:$0xf]
      %v335 = vld [vmem:[%s3 + $0x1c] sm:$0xf]
      %v336 = vpack.c.bf16 %v323, %v322
      %v337 = vpack.c.bf16 %v325, %v324
      %v338 = vpack.c.bf16 %v327, %v326
      %v347 = vunpack.c.l.b16 %v328
      %v348 = vunpack.c.l.b16 %v329
      %v349 = vunpack.c.l.b16 %v330
      %v350 = vunpack.c.l.b16 %v331
      %v351 = vunpack.c.l.b16 %v332
      %v352 = vunpack.c.l.b16 %v333
      %v353 = vunpack.c.l.b16 %v334
      %v354 = vunpack.c.l.b16 %v335
      %v355 = vpack.c.b16 %v348, %v347
      %v356 = vpack.c.b16 %v350, %v349
      %v357 = vpack.c.b16 %v352, %v351
      %v358 = vpack.c.b16 %v354, %v353
      %vm359 = vcmask 359424
      %v361 = vsel %vm359, %v355, 0
      %v364 = vsel %vm359, %v356, 0
      %v367 = vsel %vm359, %v357, 0
      %v370 = vsel %vm359, %v358, 0
      %vm372 = vcmask 1045504
      %v374 = vsel %vm372, %v338, 0
      %376 = vmatprep.subr.bf16.mxu0 0
      %377 = vmatpush1.bf16.msra.mxu0 %v336
      %378 = vmatprep.subr.bf16.mxu0 0
      %379 = vmatpush1.bf16.msra.mxu0 %v337
      %380 = vmatprep.subr.bf16.mxu0 0
      %381 = vmatpush1.bf16.msra.mxu0 %v374
      %382 = vmatprep.subr.bf16.mxu0 0
      %383 = vmatpush1.bf16.msra.mxu0 0
      %384 = vmatprep.subr.bf16.mxu0 0
      %385 = vmatpush1.bf16.msra.mxu0 0
      %386 = vmatprep.subr.bf16.mxu0 0
      %387 = vmatpush1.bf16.msra.mxu0 0
      %388 = vmatprep.subr.bf16.mxu0 0
      %389 = vmatpush1.bf16.msra.mxu0 0
      %390 = vmatprep.subr.bf16.mxu0 0
      %391 = vmatpush1.bf16.msra.mxu0 0
      %392 = vmatprep.subr.bf16.mxu0 0
      %393 = vmatpush1.bf16.msra.mxu0 0
      %394 = vmatprep.subr.bf16.mxu0 0
      %395 = vmatpush1.bf16.msra.mxu0 0
      %396 = vmatprep.subr.bf16.mxu0 0
      %397 = vmatpush1.bf16.msra.mxu0 0
      %398 = vmatprep.subr.bf16.mxu0 0
      %399 = vmatpush1.bf16.msra.mxu0 0
      %400 = vmatprep.subr.bf16.mxu0 0
      %401 = vmatpush1.bf16.msra.mxu0 0
      %402 = vmatprep.subr.bf16.mxu0 0
      %403 = vmatpush1.bf16.msra.mxu0 0
      %404 = vmatprep.subr.bf16.mxu0 0
      %405 = vmatpush1.bf16.msra.mxu0 0
      %406 = vmatprep.subr.bf16.mxu0 0
      %407 = vmatpush1.bf16.msra.mxu0 0
      %408 = vmatprep.mubr.bf16.mxu0 0
      %409 = vmatmul.mubr.bf16.gmra.mrb[0].mxu0 %v361
      %v410 = vpop.f32.mrb[0].mxu0
      %v411 = vadd.f32 0.0, %v410
      %v412 = vpop.f32.mrb[0].mxu0
      %v413 = vpop.f32.mrb[0].mxu0
      %v414 = vadd.f32 0.0, %v413
      %v415 = vpop.f32.mrb[0].mxu0
      %416 = vmatprep.mubr.bf16.mxu0 0
      %417 = vmatmul.mubr.bf16.gmra.mrb[0].mxu0 %v364
      %v418 = vpop.f32.mrb[0].mxu0
      %v419 = vadd.f32 0.0, %v418
      %v420 = vpop.f32.mrb[0].mxu0
      %v421 = vpop.f32.mrb[0].mxu0
      %v422 = vadd.f32 0.0, %v421
      %v423 = vpop.f32.mrb[0].mxu0
      %424 = vmatprep.mubr.bf16.mxu0 0
      %425 = vmatmul.mubr.bf16.gmra.mrb[0].mxu0 %v367
      %v426 = vpop.f32.mrb[0].mxu0
      %v427 = vadd.f32 0.0, %v426
      %v428 = vpop.f32.mrb[0].mxu0
      %v429 = vpop.f32.mrb[0].mxu0
      %v430 = vadd.f32 0.0, %v429
      %v431 = vpop.f32.mrb[0].mxu0
      %432 = vmatprep.mubr.bf16.mxu0 0
      %433 = vmatmul.mubr.bf16.gmra.mrb[0].mxu0 %v370
      %v434 = vpop.f32.mrb[0].mxu0
      %v435 = vadd.f32 0.0, %v434
      %v436 = vpop.f32.mrb[0].mxu0
      %v437 = vpop.f32.mrb[0].mxu0
      %v438 = vadd.f32 0.0, %v437
      %v439 = vpop.f32.mrb[0].mxu0
      %440 = vdwg.mxu0
      %v449 = vunpack.c.l.b16 %v313
      %v450 = vunpack.c.l.b16 %v314
      %v451 = vunpack.c.l.b16 %v315
      %v452 = vunpack.c.l.b16 %v316
      %v453 = vunpack.c.l.b16 %v317
      %v454 = vunpack.c.l.b16 %v318
      %v455 = vunpack.c.l.b16 %v319
      %v456 = vunpack.c.l.b16 %v320
      %v457 = vpack.c.b16 %v450, %v449
      %v458 = vpack.c.b16 %v452, %v451
      %v459 = vpack.c.b16 %v454, %v453
      %v460 = vpack.c.b16 %v456, %v455
      %vm461 = vcmask 23552
      %v463 = vsel %vm461, %v457, 0
      %v466 = vsel %vm461, %v458, 0
      %v469 = vsel %vm461, %v459, 0
      %v472 = vsel %vm461, %v460, 0
      %vm474 = vcmask 1040384
      %vm475 = vcmask 1041408
      %v476 = vsel %vm474, 4294967295, 65535
      %v477 = vsel %vm475, %v476, 0
      %v479 = vand.u32 %v321, %v477
      %481 = vmatprep.subr.bf16.mxu0 0
      %482 = vmatpush1.bf16.msra.mxu0 %v479
      %483 = vmatprep.subr.bf16.mxu0 0
      %484 = vmatpush1.bf16.msra.mxu0 0
      %485 = vmatprep.subr.bf16.mxu0 0
      %486 = vmatpush1.bf16.msra.mxu0 0
      %487 = vmatprep.subr.bf16.mxu0 0
      %488 = vmatpush1.bf16.msra.mxu0 0
      %489 = vmatprep.subr.bf16.mxu0 0
      %490 = vmatpush1.bf16.msra.mxu0 0
      %491 = vmatprep.subr.bf16.mxu0 0
      %492 = vmatpush1.bf16.msra.mxu0 0
      %493 = vmatprep.subr.bf16.mxu0 0
      %494 = vmatpush1.bf16.msra.mxu0 0
      %495 = vmatprep.subr.bf16.mxu0 0
      %496 = vmatpush1.bf16.msra.mxu0 0
      %497 = vmatprep.subr.bf16.mxu0 0
      %498 = vmatpush1.bf16.msra.mxu0 0
      %499 = vmatprep.subr.bf16.mxu0 0
      %500 = vmatpush1.bf16.msra.mxu0 0
      %501 = vmatprep.subr.bf16.mxu0 0
      %502 = vmatpush1.bf16.msra.mxu0 0
      %503 = vmatprep.subr.bf16.mxu0 0
      %504 = vmatpush1.bf16.msra.mxu0 0
      %505 = vmatprep.subr.bf16.mxu0 0
      %506 = vmatpush1.bf16.msra.mxu0 0
      %507 = vmatprep.subr.bf16.mxu0 0
      %508 = vmatpush1.bf16.msra.mxu0 0
      %509 = vmatprep.subr.bf16.mxu0 0
      %510 = vmatpush1.bf16.msra.mxu0 0
      %511 = vmatprep.subr.bf16.mxu0 0
      %512 = vmatpush1.bf16.msra.mxu0 0
      %513 = vmatprep.mubr.bf16.mxu0 0
      %514 = vmatmul.mubr.bf16.gmra.mrb[0].mxu0 %v463
      %v515 = vpop.f32.mrb[0].mxu0
      %v516 = vadd.f32 %v411, %v515
      %v517 = vpop.f32.mrb[0].mxu0
      %v518 = vpop.f32.mrb[0].mxu0
      %v519 = vadd.f32 %v414, %v518
      %v520 = vpop.f32.mrb[0].mxu0
      %521 = vmatprep.mubr.bf16.mxu0 0
      %522 = vmatmul.mubr.bf16.gmra.mrb[0].mxu0 %v466
      %v523 = vpop.f32.mrb[0].mxu0
      %v524 = vadd.f32 %v419, %v523
      %v525 = vpop.f32.mrb[0].mxu0
      %v526 = vpop.f32.mrb[0].mxu0
      %v527 = vadd.f32 %v422, %v526
      %v528 = vpop.f32.mrb[0].mxu0
      %529 = vmatprep.mubr.bf16.mxu0 0
      %530 = vmatmul.mubr.bf16.gmra.mrb[0].mxu0 %v469
      %v531 = vpop.f32.mrb[0].mxu0
      %v532 = vadd.f32 %v427, %v531
      %v533 = vpop.f32.mrb[0].mxu0
      %v534 = vpop.f32.mrb[0].mxu0
      %v535 = vadd.f32 %v430, %v534
      %v536 = vpop.f32.mrb[0].mxu0
      %537 = vmatprep.mubr.bf16.mxu0 0
      %538 = vmatmul.mubr.bf16.gmra.mrb[0].mxu0 %v472
      %v539 = vpop.f32.mrb[0].mxu0
      %v540 = vadd.f32 %v435, %v539
      %v541 = vpop.f32.mrb[0].mxu0
      %v542 = vpop.f32.mrb[0].mxu0
      %v543 = vadd.f32 %v438, %v542
      %v544 = vpop.f32.mrb[0].mxu0
      %545 = vdwg.mxu0
      %v546 = vld [vmem:[%s4] sm:$0xff]
      %v547 = vld [vmem:[%s4 + $0x8] sm:$0xff]
      %v548 = vld [vmem:[%s4 + $0x10] sm:$0xff]
      %v549 = vld [vmem:[%s4 + $0x18] sm:$0xff]
      %v550 = vld [vmem:[%s4 + $0x20] sm:$0xff]
      %v551 = vld [vmem:[%s4 + $0x28] sm:$0xff]
      %v552 = vld [vmem:[%s4 + $0x30] sm:$0xff]
      %v553 = vld [vmem:[%s4 + $0x38] sm:$0xff]
      %555 = vset.pattern.permute.xlu0 0
      %556 = vperm.xlu0 %555, %v546
      %v557 = vpop.permute.xlu0 %556
      %560 = vset.pattern.permute.xlu0 0
      %561 = vperm.xlu0 %560, %v547
      %v562 = vpop.permute.xlu0 %561
      %565 = vset.pattern.permute.xlu0 0
      %566 = vperm.xlu0 %565, %v548
      %v567 = vpop.permute.xlu0 %566
      %570 = vset.pattern.permute.xlu0 0
      %571 = vperm.xlu0 %570, %v549
      %v572 = vpop.permute.xlu0 %571
      %575 = vset.pattern.permute.xlu0 0
      %576 = vperm.xlu0 %575, %v550
      %v577 = vpop.permute.xlu0 %576
      %580 = vset.pattern.permute.xlu0 0
      %581 = vperm.xlu0 %580, %v551
      %v582 = vpop.permute.xlu0 %581
      %585 = vset.pattern.permute.xlu0 0
      %586 = vperm.xlu0 %585, %v552
      %v587 = vpop.permute.xlu0 %586
      %590 = vset.pattern.permute.xlu0 0
      %591 = vperm.xlu0 %590, %v553
      %v592 = vpop.permute.xlu0 %591
      %v594 = vmul.f32 %v516, %v557
      %v595 = vmul.f32 %v519, %v562
      %v596 = vmul.f32 %v524, %v567
      %v597 = vmul.f32 %v527, %v572
      %v598 = vmul.f32 %v532, %v577
      %v599 = vmul.f32 %v535, %v582
      %v600 = vmul.f32 %v540, %v587
      %v601 = vmul.f32 %v543, %v592
      %v602 = vld [vmem:[%s5] sm:$0xff]
      %v603 = vld [vmem:[%s5 + $0x8] sm:$0xff]
      %v604 = vld [vmem:[%s5 + $0x10] sm:$0xff]
      %v605 = vld [vmem:[%s5 + $0x18] sm:$0xff]
      %v606 = vld [vmem:[%s5 + $0x20] sm:$0xff]
      %v607 = vld [vmem:[%s5 + $0x28] sm:$0xff]
      %v608 = vld [vmem:[%s5 + $0x30] sm:$0xff]
      %v609 = vld [vmem:[%s5 + $0x38] sm:$0xff]
      %611 = vset.pattern.permute.xlu0 0
      %612 = vperm.xlu0 %611, %v602
      %v613 = vpop.permute.xlu0 %612
      %616 = vset.pattern.permute.xlu0 0
      %617 = vperm.xlu0 %616, %v603
      %v618 = vpop.permute.xlu0 %617
      %621 = vset.pattern.permute.xlu0 0
      %622 = vperm.xlu0 %621, %v604
      %v623 = vpop.permute.xlu0 %622
      %626 = vset.pattern.permute.xlu0 0
      %627 = vperm.xlu0 %626, %v605
      %v628 = vpop.permute.xlu0 %627
      %631 = vset.pattern.permute.xlu0 0
      %632 = vperm.xlu0 %631, %v606
      %v633 = vpop.permute.xlu0 %632
      %636 = vset.pattern.permute.xlu0 0
      %637 = vperm.xlu0 %636, %v607
      %v638 = vpop.permute.xlu0 %637
      %641 = vset.pattern.permute.xlu0 0
      %642 = vperm.xlu0 %641, %v608
      %v643 = vpop.permute.xlu0 %642
      %646 = vset.pattern.permute.xlu0 0
      %647 = vperm.xlu0 %646, %v609
      %v648 = vpop.permute.xlu0 %647
      %v650 = vadd.f32 %v594, %v613
      %v651 = vadd.f32 %v595, %v618
      %v652 = vadd.f32 %v596, %v623
      %v653 = vadd.f32 %v597, %v628
      %v654 = vadd.f32 %v598, %v633
      %v655 = vadd.f32 %v599, %v638
      %v656 = vadd.f32 %v600, %v643
      %v657 = vadd.f32 %v601, %v648
      %v658 = vmax.f32 %v650, 0.0
      %v659 = vmax.f32 %v651, 0.0
      %v660 = vmax.f32 %v652, 0.0
      %v661 = vmax.f32 %v653, 0.0
      %v662 = vmax.f32 %v654, 0.0
      %v663 = vmax.f32 %v655, 0.0
      %v664 = vmax.f32 %v656, 0.0
      %v665 = vmax.f32 %v657, 0.0
      %v666 = vpack.c.bf16 %v659, %v658
      %v667 = vpack.c.bf16 %v661, %v660
      %v668 = vpack.c.bf16 %v663, %v662
      %v669 = vpack.c.bf16 %v665, %v664
      %v674 = vunpack.c.l.b16 %v666
      %v675 = vunpack.c.h.b16 %v666
      %v676 = vunpack.c.l.b16 %v667
      %v677 = vunpack.c.h.b16 %v667
      %v678 = vunpack.c.l.b16 %v668
      %v679 = vunpack.c.h.b16 %v668
      %v680 = vunpack.c.l.b16 %v669
      %v681 = vunpack.c.h.b16 %v669
      %v682 = vpack.c.b16 %v674, %v674
      %v683 = vpack.c.b16 %v675, %v675
      %v684 = vpack.c.b16 %v676, %v676
      %v685 = vpack.c.b16 %v677, %v677
      %v686 = vpack.c.b16 %v678, %v678
      %v687 = vpack.c.b16 %v679, %v679
      %v688 = vpack.c.b16 %v680, %v680
      %v689 = vpack.c.b16 %v681, %v681
      %vm698 = vcmask 60416
      %699 = vst.msk [vmem:[%s310] sm:$0xf] %vm698, %v682
      %700 = vst.msk [vmem:[%s310 + $0x4] sm:$0xf] %vm698, %v683
      %701 = vst.msk [vmem:[%s310 + $0x8] sm:$0xf] %vm698, %v684
      %702 = vst.msk [vmem:[%s310 + $0xc] sm:$0xf] %vm698, %v685
      %703 = vst.msk [vmem:[%s310 + $0x10] sm:$0xf] %vm698, %v686
      %704 = vst.msk [vmem:[%s310 + $0x14] sm:$0xf] %vm698, %v687
      %705 = vst.msk [vmem:[%s310 + $0x18] sm:$0xf] %vm698, %v688
      %706 = vst.msk [vmem:[%s310 + $0x1c] sm:$0xf] %vm698, %v689
      %p707 = scmp.lt.s32.totalorder %s21, 1
      %s708 = scalar_select %p707, %s21, 1
      %p709 = scmp.lt.s32.totalorder %s22, 0
      %s710 = scalar_select %p709, %s22, 0
      %s711 = smul.addr %s708, 8
      %s712 = sadd.s32 %s710, %s711
      %s713 = smul.addr %s712, 4
      %s714 = scalar_lea.vmem %s6, %s713
      // Predicated region
      $region45: #{ndnet_segmentation_forward.15} parent=43 // pred_check
        %p715 = pneg %p189
      $region46: #{ndnet_segmentation_forward.15} parent=43 // pred_check_branch
        %717 = sbr.rel (%p715) target = $region48
      $region47: #{ndnet_segmentation_forward.15} parent=43 // pred_region
        _
      $region48: #{ndnet_segmentation_forward.15} parent=43 // pred_fallthru
        _
    $region44: #{ndnet_segmentation_forward.15} parent=5 // pred_fallthru
      _
    %p718 = scmp.le.s32.totalorder 2, %s12
    // Predicated region
    $region49: #{ndnet_segmentation_forward.15} parent=5 // pred_check
      %p719 = pneg %p718
    $region50: #{ndnet_segmentation_forward.15} parent=5 // pred_check_branch
      %721 = sbr.rel (%p719) target = $region52
    $region51: #{ndnet_segmentation_forward.15} parent=5 // pred_region
      %s722 = ssub.s32 %s12, 2
      // Predicated region
      $region53: #{ndnet_segmentation_forward.15} parent=51 // pred_check
        %p723 = pneg %p195
      $region54: #{ndnet_segmentation_forward.15} parent=51 // pred_check_branch
        %725 = sbr.rel (%p723) target = $region56
      $region55: #{ndnet_segmentation_forward.15} parent=51 // pred_region
        %p726 = scmp.lt.s32.totalorder %s23, 1
        %s727 = scalar_select %p726, %s23, 1
        %p728 = scmp.lt.s32.totalorder %s24, 0
        %s729 = scalar_select %p728, %s24, 0
        %s730 = smul.addr %s727, 8
        %s731 = sadd.s32 %s729, %s730
        %s732 = smul.addr %s731, 4
        %s733 = scalar_lea.vmem %s6, %s732
      $region56: #{ndnet_segmentation_forward.15} parent=51 // pred_fallthru
        _
    $region52: #{ndnet_segmentation_forward.15} parent=5 // pred_fallthru
      _
  $region6: #{ndnet_segmentation_forward.15} parent=0 // loop_footer
    %s16 = sadd.s32 1, %s12
  $region7: #{ndnet_segmentation_forward.15} parent=0 // loop_footer_branch
    %11 = sbr.rel target = $region3
  $region8: #{ndnet_segmentation_forward.15} parent=0 // loop_exit
    _

// kernel: ndnet_segmentation_forward.17
$region0: #{ndnet_segmentation_forward.17}
  #allocation0 [shape = 'u32[]', space=smem, size = 0x4, offset = 0x4, fixed_abs, tag = 'smem constant byte address 0x4 - core index']
  #allocation1 [shape = 'u32[144,128]{1,0:T(1,128)}', space=vmem, size = 0x12000, scoped, tag = 'internal scratch']
  %s0 = inlined_call_operand.vmem [shape: bf16[2,32,8], index: 0, kind: input, shape index: {}]
  %s1 = inlined_call_operand.vmem [shape: bf16[2,32,8], index: 1, kind: input, shape index: {}]
  %s2 = inlined_call_operand.vmem [shape: bf16[32,32], index: 2, kind: input, shape index: {}]
  %s3 = inlined_call_operand.vmem [shape: f32[32,1], index: 3, kind: input, shape index: {}]
  %s4 = inlined_call_operand.vmem [shape: f32[32,1], index: 4, kind: input, shape index: {}]
  %s5 = inlined_call_operand.vmem [shape: bf16[2,32,8], index: 5, kind: output, shape index: {}]
  %s6 = sld [smem:[#allocation0]]
  $region53: #{ndnet_segmentation_forward.17} parent=0
    _
  %s8 = ssub.s32 1, %s6
  %s9 = scalar_select 0, %s8, %s6
  loop: start=0, step=1, limit=4
  $region2: #{ndnet_segmentation_forward.17} parent=0 // loop_pre_header
    _
  $region3: #{ndnet_segmentation_forward.17} parent=0 // loop_header
    %s11 = sphi 0, %s15
    %p12 = scmp.ge.s32.totalorder %s11, 4
    %s18 = sphi 0, %s30
    %s19 = sphi 0, %s26
    %s20 = sphi 0, %s18
    %s21 = sphi 0, %s19
    %s22 = sphi 0, %s20
    %s23 = sphi 0, %s21
    %s35 = sphi 0, %s37
    %s38 = sphi 0, %s35
    %s39 = sphi 0, %s38
    %s55 = sphi 0, %s39
    %s63 = sphi 0, %s65
    %s66 = sphi 0, %s63
    %s67 = sphi 0, %s66
    %s83 = sphi 0, %s67
    %s87 = sphi 0, %s87
    %s89 = sphi 0, %s87
    %s90 = sphi 0, %s89
    %s104 = sphi 0, %s90
    %s108 = sphi 0, %s108
    %s110 = sphi 0, %s108
    %s111 = sphi 0, %s110
    %s125 = sphi 0, %s111
    %s129 = sphi 0, %s129
    %s131 = sphi 0, %s129
    %s132 = sphi 0, %s131
    %s146 = sphi 0, %s132
    %s154 = sphi 0, %s156
    %s157 = sphi 0, %s154
    %s158 = sphi 0, %s157
    %s174 = sphi 0, %s158
  $region4: #{ndnet_segmentation_forward.17} parent=0 // loop_header_branch
    %14 = sbr.rel (%p12) target = $region8
  $region5: #{ndnet_segmentation_forward.17} parent=0 // loop_body
    %s16 = ssub.s32 %s11, 1
    %s17 = ssub.s32 %s11, 2
    %s24 = sadd.s32 1, %s19
    %p25 = scmp.ge.s32.totalorder %s24, 1
    %s26 = scalar_select %p25, 0, %s24
    %s27 = sadd.s32 1, %s18
    %s28 = scalar_select %p25, %s27, %s18
    %p29 = scmp.ge.s32.totalorder %s28, 2
    %s30 = scalar_select %p29, 0, %s28
    %s31 = ssub.s32 %s18, %s30
    %s32 = ssub.s32 %s19, %s26
    %s33 = sor.u32 %s31, %s32
    %p34 = scmp.eq.s32.totalorder %s33, 0
    %s36 = sadd.s32 %s35, 1
    %s37 = scalar_select %p34, %s35, %s36
    %p40 = pneg %p34
    %p41 = scmp.eq.s32.totalorder %s11, 1
    %p42 = por %p40, %p41
    %p43 = scmp.ne.s32.totalorder %s35, %s38
    %p44 = scmp.eq.s32.totalorder %s11, 0
    %p45 = por %p43, %p44
    %p46 = scmp.ne.s32.totalorder %s35, %s38
    %p47 = scmp.eq.s32.totalorder %s16, 1
    %p48 = por %p46, %p47
    %p49 = scmp.ne.s32.totalorder %s38, %s39
    %p50 = scmp.eq.s32.totalorder %s16, 0
    %p51 = por %p49, %p50
    %p52 = scmp.ne.s32.totalorder %s38, %s39
    %p53 = scmp.eq.s32.totalorder %s17, 1
    %p54 = por %p52, %p53
    %p56 = scmp.ne.s32.totalorder %s39, %s55
    %p57 = scmp.eq.s32.totalorder %s17, 0
    %p58 = por %p56, %p57
    %s59 = ssub.s32 %s18, %s30
    %s60 = ssub.s32 %s19, %s26
    %s61 = sor.u32 %s59, %s60
    %p62 = scmp.eq.s32.totalorder %s61, 0
    %s64 = sadd.s32 %s63, 1
    %s65 = scalar_select %p62, %s63, %s64
    %p68 = pneg %p62
    %p69 = scmp.eq.s32.totalorder %s11, 1
    %p70 = por %p68, %p69
    %p71 = scmp.ne.s32.totalorder %s63, %s66
    %p72 = scmp.eq.s32.totalorder %s11, 0
    %p73 = por %p71, %p72
    %p74 = scmp.ne.s32.totalorder %s63, %s66
    %p75 = scmp.eq.s32.totalorder %s16, 1
    %p76 = por %p74, %p75
    %p77 = scmp.ne.s32.totalorder %s66, %s67
    %p78 = scmp.eq.s32.totalorder %s16, 0
    %p79 = por %p77, %p78
    %p80 = scmp.ne.s32.totalorder %s66, %s67
    %p81 = scmp.eq.s32.totalorder %s17, 1
    %p82 = por %p80, %p81
    %p84 = scmp.ne.s32.totalorder %s67, %s83
    %p85 = scmp.eq.s32.totalorder %s17, 0
    %p86 = por %p84, %p85
    %s88 = sadd.s32 %s87, 1
    %p91 = scmp.eq.s32.totalorder %s11, 1
    %p92 = scmp.ne.s32.totalorder %s87, %s89
    %p93 = scmp.eq.s32.totalorder %s11, 0
    %p94 = por %p92, %p93
    %p95 = scmp.ne.s32.totalorder %s87, %s89
    %p96 = scmp.eq.s32.totalorder %s16, 1
    %p97 = por %p95, %p96
    %p98 = scmp.ne.s32.totalorder %s89, %s90
    %p99 = scmp.eq.s32.totalorder %s16, 0
    %p100 = por %p98, %p99
    %p101 = scmp.ne.s32.totalorder %s89, %s90
    %p102 = scmp.eq.s32.totalorder %s17, 1
    %p103 = por %p101, %p102
    %p105 = scmp.ne.s32.totalorder %s90, %s104
    %p106 = scmp.eq.s32.totalorder %s17, 0
    %p107 = por %p105, %p106
    %s109 = sadd.s32 %s108, 1
    %p112 = scmp.eq.s32.totalorder %s11, 1
    %p113 = scmp.ne.s32.totalorder %s108, %s110
    %p114 = scmp.eq.s32.totalorder %s11, 0
    %p115 = por %p113, %p114
    %p116 = scmp.ne.s32.totalorder %s108, %s110
    %p117 = scmp.eq.s32.totalorder %s16, 1
    %p118 = por %p116, %p117
    %p119 = scmp.ne.s32.totalorder %s110, %s111
    %p120 = scmp.eq.s32.totalorder %s16, 0
    %p121 = por %p119, %p120
    %p122 = scmp.ne.s32.totalorder %s110, %s111
    %p123 = scmp.eq.s32.totalorder %s17, 1
    %p124 = por %p122, %p123
    %p126 = scmp.ne.s32.totalorder %s111, %s125
    %p127 = scmp.eq.s32.totalorder %s17, 0
    %p128 = por %p126, %p127
    %s130 = sadd.s32 %s129, 1
    %p133 = scmp.eq.s32.totalorder %s11, 1
    %p134 = scmp.ne.s32.totalorder %s129, %s131
    %p135 = scmp.eq.s32.totalorder %s11, 0
    %p136 = por %p134, %p135
    %p137 = scmp.ne.s32.totalorder %s129, %s131
    %p138 = scmp.eq.s32.totalorder %s16, 1
    %p139 = por %p137, %p138
    %p140 = scmp.ne.s32.totalorder %s131, %s132
    %p141 = scmp.eq.s32.totalorder %s16, 0
    %p142 = por %p140, %p141
    %p143 = scmp.ne.s32.totalorder %s131, %s132
    %p144 = scmp.eq.s32.totalorder %s17, 1
    %p145 = por %p143, %p144
    %p147 = scmp.ne.s32.totalorder %s132, %s146
    %p148 = scmp.eq.s32.totalorder %s17, 0
    %p149 = por %p147, %p148
    %s150 = ssub.s32 %s18, %s30
    %s151 = ssub.s32 %s19, %s26
    %s152 = sor.u32 %s150, %s151
    %p153 = scmp.eq.s32.totalorder %s152, 0
    %s155 = sadd.s32 %s154, 1
    %s156 = scalar_select %p153, %s154, %s155
    %p159 = pneg %p153
    %p160 = scmp.eq.s32.totalorder %s11, 1
    %p161 = por %p159, %p160
    %p162 = scmp.ne.s32.totalorder %s154, %s157
    %p163 = scmp.eq.s32.totalorder %s11, 0
    %p164 = por %p162, %p163
    %p165 = scmp.ne.s32.totalorder %s154, %s157
    %p166 = scmp.eq.s32.totalorder %s16, 1
    %p167 = por %p165, %p166
    %p168 = scmp.ne.s32.totalorder %s157, %s158
    %p169 = scmp.eq.s32.totalorder %s16, 0
    %p170 = por %p168, %p169
    %p171 = scmp.ne.s32.totalorder %s157, %s158
    %p172 = scmp.eq.s32.totalorder %s17, 1
    %p173 = por %p171, %p172
    %p175 = scmp.ne.s32.totalorder %s158, %s174
    %p176 = scmp.eq.s32.totalorder %s17, 0
    %p177 = por %p175, %p176
    %p178 = scmp.le.s32.totalorder 1, %s11
    %p179 = scmp.lt.s32.totalorder %s11, 3
    %p180 = pnand %p178, %p179
    %p181 = pneg %p180
    // Predicated region
    $region9: #{ndnet_segmentation_forward.17} parent=5 // pred_check
      _
    $region10: #{ndnet_segmentation_forward.17} parent=5 // pred_check_branch
      %183 = sbr.rel (%p180) target = $region12
    $region11: #{ndnet_segmentation_forward.17} parent=5 // pred_region
      %s184 = ssub.s32 %s11, 1
      // Predicated region
      $region13: #{ndnet_segmentation_forward.17} parent=11 // pred_check
        %p185 = pneg %p100
      $region14: #{ndnet_segmentation_forward.17} parent=11 // pred_check_branch
        %187 = sbr.rel (%p185) target = $region16
      $region15: #{ndnet_segmentation_forward.17} parent=11 // pred_region
        _
      $region16: #{ndnet_segmentation_forward.17} parent=11 // pred_fallthru
        _
      // Predicated region
      $region17: #{ndnet_segmentation_forward.17} parent=11 // pred_check
        %p188 = pneg %p121
      $region18: #{ndnet_segmentation_forward.17} parent=11 // pred_check_branch
        %190 = sbr.rel (%p188) target = $region20
      $region19: #{ndnet_segmentation_forward.17} parent=11 // pred_region
        _
      $region20: #{ndnet_segmentation_forward.17} parent=11 // pred_fallthru
        _
      // Predicated region
      $region21: #{ndnet_segmentation_forward.17} parent=11 // pred_check
        %p191 = pneg %p142
      $region22: #{ndnet_segmentation_forward.17} parent=11 // pred_check_branch
        %193 = sbr.rel (%p191) target = $region24
      $region23: #{ndnet_segmentation_forward.17} parent=11 // pred_region
        _
      $region24: #{ndnet_segmentation_forward.17} parent=11 // pred_fallthru
        _
    $region12: #{ndnet_segmentation_forward.17} parent=5 // pred_fallthru
      _
    %p194 = scmp.lt.s32.totalorder %s11, 2
    // Predicated region
    $region25: #{ndnet_segmentation_forward.17} parent=5 // pred_check
      %p195 = pneg %p194
    $region26: #{ndnet_segmentation_forward.17} parent=5 // pred_check_branch
      %197 = sbr.rel (%p195) target = $region28
    $region27: #{ndnet_segmentation_forward.17} parent=5 // pred_region
      // Predicated region
      $region29: #{ndnet_segmentation_forward.17} parent=27 // pred_check
        %p198 = pneg %p45
      $region30: #{ndnet_segmentation_forward.17} parent=27 // pred_check_branch
        %200 = sbr.rel (%p198) target = $region32
      $region31: #{ndnet_segmentation_forward.17} parent=27 // pred_region
        %p201 = scmp.lt.s32.totalorder %s18, 1
        %s202 = scalar_select %p201, %s18, 1
        %p203 = scmp.lt.s32.totalorder %s19, 0
        %s204 = scalar_select %p203, %s19, 0
        %s205 = smul.addr %s202, 4
        %s206 = sadd.s32 %s204, %s205
        %s207 = smul.addr %s206, 4
        %s208 = scalar_lea.vmem %s0, %s207
      $region32: #{ndnet_segmentation_forward.17} parent=27 // pred_fallthru
        _
      // Predicated region
      $region33: #{ndnet_segmentation_forward.17} parent=27 // pred_check
        %p209 = pneg %p73
      $region34: #{ndnet_segmentation_forward.17} parent=27 // pred_check_branch
        %211 = sbr.rel (%p209) target = $region36
      $region35: #{ndnet_segmentation_forward.17} parent=27 // pred_region
        %p212 = scmp.lt.s32.totalorder %s18, 1
        %s213 = scalar_select %p212, %s18, 1
        %p214 = scmp.lt.s32.totalorder %s19, 0
        %s215 = scalar_select %p214, %s19, 0
        %s216 = smul.addr %s213, 4
        %s217 = sadd.s32 %s215, %s216
        %s218 = smul.addr %s217, 4
        %s219 = scalar_lea.vmem %s1, %s218
      $region36: #{ndnet_segmentation_forward.17} parent=27 // pred_fallthru
        _
    $region28: #{ndnet_segmentation_forward.17} parent=5 // pred_fallthru
      _
    %p220 = scmp.le.s32.totalorder 1, %s11
    %p221 = scmp.lt.s32.totalorder %s11, 3
    %p222 = pnand %p220, %p221
    %p223 = pneg %p222
    // Predicated region
    $region37: #{ndnet_segmentation_forward.17} parent=5 // pred_check
      _
    $region38: #{ndnet_segmentation_forward.17} parent=5 // pred_check_branch
      %225 = sbr.rel (%p222) target = $region40
    $region39: #{ndnet_segmentation_forward.17} parent=5 // pred_region
      %s226 = ssub.s32 %s11, 1
      %p227 = scmp.lt.s32.totalorder %s20, 1
      %s228 = scalar_select %p227, %s20, 1
      %p229 = scmp.lt.s32.totalorder %s21, 0
      %s230 = scalar_select %p229, %s21, 0
      %s231 = smul.addr %s228, 4
      %s232 = sadd.s32 %s230, %s231
      %s233 = smul.addr %s232, 4
      %s234 = scalar_lea.vmem %s0, %s233
      %p235 = pneg %p51
      %p236 = pneg %p48
      %p237 = scmp.lt.s32.totalorder %s20, 1
      %s238 = scalar_select %p237, %s20, 1
      %p239 = scmp.lt.s32.totalorder %s21, 0
      %s240 = scalar_select %p239, %s21, 0
      %s241 = smul.addr %s238, 4
      %s242 = sadd.s32 %s240, %s241
      %s243 = smul.addr %s242, 4
      %s244 = scalar_lea.vmem %s1, %s243
      %p245 = pneg %p79
      %p246 = pneg %p76
      %p247 = pneg %p100
      %p248 = pneg %p97
      %p249 = pneg %p121
      %p250 = pneg %p118
      %p251 = pneg %p142
      %p252 = pneg %p139
      %p253 = pneg %p170
      %p254 = pneg %p167
      %p255 = scmp.lt.s32.totalorder %s20, 1
      %s256 = scalar_select %p255, %s20, 1
      %p257 = scmp.lt.s32.totalorder %s21, 0
      %s258 = scalar_select %p257, %s21, 0
      %s259 = smul.addr %s256, 4
      %s260 = sadd.s32 %s258, %s259
      %s261 = smul.addr %s260, 4
      %s262 = scalar_lea.vmem %s5, %s261
      %p263 = scmp.lt.s32.totalorder %s20, 1
      %s264 = scalar_select %p263, %s20, 1
      %p265 = scmp.lt.s32.totalorder %s21, 0
      %s266 = scalar_select %p265, %s21, 0
      %s267 = smul.addr %s264, 4
      %s268 = sadd.s32 %s266, %s267
      %s269 = smul.addr %s268, 4
      %s270 = scalar_lea.vmem %s0, %s269
      %p271 = scmp.lt.s32.totalorder %s20, 1
      %s272 = scalar_select %p271, %s20, 1
      %p273 = scmp.lt.s32.totalorder %s21, 0
      %s274 = scalar_select %p273, %s21, 0
      %s275 = smul.addr %s272, 4
      %s276 = sadd.s32 %s274, %s275
      %s277 = smul.addr %s276, 4
      %s278 = scalar_lea.vmem %s1, %s277
      %p279 = scmp.lt.s32.totalorder %s20, 1
      %s280 = scalar_select %p279, %s20, 1
      %p281 = scmp.lt.s32.totalorder %s21, 0
      %s282 = scalar_select %p281, %s21, 0
      %s283 = smul.addr %s280, 4
      %s284 = sadd.s32 %s282, %s283
      %s285 = smul.addr %s284, 4
      %s286 = scalar_lea.vmem %s5, %s285
      %v288 = vld [vmem:[%s270] sm:$0xf]
      %v289 = vld [vmem:[%s270 + $0x4] sm:$0xf]
      %v290 = vld [vmem:[%s270 + $0x8] sm:$0xf]
      %v291 = vld [vmem:[%s270 + $0xc] sm:$0xf]
      %v292 = vld [vmem:[%s278] sm:$0xf]
      %v293 = vld [vmem:[%s278 + $0x4] sm:$0xf]
      %v294 = vld [vmem:[%s278 + $0x8] sm:$0xf]
      %v295 = vld [vmem:[%s278 + $0xc] sm:$0xf]
      %v296 = vadd.bf16 %v288, %v292
      %v297 = vadd.bf16 %v289, %v293
      %v298 = vadd.bf16 %v290, %v294
      %v299 = vadd.bf16 %v291, %v295
      %v300 = vld [vmem:[%s2] sm:$0xf]
      %v301 = vld [vmem:[%s2 + $0x4] sm:$0xf]
      %v302 = vld [vmem:[%s2 + $0x8] sm:$0xf]
      %v303 = vld [vmem:[%s2 + $0xc] sm:$0xf]
      %v308 = vunpack.c.l.b16 %v300
      %v309 = vunpack.c.l.b16 %v301
      %v310 = vunpack.c.l.b16 %v302
      %v311 = vunpack.c.l.b16 %v303
      %v312 = vpack.c.b16 %v309, %v308
      %v313 = vpack.c.b16 %v311, %v310
      %v318 = vunpack.c.l.b16 %v296
      %v319 = vunpack.c.l.b16 %v297
      %v320 = vunpack.c.l.b16 %v298
      %v321 = vunpack.c.l.b16 %v299
      %v322 = vpack.c.b16 %v319, %v318
      %v323 = vpack.c.b16 %v321, %v320
      %vm326 = vcmask 261120
      %v328 = vsel %vm326, %v312, 0
      %v331 = vsel %vm326, %v313, 0
      %333 = vmatprep.subr.bf16.mxu0 0
      %334 = vmatpush1.bf16.msra.mxu0 %v322
      %335 = vmatprep.subr.bf16.mxu0 0
      %336 = vmatpush1.bf16.msra.mxu0 %v323
      %337 = vmatprep.subr.bf16.mxu0 0
      %338 = vmatpush1.bf16.msra.mxu0 0
      %339 = vmatprep.subr.bf16.mxu0 0
      %340 = vmatpush1.bf16.msra.mxu0 0
      %341 = vmatprep.subr.bf16.mxu0 0
      %342 = vmatpush1.bf16.msra.mxu0 0
      %343 = vmatprep.subr.bf16.mxu0 0
      %344 = vmatpush1.bf16.msra.mxu0 0
      %345 = vmatprep.subr.bf16.mxu0 0
      %346 = vmatpush1.bf16.msra.mxu0 0
      %347 = vmatprep.subr.bf16.mxu0 0
      %348 = vmatpush1.bf16.msra.mxu0 0
      %349 = vmatprep.subr.bf16.mxu0 0
      %350 = vmatpush1.bf16.msra.mxu0 0
      %351 = vmatprep.subr.bf16.mxu0 0
      %352 = vmatpush1.bf16.msra.mxu0 0
      %353 = vmatprep.subr.bf16.mxu0 0
      %354 = vmatpush1.bf16.msra.mxu0 0
      %355 = vmatprep.subr.bf16.mxu0 0
      %356 = vmatpush1.bf16.msra.mxu0 0
      %357 = vmatprep.subr.bf16.mxu0 0
      %358 = vmatpush1.bf16.msra.mxu0 0
      %359 = vmatprep.subr.bf16.mxu0 0
      %360 = vmatpush1.bf16.msra.mxu0 0
      %361 = vmatprep.subr.bf16.mxu0 0
      %362 = vmatpush1.bf16.msra.mxu0 0
      %363 = vmatprep.subr.bf16.mxu0 0
      %364 = vmatpush1.bf16.msra.mxu0 0
      %365 = vmatprep.mubr.bf16.mxu0 0
      %366 = vmatmul.mubr.bf16.gmra.mrb[0].mxu0 %v328
      %v367 = vpop.f32.mrb[0].mxu0
      %v368 = vadd.f32 0.0, %v367
      %v369 = vpop.f32.mrb[0].mxu0
      %v370 = vpop.f32.mrb[0].mxu0
      %v371 = vadd.f32 0.0, %v370
      %v372 = vpop.f32.mrb[0].mxu0
      %373 = vmatprep.mubr.bf16.mxu0 0
      %374 = vmatmul.mubr.bf16.gmra.mrb[0].mxu0 %v331
      %v375 = vpop.f32.mrb[0].mxu0
      %v376 = vadd.f32 0.0, %v375
      %v377 = vpop.f32.mrb[0].mxu0
      %v378 = vpop.f32.mrb[0].mxu0
      %v379 = vadd.f32 0.0, %v378
      %v380 = vpop.f32.mrb[0].mxu0
      %381 = vdwg.mxu0
      %v382 = vld [vmem:[%s3] sm:$0xff]
      %v383 = vld [vmem:[%s3 + $0x8] sm:$0xff]
      %v384 = vld [vmem:[%s3 + $0x10] sm:$0xff]
      %v385 = vld [vmem:[%s3 + $0x18] sm:$0xff]
      %387 = vset.pattern.permute.xlu0 0
      %388 = vperm.xlu0 %387, %v382
      %v389 = vpop.permute.xlu0 %388
      %392 = vset.pattern.permute.xlu0 0
      %393 = vperm.xlu0 %392, %v383
      %v394 = vpop.permute.xlu0 %393
      %397 = vset.pattern.permute.xlu0 0
      %398 = vperm.xlu0 %397, %v384
      %v399 = vpop.permute.xlu0 %398
      %402 = vset.pattern.permute.xlu0 0
      %403 = vperm.xlu0 %402, %v385
      %v404 = vpop.permute.xlu0 %403
      %v406 = vmul.f32 %v368, %v389
      %v407 = vmul.f32 %v371, %v394
      %v408 = vmul.f32 %v376, %v399
      %v409 = vmul.f32 %v379, %v404
      %v410 = vld [vmem:[%s4] sm:$0xff]
      %v411 = vld [vmem:[%s4 + $0x8] sm:$0xff]
      %v412 = vld [vmem:[%s4 + $0x10] sm:$0xff]
      %v413 = vld [vmem:[%s4 + $0x18] sm:$0xff]
      %415 = vset.pattern.permute.xlu0 0
      %416 = vperm.xlu0 %415, %v410
      %v417 = vpop.permute.xlu0 %416
      %420 = vset.pattern.permute.xlu0 0
      %421 = vperm.xlu0 %420, %v411
      %v422 = vpop.permute.xlu0 %421
      %425 = vset.pattern.permute.xlu0 0
      %426 = vperm.xlu0 %425, %v412
      %v427 = vpop.permute.xlu0 %426
      %430 = vset.pattern.permute.xlu0 0
      %431 = vperm.xlu0 %430, %v413
      %v432 = vpop.permute.xlu0 %431
      %v434 = vadd.f32 %v406, %v417
      %v435 = vadd.f32 %v407, %v422
      %v436 = vadd.f32 %v408, %v427
      %v437 = vadd.f32 %v409, %v432
      %v438 = vpack.c.bf16 %v435, %v434
      %v439 = vpack.c.bf16 %v437, %v436
      %v442 = vunpack.c.l.b16 %v438
      %v443 = vunpack.c.h.b16 %v438
      %v444 = vunpack.c.l.b16 %v439
      %v445 = vunpack.c.h.b16 %v439
      %v446 = vpack.c.b16 %v442, %v442
      %v447 = vpack.c.b16 %v443, %v443
      %v448 = vpack.c.b16 %v444, %v444
      %v449 = vpack.c.b16 %v445, %v445
      %vm454 = vcmask 60416
      %455 = vst.msk [vmem:[%s286] sm:$0xf] %vm454, %v446
      %456 = vst.msk [vmem:[%s286 + $0x4] sm:$0xf] %vm454, %v447
      %457 = vst.msk [vmem:[%s286 + $0x8] sm:$0xf] %vm454, %v448
      %458 = vst.msk [vmem:[%s286 + $0xc] sm:$0xf] %vm454, %v449
      %p459 = scmp.lt.s32.totalorder %s20, 1
      %s460 = scalar_select %p459, %s20, 1
      %p461 = scmp.lt.s32.totalorder %s21, 0
      %s462 = scalar_select %p461, %s21, 0
      %s463 = smul.addr %s460, 4
      %s464 = sadd.s32 %s462, %s463
      %s465 = smul.addr %s464, 4
      %s466 = scalar_lea.vmem %s5, %s465
      // Predicated region
      $region41: #{ndnet_segmentation_forward.17} parent=39 // pred_check
        %p467 = pneg %p167
      $region42: #{ndnet_segmentation_forward.17} parent=39 // pred_check_branch
        %469 = sbr.rel (%p467) target = $region44
      $region43: #{ndnet_segmentation_forward.17} parent=39 // pred_region
        _
      $region44: #{ndnet_segmentation_forward.17} parent=39 // pred_fallthru
        _
    $region40: #{ndnet_segmentation_forward.17} parent=5 // pred_fallthru
      _
    %p470 = scmp.le.s32.totalorder 2, %s11
    // Predicated region
    $region45: #{ndnet_segmentation_forward.17} parent=5 // pred_check
      %p471 = pneg %p470
    $region46: #{ndnet_segmentation_forward.17} parent=5 // pred_check_branch
      %473 = sbr.rel (%p471) target = $region48
    $region47: #{ndnet_segmentation_forward.17} parent=5 // pred_region
      %s474 = ssub.s32 %s11, 2
      // Predicated region
      $region49: #{ndnet_segmentation_forward.17} parent=47 // pred_check
        %p475 = pneg %p173
      $region50: #{ndnet_segmentation_forward.17} parent=47 // pred_check_branch
        %477 = sbr.rel (%p475) target = $region52
      $region51: #{ndnet_segmentation_forward.17} parent=47 // pred_region
        %p478 = scmp.lt.s32.totalorder %s22, 1
        %s479 = scalar_select %p478, %s22, 1
        %p480 = scmp.lt.s32.totalorder %s23, 0
        %s481 = scalar_select %p480, %s23, 0
        %s482 = smul.addr %s479, 4
        %s483 = sadd.s32 %s481, %s482
        %s484 = smul.addr %s483, 4
        %s485 = scalar_lea.vmem %s5, %s484
      $region52: #{ndnet_segmentation_forward.17} parent=47 // pred_fallthru
        _
    $region48: #{ndnet_segmentation_forward.17} parent=5 // pred_fallthru
      _
  $region6: #{ndnet_segmentation_forward.17} parent=0 // loop_footer
    %s15 = sadd.s32 1, %s11
  $region7: #{ndnet_segmentation_forward.17} parent=0 // loop_footer_branch
    %10 = sbr.rel target = $region3
  $region8: #{ndnet_segmentation_forward.17} parent=0 // loop_exit
    _

// kernel: ndnet_segmentation_forward.19
$region0: #{ndnet_segmentation_forward.19}
  #allocation0 [shape = 'u32[]', space=smem, size = 0x4, offset = 0x4, fixed_abs, tag = 'smem constant byte address 0x4 - core index']
  #allocation1 [shape = 'u32[144,128]{1,0:T(1,128)}', space=vmem, size = 0x12000, scoped, tag = 'internal scratch']
  %s0 = inlined_call_operand.vmem [shape: bf16[2,32,16], index: 0, kind: input, shape index: {}]
  %s1 = inlined_call_operand.vmem [shape: bf16[2,32,16], index: 1, kind: input, shape index: {}]
  %s2 = inlined_call_operand.vmem [shape: bf16[512,32], index: 2, kind: input, shape index: {}]
  %s3 = inlined_call_operand.vmem [shape: f32[512,1], index: 3, kind: input, shape index: {}]
  %s4 = inlined_call_operand.vmem [shape: f32[512,1], index: 4, kind: input, shape index: {}]
  %s5 = inlined_call_operand.vmem [shape: bf16[256,512], index: 5, kind: input, shape index: {}]
  %s6 = inlined_call_operand.vmem [shape: f32[256,1], index: 6, kind: input, shape index: {}]
  %s7 = inlined_call_operand.vmem [shape: f32[256,1], index: 7, kind: input, shape index: {}]
  %s8 = inlined_call_operand.vmem [shape: bf16[128,256], index: 8, kind: input, shape index: {}]
  %s9 = inlined_call_operand.vmem [shape: f32[128,1], index: 9, kind: input, shape index: {}]
  %s10 = inlined_call_operand.vmem [shape: f32[128,1], index: 10, kind: input, shape index: {}]
  %s11 = inlined_call_operand.vmem [shape: bf16[5,128], index: 11, kind: input, shape index: {}]
  %s12 = inlined_call_operand.vmem [shape: f32[5,1], index: 12, kind: input, shape index: {}]
  %s13 = inlined_call_operand.vmem [shape: f32[2,5,16], index: 13, kind: output, shape index: {}]
  %s14 = sld [smem:[#allocation0]]
  $region85: #{ndnet_segmentation_forward.19} parent=0
    _
  %s16 = ssub.s32 1, %s14
  %s17 = scalar_select 0, %s16, %s14
  loop: start=0, step=1, limit=4
  $region2: #{ndnet_segmentation_forward.19} parent=0 // loop_pre_header
    _
  $region3: #{ndnet_segmentation_forward.19} parent=0 // loop_header
    %s19 = sphi 0, %s23
    %p20 = scmp.ge.s32.totalorder %s19, 4
    %s26 = sphi 0, %s38
    %s27 = sphi 0, %s34
    %s28 = sphi 0, %s26
    %s29 = sphi 0, %s27
    %s30 = sphi 0, %s28
    %s31 = sphi 0, %s29
    %s43 = sphi 0, %s45
    %s46 = sphi 0, %s43
    %s47 = sphi 0, %s46
    %s63 = sphi 0, %s47
    %s71 = sphi 0, %s73
    %s74 = sphi 0, %s71
    %s75 = sphi 0, %s74
    %s91 = sphi 0, %s75
    %s95 = sphi 0, %s95
    %s97 = sphi 0, %s95
    %s98 = sphi 0, %s97
    %s112 = sphi 0, %s98
    %s116 = sphi 0, %s116
    %s118 = sphi 0, %s116
    %s119 = sphi 0, %s118
    %s133 = sphi 0, %s119
    %s137 = sphi 0, %s137
    %s139 = sphi 0, %s137
    %s140 = sphi 0, %s139
    %s154 = sphi 0, %s140
    %s158 = sphi 0, %s158
    %s160 = sphi 0, %s158
    %s161 = sphi 0, %s160
    %s175 = sphi 0, %s161
    %s179 = sphi 0, %s179
    %s181 = sphi 0, %s179
    %s182 = sphi 0, %s181
    %s196 = sphi 0, %s182
    %s200 = sphi 0, %s200
    %s202 = sphi 0, %s200
    %s203 = sphi 0, %s202
    %s217 = sphi 0, %s203
    %s221 = sphi 0, %s221
    %s223 = sphi 0, %s221
    %s224 = sphi 0, %s223
    %s238 = sphi 0, %s224
    %s242 = sphi 0, %s242
    %s244 = sphi 0, %s242
    %s245 = sphi 0, %s244
    %s259 = sphi 0, %s245
    %s263 = sphi 0, %s263
    %s265 = sphi 0, %s263
    %s266 = sphi 0, %s265
    %s280 = sphi 0, %s266
    %s284 = sphi 0, %s284
    %s286 = sphi 0, %s284
    %s287 = sphi 0, %s286
    %s301 = sphi 0, %s287
    %s305 = sphi 0, %s305
    %s307 = sphi 0, %s305
    %s308 = sphi 0, %s307
    %s322 = sphi 0, %s308
    %s330 = sphi 0, %s332
    %s333 = sphi 0, %s330
    %s334 = sphi 0, %s333
    %s350 = sphi 0, %s334
  $region4: #{ndnet_segmentation_forward.19} parent=0 // loop_header_branch
    %22 = sbr.rel (%p20) target = $region8
  $region5: #{ndnet_segmentation_forward.19} parent=0 // loop_body
    %s24 = ssub.s32 %s19, 1
    %s25 = ssub.s32 %s19, 2
    %s32 = sadd.s32 1, %s27
    %p33 = scmp.ge.s32.totalorder %s32, 1
    %s34 = scalar_select %p33, 0, %s32
    %s35 = sadd.s32 1, %s26
    %s36 = scalar_select %p33, %s35, %s26
    %p37 = scmp.ge.s32.totalorder %s36, 2
    %s38 = scalar_select %p37, 0, %s36
    %s39 = ssub.s32 %s26, %s38
    %s40 = ssub.s32 %s27, %s34
    %s41 = sor.u32 %s39, %s40
    %p42 = scmp.eq.s32.totalorder %s41, 0
    %s44 = sadd.s32 %s43, 1
    %s45 = scalar_select %p42, %s43, %s44
    %p48 = pneg %p42
    %p49 = scmp.eq.s32.totalorder %s19, 1
    %p50 = por %p48, %p49
    %p51 = scmp.ne.s32.totalorder %s43, %s46
    %p52 = scmp.eq.s32.totalorder %s19, 0
    %p53 = por %p51, %p52
    %p54 = scmp.ne.s32.totalorder %s43, %s46
    %p55 = scmp.eq.s32.totalorder %s24, 1
    %p56 = por %p54, %p55
    %p57 = scmp.ne.s32.totalorder %s46, %s47
    %p58 = scmp.eq.s32.totalorder %s24, 0
    %p59 = por %p57, %p58
    %p60 = scmp.ne.s32.totalorder %s46, %s47
    %p61 = scmp.eq.s32.totalorder %s25, 1
    %p62 = por %p60, %p61
    %p64 = scmp.ne.s32.totalorder %s47, %s63
    %p65 = scmp.eq.s32.totalorder %s25, 0
    %p66 = por %p64, %p65
    %s67 = ssub.s32 %s26, %s38
    %s68 = ssub.s32 %s27, %s34
    %s69 = sor.u32 %s67, %s68
    %p70 = scmp.eq.s32.totalorder %s69, 0
    %s72 = sadd.s32 %s71, 1
    %s73 = scalar_select %p70, %s71, %s72
    %p76 = pneg %p70
    %p77 = scmp.eq.s32.totalorder %s19, 1
    %p78 = por %p76, %p77
    %p79 = scmp.ne.s32.totalorder %s71, %s74
    %p80 = scmp.eq.s32.totalorder %s19, 0
    %p81 = por %p79, %p80
    %p82 = scmp.ne.s32.totalorder %s71, %s74
    %p83 = scmp.eq.s32.totalorder %s24, 1
    %p84 = por %p82, %p83
    %p85 = scmp.ne.s32.totalorder %s74, %s75
    %p86 = scmp.eq.s32.totalorder %s24, 0
    %p87 = por %p85, %p86
    %p88 = scmp.ne.s32.totalorder %s74, %s75
    %p89 = scmp.eq.s32.totalorder %s25, 1
    %p90 = por %p88, %p89
    %p92 = scmp.ne.s32.totalorder %s75, %s91
    %p93 = scmp.eq.s32.totalorder %s25, 0
    %p94 = por %p92, %p93
    %s96 = sadd.s32 %s95, 1
    %p99 = scmp.eq.s32.totalorder %s19, 1
    %p100 = scmp.ne.s32.totalorder %s95, %s97
    %p101 = scmp.eq.s32.totalorder %s19, 0
    %p102 = por %p100, %p101
    %p103 = scmp.ne.s32.totalorder %s95, %s97
    %p104 = scmp.eq.s32.totalorder %s24, 1
    %p105 = por %p103, %p104
    %p106 = scmp.ne.s32.totalorder %s97, %s98
    %p107 = scmp.eq.s32.totalorder %s24, 0
    %p108 = por %p106, %p107
    %p109 = scmp.ne.s32.totalorder %s97, %s98
    %p110 = scmp.eq.s32.totalorder %s25, 1
    %p111 = por %p109, %p110
    %p113 = scmp.ne.s32.totalorder %s98, %s112
    %p114 = scmp.eq.s32.totalorder %s25, 0
    %p115 = por %p113, %p114
    %s117 = sadd.s32 %s116, 1
    %p120 = scmp.eq.s32.totalorder %s19, 1
    %p121 = scmp.ne.s32.totalorder %s116, %s118
    %p122 = scmp.eq.s32.totalorder %s19, 0
    %p123 = por %p121, %p122
    %p124 = scmp.ne.s32.totalorder %s116, %s118
    %p125 = scmp.eq.s32.totalorder %s24, 1
    %p126 = por %p124, %p125
    %p127 = scmp.ne.s32.totalorder %s118, %s119
    %p128 = scmp.eq.s32.totalorder %s24, 0
    %p129 = por %p127, %p128
    %p130 = scmp.ne.s32.totalorder %s118, %s119
    %p131 = scmp.eq.s32.totalorder %s25, 1
    %p132 = por %p130, %p131
    %p134 = scmp.ne.s32.totalorder %s119, %s133
    %p135 = scmp.eq.s32.totalorder %s25, 0
    %p136 = por %p134, %p135
    %s138 = sadd.s32 %s137, 1
    %p141 = scmp.eq.s32.totalorder %s19, 1
    %p142 = scmp.ne.s32.totalorder %s137, %s139
    %p143 = scmp.eq.s32.totalorder %s19, 0
    %p144 = por %p142, %p143
    %p145 = scmp.ne.s32.totalorder %s137, %s139
    %p146 = scmp.eq.s32.totalorder %s24, 1
    %p147 = por %p145, %p146
    %p148 = scmp.ne.s32.totalorder %s139, %s140
    %p149 = scmp.eq.s32.totalorder %s24, 0
    %p150 = por %p148, %p149
    %p151 = scmp.ne.s32.totalorder %s139, %s140
    %p152 = scmp.eq.s32.totalorder %s25, 1
    %p153 = por %p151, %p152
    %p155 = scmp.ne.s32.totalorder %s140, %s154
    %p156 = scmp.eq.s32.totalorder %s25, 0
    %p157 = por %p155, %p156
    %s159 = sadd.s32 %s158, 1
    %p162 = scmp.eq.s32.totalorder %s19, 1
    %p163 = scmp.ne.s32.totalorder %s158, %s160
    %p164 = scmp.eq.s32.totalorder %s19, 0
    %p165 = por %p163, %p164
    %p166 = scmp.ne.s32.totalorder %s158, %s160
    %p167 = scmp.eq.s32.totalorder %s24, 1
    %p168 = por %p166, %p167
    %p169 = scmp.ne.s32.totalorder %s160, %s161
    %p170 = scmp.eq.s32.totalorder %s24, 0
    %p171 = por %p169, %p170
    %p172 = scmp.ne.s32.totalorder %s160, %s161
    %p173 = scmp.eq.s32.totalorder %s25, 1
    %p174 = por %p172, %p173
    %p176 = scmp.ne.s32.totalorder %s161, %s175
    %p177 = scmp.eq.s32.totalorder %s25, 0
    %p178 = por %p176, %p177
    %s180 = sadd.s32 %s179, 1
    %p183 = scmp.eq.s32.totalorder %s19, 1
    %p184 = scmp.ne.s32.totalorder %s179, %s181
    %p185 = scmp.eq.s32.totalorder %s19, 0
    %p186 = por %p184, %p185
    %p187 = scmp.ne.s32.totalorder %s179, %s181
    %p188 = scmp.eq.s32.totalorder %s24, 1
    %p189 = por %p187, %p188
    %p190 = scmp.ne.s32.totalorder %s181, %s182
    %p191 = scmp.eq.s32.totalorder %s24, 0
    %p192 = por %p190, %p191
    %p193 = scmp.ne.s32.totalorder %s181, %s182
    %p194 = scmp.eq.s32.totalorder %s25, 1
    %p195 = por %p193, %p194
    %p197 = scmp.ne.s32.totalorder %s182, %s196
    %p198 = scmp.eq.s32.totalorder %s25, 0
    %p199 = por %p197, %p198
    %s201 = sadd.s32 %s200, 1
    %p204 = scmp.eq.s32.totalorder %s19, 1
    %p205 = scmp.ne.s32.totalorder %s200, %s202
    %p206 = scmp.eq.s32.totalorder %s19, 0
    %p207 = por %p205, %p206
    %p208 = scmp.ne.s32.totalorder %s200, %s202
    %p209 = scmp.eq.s32.totalorder %s24, 1
    %p210 = por %p208, %p209
    %p211 = scmp.ne.s32.totalorder %s202, %s203
    %p212 = scmp.eq.s32.totalorder %s24, 0
    %p213 = por %p211, %p212
    %p214 = scmp.ne.s32.totalorder %s202, %s203
    %p215 = scmp.eq.s32.totalorder %s25, 1
    %p216 = por %p214, %p215
    %p218 = scmp.ne.s32.totalorder %s203, %s217
    %p219 = scmp.eq.s32.totalorder %s25, 0
    %p220 = por %p218, %p219
    %s222 = sadd.s32 %s221, 1
    %p225 = scmp.eq.s32.totalorder %s19, 1
    %p226 = scmp.ne.s32.totalorder %s221, %s223
    %p227 = scmp.eq.s32.totalorder %s19, 0
    %p228 = por %p226, %p227
    %p229 = scmp.ne.s32.totalorder %s221, %s223
    %p230 = scmp.eq.s32.totalorder %s24, 1
    %p231 = por %p229, %p230
    %p232 = scmp.ne.s32.totalorder %s223, %s224
    %p233 = scmp.eq.s32.totalorder %s24, 0
    %p234 = por %p232, %p233
    %p235 = scmp.ne.s32.totalorder %s223, %s224
    %p236 = scmp.eq.s32.totalorder %s25, 1
    %p237 = por %p235, %p236
    %p239 = scmp.ne.s32.totalorder %s224, %s238
    %p240 = scmp.eq.s32.totalorder %s25, 0
    %p241 = por %p239, %p240
    %s243 = sadd.s32 %s242, 1
    %p246 = scmp.eq.s32.totalorder %s19, 1
    %p247 = scmp.ne.s32.totalorder %s242, %s244
    %p248 = scmp.eq.s32.totalorder %s19, 0
    %p249 = por %p247, %p248
    %p250 = scmp.ne.s32.totalorder %s242, %s244
    %p251 = scmp.eq.s32.totalorder %s24, 1
    %p252 = por %p250, %p251
    %p253 = scmp.ne.s32.totalorder %s244, %s245
    %p254 = scmp.eq.s32.totalorder %s24, 0
    %p255 = por %p253, %p254
    %p256 = scmp.ne.s32.totalorder %s244, %s245
    %p257 = scmp.eq.s32.totalorder %s25, 1
    %p258 = por %p256, %p257
    %p260 = scmp.ne.s32.totalorder %s245, %s259
    %p261 = scmp.eq.s32.totalorder %s25, 0
    %p262 = por %p260, %p261
    %s264 = sadd.s32 %s263, 1
    %p267 = scmp.eq.s32.totalorder %s19, 1
    %p268 = scmp.ne.s32.totalorder %s263, %s265
    %p269 = scmp.eq.s32.totalorder %s19, 0
    %p270 = por %p268, %p269
    %p271 = scmp.ne.s32.totalorder %s263, %s265
    %p272 = scmp.eq.s32.totalorder %s24, 1
    %p273 = por %p271, %p272
    %p274 = scmp.ne.s32.totalorder %s265, %s266
    %p275 = scmp.eq.s32.totalorder %s24, 0
    %p276 = por %p274, %p275
    %p277 = scmp.ne.s32.totalorder %s265, %s266
    %p278 = scmp.eq.s32.totalorder %s25, 1
    %p279 = por %p277, %p278
    %p281 = scmp.ne.s32.totalorder %s266, %s280
    %p282 = scmp.eq.s32.totalorder %s25, 0
    %p283 = por %p281, %p282
    %s285 = sadd.s32 %s284, 1
    %p288 = scmp.eq.s32.totalorder %s19, 1
    %p289 = scmp.ne.s32.totalorder %s284, %s286
    %p290 = scmp.eq.s32.totalorder %s19, 0
    %p291 = por %p289, %p290
    %p292 = scmp.ne.s32.totalorder %s284, %s286
    %p293 = scmp.eq.s32.totalorder %s24, 1
    %p294 = por %p292, %p293
    %p295 = scmp.ne.s32.totalorder %s286, %s287
    %p296 = scmp.eq.s32.totalorder %s24, 0
    %p297 = por %p295, %p296
    %p298 = scmp.ne.s32.totalorder %s286, %s287
    %p299 = scmp.eq.s32.totalorder %s25, 1
    %p300 = por %p298, %p299
    %p302 = scmp.ne.s32.totalorder %s287, %s301
    %p303 = scmp.eq.s32.totalorder %s25, 0
    %p304 = por %p302, %p303
    %s306 = sadd.s32 %s305, 1
    %p309 = scmp.eq.s32.totalorder %s19, 1
    %p310 = scmp.ne.s32.totalorder %s305, %s307
    %p311 = scmp.eq.s32.totalorder %s19, 0
    %p312 = por %p310, %p311
    %p313 = scmp.ne.s32.totalorder %s305, %s307
    %p314 = scmp.eq.s32.totalorder %s24, 1
    %p315 = por %p313, %p314
    %p316 = scmp.ne.s32.totalorder %s307, %s308
    %p317 = scmp.eq.s32.totalorder %s24, 0
    %p318 = por %p316, %p317
    %p319 = scmp.ne.s32.totalorder %s307, %s308
    %p320 = scmp.eq.s32.totalorder %s25, 1
    %p321 = por %p319, %p320
    %p323 = scmp.ne.s32.totalorder %s308, %s322
    %p324 = scmp.eq.s32.totalorder %s25, 0
    %p325 = por %p323, %p324
    %s326 = ssub.s32 %s26, %s38
    %s327 = ssub.s32 %s27, %s34
    %s328 = sor.u32 %s326, %s327
    %p329 = scmp.eq.s32.totalorder %s328, 0
    %s331 = sadd.s32 %s330, 1
    %s332 = scalar_select %p329, %s330, %s331
    %p335 = pneg %p329
    %p336 = scmp.eq.s32.totalorder %s19, 1
    %p337 = por %p335, %p336
    %p338 = scmp.ne.s32.totalorder %s330, %s333
    %p339 = scmp.eq.s32.totalorder %s19, 0
    %p340 = por %p338, %p339
    %p341 = scmp.ne.s32.totalorder %s330, %s333
    %p342 = scmp.eq.s32.totalorder %s24, 1
    %p343 = por %p341, %p342
    %p344 = scmp.ne.s32.totalorder %s333, %s334
    %p345 = scmp.eq.s32.totalorder %s24, 0
    %p346 = por %p344, %p345
    %p347 = scmp.ne.s32.totalorder %s333, %s334
    %p348 = scmp.eq.s32.totalorder %s25, 1
    %p349 = por %p347, %p348
    %p351 = scmp.ne.s32.totalorder %s334, %s350
    %p352 = scmp.eq.s32.totalorder %s25, 0
    %p353 = por %p351, %p352
    %p354 = scmp.le.s32.totalorder 1, %s19
    %p355 = scmp.lt.s32.totalorder %s19, 3
    %p356 = pnand %p354, %p355
    %p357 = pneg %p356
    // Predicated region
    $region9: #{ndnet_segmentation_forward.19} parent=5 // pred_check
      _
    $region10: #{ndnet_segmentation_forward.19} parent=5 // pred_check_branch
      %359 = sbr.rel (%p356) target = $region12
    $region11: #{ndnet_segmentation_forward.19} parent=5 // pred_region
      %s360 = ssub.s32 %s19, 1
      // Predicated region
      $region13: #{ndnet_segmentation_forward.19} parent=11 // pred_check
        %p361 = pneg %p108
      $region14: #{ndnet_segmentation_forward.19} parent=11 // pred_check_branch
        %363 = sbr.rel (%p361) target = $region16
      $region15: #{ndnet_segmentation_forward.19} parent=11 // pred_region
        _
      $region16: #{ndnet_segmentation_forward.19} parent=11 // pred_fallthru
        _
      // Predicated region
      $region17: #{ndnet_segmentation_forward.19} parent=11 // pred_check
        %p364 = pneg %p129
      $region18: #{ndnet_segmentation_forward.19} parent=11 // pred_check_branch
        %366 = sbr.rel (%p364) target = $region20
      $region19: #{ndnet_segmentation_forward.19} parent=11 // pred_region
        _
      $region20: #{ndnet_segmentation_forward.19} parent=11 // pred_fallthru
        _
      // Predicated region
      $region21: #{ndnet_segmentation_forward.19} parent=11 // pred_check
        %p367 = pneg %p150
      $region22: #{ndnet_segmentation_forward.19} parent=11 // pred_check_branch
        %369 = sbr.rel (%p367) target = $region24
      $region23: #{ndnet_segmentation_forward.19} parent=11 // pred_region
        _
      $region24: #{ndnet_segmentation_forward.19} parent=11 // pred_fallthru
        _
      // Predicated region
      $region25: #{ndnet_segmentation_forward.19} parent=11 // pred_check
        %p370 = pneg %p171
      $region26: #{ndnet_segmentation_forward.19} parent=11 // pred_check_branch
        %372 = sbr.rel (%p370) target = $region28
      $region27: #{ndnet_segmentation_forward.19} parent=11 // pred_region
        _
      $region28: #{ndnet_segmentation_forward.19} parent=11 // pred_fallthru
        _
      // Predicated region
      $region29: #{ndnet_segmentation_forward.19} parent=11 // pred_check
        %p373 = pneg %p192
      $region30: #{ndnet_segmentation_forward.19} parent=11 // pred_check_branch
        %375 = sbr.rel (%p373) target = $region32
      $region31: #{ndnet_segmentation_forward.19} parent=11 // pred_region
        _
      $region32: #{ndnet_segmentation_forward.19} parent=11 // pred_fallthru
        _
      // Predicated region
      $region33: #{ndnet_segmentation_forward.19} parent=11 // pred_check
        %p376 = pneg %p213
      $region34: #{ndnet_segmentation_forward.19} parent=11 // pred_check_branch
        %378 = sbr.rel (%p376) target = $region36
      $region35: #{ndnet_segmentation_forward.19} parent=11 // pred_region
        _
      $region36: #{ndnet_segmentation_forward.19} parent=11 // pred_fallthru
        _
      // Predicated region
      $region37: #{ndnet_segmentation_forward.19} parent=11 // pred_check
        %p379 = pneg %p234
      $region38: #{ndnet_segmentation_forward.19} parent=11 // pred_check_branch
        %381 = sbr.rel (%p379) target = $region40
      $region39: #{ndnet_segmentation_forward.19} parent=11 // pred_region
        _
      $region40: #{ndnet_segmentation_forward.19} parent=11 // pred_fallthru
        _
      // Predicated region
      $region41: #{ndnet_segmentation_forward.19} parent=11 // pred_check
        %p382 = pneg %p255
      $region42: #{ndnet_segmentation_forward.19} parent=11 // pred_check_branch
        %384 = sbr.rel (%p382) target = $region44
      $region43: #{ndnet_segmentation_forward.19} parent=11 // pred_region
        _
      $region44: #{ndnet_segmentation_forward.19} parent=11 // pred_fallthru
        _
      // Predicated region
      $region45: #{ndnet_segmentation_forward.19} parent=11 // pred_check
        %p385 = pneg %p276
      $region46: #{ndnet_segmentation_forward.19} parent=11 // pred_check_branch
        %387 = sbr.rel (%p385) target = $region48
      $region47: #{ndnet_segmentation_forward.19} parent=11 // pred_region
        _
      $region48: #{ndnet_segmentation_forward.19} parent=11 // pred_fallthru
        _
      // Predicated region
      $region49: #{ndnet_segmentation_forward.19} parent=11 // pred_check
        %p388 = pneg %p297
      $region50: #{ndnet_segmentation_forward.19} parent=11 // pred_check_branch
        %390 = sbr.rel (%p388) target = $region52
      $region51: #{ndnet_segmentation_forward.19} parent=11 // pred_region
        _
      $region52: #{ndnet_segmentation_forward.19} parent=11 // pred_fallthru
        _
      // Predicated region
      $region53: #{ndnet_segmentation_forward.19} parent=11 // pred_check
        %p391 = pneg %p318
      $region54: #{ndnet_segmentation_forward.19} parent=11 // pred_check_branch
        %393 = sbr.rel (%p391) target = $region56
      $region55: #{ndnet_segmentation_forward.19} parent=11 // pred_region
        _
      $region56: #{ndnet_segmentation_forward.19} parent=11 // pred_fallthru
        _
    $region12: #{ndnet_segmentation_forward.19} parent=5 // pred_fallthru
      _
    %p394 = scmp.lt.s32.totalorder %s19, 2
    // Predicated region
    $region57: #{ndnet_segmentation_forward.19} parent=5 // pred_check
      %p395 = pneg %p394
    $region58: #{ndnet_segmentation_forward.19} parent=5 // pred_check_branch
      %397 = sbr.rel (%p395) target = $region60
    $region59: #{ndnet_segmentation_forward.19} parent=5 // pred_region
      // Predicated region
      $region61: #{ndnet_segmentation_forward.19} parent=59 // pred_check
        %p398 = pneg %p53
      $region62: #{ndnet_segmentation_forward.19} parent=59 // pred_check_branch
        %400 = sbr.rel (%p398) target = $region64
      $region63: #{ndnet_segmentation_forward.19} parent=59 // pred_region
        %p401 = scmp.lt.s32.totalorder %s26, 1
        %s402 = scalar_select %p401, %s26, 1
        %p403 = scmp.lt.s32.totalorder %s27, 0
        %s404 = scalar_select %p403, %s27, 0
        %s405 = smul.addr %s402, 4
        %s406 = sadd.s32 %s404, %s405
        %s407 = smul.addr %s406, 4
        %s408 = scalar_lea.vmem %s0, %s407
      $region64: #{ndnet_segmentation_forward.19} parent=59 // pred_fallthru
        _
      // Predicated region
      $region65: #{ndnet_segmentation_forward.19} parent=59 // pred_check
        %p409 = pneg %p81
      $region66: #{ndnet_segmentation_forward.19} parent=59 // pred_check_branch
        %411 = sbr.rel (%p409) target = $region68
      $region67: #{ndnet_segmentation_forward.19} parent=59 // pred_region
        %p412 = scmp.lt.s32.totalorder %s26, 1
        %s413 = scalar_select %p412, %s26, 1
        %p414 = scmp.lt.s32.totalorder %s27, 0
        %s415 = scalar_select %p414, %s27, 0
        %s416 = smul.addr %s413, 4
        %s417 = sadd.s32 %s415, %s416
        %s418 = smul.addr %s417, 4
        %s419 = scalar_lea.vmem %s1, %s418
      $region68: #{ndnet_segmentation_forward.19} parent=59 // pred_fallthru
        _
    $region60: #{ndnet_segmentation_forward.19} parent=5 // pred_fallthru
      _
    %p420 = scmp.le.s32.totalorder 1, %s19
    %p421 = scmp.lt.s32.totalorder %s19, 3
    %p422 = pnand %p420, %p421
    %p423 = pneg %p422
    // Predicated region
    $region69: #{ndnet_segmentation_forward.19} parent=5 // pred_check
      _
    $region70: #{ndnet_segmentation_forward.19} parent=5 // pred_check_branch
      %425 = sbr.rel (%p422) target = $region72
    $region71: #{ndnet_segmentation_forward.19} parent=5 // pred_region
      %s426 = ssub.s32 %s19, 1
      %p427 = scmp.lt.s32.totalorder %s28, 1
      %s428 = scalar_select %p427, %s28, 1
      %p429 = scmp.lt.s32.totalorder %s29, 0
      %s430 = scalar_select %p429, %s29, 0
      %s431 = smul.addr %s428, 4
      %s432 = sadd.s32 %s430, %s431
      %s433 = smul.addr %s432, 4
      %s434 = scalar_lea.vmem %s0, %s433
      %p435 = pneg %p59
      %p436 = pneg %p56
      %p437 = scmp.lt.s32.totalorder %s28, 1
      %s438 = scalar_select %p437, %s28, 1
      %p439 = scmp.lt.s32.totalorder %s29, 0
      %s440 = scalar_select %p439, %s29, 0
      %s441 = smul.addr %s438, 4
      %s442 = sadd.s32 %s440, %s441
      %s443 = smul.addr %s442, 4
      %s444 = scalar_lea.vmem %s1, %s443
      %p445 = pneg %p87
      %p446 = pneg %p84
      %p447 = pneg %p108
      %p448 = pneg %p105
      %p449 = pneg %p129
      %p450 = pneg %p126
      %p451 = pneg %p150
      %p452 = pneg %p147
      %p453 = pneg %p171
      %p454 = pneg %p168
      %p455 = pneg %p192
      %p456 = pneg %p189
      %p457 = pneg %p213
      %p458 = pneg %p210
      %p459 = pneg %p234
      %p460 = pneg %p231
      %p461 = pneg %p255
      %p462 = pneg %p252
      %p463 = pneg %p276
      %p464 = pneg %p273
      %p465 = pneg %p297
      %p466 = pneg %p294
      %p467 = pneg %p318
      %p468 = pneg %p315
      %p469 = pneg %p346
      %p470 = pneg %p343
      %p471 = scmp.lt.s32.totalorder %s28, 1
      %s472 = scalar_select %p471, %s28, 1
      %p473 = scmp.lt.s32.totalorder %s29, 0
      %s474 = scalar_select %p473, %s29, 0
      %s475 = sadd.s32 %s474, %s472
      %s476 = smul.addr %s475, 8
      %s477 = scalar_lea.vmem %s13, %s476
      %p478 = scmp.lt.s32.totalorder %s28, 1
      %s479 = scalar_select %p478, %s28, 1
      %p480 = scmp.lt.s32.totalorder %s29, 0
      %s481 = scalar_select %p480, %s29, 0
      %s482 = smul.addr %s479, 4
      %s483 = sadd.s32 %s481, %s482
      %s484 = smul.addr %s483, 4
      %s485 = scalar_lea.vmem %s0, %s484
      %p486 = scmp.lt.s32.totalorder %s28, 1
      %s487 = scalar_select %p486, %s28, 1
      %p488 = scmp.lt.s32.totalorder %s29, 0
      %s489 = scalar_select %p488, %s29, 0
      %s490 = smul.addr %s487, 4
      %s491 = sadd.s32 %s489, %s490
      %s492 = smul.addr %s491, 4
      %s493 = scalar_lea.vmem %s1, %s492
      %p494 = scmp.lt.s32.totalorder %s28, 1
      %s495 = scalar_select %p494, %s28, 1
      %p496 = scmp.lt.s32.totalorder %s29, 0
      %s497 = scalar_select %p496, %s29, 0
      %s498 = sadd.s32 %s497, %s495
      %s499 = smul.addr %s498, 8
      %s500 = scalar_lea.vmem %s13, %s499
      %v502 = vld [vmem:[%s485] sm:$0xf]
      %v503 = vld [vmem:[%s485 + $0x4] sm:$0xf]
      %v504 = vld [vmem:[%s485 + $0x8] sm:$0xf]
      %v505 = vld [vmem:[%s485 + $0xc] sm:$0xf]
      %v506 = vld [vmem:[%s493] sm:$0xf]
      %v507 = vld [vmem:[%s493 + $0x4] sm:$0xf]
      %v508 = vld [vmem:[%s493 + $0x8] sm:$0xf]
      %v509 = vld [vmem:[%s493 + $0xc] sm:$0xf]
      %v510 = vadd.bf16 %v502, %v506
      %v511 = vadd.bf16 %v503, %v507
      %v512 = vadd.bf16 %v504, %v508
      %v513 = vadd.bf16 %v505, %v509
      %v514 = vld [vmem:[%s2] sm:$0xf]
      %v515 = vld [vmem:[%s2 + $0x4] sm:$0xf]
      %v516 = vld [vmem:[%s2 + $0x8] sm:$0xf]
      %v517 = vld [vmem:[%s2 + $0xc] sm:$0xf]
      %v518 = vld [vmem:[%s2 + $0x10] sm:$0xf]
      %v519 = vld [vmem:[%s2 + $0x14] sm:$0xf]
      %v520 = vld [vmem:[%s2 + $0x18] sm:$0xf]
      %v521 = vld [vmem:[%s2 + $0x1c] sm:$0xf]
      %v522 = vld [vmem:[%s2 + $0x20] sm:$0xf]
      %v523 = vld [vmem:[%s2 + $0x24] sm:$0xf]
      %v524 = vld [vmem:[%s2 + $0x28] sm:$0xf]
      %v525 = vld [vmem:[%s2 + $0x2c] sm:$0xf]
      %v526 = vld [vmem:[%s2 + $0x30] sm:$0xf]
      %v527 = vld [vmem:[%s2 + $0x34] sm:$0xf]
      %v528 = vld [vmem:[%s2 + $0x38] sm:$0xf]
      %v529 = vld [vmem:[%s2 + $0x3c] sm:$0xf]
      %v530 = vld [vmem:[%s2 + $0x40] sm:$0xf]
      %v531 = vld [vmem:[%s2 + $0x44] sm:$0xf]
      %v532 = vld [vmem:[%s2 + $0x48] sm:$0xf]
      %v533 = vld [vmem:[%s2 + $0x4c] sm:$0xf]
      %v534 = vld [vmem:[%s2 + $0x50] sm:$0xf]
      %v535 = vld [vmem:[%s2 + $0x54] sm:$0xf]
      %v536 = vld [vmem:[%s2 + $0x58] sm:$0xf]
      %v537 = vld [vmem:[%s2 + $0x5c] sm:$0xf]
      %v538 = vld [vmem:[%s2 + $0x60] sm:$0xf]
      %v539 = vld [vmem:[%s2 + $0x64] sm:$0xf]
      %v540 = vld [vmem:[%s2 + $0x68] sm:$0xf]
      %v541 = vld [vmem:[%s2 + $0x6c] sm:$0xf]
      %v542 = vld [vmem:[%s2 + $0x70] sm:$0xf]
      %v543 = vld [vmem:[%s2 + $0x74] sm:$0xf]
      %v544 = vld [vmem:[%s2 + $0x78] sm:$0xf]
      %v545 = vld [vmem:[%s2 + $0x7c] sm:$0xf]
      %v546 = vld [vmem:[%s2 + $0x80] sm:$0xf]
      %v547 = vld [vmem:[%s2 + $0x84] sm:$0xf]
      %v548 = vld [vmem:[%s2 + $0x88] sm:$0xf]
      %v549 = vld [vmem:[%s2 + $0x8c] sm:$0xf]
      %v550 = vld [vmem:[%s2 + $0x90] sm:$0xf]
      %v551 = vld [vmem:[%s2 + $0x94] sm:$0xf]
      %v552 = vld [vmem:[%s2 + $0x98] sm:$0xf]
      %v553 = vld [vmem:[%s2 + $0x9c] sm:$0xf]
      %v554 = vld [vmem:[%s2 + $0xa0] sm:$0xf]
      %v555 = vld [vmem:[%s2 + $0xa4] sm:$0xf]
      %v556 = vld [vmem:[%s2 + $0xa8] sm:$0xf]
      %v557 = vld [vmem:[%s2 + $0xac] sm:$0xf]
      %v558 = vld [vmem:[%s2 + $0xb0] sm:$0xf]
      %v559 = vld [vmem:[%s2 + $0xb4] sm:$0xf]
      %v560 = vld [vmem:[%s2 + $0xb8] sm:$0xf]
      %v561 = vld [vmem:[%s2 + $0xbc] sm:$0xf]
      %v562 = vld [vmem:[%s2 + $0xc0] sm:$0xf]
      %v563 = vld [vmem:[%s2 + $0xc4] sm:$0xf]
      %v564 = vld [vmem:[%s2 + $0xc8] sm:$0xf]
      %v565 = vld [vmem:[%s2 + $0xcc] sm:$0xf]
      %v566 = vld [vmem:[%s2 + $0xd0] sm:$0xf]
      %v567 = vld [vmem:[%s2 + $0xd4] sm:$0xf]
      %v568 = vld [vmem:[%s2 + $0xd8] sm:$0xf]
      %v569 = vld [vmem:[%s2 + $0xdc] sm:$0xf]
      %v570 = vld [vmem:[%s2 + $0xe0] sm:$0xf]
      %v571 = vld [vmem:[%s2 + $0xe4] sm:$0xf]
      %v572 = vld [vmem:[%s2 + $0xe8] sm:$0xf]
      %v573 = vld [vmem:[%s2 + $0xec] sm:$0xf]
      %v574 = vld [vmem:[%s2 + $0xf0] sm:$0xf]
      %v575 = vld [vmem:[%s2 + $0xf4] sm:$0xf]
      %v576 = vld [vmem:[%s2 + $0xf8] sm:$0xf]
      %v577 = vld [vmem:[%s2 + $0xfc] sm:$0xf]
      %v642 = vunpack.c.l.b16 %v514
      %v643 = vunpack.c.l.b16 %v515
      %v644 = vunpack.c.l.b16 %v516
      %v645 = vunpack.c.l.b16 %v517
      %v646 = vunpack.c.l.b16 %v518
      %v647 = vunpack.c.l.b16 %v519
      %v648 = vunpack.c.l.b16 %v520
      %v649 = vunpack.c.l.b16 %v521
      %v650 = vunpack.c.l.b16 %v522
      %v651 = vunpack.c.l.b16 %v523
      %v652 = vunpack.c.l.b16 %v524
      %v653 = vunpack.c.l.b16 %v525
      %v654 = vunpack.c.l.b16 %v526
      %v655 = vunpack.c.l.b16 %v527
      %v656 = vunpack.c.l.b16 %v528
      %v657 = vunpack.c.l.b16 %v529
      %v658 = vunpack.c.l.b16 %v530
      %v659 = vunpack.c.l.b16 %v531
      %v660 = vunpack.c.l.b16 %v532
      %v661 = vunpack.c.l.b16 %v533
      %v662 = vunpack.c.l.b16 %v534
      %v663 = vunpack.c.l.b16 %v535
      %v664 = vunpack.c.l.b16 %v536
      %v665 = vunpack.c.l.b16 %v537
      %v666 = vunpack.c.l.b16 %v538
      %v667 = vunpack.c.l.b16 %v539
      %v668 = vunpack.c.l.b16 %v540
      %v669 = vunpack.c.l.b16 %v541
      %v670 = vunpack.c.l.b16 %v542
      %v671 = vunpack.c.l.b16 %v543
      %v672 = vunpack.c.l.b16 %v544
      %v673 = vunpack.c.l.b16 %v545
      %v674 = vunpack.c.l.b16 %v546
      %v675 = vunpack.c.l.b16 %v547
      %v676 = vunpack.c.l.b16 %v548
      %v677 = vunpack.c.l.b16 %v549
      %v678 = vunpack.c.l.b16 %v550
      %v679 = vunpack.c.l.b16 %v551
      %v680 = vunpack.c.l.b16 %v552
      %v681 = vunpack.c.l.b16 %v553
      %v682 = vunpack.c.l.b16 %v554
      %v683 = vunpack.c.l.b16 %v555
      %v684 = vunpack.c.l.b16 %v556
      %v685 = vunpack.c.l.b16 %v557
      %v686 = vunpack.c.l.b16 %v558
      %v687 = vunpack.c.l.b16 %v559
      %v688 = vunpack.c.l.b16 %v560
      %v689 = vunpack.c.l.b16 %v561
      %v690 = vunpack.c.l.b16 %v562
      %v691 = vunpack.c.l.b16 %v563
      %v692 = vunpack.c.l.b16 %v564
      %v693 = vunpack.c.l.b16 %v565
      %v694 = vunpack.c.l.b16 %v566
      %v695 = vunpack.c.l.b16 %v567
      %v696 = vunpack.c.l.b16 %v568
      %v697 = vunpack.c.l.b16 %v569
      %v698 = vunpack.c.l.b16 %v570
      %v699 = vunpack.c.l.b16 %v571
      %v700 = vunpack.c.l.b16 %v572
      %v701 = vunpack.c.l.b16 %v573
      %v702 = vunpack.c.l.b16 %v574
      %v703 = vunpack.c.l.b16 %v575
      %v704 = vunpack.c.l.b16 %v576
      %v705 = vunpack.c.l.b16 %v577
      %v706 = vpack.c.b16 %v643, %v642
      %v707 = vpack.c.b16 %v645, %v644
      %v708 = vpack.c.b16 %v647, %v646
      %v709 = vpack.c.b16 %v649, %v648
      %v710 = vpack.c.b16 %v651, %v650
      %v711 = vpack.c.b16 %v653, %v652
      %v712 = vpack.c.b16 %v655, %v654
      %v713 = vpack.c.b16 %v657, %v656
      %v714 = vpack.c.b16 %v659, %v658
      %v715 = vpack.c.b16 %v661, %v660
      %v716 = vpack.c.b16 %v663, %v662
      %v717 = vpack.c.b16 %v665, %v664
      %v718 = vpack.c.b16 %v667, %v666
      %v719 = vpack.c.b16 %v669, %v668
      %v720 = vpack.c.b16 %v671, %v670
      %v721 = vpack.c.b16 %v673, %v672
      %v722 = vpack.c.b16 %v675, %v674
      %v723 = vpack.c.b16 %v677, %v676
      %v724 = vpack.c.b16 %v679, %v678
      %v725 = vpack.c.b16 %v681, %v680
      %v726 = vpack.c.b16 %v683, %v682
      %v727 = vpack.c.b16 %v685, %v684
      %v728 = vpack.c.b16 %v687, %v686
      %v729 = vpack.c.b16 %v689, %v688
      %v730 = vpack.c.b16 %v691, %v690
      %v731 = vpack.c.b16 %v693, %v692
      %v732 = vpack.c.b16 %v695, %v694
      %v733 = vpack.c.b16 %v697, %v696
      %v734 = vpack.c.b16 %v699, %v698
      %v735 = vpack.c.b16 %v701, %v700
      %v736 = vpack.c.b16 %v703, %v702
      %v737 = vpack.c.b16 %v705, %v704
      %v742 = vunpack.c.l.b16 %v510
      %v743 = vunpack.c.l.b16 %v511
      %v744 = vunpack.c.l.b16 %v512
      %v745 = vunpack.c.l.b16 %v513
      %v746 = vpack.c.b16 %v743, %v742
      %v747 = vpack.c.b16 %v745, %v744
      %vm750 = vcmask 261120
      %v752 = vsel %vm750, %v706, 0
      %v755 = vsel %vm750, %v707, 0
      %v758 = vsel %vm750, %v708, 0
      %v761 = vsel %vm750, %v709, 0
      %v764 = vsel %vm750, %v710, 0
      %v767 = vsel %vm750, %v711, 0
      %v770 = vsel %vm750, %v712, 0
      %v773 = vsel %vm750, %v713, 0
      %v776 = vsel %vm750, %v714, 0
      %v779 = vsel %vm750, %v715, 0
      %v782 = vsel %vm750, %v716, 0
      %v785 = vsel %vm750, %v717, 0
      %v788 = vsel %vm750, %v718, 0
      %v791 = vsel %vm750, %v719, 0
      %v794 = vsel %vm750, %v720, 0
      %v797 = vsel %vm750, %v721, 0
      %v800 = vsel %vm750, %v722, 0
      %v803 = vsel %vm750, %v723, 0
      %v806 = vsel %vm750, %v724, 0
      %v809 = vsel %vm750, %v725, 0
      %v812 = vsel %vm750, %v726, 0
      %v815 = vsel %vm750, %v727, 0
      %v818 = vsel %vm750, %v728, 0
      %v821 = vsel %vm750, %v729, 0
      %v824 = vsel %vm750, %v730, 0
      %v827 = vsel %vm750, %v731, 0
      %v830 = vsel %vm750, %v732, 0
      %v833 = vsel %vm750, %v733, 0
      %v836 = vsel %vm750, %v734, 0
      %v839 = vsel %vm750, %v735, 0
      %v842 = vsel %vm750, %v736, 0
      %v845 = vsel %vm750, %v737, 0
      %847 = vmatprep.subr.bf16.mxu0 0
      %848 = vmatpush1.bf16.msra.mxu0 %v746
      %849 = vmatprep.subr.bf16.mxu0 0
      %850 = vmatpush1.bf16.msra.mxu0 %v747
      %851 = vmatprep.subr.bf16.mxu0 0
      %852 = vmatpush1.bf16.msra.mxu0 0
      %853 = vmatprep.subr.bf16.mxu0 0
      %854 = vmatpush1.bf16.msra.mxu0 0
      %855 = vmatprep.subr.bf16.mxu0 0
      %856 = vmatpush1.bf16.msra.mxu0 0
      %857 = vmatprep.subr.bf16.mxu0 0
      %858 = vmatpush1.bf16.msra.mxu0 0
      %859 = vmatprep.subr.bf16.mxu0 0
      %860 = vmatpush1.bf16.msra.mxu0 0
      %861 = vmatprep.subr.bf16.mxu0 0
      %862 = vmatpush1.bf16.msra.mxu0 0
      %863 = vmatprep.subr.bf16.mxu0 0
      %864 = vmatpush1.bf16.msra.mxu0 0
      %865 = vmatprep.subr.bf16.mxu0 0
      %866 = vmatpush1.bf16.msra.mxu0 0
      %867 = vmatprep.subr.bf16.mxu0 0
      %868 = vmatpush1.bf16.msra.mxu0 0
      %869 = vmatprep.subr.bf16.mxu0 0
      %870 = vmatpush1.bf16.msra.mxu0 0
      %871 = vmatprep.subr.bf16.mxu0 0
      %872 = vmatpush1.bf16.msra.mxu0 0
      %873 = vmatprep.subr.bf16.mxu0 0
      %874 = vmatpush1.bf16.msra.mxu0 0
      %875 = vmatprep.subr.bf16.mxu0 0
      %876 = vmatpush1.bf16.msra.mxu0 0
      %877 = vmatprep.subr.bf16.mxu0 0
      %878 = vmatpush1.bf16.msra.mxu0 0
      %879 = vmatprep.mubr.bf16.mxu0 0
      %880 = vmatmul.mubr.bf16.gmra.mrb[0].mxu0 %v752
      %v881 = vpop.f32.mrb[0].mxu0
      %v882 = vadd.f32 0.0, %v881
      %v883 = vpop.f32.mrb[0].mxu0
      %v884 = vpop.f32.mrb[0].mxu0
      %v885 = vadd.f32 0.0, %v884
      %v886 = vpop.f32.mrb[0].mxu0
      %887 = vmatprep.mubr.bf16.mxu0 0
      %888 = vmatmul.mubr.bf16.gmra.mrb[0].mxu0 %v755
      %v889 = vpop.f32.mrb[0].mxu0
      %v890 = vadd.f32 0.0, %v889
      %v891 = vpop.f32.mrb[0].mxu0
      %v892 = vpop.f32.mrb[0].mxu0
      %v893 = vadd.f32 0.0, %v892
      %v894 = vpop.f32.mrb[0].mxu0
      %895 = vmatprep.mubr.bf16.mxu0 0
      %896 = vmatmul.mubr.bf16.gmra.mrb[0].mxu0 %v758
      %v897 = vpop.f32.mrb[0].mxu0
      %v898 = vadd.f32 0.0, %v897
      %v899 = vpop.f32.mrb[0].mxu0
      %v900 = vpop.f32.mrb[0].mxu0
      %v901 = vadd.f32 0.0, %v900
      %v902 = vpop.f32.mrb[0].mxu0
      %903 = vmatprep.mubr.bf16.mxu0 0
      %904 = vmatmul.mubr.bf16.gmra.mrb[0].mxu0 %v761
      %v905 = vpop.f32.mrb[0].mxu0
      %v906 = vadd.f32 0.0, %v905
      %v907 = vpop.f32.mrb[0].mxu0
      %v908 = vpop.f32.mrb[0].mxu0
      %v909 = vadd.f32 0.0, %v908
      %v910 = vpop.f32.mrb[0].mxu0
      %911 = vmatprep.mubr.bf16.mxu0 0
      %912 = vmatmul.mubr.bf16.gmra.mrb[0].mxu0 %v764
      %v913 = vpop.f32.mrb[0].mxu0
      %v914 = vadd.f32 0.0, %v913
      %v915 = vpop.f32.mrb[0].mxu0
      %v916 = vpop.f32.mrb[0].mxu0
      %v917 = vadd.f32 0.0, %v916
      %v918 = vpop.f32.mrb[0].mxu0
      %919 = vmatprep.mubr.bf16.mxu0 0
      %920 = vmatmul.mubr.bf16.gmra.mrb[0].mxu0 %v767
      %v921 = vpop.f32.mrb[0].mxu0
      %v922 = vadd.f32 0.0, %v921
      %v923 = vpop.f32.mrb[0].mxu0
      %v924 = vpop.f32.mrb[0].mxu0
      %v925 = vadd.f32 0.0, %v924
      %v926 = vpop.f32.mrb[0].mxu0
      %927 = vmatprep.mubr.bf16.mxu0 0
      %928 = vmatmul.mubr.bf16.gmra.mrb[0].mxu0 %v770
      %v929 = vpop.f32.mrb[0].mxu0
      %v930 = vadd.f32 0.0, %v929
      %v931 = vpop.f32.mrb[0].mxu0
      %v932 = vpop.f32.mrb[0].mxu0
      %v933 = vadd.f32 0.0, %v932
      %v934 = vpop.f32.mrb[0].mxu0
      %935 = vmatprep.mubr.bf16.mxu0 0
      %936 = vmatmul.mubr.bf16.gmra.mrb[0].mxu0 %v773
      %v937 = vpop.f32.mrb[0].mxu0
      %v938 = vadd.f32 0.0, %v937
      %v939 = vpop.f32.mrb[0].mxu0
      %v940 = vpop.f32.mrb[0].mxu0
      %v941 = vadd.f32 0.0, %v940
      %v942 = vpop.f32.mrb[0].mxu0
      %943 = vmatprep.mubr.bf16.mxu0 0
      %944 = vmatmul.mubr.bf16.gmra.mrb[0].mxu0 %v776
      %v945 = vpop.f32.mrb[0].mxu0
      %v946 = vadd.f32 0.0, %v945
      %v947 = vpop.f32.mrb[0].mxu0
      %v948 = vpop.f32.mrb[0].mxu0
      %v949 = vadd.f32 0.0, %v948
      %v950 = vpop.f32.mrb[0].mxu0
      %951 = vmatprep.mubr.bf16.mxu0 0
      %952 = vmatmul.mubr.bf16.gmra.mrb[0].mxu0 %v779
      %v953 = vpop.f32.mrb[0].mxu0
      %v954 = vadd.f32 0.0, %v953
      %v955 = vpop.f32.mrb[0].mxu0
      %v956 = vpop.f32.mrb[0].mxu0
      %v957 = vadd.f32 0.0, %v956
      %v958 = vpop.f32.mrb[0].mxu0
      %959 = vmatprep.mubr.bf16.mxu0 0
      %960 = vmatmul.mubr.bf16.gmra.mrb[0].mxu0 %v782
      %v961 = vpop.f32.mrb[0].mxu0
      %v962 = vadd.f32 0.0, %v961
      %v963 = vpop.f32.mrb[0].mxu0
      %v964 = vpop.f32.mrb[0].mxu0
      %v965 = vadd.f32 0.0, %v964
      %v966 = vpop.f32.mrb[0].mxu0
      %967 = vmatprep.mubr.bf16.mxu0 0
      %968 = vmatmul.mubr.bf16.gmra.mrb[0].mxu0 %v785
      %v969 = vpop.f32.mrb[0].mxu0
      %v970 = vadd.f32 0.0, %v969
      %v971 = vpop.f32.mrb[0].mxu0
      %v972 = vpop.f32.mrb[0].mxu0
      %v973 = vadd.f32 0.0, %v972
      %v974 = vpop.f32.mrb[0].mxu0
      %975 = vmatprep.mubr.bf16.mxu0 0
      %976 = vmatmul.mubr.bf16.gmra.mrb[0].mxu0 %v788
      %v977 = vpop.f32.mrb[0].mxu0
      %v978 = vadd.f32 0.0, %v977
      %v979 = vpop.f32.mrb[0].mxu0
      %v980 = vpop.f32.mrb[0].mxu0
      %v981 = vadd.f32 0.0, %v980
      %v982 = vpop.f32.mrb[0].mxu0
      %983 = vmatprep.mubr.bf16.mxu0 0
      %984 = vmatmul.mubr.bf16.gmra.mrb[0].mxu0 %v791
      %v985 = vpop.f32.mrb[0].mxu0
      %v986 = vadd.f32 0.0, %v985
      %v987 = vpop.f32.mrb[0].mxu0
      %v988 = vpop.f32.mrb[0].mxu0
      %v989 = vadd.f32 0.0, %v988
      %v990 = vpop.f32.mrb[0].mxu0
      %991 = vmatprep.mubr.bf16.mxu0 0
      %992 = vmatmul.mubr.bf16.gmra.mrb[0].mxu0 %v794
      %v993 = vpop.f32.mrb[0].mxu0
      %v994 = vadd.f32 0.0, %v993
      %v995 = vpop.f32.mrb[0].mxu0
      %v996 = vpop.f32.mrb[0].mxu0
      %v997 = vadd.f32 0.0, %v996
      %v998 = vpop.f32.mrb[0].mxu0
      %999 = vmatprep.mubr.bf16.mxu0 0
      %1000 = vmatmul.mubr.bf16.gmra.mrb[0].mxu0 %v797
      %v1001 = vpop.f32.mrb[0].mxu0
      %v1002 = vadd.f32 0.0, %v1001
      %v1003 = vpop.f32.mrb[0].mxu0
      %v1004 = vpop.f32.mrb[0].mxu0
      %v1005 = vadd.f32 0.0, %v1004
      %v1006 = vpop.f32.mrb[0].mxu0
      %1007 = vmatprep.mubr.bf16.mxu0 0
      %1008 = vmatmul.mubr.bf16.gmra.mrb[0].mxu0 %v800
      %v1009 = vpop.f32.mrb[0].mxu0
      %v1010 = vadd.f32 0.0, %v1009
      %v1011 = vpop.f32.mrb[0].mxu0
      %v1012 = vpop.f32.mrb[0].mxu0
      %v1013 = vadd.f32 0.0, %v1012
      %v1014 = vpop.f32.mrb[0].mxu0
      %1015 = vmatprep.mubr.bf16.mxu0 0
      %1016 = vmatmul.mubr.bf16.gmra.mrb[0].mxu0 %v803
      %v1017 = vpop.f32.mrb[0].mxu0
      %v1018 = vadd.f32 0.0, %v1017
      %v1019 = vpop.f32.mrb[0].mxu0
      %v1020 = vpop.f32.mrb[0].mxu0
      %v1021 = vadd.f32 0.0, %v1020
      %v1022 = vpop.f32.mrb[0].mxu0
      %1023 = vmatprep.mubr.bf16.mxu0 0
      %1024 = vmatmul.mubr.bf16.gmra.mrb[0].mxu0 %v806
      %v1025 = vpop.f32.mrb[0].mxu0
      %v1026 = vadd.f32 0.0, %v1025
      %v1027 = vpop.f32.mrb[0].mxu0
      %v1028 = vpop.f32.mrb[0].mxu0
      %v1029 = vadd.f32 0.0, %v1028
      %v1030 = vpop.f32.mrb[0].mxu0
      %1031 = vmatprep.mubr.bf16.mxu0 0
      %1032 = vmatmul.mubr.bf16.gmra.mrb[0].mxu0 %v809
      %v1033 = vpop.f32.mrb[0].mxu0
      %v1034 = vadd.f32 0.0, %v1033
      %v1035 = vpop.f32.mrb[0].mxu0
      %v1036 = vpop.f32.mrb[0].mxu0
      %v1037 = vadd.f32 0.0, %v1036
      %v1038 = vpop.f32.mrb[0].mxu0
      %1039 = vmatprep.mubr.bf16.mxu0 0
      %1040 = vmatmul.mubr.bf16.gmra.mrb[0].mxu0 %v812
      %v1041 = vpop.f32.mrb[0].mxu0
      %v1042 = vadd.f32 0.0, %v1041
      %v1043 = vpop.f32.mrb[0].mxu0
      %v1044 = vpop.f32.mrb[0].mxu0
      %v1045 = vadd.f32 0.0, %v1044
      %v1046 = vpop.f32.mrb[0].mxu0
      %1047 = vmatprep.mubr.bf16.mxu0 0
      %1048 = vmatmul.mubr.bf16.gmra.mrb[0].mxu0 %v815
      %v1049 = vpop.f32.mrb[0].mxu0
      %v1050 = vadd.f32 0.0, %v1049
      %v1051 = vpop.f32.mrb[0].mxu0
      %v1052 = vpop.f32.mrb[0].mxu0
      %v1053 = vadd.f32 0.0, %v1052
      %v1054 = vpop.f32.mrb[0].mxu0
      %1055 = vmatprep.mubr.bf16.mxu0 0
      %1056 = vmatmul.mubr.bf16.gmra.mrb[0].mxu0 %v818
      %v1057 = vpop.f32.mrb[0].mxu0
      %v1058 = vadd.f32 0.0, %v1057
      %v1059 = vpop.f32.mrb[0].mxu0
      %v1060 = vpop.f32.mrb[0].mxu0
      %v1061 = vadd.f32 0.0, %v1060
      %v1062 = vpop.f32.mrb[0].mxu0
      %1063 = vmatprep.mubr.bf16.mxu0 0
      %1064 = vmatmul.mubr.bf16.gmra.mrb[0].mxu0 %v821
      %v1065 = vpop.f32.mrb[0].mxu0
      %v1066 = vadd.f32 0.0, %v1065
      %v1067 = vpop.f32.mrb[0].mxu0
      %v1068 = vpop.f32.mrb[0].mxu0
      %v1069 = vadd.f32 0.0, %v1068
      %v1070 = vpop.f32.mrb[0].mxu0
      %1071 = vmatprep.mubr.bf16.mxu0 0
      %1072 = vmatmul.mubr.bf16.gmra.mrb[0].mxu0 %v824
      %v1073 = vpop.f32.mrb[0].mxu0
      %v1074 = vadd.f32 0.0, %v1073
      %v1075 = vpop.f32.mrb[0].mxu0
      %v1076 = vpop.f32.mrb[0].mxu0
      %v1077 = vadd.f32 0.0, %v1076
      %v1078 = vpop.f32.mrb[0].mxu0
      %1079 = vmatprep.mubr.bf16.mxu0 0
      %1080 = vmatmul.mubr.bf16.gmra.mrb[0].mxu0 %v827
      %v1081 = vpop.f32.mrb[0].mxu0
      %v1082 = vadd.f32 0.0, %v1081
      %v1083 = vpop.f32.mrb[0].mxu0
      %v1084 = vpop.f32.mrb[0].mxu0
      %v1085 = vadd.f32 0.0, %v1084
      %v1086 = vpop.f32.mrb[0].mxu0
      %1087 = vmatprep.mubr.bf16.mxu0 0
      %1088 = vmatmul.mubr.bf16.gmra.mrb[0].mxu0 %v830
      %v1089 = vpop.f32.mrb[0].mxu0
      %v1090 = vadd.f32 0.0, %v1089
      %v1091 = vpop.f32.mrb[0].mxu0
      %v1092 = vpop.f32.mrb[0].mxu0
      %v1093 = vadd.f32 0.0, %v1092
      %v1094 = vpop.f32.mrb[0].mxu0
      %1095 = vmatprep.mubr.bf16.mxu0 0
      %1096 = vmatmul.mubr.bf16.gmra.mrb[0].mxu0 %v833
      %v1097 = vpop.f32.mrb[0].mxu0
      %v1098 = vadd.f32 0.0, %v1097
      %v1099 = vpop.f32.mrb[0].mxu0
      %v1100 = vpop.f32.mrb[0].mxu0
      %v1101 = vadd.f32 0.0, %v1100
      %v1102 = vpop.f32.mrb[0].mxu0
      %1103 = vmatprep.mubr.bf16.mxu0 0
      %1104 = vmatmul.mubr.bf16.gmra.mrb[0].mxu0 %v836
      %v1105 = vpop.f32.mrb[0].mxu0
      %v1106 = vadd.f32 0.0, %v1105
      %v1107 = vpop.f32.mrb[0].mxu0
      %v1108 = vpop.f32.mrb[0].mxu0
      %v1109 = vadd.f32 0.0, %v1108
      %v1110 = vpop.f32.mrb[0].mxu0
      %1111 = vmatprep.mubr.bf16.mxu0 0
      %1112 = vmatmul.mubr.bf16.gmra.mrb[0].mxu0 %v839
      %v1113 = vpop.f32.mrb[0].mxu0
      %v1114 = vadd.f32 0.0, %v1113
      %v1115 = vpop.f32.mrb[0].mxu0
      %v1116 = vpop.f32.mrb[0].mxu0
      %v1117 = vadd.f32 0.0, %v1116
      %v1118 = vpop.f32.mrb[0].mxu0
      %1119 = vmatprep.mubr.bf16.mxu0 0
      %1120 = vmatmul.mubr.bf16.gmra.mrb[0].mxu0 %v842
      %v1121 = vpop.f32.mrb[0].mxu0
      %v1122 = vadd.f32 0.0, %v1121
      %v1123 = vpop.f32.mrb[0].mxu0
      %v1124 = vpop.f32.mrb[0].mxu0
      %v1125 = vadd.f32 0.0, %v1124
      %v1126 = vpop.f32.mrb[0].mxu0
      %1127 = vmatprep.mubr.bf16.mxu0 0
      %1128 = vmatmul.mubr.bf16.gmra.mrb[0].mxu0 %v845
      %v1129 = vpop.f32.mrb[0].mxu0
      %v1130 = vadd.f32 0.0, %v1129
      %v1131 = vpop.f32.mrb[0].mxu0
      %v1132 = vpop.f32.mrb[0].mxu0
      %v1133 = vadd.f32 0.0, %v1132
      %v1134 = vpop.f32.mrb[0].mxu0
      %1135 = vdwg.mxu0
      %v1136 = vld [vmem:[%s3] sm:$0xff]
      %v1137 = vld [vmem:[%s3 + $0x8] sm:$0xff]
      %v1138 = vld [vmem:[%s3 + $0x10] sm:$0xff]
      %v1139 = vld [vmem:[%s3 + $0x18] sm:$0xff]
      %v1140 = vld [vmem:[%s3 + $0x20] sm:$0xff]
      %v1141 = vld [vmem:[%s3 + $0x28] sm:$0xff]
      %v1142 = vld [vmem:[%s3 + $0x30] sm:$0xff]
      %v1143 = vld [vmem:[%s3 + $0x38] sm:$0xff]
      %v1144 = vld [vmem:[%s3 + $0x40] sm:$0xff]
      %v1145 = vld [vmem:[%s3 + $0x48] sm:$0xff]
      %v1146 = vld [vmem:[%s3 + $0x50] sm:$0xff]
      %v1147 = vld [vmem:[%s3 + $0x58] sm:$0xff]
      %v1148 = vld [vmem:[%s3 + $0x60] sm:$0xff]
      %v1149 = vld [vmem:[%s3 + $0x68] sm:$0xff]
      %v1150 = vld [vmem:[%s3 + $0x70] sm:$0xff]
      %v1151 = vld [vmem:[%s3 + $0x78] sm:$0xff]
      %v1152 = vld [vmem:[%s3 + $0x80] sm:$0xff]
      %v1153 = vld [vmem:[%s3 + $0x88] sm:$0xff]
      %v1154 = vld [vmem:[%s3 + $0x90] sm:$0xff]
      %v1155 = vld [vmem:[%s3 + $0x98] sm:$0xff]
      %v1156 = vld [vmem:[%s3 + $0xa0] sm:$0xff]
      %v1157 = vld [vmem:[%s3 + $0xa8] sm:$0xff]
      %v1158 = vld [vmem:[%s3 + $0xb0] sm:$0xff]
      %v1159 = vld [vmem:[%s3 + $0xb8] sm:$0xff]
      %v1160 = vld [vmem:[%s3 + $0xc0] sm:$0xff]
      %v1161 = vld [vmem:[%s3 + $0xc8] sm:$0xff]
      %v1162 = vld [vmem:[%s3 + $0xd0] sm:$0xff]
      %v1163 = vld [vmem:[%s3 + $0xd8] sm:$0xff]
      %v1164 = vld [vmem:[%s3 + $0xe0] sm:$0xff]
      %v1165 = vld [vmem:[%s3 + $0xe8] sm:$0xff]
      %v1166 = vld [vmem:[%s3 + $0xf0] sm:$0xff]
      %v1167 = vld [vmem:[%s3 + $0xf8] sm:$0xff]
      %v1168 = vld [vmem:[%s3 + $0x100] sm:$0xff]
      %v1169 = vld [vmem:[%s3 + $0x108] sm:$0xff]
      %v1170 = vld [vmem:[%s3 + $0x110] sm:$0xff]
      %v1171 = vld [vmem:[%s3 + $0x118] sm:$0xff]
      %v1172 = vld [vmem:[%s3 + $0x120] sm:$0xff]
      %v1173 = vld [vmem:[%s3 + $0x128] sm:$0xff]
      %v1174 = vld [vmem:[%s3 + $0x130] sm:$0xff]
      %v1175 = vld [vmem:[%s3 + $0x138] sm:$0xff]
      %v1176 = vld [vmem:[%s3 + $0x140] sm:$0xff]
      %v1177 = vld [vmem:[%s3 + $0x148] sm:$0xff]
      %v1178 = vld [vmem:[%s3 + $0x150] sm:$0xff]
      %v1179 = vld [vmem:[%s3 + $0x158] sm:$0xff]
      %v1180 = vld [vmem:[%s3 + $0x160] sm:$0xff]
      %v1181 = vld [vmem:[%s3 + $0x168] sm:$0xff]
      %v1182 = vld [vmem:[%s3 + $0x170] sm:$0xff]
      %v1183 = vld [vmem:[%s3 + $0x178] sm:$0xff]
      %v1184 = vld [vmem:[%s3 + $0x180] sm:$0xff]
      %v1185 = vld [vmem:[%s3 + $0x188] sm:$0xff]
      %v1186 = vld [vmem:[%s3 + $0x190] sm:$0xff]
      %v1187 = vld [vmem:[%s3 + $0x198] sm:$0xff]
      %v1188 = vld [vmem:[%s3 + $0x1a0] sm:$0xff]
      %v1189 = vld [vmem:[%s3 + $0x1a8] sm:$0xff]
      %v1190 = vld [vmem:[%s3 + $0x1b0] sm:$0xff]
      %v1191 = vld [vmem:[%s3 + $0x1b8] sm:$0xff]
      %v1192 = vld [vmem:[%s3 + $0x1c0] sm:$0xff]
      %v1193 = vld [vmem:[%s3 + $0x1c8] sm:$0xff]
      %v1194 = vld [vmem:[%s3 + $0x1d0] sm:$0xff]
      %v1195 = vld [vmem:[%s3 + $0x1d8] sm:$0xff]
      %v1196 = vld [vmem:[%s3 + $0x1e0] sm:$0xff]
      %v1197 = vld [vmem:[%s3 + $0x1e8] sm:$0xff]
      %v1198 = vld [vmem:[%s3 + $0x1f0] sm:$0xff]
      %v1199 = vld [vmem:[%s3 + $0x1f8] sm:$0xff]
      %1201 = vset.pattern.permute.xlu0 0
      %1202 = vperm.xlu0 %1201, %v1136
      %v1203 = vpop.permute.xlu0 %1202
      %1206 = vset.pattern.permute.xlu0 0
      %1207 = vperm.xlu0 %1206, %v1137
      %v1208 = vpop.permute.xlu0 %1207
      %1211 = vset.pattern.permute.xlu0 0
      %1212 = vperm.xlu0 %1211, %v1138
      %v1213 = vpop.permute.xlu0 %1212
      %1216 = vset.pattern.permute.xlu0 0
      %1217 = vperm.xlu0 %1216, %v1139
      %v1218 = vpop.permute.xlu0 %1217
      %1221 = vset.pattern.permute.xlu0 0
      %1222 = vperm.xlu0 %1221, %v1140
      %v1223 = vpop.permute.xlu0 %1222
      %1226 = vset.pattern.permute.xlu0 0
      %1227 = vperm.xlu0 %1226, %v1141
      %v1228 = vpop.permute.xlu0 %1227
      %1231 = vset.pattern.permute.xlu0 0
      %1232 = vperm.xlu0 %1231, %v1142
      %v1233 = vpop.permute.xlu0 %1232
      %1236 = vset.pattern.permute.xlu0 0
      %1237 = vperm.xlu0 %1236, %v1143
      %v1238 = vpop.permute.xlu0 %1237
      %1241 = vset.pattern.permute.xlu0 0
      %1242 = vperm.xlu0 %1241, %v1144
      %v1243 = vpop.permute.xlu0 %1242
      %1246 = vset.pattern.permute.xlu0 0
      %1247 = vperm.xlu0 %1246, %v1145
      %v1248 = vpop.permute.xlu0 %1247
      %1251 = vset.pattern.permute.xlu0 0
      %1252 = vperm.xlu0 %1251, %v1146
      %v1253 = vpop.permute.xlu0 %1252
      %1256 = vset.pattern.permute.xlu0 0
      %1257 = vperm.xlu0 %1256, %v1147
      %v1258 = vpop.permute.xlu0 %1257
      %1261 = vset.pattern.permute.xlu0 0
      %1262 = vperm.xlu0 %1261, %v1148
      %v1263 = vpop.permute.xlu0 %1262
      %1266 = vset.pattern.permute.xlu0 0
      %1267 = vperm.xlu0 %1266, %v1149
      %v1268 = vpop.permute.xlu0 %1267
      %1271 = vset.pattern.permute.xlu0 0
      %1272 = vperm.xlu0 %1271, %v1150
      %v1273 = vpop.permute.xlu0 %1272
      %1276 = vset.pattern.permute.xlu0 0
      %1277 = vperm.xlu0 %1276, %v1151
      %v1278 = vpop.permute.xlu0 %1277
      %1281 = vset.pattern.permute.xlu0 0
      %1282 = vperm.xlu0 %1281, %v1152
      %v1283 = vpop.permute.xlu0 %1282
      %1286 = vset.pattern.permute.xlu0 0
      %1287 = vperm.xlu0 %1286, %v1153
      %v1288 = vpop.permute.xlu0 %1287
      %1291 = vset.pattern.permute.xlu0 0
      %1292 = vperm.xlu0 %1291, %v1154
      %v1293 = vpop.permute.xlu0 %1292
      %1296 = vset.pattern.permute.xlu0 0
      %1297 = vperm.xlu0 %1296, %v1155
      %v1298 = vpop.permute.xlu0 %1297
      %1301 = vset.pattern.permute.xlu0 0
      %1302 = vperm.xlu0 %1301, %v1156
      %v1303 = vpop.permute.xlu0 %1302
      %1306 = vset.pattern.permute.xlu0 0
      %1307 = vperm.xlu0 %1306, %v1157
      %v1308 = vpop.permute.xlu0 %1307
      %1311 = vset.pattern.permute.xlu0 0
      %1312 = vperm.xlu0 %1311, %v1158
      %v1313 = vpop.permute.xlu0 %1312
      %1316 = vset.pattern.permute.xlu0 0
      %1317 = vperm.xlu0 %1316, %v1159
      %v1318 = vpop.permute.xlu0 %1317
      %1321 = vset.pattern.permute.xlu0 0
      %1322 = vperm.xlu0 %1321, %v1160
      %v1323 = vpop.permute.xlu0 %1322
      %1326 = vset.pattern.permute.xlu0 0
      %1327 = vperm.xlu0 %1326, %v1161
      %v1328 = vpop.permute.xlu0 %1327
      %1331 = vset.pattern.permute.xlu0 0
      %1332 = vperm.xlu0 %1331, %v1162
      %v1333 = vpop.permute.xlu0 %1332
      %1336 = vset.pattern.permute.xlu0 0
      %1337 = vperm.xlu0 %1336, %v1163
      %v1338 = vpop.permute.xlu0 %1337
      %1341 = vset.pattern.permute.xlu0 0
      %1342 = vperm.xlu0 %1341, %v1164
      %v1343 = vpop.permute.xlu0 %1342
      %1346 = vset.pattern.permute.xlu0 0
      %1347 = vperm.xlu0 %1346, %v1165
      %v1348 = vpop.permute.xlu0 %1347
      %1351 = vset.pattern.permute.xlu0 0
      %1352 = vperm.xlu0 %1351, %v1166
      %v1353 = vpop.permute.xlu0 %1352
      %1356 = vset.pattern.permute.xlu0 0
      %1357 = vperm.xlu0 %1356, %v1167
      %v1358 = vpop.permute.xlu0 %1357
      %1361 = vset.pattern.permute.xlu0 0
      %1362 = vperm.xlu0 %1361, %v1168
      %v1363 = vpop.permute.xlu0 %1362
      %1366 = vset.pattern.permute.xlu0 0
      %1367 = vperm.xlu0 %1366, %v1169
      %v1368 = vpop.permute.xlu0 %1367
      %1371 = vset.pattern.permute.xlu0 0
      %1372 = vperm.xlu0 %1371, %v1170
      %v1373 = vpop.permute.xlu0 %1372
      %1376 = vset.pattern.permute.xlu0 0
      %1377 = vperm.xlu0 %1376, %v1171
      %v1378 = vpop.permute.xlu0 %1377
      %1381 = vset.pattern.permute.xlu0 0
      %1382 = vperm.xlu0 %1381, %v1172
      %v1383 = vpop.permute.xlu0 %1382
      %1386 = vset.pattern.permute.xlu0 0
      %1387 = vperm.xlu0 %1386, %v1173
      %v1388 = vpop.permute.xlu0 %1387
      %1391 = vset.pattern.permute.xlu0 0
      %1392 = vperm.xlu0 %1391, %v1174
      %v1393 = vpop.permute.xlu0 %1392
      %1396 = vset.pattern.permute.xlu0 0
      %1397 = vperm.xlu0 %1396, %v1175
      %v1398 = vpop.permute.xlu0 %1397
      %1401 = vset.pattern.permute.xlu0 0
      %1402 = vperm.xlu0 %1401, %v1176
      %v1403 = vpop.permute.xlu0 %1402
      %1406 = vset.pattern.permute.xlu0 0
      %1407 = vperm.xlu0 %1406, %v1177
      %v1408 = vpop.permute.xlu0 %1407
      %1411 = vset.pattern.permute.xlu0 0
      %1412 = vperm.xlu0 %1411, %v1178
      %v1413 = vpop.permute.xlu0 %1412
      %1416 = vset.pattern.permute.xlu0 0
      %1417 = vperm.xlu0 %1416, %v1179
      %v1418 = vpop.permute.xlu0 %1417
      %1421 = vset.pattern.permute.xlu0 0
      %1422 = vperm.xlu0 %1421, %v1180
      %v1423 = vpop.permute.xlu0 %1422
      %1426 = vset.pattern.permute.xlu0 0
      %1427 = vperm.xlu0 %1426, %v1181
      %v1428 = vpop.permute.xlu0 %1427
      %1431 = vset.pattern.permute.xlu0 0
      %1432 = vperm.xlu0 %1431, %v1182
      %v1433 = vpop.permute.xlu0 %1432
      %1436 = vset.pattern.permute.xlu0 0
      %1437 = vperm.xlu0 %1436, %v1183
      %v1438 = vpop.permute.xlu0 %1437
      %1441 = vset.pattern.permute.xlu0 0
      %1442 = vperm.xlu0 %1441, %v1184
      %v1443 = vpop.permute.xlu0 %1442
      %1446 = vset.pattern.permute.xlu0 0
      %1447 = vperm.xlu0 %1446, %v1185
      %v1448 = vpop.permute.xlu0 %1447
      %1451 = vset.pattern.permute.xlu0 0
      %1452 = vperm.xlu0 %1451, %v1186
      %v1453 = vpop.permute.xlu0 %1452
      %1456 = vset.pattern.permute.xlu0 0
      %1457 = vperm.xlu0 %1456, %v1187
      %v1458 = vpop.permute.xlu0 %1457
      %1461 = vset.pattern.permute.xlu0 0
      %1462 = vperm.xlu0 %1461, %v1188
      %v1463 = vpop.permute.xlu0 %1462
      %1466 = vset.pattern.permute.xlu0 0
      %1467 = vperm.xlu0 %1466, %v1189
      %v1468 = vpop.permute.xlu0 %1467
      %1471 = vset.pattern.permute.xlu0 0
      %1472 = vperm.xlu0 %1471, %v1190
      %v1473 = vpop.permute.xlu0 %1472
      %1476 = vset.pattern.permute.xlu0 0
      %1477 = vperm.xlu0 %1476, %v1191
      %v1478 = vpop.permute.xlu0 %1477
      %1481 = vset.pattern.permute.xlu0 0
      %1482 = vperm.xlu0 %1481, %v1192
      %v1483 = vpop.permute.xlu0 %1482
      %1486 = vset.pattern.permute.xlu0 0
      %1487 = vperm.xlu0 %1486, %v1193
      %v1488 = vpop.permute.xlu0 %1487
      %1491 = vset.pattern.permute.xlu0 0
      %1492 = vperm.xlu0 %1491, %v1194
      %v1493 = vpop.permute.xlu0 %1492
      %1496 = vset.pattern.permute.xlu0 0
      %1497 = vperm.xlu0 %1496, %v1195
      %v1498 = vpop.permute.xlu0 %1497
      %1501 = vset.pattern.permute.xlu0 0
      %1502 = vperm.xlu0 %1501, %v1196
      %v1503 = vpop.permute.xlu0 %1502
      %1506 = vset.pattern.permute.xlu0 0
      %1507 = vperm.xlu0 %1506, %v1197
      %v1508 = vpop.permute.xlu0 %1507
      %1511 = vset.pattern.permute.xlu0 0
      %1512 = vperm.xlu0 %1511, %v1198
      %v1513 = vpop.permute.xlu0 %1512
      %1516 = vset.pattern.permute.xlu0 0
      %1517 = vperm.xlu0 %1516, %v1199
      %v1518 = vpop.permute.xlu0 %1517
      %v1520 = vmul.f32 %v882, %v1203
      %v1521 = vmul.f32 %v885, %v1208
      %v1522 = vmul.f32 %v890, %v1213
      %v1523 = vmul.f32 %v893, %v1218
      %v1524 = vmul.f32 %v898, %v1223
      %v1525 = vmul.f32 %v901, %v1228
      %v1526 = vmul.f32 %v906, %v1233
      %v1527 = vmul.f32 %v909, %v1238
      %v1528 = vmul.f32 %v914, %v1243
      %v1529 = vmul.f32 %v917, %v1248
      %v1530 = vmul.f32 %v922, %v1253
      %v1531 = vmul.f32 %v925, %v1258
      %v1532 = vmul.f32 %v930, %v1263
      %v1533 = vmul.f32 %v933, %v1268
      %v1534 = vmul.f32 %v938, %v1273
      %v1535 = vmul.f32 %v941, %v1278
      %v1536 = vmul.f32 %v946, %v1283
      %v1537 = vmul.f32 %v949, %v1288
      %v1538 = vmul.f32 %v954, %v1293
      %v1539 = vmul.f32 %v957, %v1298
      %v1540 = vmul.f32 %v962, %v1303
      %v1541 = vmul.f32 %v965, %v1308
      %v1542 = vmul.f32 %v970, %v1313
      %v1543 = vmul.f32 %v973, %v1318
      %v1544 = vmul.f32 %v978, %v1323
      %v1545 = vmul.f32 %v981, %v1328
      %v1546 = vmul.f32 %v986, %v1333
      %v1547 = vmul.f32 %v989, %v1338
      %v1548 = vmul.f32 %v994, %v1343
      %v1549 = vmul.f32 %v997, %v1348
      %v1550 = vmul.f32 %v1002, %v1353
      %v1551 = vmul.f32 %v1005, %v1358
      %v1552 = vmul.f32 %v1010, %v1363
      %v1553 = vmul.f32 %v1013, %v1368
      %v1554 = vmul.f32 %v1018, %v1373
      %v1555 = vmul.f32 %v1021, %v1378
      %v1556 = vmul.f32 %v1026, %v1383
      %v1557 = vmul.f32 %v1029, %v1388
      %v1558 = vmul.f32 %v1034, %v1393
      %v1559 = vmul.f32 %v1037, %v1398
      %v1560 = vmul.f32 %v1042, %v1403
      %v1561 = vmul.f32 %v1045, %v1408
      %v1562 = vmul.f32 %v1050, %v1413
      %v1563 = vmul.f32 %v1053, %v1418
      %v1564 = vmul.f32 %v1058, %v1423
      %v1565 = vmul.f32 %v1061, %v1428
      %v1566 = vmul.f32 %v1066, %v1433
      %v1567 = vmul.f32 %v1069, %v1438
      %v1568 = vmul.f32 %v1074, %v1443
      %v1569 = vmul.f32 %v1077, %v1448
      %v1570 = vmul.f32 %v1082, %v1453
      %v1571 = vmul.f32 %v1085, %v1458
      %v1572 = vmul.f32 %v1090, %v1463
      %v1573 = vmul.f32 %v1093, %v1468
      %v1574 = vmul.f32 %v1098, %v1473
      %v1575 = vmul.f32 %v1101, %v1478
      %v1576 = vmul.f32 %v1106, %v1483
      %v1577 = vmul.f32 %v1109, %v1488
      %v1578 = vmul.f32 %v1114, %v1493
      %v1579 = vmul.f32 %v1117, %v1498
      %v1580 = vmul.f32 %v1122, %v1503
      %v1581 = vmul.f32 %v1125, %v1508
      %v1582 = vmul.f32 %v1130, %v1513
      %v1583 = vmul.f32 %v1133, %v1518
      %v1584 = vld [vmem:[%s4] sm:$0xff]
      %v1585 = vld [vmem:[%s4 + $0x8] sm:$0xff]
      %v1586 = vld [vmem:[%s4 + $0x10] sm:$0xff]
      %v1587 = vld [vmem:[%s4 + $0x18] sm:$0xff]
      %v1588 = vld [vmem:[%s4 + $0x20] sm:$0xff]
      %v1589 = vld [vmem:[%s4 + $0x28] sm:$0xff]
      %v1590 = vld [vmem:[%s4 + $0x30] sm:$0xff]
      %v1591 = vld [vmem:[%s4 + $0x38] sm:$0xff]
      %v1592 = vld [vmem:[%s4 + $0x40] sm:$0xff]
      %v1593 = vld [vmem:[%s4 + $0x48] sm:$0xff]
      %v1594 = vld [vmem:[%s4 + $0x50] sm:$0xff]
      %v1595 = vld [vmem:[%s4 + $0x58] sm:$0xff]
      %v1596 = vld [vmem:[%s4 + $0x60] sm:$0xff]
      %v1597 = vld [vmem:[%s4 + $0x68] sm:$0xff]
      %v1598 = vld [vmem:[%s4 + $0x70] sm:$0xff]
      %v1599 = vld [vmem:[%s4 + $0x78] sm:$0xff]
      %v1600 = vld [vmem:[%s4 + $0x80] sm:$0xff]
      %v1601 = vld [vmem:[%s4 + $0x88] sm:$0xff]
      %v1602 = vld [vmem:[%s4 + $0x90] sm:$0xff]
      %v1603 = vld [vmem:[%s4 + $0x98] sm:$0xff]
      %v1604 = vld [vmem:[%s4 + $0xa0] sm:$0xff]
      %v1605 = vld [vmem:[%s4 + $0xa8] sm:$0xff]
      %v1606 = vld [vmem:[%s4 + $0xb0] sm:$0xff]
      %v1607 = vld [vmem:[%s4 + $0xb8] sm:$0xff]
      %v1608 = vld [vmem:[%s4 + $0xc0] sm:$0xff]
      %v1609 = vld [vmem:[%s4 + $0xc8] sm:$0xff]
      %v1610 = vld [vmem:[%s4 + $0xd0] sm:$0xff]
      %v1611 = vld [vmem:[%s4 + $0xd8] sm:$0xff]
      %v1612 = vld [vmem:[%s4 + $0xe0] sm:$0xff]
      %v1613 = vld [vmem:[%s4 + $0xe8] sm:$0xff]
      %v1614 = vld [vmem:[%s4 + $0xf0] sm:$0xff]
      %v1615 = vld [vmem:[%s4 + $0xf8] sm:$0xff]
      %v1616 = vld [vmem:[%s4 + $0x100] sm:$0xff]
      %v1617 = vld [vmem:[%s4 + $0x108] sm:$0xff]
      %v1618 = vld [vmem:[%s4 + $0x110] sm:$0xff]
      %v1619 = vld [vmem:[%s4 + $0x118] sm:$0xff]
      %v1620 = vld [vmem:[%s4 + $0x120] sm:$0xff]
      %v1621 = vld [vmem:[%s4 + $0x128] sm:$0xff]
      %v1622 = vld [vmem:[%s4 + $0x130] sm:$0xff]
      %v1623 = vld [vmem:[%s4 + $0x138] sm:$0xff]
      %v1624 = vld [vmem:[%s4 + $0x140] sm:$0xff]
      %v1625 = vld [vmem:[%s4 + $0x148] sm:$0xff]
      %v1626 = vld [vmem:[%s4 + $0x150] sm:$0xff]
      %v1627 = vld [vmem:[%s4 + $0x158] sm:$0xff]
      %v1628 = vld [vmem:[%s4 + $0x160] sm:$0xff]
      %v1629 = vld [vmem:[%s4 + $0x168] sm:$0xff]
      %v1630 = vld [vmem:[%s4 + $0x170] sm:$0xff]
      %v1631 = vld [vmem:[%s4 + $0x178] sm:$0xff]
      %v1632 = vld [vmem:[%s4 + $0x180] sm:$0xff]
      %v1633 = vld [vmem:[%s4 + $0x188] sm:$0xff]
      %v1634 = vld [vmem:[%s4 + $0x190] sm:$0xff]
      %v1635 = vld [vmem:[%s4 + $0x198] sm:$0xff]
      %v1636 = vld [vmem:[%s4 + $0x1a0] sm:$0xff]
      %v1637 = vld [vmem:[%s4 + $0x1a8] sm:$0xff]
      %v1638 = vld [vmem:[%s4 + $0x1b0] sm:$0xff]
      %v1639 = vld [vmem:[%s4 + $0x1b8] sm:$0xff]
      %v1640 = vld [vmem:[%s4 + $0x1c0] sm:$0xff]
      %v1641 = vld [vmem:[%s4 + $0x1c8] sm:$0xff]
      %v1642 = vld [vmem:[%s4 + $0x1d0] sm:$0xff]
      %v1643 = vld [vmem:[%s4 + $0x1d8] sm:$0xff]
      %v1644 = vld [vmem:[%s4 + $0x1e0] sm:$0xff]
      %v1645 = vld [vmem:[%s4 + $0x1e8] sm:$0xff]
      %v1646 = vld [vmem:[%s4 + $0x1f0] sm:$0xff]
      %v1647 = vld [vmem:[%s4 + $0x1f8] sm:$0xff]
      %1649 = vset.pattern.permute.xlu0 0
      %1650 = vperm.xlu0 %1649, %v1584
      %v1651 = vpop.permute.xlu0 %1650
      %1654 = vset.pattern.permute.xlu0 0
      %1655 = vperm.xlu0 %1654, %v1585
      %v1656 = vpop.permute.xlu0 %1655
      %1659 = vset.pattern.permute.xlu0 0
      %1660 = vperm.xlu0 %1659, %v1586
      %v1661 = vpop.permute.xlu0 %1660
      %1664 = vset.pattern.permute.xlu0 0
      %1665 = vperm.xlu0 %1664, %v1587
      %v1666 = vpop.permute.xlu0 %1665
      %1669 = vset.pattern.permute.xlu0 0
      %1670 = vperm.xlu0 %1669, %v1588
      %v1671 = vpop.permute.xlu0 %1670
      %1674 = vset.pattern.permute.xlu0 0
      %1675 = vperm.xlu0 %1674, %v1589
      %v1676 = vpop.permute.xlu0 %1675
      %1679 = vset.pattern.permute.xlu0 0
      %1680 = vperm.xlu0 %1679, %v1590
      %v1681 = vpop.permute.xlu0 %1680
      %1684 = vset.pattern.permute.xlu0 0
      %1685 = vperm.xlu0 %1684, %v1591
      %v1686 = vpop.permute.xlu0 %1685
      %1689 = vset.pattern.permute.xlu0 0
      %1690 = vperm.xlu0 %1689, %v1592
      %v1691 = vpop.permute.xlu0 %1690
      %1694 = vset.pattern.permute.xlu0 0
      %1695 = vperm.xlu0 %1694, %v1593
      %v1696 = vpop.permute.xlu0 %1695
      %1699 = vset.pattern.permute.xlu0 0
      %1700 = vperm.xlu0 %1699, %v1594
      %v1701 = vpop.permute.xlu0 %1700
      %1704 = vset.pattern.permute.xlu0 0
      %1705 = vperm.xlu0 %1704, %v1595
      %v1706 = vpop.permute.xlu0 %1705
      %1709 = vset.pattern.permute.xlu0 0
      %1710 = vperm.xlu0 %1709, %v1596
      %v1711 = vpop.permute.xlu0 %1710
      %1714 = vset.pattern.permute.xlu0 0
      %1715 = vperm.xlu0 %1714, %v1597
      %v1716 = vpop.permute.xlu0 %1715
      %1719 = vset.pattern.permute.xlu0 0
      %1720 = vperm.xlu0 %1719, %v1598
      %v1721 = vpop.permute.xlu0 %1720
      %1724 = vset.pattern.permute.xlu0 0
      %1725 = vperm.xlu0 %1724, %v1599
      %v1726 = vpop.permute.xlu0 %1725
      %1729 = vset.pattern.permute.xlu0 0
      %1730 = vperm.xlu0 %1729, %v1600
      %v1731 = vpop.permute.xlu0 %1730
      %1734 = vset.pattern.permute.xlu0 0
      %1735 = vperm.xlu0 %1734, %v1601
      %v1736 = vpop.permute.xlu0 %1735
      %1739 = vset.pattern.permute.xlu0 0
      %1740 = vperm.xlu0 %1739, %v1602
      %v1741 = vpop.permute.xlu0 %1740
      %1744 = vset.pattern.permute.xlu0 0
      %1745 = vperm.xlu0 %1744, %v1603
      %v1746 = vpop.permute.xlu0 %1745
      %1749 = vset.pattern.permute.xlu0 0
      %1750 = vperm.xlu0 %1749, %v1604
      %v1751 = vpop.permute.xlu0 %1750
      %1754 = vset.pattern.permute.xlu0 0
      %1755 = vperm.xlu0 %1754, %v1605
      %v1756 = vpop.permute.xlu0 %1755
      %1759 = vset.pattern.permute.xlu0 0
      %1760 = vperm.xlu0 %1759, %v1606
      %v1761 = vpop.permute.xlu0 %1760
      %1764 = vset.pattern.permute.xlu0 0
      %1765 = vperm.xlu0 %1764, %v1607
      %v1766 = vpop.permute.xlu0 %1765
      %1769 = vset.pattern.permute.xlu0 0
      %1770 = vperm.xlu0 %1769, %v1608
      %v1771 = vpop.permute.xlu0 %1770
      %1774 = vset.pattern.permute.xlu0 0
      %1775 = vperm.xlu0 %1774, %v1609
      %v1776 = vpop.permute.xlu0 %1775
      %1779 = vset.pattern.permute.xlu0 0
      %1780 = vperm.xlu0 %1779, %v1610
      %v1781 = vpop.permute.xlu0 %1780
      %1784 = vset.pattern.permute.xlu0 0
      %1785 = vperm.xlu0 %1784, %v1611
      %v1786 = vpop.permute.xlu0 %1785
      %1789 = vset.pattern.permute.xlu0 0
      %1790 = vperm.xlu0 %1789, %v1612
      %v1791 = vpop.permute.xlu0 %1790
      %1794 = vset.pattern.permute.xlu0 0
      %1795 = vperm.xlu0 %1794, %v1613
      %v1796 = vpop.permute.xlu0 %1795
      %1799 = vset.pattern.permute.xlu0 0
      %1800 = vperm.xlu0 %1799, %v1614
      %v1801 = vpop.permute.xlu0 %1800
      %1804 = vset.pattern.permute.xlu0 0
      %1805 = vperm.xlu0 %1804, %v1615
      %v1806 = vpop.permute.xlu0 %1805
      %1809 = vset.pattern.permute.xlu0 0
      %1810 = vperm.xlu0 %1809, %v1616
      %v1811 = vpop.permute.xlu0 %1810
      %1814 = vset.pattern.permute.xlu0 0
      %1815 = vperm.xlu0 %1814, %v1617
      %v1816 = vpop.permute.xlu0 %1815
      %1819 = vset.pattern.permute.xlu0 0
      %1820 = vperm.xlu0 %1819, %v1618
      %v1821 = vpop.permute.xlu0 %1820
      %1824 = vset.pattern.permute.xlu0 0
      %1825 = vperm.xlu0 %1824, %v1619
      %v1826 = vpop.permute.xlu0 %1825
      %1829 = vset.pattern.permute.xlu0 0
      %1830 = vperm.xlu0 %1829, %v1620
      %v1831 = vpop.permute.xlu0 %1830
      %1834 = vset.pattern.permute.xlu0 0
      %1835 = vperm.xlu0 %1834, %v1621
      %v1836 = vpop.permute.xlu0 %1835
      %1839 = vset.pattern.permute.xlu0 0
      %1840 = vperm.xlu0 %1839, %v1622
      %v1841 = vpop.permute.xlu0 %1840
      %1844 = vset.pattern.permute.xlu0 0
      %1845 = vperm.xlu0 %1844, %v1623
      %v1846 = vpop.permute.xlu0 %1845
      %1849 = vset.pattern.permute.xlu0 0
      %1850 = vperm.xlu0 %1849, %v1624
      %v1851 = vpop.permute.xlu0 %1850
      %1854 = vset.pattern.permute.xlu0 0
      %1855 = vperm.xlu0 %1854, %v1625
      %v1856 = vpop.permute.xlu0 %1855
      %1859 = vset.pattern.permute.xlu0 0
      %1860 = vperm.xlu0 %1859, %v1626
      %v1861 = vpop.permute.xlu0 %1860
      %1864 = vset.pattern.permute.xlu0 0
      %1865 = vperm.xlu0 %1864, %v1627
      %v1866 = vpop.permute.xlu0 %1865
      %1869 = vset.pattern.permute.xlu0 0
      %1870 = vperm.xlu0 %1869, %v1628
      %v1871 = vpop.permute.xlu0 %1870
      %1874 = vset.pattern.permute.xlu0 0
      %1875 = vperm.xlu0 %1874, %v1629
      %v1876 = vpop.permute.xlu0 %1875
      %1879 = vset.pattern.permute.xlu0 0
      %1880 = vperm.xlu0 %1879, %v1630
      %v1881 = vpop.permute.xlu0 %1880
      %1884 = vset.pattern.permute.xlu0 0
      %1885 = vperm.xlu0 %1884, %v1631
      %v1886 = vpop.permute.xlu0 %1885
      %1889 = vset.pattern.permute.xlu0 0
      %1890 = vperm.xlu0 %1889, %v1632
      %v1891 = vpop.permute.xlu0 %1890
      %1894 = vset.pattern.permute.xlu0 0
      %1895 = vperm.xlu0 %1894, %v1633
      %v1896 = vpop.permute.xlu0 %1895
      %1899 = vset.pattern.permute.xlu0 0
      %1900 = vperm.xlu0 %1899, %v1634
      %v1901 = vpop.permute.xlu0 %1900
      %1904 = vset.pattern.permute.xlu0 0
      %1905 = vperm.xlu0 %1904, %v1635
      %v1906 = vpop.permute.xlu0 %1905
      %1909 = vset.pattern.permute.xlu0 0
      %1910 = vperm.xlu0 %1909, %v1636
      %v1911 = vpop.permute.xlu0 %1910
      %1914 = vset.pattern.permute.xlu0 0
      %1915 = vperm.xlu0 %1914, %v1637
      %v1916 = vpop.permute.xlu0 %1915
      %1919 = vset.pattern.permute.xlu0 0
      %1920 = vperm.xlu0 %1919, %v1638
      %v1921 = vpop.permute.xlu0 %1920
      %1924 = vset.pattern.permute.xlu0 0
      %1925 = vperm.xlu0 %1924, %v1639
      %v1926 = vpop.permute.xlu0 %1925
      %1929 = vset.pattern.permute.xlu0 0
      %1930 = vperm.xlu0 %1929, %v1640
      %v1931 = vpop.permute.xlu0 %1930
      %1934 = vset.pattern.permute.xlu0 0
      %1935 = vperm.xlu0 %1934, %v1641
      %v1936 = vpop.permute.xlu0 %1935
      %1939 = vset.pattern.permute.xlu0 0
      %1940 = vperm.xlu0 %1939, %v1642
      %v1941 = vpop.permute.xlu0 %1940
      %1944 = vset.pattern.permute.xlu0 0
      %1945 = vperm.xlu0 %1944, %v1643
      %v1946 = vpop.permute.xlu0 %1945
      %1949 = vset.pattern.permute.xlu0 0
      %1950 = vperm.xlu0 %1949, %v1644
      %v1951 = vpop.permute.xlu0 %1950
      %1954 = vset.pattern.permute.xlu0 0
      %1955 = vperm.xlu0 %1954, %v1645
      %v1956 = vpop.permute.xlu0 %1955
      %1959 = vset.pattern.permute.xlu0 0
      %1960 = vperm.xlu0 %1959, %v1646
      %v1961 = vpop.permute.xlu0 %1960
      %1964 = vset.pattern.permute.xlu0 0
      %1965 = vperm.xlu0 %1964, %v1647
      %v1966 = vpop.permute.xlu0 %1965
      %v1968 = vadd.f32 %v1520, %v1651
      %v1969 = vadd.f32 %v1521, %v1656
      %v1970 = vadd.f32 %v1522, %v1661
      %v1971 = vadd.f32 %v1523, %v1666
      %v1972 = vadd.f32 %v1524, %v1671
      %v1973 = vadd.f32 %v1525, %v1676
      %v1974 = vadd.f32 %v1526, %v1681
      %v1975 = vadd.f32 %v1527, %v1686
      %v1976 = vadd.f32 %v1528, %v1691
      %v1977 = vadd.f32 %v1529, %v1696
      %v1978 = vadd.f32 %v1530, %v1701
      %v1979 = vadd.f32 %v1531, %v1706
      %v1980 = vadd.f32 %v1532, %v1711
      %v1981 = vadd.f32 %v1533, %v1716
      %v1982 = vadd.f32 %v1534, %v1721
      %v1983 = vadd.f32 %v1535, %v1726
      %v1984 = vadd.f32 %v1536, %v1731
      %v1985 = vadd.f32 %v1537, %v1736
      %v1986 = vadd.f32 %v1538, %v1741
      %v1987 = vadd.f32 %v1539, %v1746
      %v1988 = vadd.f32 %v1540, %v1751
      %v1989 = vadd.f32 %v1541, %v1756
      %v1990 = vadd.f32 %v1542, %v1761
      %v1991 = vadd.f32 %v1543, %v1766
      %v1992 = vadd.f32 %v1544, %v1771
      %v1993 = vadd.f32 %v1545, %v1776
      %v1994 = vadd.f32 %v1546, %v1781
      %v1995 = vadd.f32 %v1547, %v1786
      %v1996 = vadd.f32 %v1548, %v1791
      %v1997 = vadd.f32 %v1549, %v1796
      %v1998 = vadd.f32 %v1550, %v1801
      %v1999 = vadd.f32 %v1551, %v1806
      %v2000 = vadd.f32 %v1552, %v1811
      %v2001 = vadd.f32 %v1553, %v1816
      %v2002 = vadd.f32 %v1554, %v1821
      %v2003 = vadd.f32 %v1555, %v1826
      %v2004 = vadd.f32 %v1556, %v1831
      %v2005 = vadd.f32 %v1557, %v1836
      %v2006 = vadd.f32 %v1558, %v1841
      %v2007 = vadd.f32 %v1559, %v1846
      %v2008 = vadd.f32 %v1560, %v1851
      %v2009 = vadd.f32 %v1561, %v1856
      %v2010 = vadd.f32 %v1562, %v1861
      %v2011 = vadd.f32 %v1563, %v1866
      %v2012 = vadd.f32 %v1564, %v1871
      %v2013 = vadd.f32 %v1565, %v1876
      %v2014 = vadd.f32 %v1566, %v1881
      %v2015 = vadd.f32 %v1567, %v1886
      %v2016 = vadd.f32 %v1568, %v1891
      %v2017 = vadd.f32 %v1569, %v1896
      %v2018 = vadd.f32 %v1570, %v1901
      %v2019 = vadd.f32 %v1571, %v1906
      %v2020 = vadd.f32 %v1572, %v1911
      %v2021 = vadd.f32 %v1573, %v1916
      %v2022 = vadd.f32 %v1574, %v1921
      %v2023 = vadd.f32 %v1575, %v1926
      %v2024 = vadd.f32 %v1576, %v1931
      %v2025 = vadd.f32 %v1577, %v1936
      %v2026 = vadd.f32 %v1578, %v1941
      %v2027 = vadd.f32 %v1579, %v1946
      %v2028 = vadd.f32 %v1580, %v1951
      %v2029 = vadd.f32 %v1581, %v1956
      %v2030 = vadd.f32 %v1582, %v1961
      %v2031 = vadd.f32 %v1583, %v1966
      %v2032 = vmax.f32 %v1968, 0.0
      %v2033 = vmax.f32 %v1969, 0.0
      %v2034 = vmax.f32 %v1970, 0.0
      %v2035 = vmax.f32 %v1971, 0.0
      %v2036 = vmax.f32 %v1972, 0.0
      %v2037 = vmax.f32 %v1973, 0.0
      %v2038 = vmax.f32 %v1974, 0.0
      %v2039 = vmax.f32 %v1975, 0.0
      %v2040 = vmax.f32 %v1976, 0.0
      %v2041 = vmax.f32 %v1977, 0.0
      %v2042 = vmax.f32 %v1978, 0.0
      %v2043 = vmax.f32 %v1979, 0.0
      %v2044 = vmax.f32 %v1980, 0.0
      %v2045 = vmax.f32 %v1981, 0.0
      %v2046 = vmax.f32 %v1982, 0.0
      %v2047 = vmax.f32 %v1983, 0.0
      %v2048 = vmax.f32 %v1984, 0.0
      %v2049 = vmax.f32 %v1985, 0.0
      %v2050 = vmax.f32 %v1986, 0.0
      %v2051 = vmax.f32 %v1987, 0.0
      %v2052 = vmax.f32 %v1988, 0.0
      %v2053 = vmax.f32 %v1989, 0.0
      %v2054 = vmax.f32 %v1990, 0.0
      %v2055 = vmax.f32 %v1991, 0.0
      %v2056 = vmax.f32 %v1992, 0.0
      %v2057 = vmax.f32 %v1993, 0.0
      %v2058 = vmax.f32 %v1994, 0.0
      %v2059 = vmax.f32 %v1995, 0.0
      %v2060 = vmax.f32 %v1996, 0.0
      %v2061 = vmax.f32 %v1997, 0.0
      %v2062 = vmax.f32 %v1998, 0.0
      %v2063 = vmax.f32 %v1999, 0.0
      %v2064 = vmax.f32 %v2000, 0.0
      %v2065 = vmax.f32 %v2001, 0.0
      %v2066 = vmax.f32 %v2002, 0.0
      %v2067 = vmax.f32 %v2003, 0.0
      %v2068 = vmax.f32 %v2004, 0.0
      %v2069 = vmax.f32 %v2005, 0.0
      %v2070 = vmax.f32 %v2006, 0.0
      %v2071 = vmax.f32 %v2007, 0.0
      %v2072 = vmax.f32 %v2008, 0.0
      %v2073 = vmax.f32 %v2009, 0.0
      %v2074 = vmax.f32 %v2010, 0.0
      %v2075 = vmax.f32 %v2011, 0.0
      %v2076 = vmax.f32 %v2012, 0.0
      %v2077 = vmax.f32 %v2013, 0.0
      %v2078 = vmax.f32 %v2014, 0.0
      %v2079 = vmax.f32 %v2015, 0.0
      %v2080 = vmax.f32 %v2016, 0.0
      %v2081 = vmax.f32 %v2017, 0.0
      %v2082 = vmax.f32 %v2018, 0.0
      %v2083 = vmax.f32 %v2019, 0.0
      %v2084 = vmax.f32 %v2020, 0.0
      %v2085 = vmax.f32 %v2021, 0.0
      %v2086 = vmax.f32 %v2022, 0.0
      %v2087 = vmax.f32 %v2023, 0.0
      %v2088 = vmax.f32 %v2024, 0.0
      %v2089 = vmax.f32 %v2025, 0.0
      %v2090 = vmax.f32 %v2026, 0.0
      %v2091 = vmax.f32 %v2027, 0.0
      %v2092 = vmax.f32 %v2028, 0.0
      %v2093 = vmax.f32 %v2029, 0.0
      %v2094 = vmax.f32 %v2030, 0.0
      %v2095 = vmax.f32 %v2031, 0.0
      %v2096 = vpack.c.bf16 %v2033, %v2032
      %v2097 = vpack.c.bf16 %v2035, %v2034
      %v2098 = vpack.c.bf16 %v2037, %v2036
      %v2099 = vpack.c.bf16 %v2039, %v2038
      %v2100 = vpack.c.bf16 %v2041, %v2040
      %v2101 = vpack.c.bf16 %v2043, %v2042
      %v2102 = vpack.c.bf16 %v2045, %v2044
      %v2103 = vpack.c.bf16 %v2047, %v2046
      %v2104 = vpack.c.bf16 %v2049, %v2048
      %v2105 = vpack.c.bf16 %v2051, %v2050
      %v2106 = vpack.c.bf16 %v2053, %v2052
      %v2107 = vpack.c.bf16 %v2055, %v2054
      %v2108 = vpack.c.bf16 %v2057, %v2056
      %v2109 = vpack.c.bf16 %v2059, %v2058
      %v2110 = vpack.c.bf16 %v2061, %v2060
      %v2111 = vpack.c.bf16 %v2063, %v2062
      %v2112 = vpack.c.bf16 %v2065, %v2064
      %v2113 = vpack.c.bf16 %v2067, %v2066
      %v2114 = vpack.c.bf16 %v2069, %v2068
      %v2115 = vpack.c.bf16 %v2071, %v2070
      %v2116 = vpack.c.bf16 %v2073, %v2072
      %v2117 = vpack.c.bf16 %v2075, %v2074
      %v2118 = vpack.c.bf16 %v2077, %v2076
      %v2119 = vpack.c.bf16 %v2079, %v2078
      %v2120 = vpack.c.bf16 %v2081, %v2080
      %v2121 = vpack.c.bf16 %v2083, %v2082
      %v2122 = vpack.c.bf16 %v2085, %v2084
      %v2123 = vpack.c.bf16 %v2087, %v2086
      %v2124 = vpack.c.bf16 %v2089, %v2088
      %v2125 = vpack.c.bf16 %v2091, %v2090
      %v2126 = vpack.c.bf16 %v2093, %v2092
      %v2127 = vpack.c.bf16 %v2095, %v2094
      %v2128 = vld [vmem:[%s5] sm:$0xff]
      %v2129 = vld [vmem:[%s5 + $0x8] sm:$0xff]
      %v2130 = vld [vmem:[%s5 + $0x10] sm:$0xff]
      %v2131 = vld [vmem:[%s5 + $0x18] sm:$0xff]
      %v2132 = vld [vmem:[%s5 + $0x20] sm:$0xff]
      %v2133 = vld [vmem:[%s5 + $0x28] sm:$0xff]
      %v2134 = vld [vmem:[%s5 + $0x30] sm:$0xff]
      %v2135 = vld [vmem:[%s5 + $0x38] sm:$0xff]
      %v2136 = vld [vmem:[%s5 + $0x40] sm:$0xff]
      %v2137 = vld [vmem:[%s5 + $0x48] sm:$0xff]
      %v2138 = vld [vmem:[%s5 + $0x50] sm:$0xff]
      %v2139 = vld [vmem:[%s5 + $0x58] sm:$0xff]
      %v2140 = vld [vmem:[%s5 + $0x60] sm:$0xff]
      %v2141 = vld [vmem:[%s5 + $0x68] sm:$0xff]
      %v2142 = vld [vmem:[%s5 + $0x70] sm:$0xff]
      %v2143 = vld [vmem:[%s5 + $0x78] sm:$0xff]
      %v2144 = vld [vmem:[%s5 + $0x80] sm:$0xff]
      %v2145 = vld [vmem:[%s5 + $0x88] sm:$0xff]
      %v2146 = vld [vmem:[%s5 + $0x90] sm:$0xff]
      %v2147 = vld [vmem:[%s5 + $0x98] sm:$0xff]
      %v2148 = vld [vmem:[%s5 + $0xa0] sm:$0xff]
      %v2149 = vld [vmem:[%s5 + $0xa8] sm:$0xff]
      %v2150 = vld [vmem:[%s5 + $0xb0] sm:$0xff]
      %v2151 = vld [vmem:[%s5 + $0xb8] sm:$0xff]
      %v2152 = vld [vmem:[%s5 + $0xc0] sm:$0xff]
      %v2153 = vld [vmem:[%s5 + $0xc8] sm:$0xff]
      %v2154 = vld [vmem:[%s5 + $0xd0] sm:$0xff]
      %v2155 = vld [vmem:[%s5 + $0xd8] sm:$0xff]
      %v2156 = vld [vmem:[%s5 + $0xe0] sm:$0xff]
      %v2157 = vld [vmem:[%s5 + $0xe8] sm:$0xff]
      %v2158 = vld [vmem:[%s5 + $0xf0] sm:$0xff]
      %v2159 = vld [vmem:[%s5 + $0xf8] sm:$0xff]
      %v2160 = vld [vmem:[%s5 + $0x100] sm:$0xff]
      %v2161 = vld [vmem:[%s5 + $0x108] sm:$0xff]
      %v2162 = vld [vmem:[%s5 + $0x110] sm:$0xff]
      %v2163 = vld [vmem:[%s5 + $0x118] sm:$0xff]
      %v2164 = vld [vmem:[%s5 + $0x120] sm:$0xff]
      %v2165 = vld [vmem:[%s5 + $0x128] sm:$0xff]
      %v2166 = vld [vmem:[%s5 + $0x130] sm:$0xff]
      %v2167 = vld [vmem:[%s5 + $0x138] sm:$0xff]
      %v2168 = vld [vmem:[%s5 + $0x140] sm:$0xff]
      %v2169 = vld [vmem:[%s5 + $0x148] sm:$0xff]
      %v2170 = vld [vmem:[%s5 + $0x150] sm:$0xff]
      %v2171 = vld [vmem:[%s5 + $0x158] sm:$0xff]
      %v2172 = vld [vmem:[%s5 + $0x160] sm:$0xff]
      %v2173 = vld [vmem:[%s5 + $0x168] sm:$0xff]
      %v2174 = vld [vmem:[%s5 + $0x170] sm:$0xff]
      %v2175 = vld [vmem:[%s5 + $0x178] sm:$0xff]
      %v2176 = vld [vmem:[%s5 + $0x180] sm:$0xff]
      %v2177 = vld [vmem:[%s5 + $0x188] sm:$0xff]
      %v2178 = vld [vmem:[%s5 + $0x190] sm:$0xff]
      %v2179 = vld [vmem:[%s5 + $0x198] sm:$0xff]
      %v2180 = vld [vmem:[%s5 + $0x1a0] sm:$0xff]
      %v2181 = vld [vmem:[%s5 + $0x1a8] sm:$0xff]
      %v2182 = vld [vmem:[%s5 + $0x1b0] sm:$0xff]
      %v2183 = vld [vmem:[%s5 + $0x1b8] sm:$0xff]
      %v2184 = vld [vmem:[%s5 + $0x1c0] sm:$0xff]
      %v2185 = vld [vmem:[%s5 + $0x1c8] sm:$0xff]
      %v2186 = vld [vmem:[%s5 + $0x1d0] sm:$0xff]
      %v2187 = vld [vmem:[%s5 + $0x1d8] sm:$0xff]
      %v2188 = vld [vmem:[%s5 + $0x1e0] sm:$0xff]
      %v2189 = vld [vmem:[%s5 + $0x1e8] sm:$0xff]
      %v2190 = vld [vmem:[%s5 + $0x1f0] sm:$0xff]
      %v2191 = vld [vmem:[%s5 + $0x1f8] sm:$0xff]
      %v2256 = vunpack.c.l.b16 %v2128
      %v2257 = vunpack.c.h.b16 %v2128
      %v2258 = vunpack.c.l.b16 %v2129
      %v2259 = vunpack.c.h.b16 %v2129
      %v2260 = vunpack.c.l.b16 %v2130
      %v2261 = vunpack.c.h.b16 %v2130
      %v2262 = vunpack.c.l.b16 %v2131
      %v2263 = vunpack.c.h.b16 %v2131
      %v2264 = vunpack.c.l.b16 %v2132
      %v2265 = vunpack.c.h.b16 %v2132
      %v2266 = vunpack.c.l.b16 %v2133
      %v2267 = vunpack.c.h.b16 %v2133
      %v2268 = vunpack.c.l.b16 %v2134
      %v2269 = vunpack.c.h.b16 %v2134
      %v2270 = vunpack.c.l.b16 %v2135
      %v2271 = vunpack.c.h.b16 %v2135
      %v2272 = vunpack.c.l.b16 %v2136
      %v2273 = vunpack.c.h.b16 %v2136
      %v2274 = vunpack.c.l.b16 %v2137
      %v2275 = vunpack.c.h.b16 %v2137
      %v2276 = vunpack.c.l.b16 %v2138
      %v2277 = vunpack.c.h.b16 %v2138
      %v2278 = vunpack.c.l.b16 %v2139
      %v2279 = vunpack.c.h.b16 %v2139
      %v2280 = vunpack.c.l.b16 %v2140
      %v2281 = vunpack.c.h.b16 %v2140
      %v2282 = vunpack.c.l.b16 %v2141
      %v2283 = vunpack.c.h.b16 %v2141
      %v2284 = vunpack.c.l.b16 %v2142
      %v2285 = vunpack.c.h.b16 %v2142
      %v2286 = vunpack.c.l.b16 %v2143
      %v2287 = vunpack.c.h.b16 %v2143
      %v2288 = vunpack.c.l.b16 %v2144
      %v2289 = vunpack.c.h.b16 %v2144
      %v2290 = vunpack.c.l.b16 %v2145
      %v2291 = vunpack.c.h.b16 %v2145
      %v2292 = vunpack.c.l.b16 %v2146
      %v2293 = vunpack.c.h.b16 %v2146
      %v2294 = vunpack.c.l.b16 %v2147
      %v2295 = vunpack.c.h.b16 %v2147
      %v2296 = vunpack.c.l.b16 %v2148
      %v2297 = vunpack.c.h.b16 %v2148
      %v2298 = vunpack.c.l.b16 %v2149
      %v2299 = vunpack.c.h.b16 %v2149
      %v2300 = vunpack.c.l.b16 %v2150
      %v2301 = vunpack.c.h.b16 %v2150
      %v2302 = vunpack.c.l.b16 %v2151
      %v2303 = vunpack.c.h.b16 %v2151
      %v2304 = vunpack.c.l.b16 %v2152
      %v2305 = vunpack.c.h.b16 %v2152
      %v2306 = vunpack.c.l.b16 %v2153
      %v2307 = vunpack.c.h.b16 %v2153
      %v2308 = vunpack.c.l.b16 %v2154
      %v2309 = vunpack.c.h.b16 %v2154
      %v2310 = vunpack.c.l.b16 %v2155
      %v2311 = vunpack.c.h.b16 %v2155
      %v2312 = vunpack.c.l.b16 %v2156
      %v2313 = vunpack.c.h.b16 %v2156
      %v2314 = vunpack.c.l.b16 %v2157
      %v2315 = vunpack.c.h.b16 %v2157
      %v2316 = vunpack.c.l.b16 %v2158
      %v2317 = vunpack.c.h.b16 %v2158
      %v2318 = vunpack.c.l.b16 %v2159
      %v2319 = vunpack.c.h.b16 %v2159
      %v2320 = vunpack.c.l.b16 %v2160
      %v2321 = vunpack.c.h.b16 %v2160
      %v2322 = vunpack.c.l.b16 %v2161
      %v2323 = vunpack.c.h.b16 %v2161
      %v2324 = vunpack.c.l.b16 %v2162
      %v2325 = vunpack.c.h.b16 %v2162
      %v2326 = vunpack.c.l.b16 %v2163
      %v2327 = vunpack.c.h.b16 %v2163
      %v2328 = vunpack.c.l.b16 %v2164
      %v2329 = vunpack.c.h.b16 %v2164
      %v2330 = vunpack.c.l.b16 %v2165
      %v2331 = vunpack.c.h.b16 %v2165
      %v2332 = vunpack.c.l.b16 %v2166
      %v2333 = vunpack.c.h.b16 %v2166
      %v2334 = vunpack.c.l.b16 %v2167
      %v2335 = vunpack.c.h.b16 %v2167
      %v2336 = vunpack.c.l.b16 %v2168
      %v2337 = vunpack.c.h.b16 %v2168
      %v2338 = vunpack.c.l.b16 %v2169
      %v2339 = vunpack.c.h.b16 %v2169
      %v2340 = vunpack.c.l.b16 %v2170
      %v2341 = vunpack.c.h.b16 %v2170
      %v2342 = vunpack.c.l.b16 %v2171
      %v2343 = vunpack.c.h.b16 %v2171
      %v2344 = vunpack.c.l.b16 %v2172
      %v2345 = vunpack.c.h.b16 %v2172
      %v2346 = vunpack.c.l.b16 %v2173
      %v2347 = vunpack.c.h.b16 %v2173
      %v2348 = vunpack.c.l.b16 %v2174
      %v2349 = vunpack.c.h.b16 %v2174
      %v2350 = vunpack.c.l.b16 %v2175
      %v2351 = vunpack.c.h.b16 %v2175
      %v2352 = vunpack.c.l.b16 %v2176
      %v2353 = vunpack.c.h.b16 %v2176
      %v2354 = vunpack.c.l.b16 %v2177
      %v2355 = vunpack.c.h.b16 %v2177
      %v2356 = vunpack.c.l.b16 %v2178
      %v2357 = vunpack.c.h.b16 %v2178
      %v2358 = vunpack.c.l.b16 %v2179
      %v2359 = vunpack.c.h.b16 %v2179
      %v2360 = vunpack.c.l.b16 %v2180
      %v2361 = vunpack.c.h.b16 %v2180
      %v2362 = vunpack.c.l.b16 %v2181
      %v2363 = vunpack.c.h.b16 %v2181
      %v2364 = vunpack.c.l.b16 %v2182
      %v2365 = vunpack.c.h.b16 %v2182
      %v2366 = vunpack.c.l.b16 %v2183
      %v2367 = vunpack.c.h.b16 %v2183
      %v2368 = vunpack.c.l.b16 %v2184
      %v2369 = vunpack.c.h.b16 %v2184
      %v2370 = vunpack.c.l.b16 %v2185
      %v2371 = vunpack.c.h.b16 %v2185
      %v2372 = vunpack.c.l.b16 %v2186
      %v2373 = vunpack.c.h.b16 %v2186
      %v2374 = vunpack.c.l.b16 %v2187
      %v2375 = vunpack.c.h.b16 %v2187
      %v2376 = vunpack.c.l.b16 %v2188
      %v2377 = vunpack.c.h.b16 %v2188
      %v2378 = vunpack.c.l.b16 %v2189
      %v2379 = vunpack.c.h.b16 %v2189
      %v2380 = vunpack.c.l.b16 %v2190
      %v2381 = vunpack.c.h.b16 %v2190
      %v2382 = vunpack.c.l.b16 %v2191
      %v2383 = vunpack.c.h.b16 %v2191
      %v2384 = vpack.c.b16 %v2260, %v2256
      %v2385 = vpack.c.b16 %v2261, %v2257
      %v2386 = vpack.c.b16 %v2262, %v2258
      %v2387 = vpack.c.b16 %v2263, %v2259
      %v2388 = vpack.c.b16 %v2268, %v2264
      %v2389 = vpack.c.b16 %v2269, %v2265
      %v2390 = vpack.c.b16 %v2270, %v2266
      %v2391 = vpack.c.b16 %v2271, %v2267
      %v2392 = vpack.c.b16 %v2276, %v2272
      %v2393 = vpack.c.b16 %v2277, %v2273
      %v2394 = vpack.c.b16 %v2278, %v2274
      %v2395 = vpack.c.b16 %v2279, %v2275
      %v2396 = vpack.c.b16 %v2284, %v2280
      %v2397 = vpack.c.b16 %v2285, %v2281
      %v2398 = vpack.c.b16 %v2286, %v2282
      %v2399 = vpack.c.b16 %v2287, %v2283
      %v2400 = vpack.c.b16 %v2292, %v2288
      %v2401 = vpack.c.b16 %v2293, %v2289
      %v2402 = vpack.c.b16 %v2294, %v2290
      %v2403 = vpack.c.b16 %v2295, %v2291
      %v2404 = vpack.c.b16 %v2300, %v2296
      %v2405 = vpack.c.b16 %v2301, %v2297
      %v2406 = vpack.c.b16 %v2302, %v2298
      %v2407 = vpack.c.b16 %v2303, %v2299
      %v2408 = vpack.c.b16 %v2308, %v2304
      %v2409 = vpack.c.b16 %v2309, %v2305
      %v2410 = vpack.c.b16 %v2310, %v2306
      %v2411 = vpack.c.b16 %v2311, %v2307
      %v2412 = vpack.c.b16 %v2316, %v2312
      %v2413 = vpack.c.b16 %v2317, %v2313
      %v2414 = vpack.c.b16 %v2318, %v2314
      %v2415 = vpack.c.b16 %v2319, %v2315
      %v2416 = vpack.c.b16 %v2324, %v2320
      %v2417 = vpack.c.b16 %v2325, %v2321
      %v2418 = vpack.c.b16 %v2326, %v2322
      %v2419 = vpack.c.b16 %v2327, %v2323
      %v2420 = vpack.c.b16 %v2332, %v2328
      %v2421 = vpack.c.b16 %v2333, %v2329
      %v2422 = vpack.c.b16 %v2334, %v2330
      %v2423 = vpack.c.b16 %v2335, %v2331
      %v2424 = vpack.c.b16 %v2340, %v2336
      %v2425 = vpack.c.b16 %v2341, %v2337
      %v2426 = vpack.c.b16 %v2342, %v2338
      %v2427 = vpack.c.b16 %v2343, %v2339
      %v2428 = vpack.c.b16 %v2348, %v2344
      %v2429 = vpack.c.b16 %v2349, %v2345
      %v2430 = vpack.c.b16 %v2350, %v2346
      %v2431 = vpack.c.b16 %v2351, %v2347
      %v2432 = vpack.c.b16 %v2356, %v2352
      %v2433 = vpack.c.b16 %v2357, %v2353
      %v2434 = vpack.c.b16 %v2358, %v2354
      %v2435 = vpack.c.b16 %v2359, %v2355
      %v2436 = vpack.c.b16 %v2364, %v2360
      %v2437 = vpack.c.b16 %v2365, %v2361
      %v2438 = vpack.c.b16 %v2366, %v2362
      %v2439 = vpack.c.b16 %v2367, %v2363
      %v2440 = vpack.c.b16 %v2372, %v2368
      %v2441 = vpack.c.b16 %v2373, %v2369
      %v2442 = vpack.c.b16 %v2374, %v2370
      %v2443 = vpack.c.b16 %v2375, %v2371
      %v2444 = vpack.c.b16 %v2380, %v2376
      %v2445 = vpack.c.b16 %v2381, %v2377
      %v2446 = vpack.c.b16 %v2382, %v2378
      %v2447 = vpack.c.b16 %v2383, %v2379
      %2512 = vmatprep.subr.bf16.mxu0 0
      %2513 = vmatpush1.bf16.msra.mxu0 %v2096
      %2514 = vmatprep.subr.bf16.mxu0 0
      %2515 = vmatpush1.bf16.msra.mxu0 %v2097
      %2516 = vmatprep.subr.bf16.mxu0 0
      %2517 = vmatpush1.bf16.msra.mxu0 %v2098
      %2518 = vmatprep.subr.bf16.mxu0 0
      %2519 = vmatpush1.bf16.msra.mxu0 %v2099
      %2520 = vmatprep.subr.bf16.mxu0 0
      %2521 = vmatpush1.bf16.msra.mxu0 %v2100
      %2522 = vmatprep.subr.bf16.mxu0 0
      %2523 = vmatpush1.bf16.msra.mxu0 %v2101
      %2524 = vmatprep.subr.bf16.mxu0 0
      %2525 = vmatpush1.bf16.msra.mxu0 %v2102
      %2526 = vmatprep.subr.bf16.mxu0 0
      %2527 = vmatpush1.bf16.msra.mxu0 %v2103
      %2528 = vmatprep.subr.bf16.mxu0 0
      %2529 = vmatpush1.bf16.msra.mxu0 %v2104
      %2530 = vmatprep.subr.bf16.mxu0 0
      %2531 = vmatpush1.bf16.msra.mxu0 %v2105
      %2532 = vmatprep.subr.bf16.mxu0 0
      %2533 = vmatpush1.bf16.msra.mxu0 %v2106
      %2534 = vmatprep.subr.bf16.mxu0 0
      %2535 = vmatpush1.bf16.msra.mxu0 %v2107
      %2536 = vmatprep.subr.bf16.mxu0 0
      %2537 = vmatpush1.bf16.msra.mxu0 %v2108
      %2538 = vmatprep.subr.bf16.mxu0 0
      %2539 = vmatpush1.bf16.msra.mxu0 %v2109
      %2540 = vmatprep.subr.bf16.mxu0 0
      %2541 = vmatpush1.bf16.msra.mxu0 %v2110
      %2542 = vmatprep.subr.bf16.mxu0 0
      %2543 = vmatpush1.bf16.msra.mxu0 %v2111
      %2544 = vmatprep.mubr.bf16.mxu0 %v2385
      %2545 = vmatmul.mubr.bf16.gmra.mrb[0].mxu0 %v2384
      %v2546 = vpop.f32.mrb[0].mxu0
      %v2547 = vadd.f32 0.0, %v2546
      %v2548 = vpop.f32.mrb[0].mxu0
      %v2549 = vpop.f32.mrb[0].mxu0
      %v2550 = vadd.f32 0.0, %v2549
      %v2551 = vpop.f32.mrb[0].mxu0
      %2552 = vmatprep.mubr.bf16.mxu0 %v2389
      %2553 = vmatmul.mubr.bf16.gmra.mrb[0].mxu0 %v2388
      %v2554 = vpop.f32.mrb[0].mxu0
      %v2555 = vadd.f32 0.0, %v2554
      %v2556 = vpop.f32.mrb[0].mxu0
      %v2557 = vpop.f32.mrb[0].mxu0
      %v2558 = vadd.f32 0.0, %v2557
      %v2559 = vpop.f32.mrb[0].mxu0
      %2560 = vmatprep.mubr.bf16.mxu0 %v2393
      %2561 = vmatmul.mubr.bf16.gmra.mrb[0].mxu0 %v2392
      %v2562 = vpop.f32.mrb[0].mxu0
      %v2563 = vadd.f32 0.0, %v2562
      %v2564 = vpop.f32.mrb[0].mxu0
      %v2565 = vpop.f32.mrb[0].mxu0
      %v2566 = vadd.f32 0.0, %v2565
      %v2567 = vpop.f32.mrb[0].mxu0
      %2568 = vmatprep.mubr.bf16.mxu0 %v2397
      %2569 = vmatmul.mubr.bf16.gmra.mrb[0].mxu0 %v2396
      %v2570 = vpop.f32.mrb[0].mxu0
      %v2571 = vadd.f32 0.0, %v2570
      %v2572 = vpop.f32.mrb[0].mxu0
      %v2573 = vpop.f32.mrb[0].mxu0
      %v2574 = vadd.f32 0.0, %v2573
      %v2575 = vpop.f32.mrb[0].mxu0
      %2576 = vmatprep.mubr.bf16.mxu0 %v2401
      %2577 = vmatmul.mubr.bf16.gmra.mrb[0].mxu0 %v2400
      %v2578 = vpop.f32.mrb[0].mxu0
      %v2579 = vadd.f32 0.0, %v2578
      %v2580 = vpop.f32.mrb[0].mxu0
      %v2581 = vpop.f32.mrb[0].mxu0
      %v2582 = vadd.f32 0.0, %v2581
      %v2583 = vpop.f32.mrb[0].mxu0
      %2584 = vmatprep.mubr.bf16.mxu0 %v2405
      %2585 = vmatmul.mubr.bf16.gmra.mrb[0].mxu0 %v2404
      %v2586 = vpop.f32.mrb[0].mxu0
      %v2587 = vadd.f32 0.0, %v2586
      %v2588 = vpop.f32.mrb[0].mxu0
      %v2589 = vpop.f32.mrb[0].mxu0
      %v2590 = vadd.f32 0.0, %v2589
      %v2591 = vpop.f32.mrb[0].mxu0
      %2592 = vmatprep.mubr.bf16.mxu0 %v2409
      %2593 = vmatmul.mubr.bf16.gmra.mrb[0].mxu0 %v2408
      %v2594 = vpop.f32.mrb[0].mxu0
      %v2595 = vadd.f32 0.0, %v2594
      %v2596 = vpop.f32.mrb[0].mxu0
      %v2597 = vpop.f32.mrb[0].mxu0
      %v2598 = vadd.f32 0.0, %v2597
      %v2599 = vpop.f32.mrb[0].mxu0
      %2600 = vmatprep.mubr.bf16.mxu0 %v2413
      %2601 = vmatmul.mubr.bf16.gmra.mrb[0].mxu0 %v2412
      %v2602 = vpop.f32.mrb[0].mxu0
      %v2603 = vadd.f32 0.0, %v2602
      %v2604 = vpop.f32.mrb[0].mxu0
      %v2605 = vpop.f32.mrb[0].mxu0
      %v2606 = vadd.f32 0.0, %v2605
      %v2607 = vpop.f32.mrb[0].mxu0
      %2608 = vmatprep.mubr.bf16.mxu0 %v2417
      %2609 = vmatmul.mubr.bf16.gmra.mrb[0].mxu0 %v2416
      %v2610 = vpop.f32.mrb[0].mxu0
      %v2611 = vadd.f32 0.0, %v2610
      %v2612 = vpop.f32.mrb[0].mxu0
      %v2613 = vpop.f32.mrb[0].mxu0
      %v2614 = vadd.f32 0.0, %v2613
      %v2615 = vpop.f32.mrb[0].mxu0
      %2616 = vmatprep.mubr.bf16.mxu0 %v2421
      %2617 = vmatmul.mubr.bf16.gmra.mrb[0].mxu0 %v2420
      %v2618 = vpop.f32.mrb[0].mxu0
      %v2619 = vadd.f32 0.0, %v2618
      %v2620 = vpop.f32.mrb[0].mxu0
      %v2621 = vpop.f32.mrb[0].mxu0
      %v2622 = vadd.f32 0.0, %v2621
      %v2623 = vpop.f32.mrb[0].mxu0
      %2624 = vmatprep.mubr.bf16.mxu0 %v2425
      %2625 = vmatmul.mubr.bf16.gmra.mrb[0].mxu0 %v2424
      %v2626 = vpop.f32.mrb[0].mxu0
      %v2627 = vadd.f32 0.0, %v2626
      %v2628 = vpop.f32.mrb[0].mxu0
      %v2629 = vpop.f32.mrb[0].mxu0
      %v2630 = vadd.f32 0.0, %v2629
      %v2631 = vpop.f32.mrb[0].mxu0
      %2632 = vmatprep.mubr.bf16.mxu0 %v2429
      %2633 = vmatmul.mubr.bf16.gmra.mrb[0].mxu0 %v2428
      %v2634 = vpop.f32.mrb[0].mxu0
      %v2635 = vadd.f32 0.0, %v2634
      %v2636 = vpop.f32.mrb[0].mxu0
      %v2637 = vpop.f32.mrb[0].mxu0
      %v2638 = vadd.f32 0.0, %v2637
      %v2639 = vpop.f32.mrb[0].mxu0
      %2640 = vmatprep.mubr.bf16.mxu0 %v2433
      %2641 = vmatmul.mubr.bf16.gmra.mrb[0].mxu0 %v2432
      %v2642 = vpop.f32.mrb[0].mxu0
      %v2643 = vadd.f32 0.0, %v2642
      %v2644 = vpop.f32.mrb[0].mxu0
      %v2645 = vpop.f32.mrb[0].mxu0
      %v2646 = vadd.f32 0.0, %v2645
      %v2647 = vpop.f32.mrb[0].mxu0
      %2648 = vmatprep.mubr.bf16.mxu0 %v2437
      %2649 = vmatmul.mubr.bf16.gmra.mrb[0].mxu0 %v2436
      %v2650 = vpop.f32.mrb[0].mxu0
      %v2651 = vadd.f32 0.0, %v2650
      %v2652 = vpop.f32.mrb[0].mxu0
      %v2653 = vpop.f32.mrb[0].mxu0
      %v2654 = vadd.f32 0.0, %v2653
      %v2655 = vpop.f32.mrb[0].mxu0
      %2656 = vmatprep.mubr.bf16.mxu0 %v2441
      %2657 = vmatmul.mubr.bf16.gmra.mrb[0].mxu0 %v2440
      %v2658 = vpop.f32.mrb[0].mxu0
      %v2659 = vadd.f32 0.0, %v2658
      %v2660 = vpop.f32.mrb[0].mxu0
      %v2661 = vpop.f32.mrb[0].mxu0
      %v2662 = vadd.f32 0.0, %v2661
      %v2663 = vpop.f32.mrb[0].mxu0
      %2664 = vmatprep.mubr.bf16.mxu0 %v2445
      %2665 = vmatmul.mubr.bf16.gmra.mrb[0].mxu0 %v2444
      %v2666 = vpop.f32.mrb[0].mxu0
      %v2667 = vadd.f32 0.0, %v2666
      %v2668 = vpop.f32.mrb[0].mxu0
      %v2669 = vpop.f32.mrb[0].mxu0
      %v2670 = vadd.f32 0.0, %v2669
      %v2671 = vpop.f32.mrb[0].mxu0
      %2672 = vdwg.mxu0
      %2673 = vmatprep.subr.bf16.mxu0 0
      %2674 = vmatpush1.bf16.msra.mxu0 %v2112
      %2675 = vmatprep.subr.bf16.mxu0 0
      %2676 = vmatpush1.bf16.msra.mxu0 %v2113
      %2677 = vmatprep.subr.bf16.mxu0 0
      %2678 = vmatpush1.bf16.msra.mxu0 %v2114
      %2679 = vmatprep.subr.bf16.mxu0 0
      %2680 = vmatpush1.bf16.msra.mxu0 %v2115
      %2681 = vmatprep.subr.bf16.mxu0 0
      %2682 = vmatpush1.bf16.msra.mxu0 %v2116
      %2683 = vmatprep.subr.bf16.mxu0 0
      %2684 = vmatpush1.bf16.msra.mxu0 %v2117
      %2685 = vmatprep.subr.bf16.mxu0 0
      %2686 = vmatpush1.bf16.msra.mxu0 %v2118
      %2687 = vmatprep.subr.bf16.mxu0 0
      %2688 = vmatpush1.bf16.msra.mxu0 %v2119
      %2689 = vmatprep.subr.bf16.mxu0 0
      %2690 = vmatpush1.bf16.msra.mxu0 %v2120
      %2691 = vmatprep.subr.bf16.mxu0 0
      %2692 = vmatpush1.bf16.msra.mxu0 %v2121
      %2693 = vmatprep.subr.bf16.mxu0 0
      %2694 = vmatpush1.bf16.msra.mxu0 %v2122
      %2695 = vmatprep.subr.bf16.mxu0 0
      %2696 = vmatpush1.bf16.msra.mxu0 %v2123
      %2697 = vmatprep.subr.bf16.mxu0 0
      %2698 = vmatpush1.bf16.msra.mxu0 %v2124
      %2699 = vmatprep.subr.bf16.mxu0 0
      %2700 = vmatpush1.bf16.msra.mxu0 %v2125
      %2701 = vmatprep.subr.bf16.mxu0 0
      %2702 = vmatpush1.bf16.msra.mxu0 %v2126
      %2703 = vmatprep.subr.bf16.mxu0 0
      %2704 = vmatpush1.bf16.msra.mxu0 %v2127
      %2705 = vmatprep.mubr.bf16.mxu0 %v2387
      %2706 = vmatmul.mubr.bf16.gmra.mrb[0].mxu0 %v2386
      %v2707 = vpop.f32.mrb[0].mxu0
      %v2708 = vadd.f32 %v2547, %v2707
      %v2709 = vpop.f32.mrb[0].mxu0
      %v2710 = vpop.f32.mrb[0].mxu0
      %v2711 = vadd.f32 %v2550, %v2710
      %v2712 = vpop.f32.mrb[0].mxu0
      %2713 = vmatprep.mubr.bf16.mxu0 %v2391
      %2714 = vmatmul.mubr.bf16.gmra.mrb[0].mxu0 %v2390
      %v2715 = vpop.f32.mrb[0].mxu0
      %v2716 = vadd.f32 %v2555, %v2715
      %v2717 = vpop.f32.mrb[0].mxu0
      %v2718 = vpop.f32.mrb[0].mxu0
      %v2719 = vadd.f32 %v2558, %v2718
      %v2720 = vpop.f32.mrb[0].mxu0
      %2721 = vmatprep.mubr.bf16.mxu0 %v2395
      %2722 = vmatmul.mubr.bf16.gmra.mrb[0].mxu0 %v2394
      %v2723 = vpop.f32.mrb[0].mxu0
      %v2724 = vadd.f32 %v2563, %v2723
      %v2725 = vpop.f32.mrb[0].mxu0
      %v2726 = vpop.f32.mrb[0].mxu0
      %v2727 = vadd.f32 %v2566, %v2726
      %v2728 = vpop.f32.mrb[0].mxu0
      %2729 = vmatprep.mubr.bf16.mxu0 %v2399
      %2730 = vmatmul.mubr.bf16.gmra.mrb[0].mxu0 %v2398
      %v2731 = vpop.f32.mrb[0].mxu0
      %v2732 = vadd.f32 %v2571, %v2731
      %v2733 = vpop.f32.mrb[0].mxu0
      %v2734 = vpop.f32.mrb[0].mxu0
      %v2735 = vadd.f32 %v2574, %v2734
      %v2736 = vpop.f32.mrb[0].mxu0
      %2737 = vmatprep.mubr.bf16.mxu0 %v2403
      %2738 = vmatmul.mubr.bf16.gmra.mrb[0].mxu0 %v2402
      %v2739 = vpop.f32.mrb[0].mxu0
      %v2740 = vadd.f32 %v2579, %v2739
      %v2741 = vpop.f32.mrb[0].mxu0
      %v2742 = vpop.f32.mrb[0].mxu0
      %v2743 = vadd.f32 %v2582, %v2742
      %v2744 = vpop.f32.mrb[0].mxu0
      %2745 = vmatprep.mubr.bf16.mxu0 %v2407
      %2746 = vmatmul.mubr.bf16.gmra.mrb[0].mxu0 %v2406
      %v2747 = vpop.f32.mrb[0].mxu0
      %v2748 = vadd.f32 %v2587, %v2747
      %v2749 = vpop.f32.mrb[0].mxu0
      %v2750 = vpop.f32.mrb[0].mxu0
      %v2751 = vadd.f32 %v2590, %v2750
      %v2752 = vpop.f32.mrb[0].mxu0
      %2753 = vmatprep.mubr.bf16.mxu0 %v2411
      %2754 = vmatmul.mubr.bf16.gmra.mrb[0].mxu0 %v2410
      %v2755 = vpop.f32.mrb[0].mxu0
      %v2756 = vadd.f32 %v2595, %v2755
      %v2757 = vpop.f32.mrb[0].mxu0
      %v2758 = vpop.f32.mrb[0].mxu0
      %v2759 = vadd.f32 %v2598, %v2758
      %v2760 = vpop.f32.mrb[0].mxu0
      %2761 = vmatprep.mubr.bf16.mxu0 %v2415
      %2762 = vmatmul.mubr.bf16.gmra.mrb[0].mxu0 %v2414
      %v2763 = vpop.f32.mrb[0].mxu0
      %v2764 = vadd.f32 %v2603, %v2763
      %v2765 = vpop.f32.mrb[0].mxu0
      %v2766 = vpop.f32.mrb[0].mxu0
      %v2767 = vadd.f32 %v2606, %v2766
      %v2768 = vpop.f32.mrb[0].mxu0
      %2769 = vmatprep.mubr.bf16.mxu0 %v2419
      %2770 = vmatmul.mubr.bf16.gmra.mrb[0].mxu0 %v2418
      %v2771 = vpop.f32.mrb[0].mxu0
      %v2772 = vadd.f32 %v2611, %v2771
      %v2773 = vpop.f32.mrb[0].mxu0
      %v2774 = vpop.f32.mrb[0].mxu0
      %v2775 = vadd.f32 %v2614, %v2774
      %v2776 = vpop.f32.mrb[0].mxu0
      %2777 = vmatprep.mubr.bf16.mxu0 %v2423
      %2778 = vmatmul.mubr.bf16.gmra.mrb[0].mxu0 %v2422
      %v2779 = vpop.f32.mrb[0].mxu0
      %v2780 = vadd.f32 %v2619, %v2779
      %v2781 = vpop.f32.mrb[0].mxu0
      %v2782 = vpop.f32.mrb[0].mxu0
      %v2783 = vadd.f32 %v2622, %v2782
      %v2784 = vpop.f32.mrb[0].mxu0
      %2785 = vmatprep.mubr.bf16.mxu0 %v2427
      %2786 = vmatmul.mubr.bf16.gmra.mrb[0].mxu0 %v2426
      %v2787 = vpop.f32.mrb[0].mxu0
      %v2788 = vadd.f32 %v2627, %v2787
      %v2789 = vpop.f32.mrb[0].mxu0
      %v2790 = vpop.f32.mrb[0].mxu0
      %v2791 = vadd.f32 %v2630, %v2790
      %v2792 = vpop.f32.mrb[0].mxu0
      %2793 = vmatprep.mubr.bf16.mxu0 %v2431
      %2794 = vmatmul.mubr.bf16.gmra.mrb[0].mxu0 %v2430
      %v2795 = vpop.f32.mrb[0].mxu0
      %v2796 = vadd.f32 %v2635, %v2795
      %v2797 = vpop.f32.mrb[0].mxu0
      %v2798 = vpop.f32.mrb[0].mxu0
      %v2799 = vadd.f32 %v2638, %v2798
      %v2800 = vpop.f32.mrb[0].mxu0
      %2801 = vmatprep.mubr.bf16.mxu0 %v2435
      %2802 = vmatmul.mubr.bf16.gmra.mrb[0].mxu0 %v2434
      %v2803 = vpop.f32.mrb[0].mxu0
      %v2804 = vadd.f32 %v2643, %v2803
      %v2805 = vpop.f32.mrb[0].mxu0
      %v2806 = vpop.f32.mrb[0].mxu0
      %v2807 = vadd.f32 %v2646, %v2806
      %v2808 = vpop.f32.mrb[0].mxu0
      %2809 = vmatprep.mubr.bf16.mxu0 %v2439
      %2810 = vmatmul.mubr.bf16.gmra.mrb[0].mxu0 %v2438
      %v2811 = vpop.f32.mrb[0].mxu0
      %v2812 = vadd.f32 %v2651, %v2811
      %v2813 = vpop.f32.mrb[0].mxu0
      %v2814 = vpop.f32.mrb[0].mxu0
      %v2815 = vadd.f32 %v2654, %v2814
      %v2816 = vpop.f32.mrb[0].mxu0
      %2817 = vmatprep.mubr.bf16.mxu0 %v2443
      %2818 = vmatmul.mubr.bf16.gmra.mrb[0].mxu0 %v2442
      %v2819 = vpop.f32.mrb[0].mxu0
      %v2820 = vadd.f32 %v2659, %v2819
      %v2821 = vpop.f32.mrb[0].mxu0
      %v2822 = vpop.f32.mrb[0].mxu0
      %v2823 = vadd.f32 %v2662, %v2822
      %v2824 = vpop.f32.mrb[0].mxu0
      %2825 = vmatprep.mubr.bf16.mxu0 %v2447
      %2826 = vmatmul.mubr.bf16.gmra.mrb[0].mxu0 %v2446
      %v2827 = vpop.f32.mrb[0].mxu0
      %v2828 = vadd.f32 %v2667, %v2827
      %v2829 = vpop.f32.mrb[0].mxu0
      %v2830 = vpop.f32.mrb[0].mxu0
      %v2831 = vadd.f32 %v2670, %v2830
      %v2832 = vpop.f32.mrb[0].mxu0
      %2833 = vdwg.mxu0
      %v2834 = vld [vmem:[%s6] sm:$0xff]
      %v2835 = vld [vmem:[%s6 + $0x8] sm:$0xff]
      %v2836 = vld [vmem:[%s6 + $0x10] sm:$0xff]
      %v2837 = vld [vmem:[%s6 + $0x18] sm:$0xff]
      %v2838 = vld [vmem:[%s6 + $0x20] sm:$0xff]
      %v2839 = vld [vmem:[%s6 + $0x28] sm:$0xff]
      %v2840 = vld [vmem:[%s6 + $0x30] sm:$0xff]
      %v2841 = vld [vmem:[%s6 + $0x38] sm:$0xff]
      %v2842 = vld [vmem:[%s6 + $0x40] sm:$0xff]
      %v2843 = vld [vmem:[%s6 + $0x48] sm:$0xff]
      %v2844 = vld [vmem:[%s6 + $0x50] sm:$0xff]
      %v2845 = vld [vmem:[%s6 + $0x58] sm:$0xff]
      %v2846 = vld [vmem:[%s6 + $0x60] sm:$0xff]
      %v2847 = vld [vmem:[%s6 + $0x68] sm:$0xff]
      %v2848 = vld [vmem:[%s6 + $0x70] sm:$0xff]
      %v2849 = vld [vmem:[%s6 + $0x78] sm:$0xff]
      %v2850 = vld [vmem:[%s6 + $0x80] sm:$0xff]
      %v2851 = vld [vmem:[%s6 + $0x88] sm:$0xff]
      %v2852 = vld [vmem:[%s6 + $0x90] sm:$0xff]
      %v2853 = vld [vmem:[%s6 + $0x98] sm:$0xff]
      %v2854 = vld [vmem:[%s6 + $0xa0] sm:$0xff]
      %v2855 = vld [vmem:[%s6 + $0xa8] sm:$0xff]
      %v2856 = vld [vmem:[%s6 + $0xb0] sm:$0xff]
      %v2857 = vld [vmem:[%s6 + $0xb8] sm:$0xff]
      %v2858 = vld [vmem:[%s6 + $0xc0] sm:$0xff]
      %v2859 = vld [vmem:[%s6 + $0xc8] sm:$0xff]
      %v2860 = vld [vmem:[%s6 + $0xd0] sm:$0xff]
      %v2861 = vld [vmem:[%s6 + $0xd8] sm:$0xff]
      %v2862 = vld [vmem:[%s6 + $0xe0] sm:$0xff]
      %v2863 = vld [vmem:[%s6 + $0xe8] sm:$0xff]
      %v2864 = vld [vmem:[%s6 + $0xf0] sm:$0xff]
      %v2865 = vld [vmem:[%s6 + $0xf8] sm:$0xff]
      %2867 = vset.pattern.permute.xlu0 0
      %2868 = vperm.xlu0 %2867, %v2834
      %v2869 = vpop.permute.xlu0 %2868
      %2872 = vset.pattern.permute.xlu0 0
      %2873 = vperm.xlu0 %2872, %v2835
      %v2874 = vpop.permute.xlu0 %2873
      %2877 = vset.pattern.permute.xlu0 0
      %2878 = vperm.xlu0 %2877, %v2836
      %v2879 = vpop.permute.xlu0 %2878
      %2882 = vset.pattern.permute.xlu0 0
      %2883 = vperm.xlu0 %2882, %v2837
      %v2884 = vpop.permute.xlu0 %2883
      %2887 = vset.pattern.permute.xlu0 0
      %2888 = vperm.xlu0 %2887, %v2838
      %v2889 = vpop.permute.xlu0 %2888
      %2892 = vset.pattern.permute.xlu0 0
      %2893 = vperm.xlu0 %2892, %v2839
      %v2894 = vpop.permute.xlu0 %2893
      %2897 = vset.pattern.permute.xlu0 0
      %2898 = vperm.xlu0 %2897, %v2840
      %v2899 = vpop.permute.xlu0 %2898
      %2902 = vset.pattern.permute.xlu0 0
      %2903 = vperm.xlu0 %2902, %v2841
      %v2904 = vpop.permute.xlu0 %2903
      %2907 = vset.pattern.permute.xlu0 0
      %2908 = vperm.xlu0 %2907, %v2842
      %v2909 = vpop.permute.xlu0 %2908
      %2912 = vset.pattern.permute.xlu0 0
      %2913 = vperm.xlu0 %2912, %v2843
      %v2914 = vpop.permute.xlu0 %2913
      %2917 = vset.pattern.permute.xlu0 0
      %2918 = vperm.xlu0 %2917, %v2844
      %v2919 = vpop.permute.xlu0 %2918
      %2922 = vset.pattern.permute.xlu0 0
      %2923 = vperm.xlu0 %2922, %v2845
      %v2924 = vpop.permute.xlu0 %2923
      %2927 = vset.pattern.permute.xlu0 0
      %2928 = vperm.xlu0 %2927, %v2846
      %v2929 = vpop.permute.xlu0 %2928
      %2932 = vset.pattern.permute.xlu0 0
      %2933 = vperm.xlu0 %2932, %v2847
      %v2934 = vpop.permute.xlu0 %2933
      %2937 = vset.pattern.permute.xlu0 0
      %2938 = vperm.xlu0 %2937, %v2848
      %v2939 = vpop.permute.xlu0 %2938
      %2942 = vset.pattern.permute.xlu0 0
      %2943 = vperm.xlu0 %2942, %v2849
      %v2944 = vpop.permute.xlu0 %2943
      %2947 = vset.pattern.permute.xlu0 0
      %2948 = vperm.xlu0 %2947, %v2850
      %v2949 = vpop.permute.xlu0 %2948
      %2952 = vset.pattern.permute.xlu0 0
      %2953 = vperm.xlu0 %2952, %v2851
      %v2954 = vpop.permute.xlu0 %2953
      %2957 = vset.pattern.permute.xlu0 0
      %2958 = vperm.xlu0 %2957, %v2852
      %v2959 = vpop.permute.xlu0 %2958
      %2962 = vset.pattern.permute.xlu0 0
      %2963 = vperm.xlu0 %2962, %v2853
      %v2964 = vpop.permute.xlu0 %2963
      %2967 = vset.pattern.permute.xlu0 0
      %2968 = vperm.xlu0 %2967, %v2854
      %v2969 = vpop.permute.xlu0 %2968
      %2972 = vset.pattern.permute.xlu0 0
      %2973 = vperm.xlu0 %2972, %v2855
      %v2974 = vpop.permute.xlu0 %2973
      %2977 = vset.pattern.permute.xlu0 0
      %2978 = vperm.xlu0 %2977, %v2856
      %v2979 = vpop.permute.xlu0 %2978
      %2982 = vset.pattern.permute.xlu0 0
      %2983 = vperm.xlu0 %2982, %v2857
      %v2984 = vpop.permute.xlu0 %2983
      %2987 = vset.pattern.permute.xlu0 0
      %2988 = vperm.xlu0 %2987, %v2858
      %v2989 = vpop.permute.xlu0 %2988
      %2992 = vset.pattern.permute.xlu0 0
      %2993 = vperm.xlu0 %2992, %v2859
      %v2994 = vpop.permute.xlu0 %2993
      %2997 = vset.pattern.permute.xlu0 0
      %2998 = vperm.xlu0 %2997, %v2860
      %v2999 = vpop.permute.xlu0 %2998
      %3002 = vset.pattern.permute.xlu0 0
      %3003 = vperm.xlu0 %3002, %v2861
      %v3004 = vpop.permute.xlu0 %3003
      %3007 = vset.pattern.permute.xlu0 0
      %3008 = vperm.xlu0 %3007, %v2862
      %v3009 = vpop.permute.xlu0 %3008
      %3012 = vset.pattern.permute.xlu0 0
      %3013 = vperm.xlu0 %3012, %v2863
      %v3014 = vpop.permute.xlu0 %3013
      %3017 = vset.pattern.permute.xlu0 0
      %3018 = vperm.xlu0 %3017, %v2864
      %v3019 = vpop.permute.xlu0 %3018
      %3022 = vset.pattern.permute.xlu0 0
      %3023 = vperm.xlu0 %3022, %v2865
      %v3024 = vpop.permute.xlu0 %3023
      %v3026 = vmul.f32 %v2708, %v2869
      %v3027 = vmul.f32 %v2711, %v2874
      %v3028 = vmul.f32 %v2716, %v2879
      %v3029 = vmul.f32 %v2719, %v2884
      %v3030 = vmul.f32 %v2724, %v2889
      %v3031 = vmul.f32 %v2727, %v2894
      %v3032 = vmul.f32 %v2732, %v2899
      %v3033 = vmul.f32 %v2735, %v2904
      %v3034 = vmul.f32 %v2740, %v2909
      %v3035 = vmul.f32 %v2743, %v2914
      %v3036 = vmul.f32 %v2748, %v2919
      %v3037 = vmul.f32 %v2751, %v2924
      %v3038 = vmul.f32 %v2756, %v2929
      %v3039 = vmul.f32 %v2759, %v2934
      %v3040 = vmul.f32 %v2764, %v2939
      %v3041 = vmul.f32 %v2767, %v2944
      %v3042 = vmul.f32 %v2772, %v2949
      %v3043 = vmul.f32 %v2775, %v2954
      %v3044 = vmul.f32 %v2780, %v2959
      %v3045 = vmul.f32 %v2783, %v2964
      %v3046 = vmul.f32 %v2788, %v2969
      %v3047 = vmul.f32 %v2791, %v2974
      %v3048 = vmul.f32 %v2796, %v2979
      %v3049 = vmul.f32 %v2799, %v2984
      %v3050 = vmul.f32 %v2804, %v2989
      %v3051 = vmul.f32 %v2807, %v2994
      %v3052 = vmul.f32 %v2812, %v2999
      %v3053 = vmul.f32 %v2815, %v3004
      %v3054 = vmul.f32 %v2820, %v3009
      %v3055 = vmul.f32 %v2823, %v3014
      %v3056 = vmul.f32 %v2828, %v3019
      %v3057 = vmul.f32 %v2831, %v3024
      %v3058 = vld [vmem:[%s7] sm:$0xff]
      %v3059 = vld [vmem:[%s7 + $0x8] sm:$0xff]
      %v3060 = vld [vmem:[%s7 + $0x10] sm:$0xff]
      %v3061 = vld [vmem:[%s7 + $0x18] sm:$0xff]
      %v3062 = vld [vmem:[%s7 + $0x20] sm:$0xff]
      %v3063 = vld [vmem:[%s7 + $0x28] sm:$0xff]
      %v3064 = vld [vmem:[%s7 + $0x30] sm:$0xff]
      %v3065 = vld [vmem:[%s7 + $0x38] sm:$0xff]
      %v3066 = vld [vmem:[%s7 + $0x40] sm:$0xff]
      %v3067 = vld [vmem:[%s7 + $0x48] sm:$0xff]
      %v3068 = vld [vmem:[%s7 + $0x50] sm:$0xff]
      %v3069 = vld [vmem:[%s7 + $0x58] sm:$0xff]
      %v3070 = vld [vmem:[%s7 + $0x60] sm:$0xff]
      %v3071 = vld [vmem:[%s7 + $0x68] sm:$0xff]
      %v3072 = vld [vmem:[%s7 + $0x70] sm:$0xff]
      %v3073 = vld [vmem:[%s7 + $0x78] sm:$0xff]
      %v3074 = vld [vmem:[%s7 + $0x80] sm:$0xff]
      %v3075 = vld [vmem:[%s7 + $0x88] sm:$0xff]
      %v3076 = vld [vmem:[%s7 + $0x90] sm:$0xff]
      %v3077 = vld [vmem:[%s7 + $0x98] sm:$0xff]
      %v3078 = vld [vmem:[%s7 + $0xa0] sm:$0xff]
      %v3079 = vld [vmem:[%s7 + $0xa8] sm:$0xff]
      %v3080 = vld [vmem:[%s7 + $0xb0] sm:$0xff]
      %v3081 = vld [vmem:[%s7 + $0xb8] sm:$0xff]
      %v3082 = vld [vmem:[%s7 + $0xc0] sm:$0xff]
      %v3083 = vld [vmem:[%s7 + $0xc8] sm:$0xff]
      %v3084 = vld [vmem:[%s7 + $0xd0] sm:$0xff]
      %v3085 = vld [vmem:[%s7 + $0xd8] sm:$0xff]
      %v3086 = vld [vmem:[%s7 + $0xe0] sm:$0xff]
      %v3087 = vld [vmem:[%s7 + $0xe8] sm:$0xff]
      %v3088 = vld [vmem:[%s7 + $0xf0] sm:$0xff]
      %v3089 = vld [vmem:[%s7 + $0xf8] sm:$0xff]
      %3091 = vset.pattern.permute.xlu0 0
      %3092 = vperm.xlu0 %3091, %v3058
      %v3093 = vpop.permute.xlu0 %3092
      %3096 = vset.pattern.permute.xlu0 0
      %3097 = vperm.xlu0 %3096, %v3059
      %v3098 = vpop.permute.xlu0 %3097
      %3101 = vset.pattern.permute.xlu0 0
      %3102 = vperm.xlu0 %3101, %v3060
      %v3103 = vpop.permute.xlu0 %3102
      %3106 = vset.pattern.permute.xlu0 0
      %3107 = vperm.xlu0 %3106, %v3061
      %v3108 = vpop.permute.xlu0 %3107
      %3111 = vset.pattern.permute.xlu0 0
      %3112 = vperm.xlu0 %3111, %v3062
      %v3113 = vpop.permute.xlu0 %3112
      %3116 = vset.pattern.permute.xlu0 0
      %3117 = vperm.xlu0 %3116, %v3063
      %v3118 = vpop.permute.xlu0 %3117
      %3121 = vset.pattern.permute.xlu0 0
      %3122 = vperm.xlu0 %3121, %v3064
      %v3123 = vpop.permute.xlu0 %3122
      %3126 = vset.pattern.permute.xlu0 0
      %3127 = vperm.xlu0 %3126, %v3065
      %v3128 = vpop.permute.xlu0 %3127
      %3131 = vset.pattern.permute.xlu0 0
      %3132 = vperm.xlu0 %3131, %v3066
      %v3133 = vpop.permute.xlu0 %3132
      %3136 = vset.pattern.permute.xlu0 0
      %3137 = vperm.xlu0 %3136, %v3067
      %v3138 = vpop.permute.xlu0 %3137
      %3141 = vset.pattern.permute.xlu0 0
      %3142 = vperm.xlu0 %3141, %v3068
      %v3143 = vpop.permute.xlu0 %3142
      %3146 = vset.pattern.permute.xlu0 0
      %3147 = vperm.xlu0 %3146, %v3069
      %v3148 = vpop.permute.xlu0 %3147
      %3151 = vset.pattern.permute.xlu0 0
      %3152 = vperm.xlu0 %3151, %v3070
      %v3153 = vpop.permute.xlu0 %3152
      %3156 = vset.pattern.permute.xlu0 0
      %3157 = vperm.xlu0 %3156, %v3071
      %v3158 = vpop.permute.xlu0 %3157
      %3161 = vset.pattern.permute.xlu0 0
      %3162 = vperm.xlu0 %3161, %v3072
      %v3163 = vpop.permute.xlu0 %3162
      %3166 = vset.pattern.permute.xlu0 0
      %3167 = vperm.xlu0 %3166, %v3073
      %v3168 = vpop.permute.xlu0 %3167
      %3171 = vset.pattern.permute.xlu0 0
      %3172 = vperm.xlu0 %3171, %v3074
      %v3173 = vpop.permute.xlu0 %3172
      %3176 = vset.pattern.permute.xlu0 0
      %3177 = vperm.xlu0 %3176, %v3075
      %v3178 = vpop.permute.xlu0 %3177
      %3181 = vset.pattern.permute.xlu0 0
      %3182 = vperm.xlu0 %3181, %v3076
      %v3183 = vpop.permute.xlu0 %3182
      %3186 = vset.pattern.permute.xlu0 0
      %3187 = vperm.xlu0 %3186, %v3077
      %v3188 = vpop.permute.xlu0 %3187
      %3191 = vset.pattern.permute.xlu0 0
      %3192 = vperm.xlu0 %3191, %v3078
      %v3193 = vpop.permute.xlu0 %3192
      %3196 = vset.pattern.permute.xlu0 0
      %3197 = vperm.xlu0 %3196, %v3079
      %v3198 = vpop.permute.xlu0 %3197
      %3201 = vset.pattern.permute.xlu0 0
      %3202 = vperm.xlu0 %3201, %v3080
      %v3203 = vpop.permute.xlu0 %3202
      %3206 = vset.pattern.permute.xlu0 0
      %3207 = vperm.xlu0 %3206, %v3081
      %v3208 = vpop.permute.xlu0 %3207
      %3211 = vset.pattern.permute.xlu0 0
      %3212 = vperm.xlu0 %3211, %v3082
      %v3213 = vpop.permute.xlu0 %3212
      %3216 = vset.pattern.permute.xlu0 0
      %3217 = vperm.xlu0 %3216, %v3083
      %v3218 = vpop.permute.xlu0 %3217
      %3221 = vset.pattern.permute.xlu0 0
      %3222 = vperm.xlu0 %3221, %v3084
      %v3223 = vpop.permute.xlu0 %3222
      %3226 = vset.pattern.permute.xlu0 0
      %3227 = vperm.xlu0 %3226, %v3085
      %v3228 = vpop.permute.xlu0 %3227
      %3231 = vset.pattern.permute.xlu0 0
      %3232 = vperm.xlu0 %3231, %v3086
      %v3233 = vpop.permute.xlu0 %3232
      %3236 = vset.pattern.permute.xlu0 0
      %3237 = vperm.xlu0 %3236, %v3087
      %v3238 = vpop.permute.xlu0 %3237
      %3241 = vset.pattern.permute.xlu0 0
      %3242 = vperm.xlu0 %3241, %v3088
      %v3243 = vpop.permute.xlu0 %3242
      %3246 = vset.pattern.permute.xlu0 0
      %3247 = vperm.xlu0 %3246, %v3089
      %v3248 = vpop.permute.xlu0 %3247
      %v3250 = vadd.f32 %v3026, %v3093
      %v3251 = vadd.f32 %v3027, %v3098
      %v3252 = vadd.f32 %v3028, %v3103
      %v3253 = vadd.f32 %v3029, %v3108
      %v3254 = vadd.f32 %v3030, %v3113
      %v3255 = vadd.f32 %v3031, %v3118
      %v3256 = vadd.f32 %v3032, %v3123
      %v3257 = vadd.f32 %v3033, %v3128
      %v3258 = vadd.f32 %v3034, %v3133
      %v3259 = vadd.f32 %v3035, %v3138
      %v3260 = vadd.f32 %v3036, %v3143
      %v3261 = vadd.f32 %v3037, %v3148
      %v3262 = vadd.f32 %v3038, %v3153
      %v3263 = vadd.f32 %v3039, %v3158
      %v3264 = vadd.f32 %v3040, %v3163
      %v3265 = vadd.f32 %v3041, %v3168
      %v3266 = vadd.f32 %v3042, %v3173
      %v3267 = vadd.f32 %v3043, %v3178
      %v3268 = vadd.f32 %v3044, %v3183
      %v3269 = vadd.f32 %v3045, %v3188
      %v3270 = vadd.f32 %v3046, %v3193
      %v3271 = vadd.f32 %v3047, %v3198
      %v3272 = vadd.f32 %v3048, %v3203
      %v3273 = vadd.f32 %v3049, %v3208
      %v3274 = vadd.f32 %v3050, %v3213
      %v3275 = vadd.f32 %v3051, %v3218
      %v3276 = vadd.f32 %v3052, %v3223
      %v3277 = vadd.f32 %v3053, %v3228
      %v3278 = vadd.f32 %v3054, %v3233
      %v3279 = vadd.f32 %v3055, %v3238
      %v3280 = vadd.f32 %v3056, %v3243
      %v3281 = vadd.f32 %v3057, %v3248
      %v3282 = vmax.f32 %v3250, 0.0
      %v3283 = vmax.f32 %v3251, 0.0
      %v3284 = vmax.f32 %v3252, 0.0
      %v3285 = vmax.f32 %v3253, 0.0
      %v3286 = vmax.f32 %v3254, 0.0
      %v3287 = vmax.f32 %v3255, 0.0
      %v3288 = vmax.f32 %v3256, 0.0
      %v3289 = vmax.f32 %v3257, 0.0
      %v3290 = vmax.f32 %v3258, 0.0
      %v3291 = vmax.f32 %v3259, 0.0
      %v3292 = vmax.f32 %v3260, 0.0
      %v3293 = vmax.f32 %v3261, 0.0
      %v3294 = vmax.f32 %v3262, 0.0
      %v3295 = vmax.f32 %v3263, 0.0
      %v3296 = vmax.f32 %v3264, 0.0
      %v3297 = vmax.f32 %v3265, 0.0
      %v3298 = vmax.f32 %v3266, 0.0
      %v3299 = vmax.f32 %v3267, 0.0
      %v3300 = vmax.f32 %v3268, 0.0
      %v3301 = vmax.f32 %v3269, 0.0
      %v3302 = vmax.f32 %v3270, 0.0
      %v3303 = vmax.f32 %v3271, 0.0
      %v3304 = vmax.f32 %v3272, 0.0
      %v3305 = vmax.f32 %v3273, 0.0
      %v3306 = vmax.f32 %v3274, 0.0
      %v3307 = vmax.f32 %v3275, 0.0
      %v3308 = vmax.f32 %v3276, 0.0
      %v3309 = vmax.f32 %v3277, 0.0
      %v3310 = vmax.f32 %v3278, 0.0
      %v3311 = vmax.f32 %v3279, 0.0
      %v3312 = vmax.f32 %v3280, 0.0
      %v3313 = vmax.f32 %v3281, 0.0
      %v3314 = vpack.c.bf16 %v3283, %v3282
      %v3315 = vpack.c.bf16 %v3285, %v3284
      %v3316 = vpack.c.bf16 %v3287, %v3286
      %v3317 = vpack.c.bf16 %v3289, %v3288
      %v3318 = vpack.c.bf16 %v3291, %v3290
      %v3319 = vpack.c.bf16 %v3293, %v3292
      %v3320 = vpack.c.bf16 %v3295, %v3294
      %v3321 = vpack.c.bf16 %v3297, %v3296
      %v3322 = vpack.c.bf16 %v3299, %v3298
      %v3323 = vpack.c.bf16 %v3301, %v3300
      %v3324 = vpack.c.bf16 %v3303, %v3302
      %v3325 = vpack.c.bf16 %v3305, %v3304
      %v3326 = vpack.c.bf16 %v3307, %v3306
      %v3327 = vpack.c.bf16 %v3309, %v3308
      %v3328 = vpack.c.bf16 %v3311, %v3310
      %v3329 = vpack.c.bf16 %v3313, %v3312
      %v3330 = vld [vmem:[%s8] sm:$0xff]
      %v3331 = vld [vmem:[%s8 + $0x8] sm:$0xff]
      %v3332 = vld [vmem:[%s8 + $0x10] sm:$0xff]
      %v3333 = vld [vmem:[%s8 + $0x18] sm:$0xff]
      %v3334 = vld [vmem:[%s8 + $0x20] sm:$0xff]
      %v3335 = vld [vmem:[%s8 + $0x28] sm:$0xff]
      %v3336 = vld [vmem:[%s8 + $0x30] sm:$0xff]
      %v3337 = vld [vmem:[%s8 + $0x38] sm:$0xff]
      %v3338 = vld [vmem:[%s8 + $0x40] sm:$0xff]
      %v3339 = vld [vmem:[%s8 + $0x48] sm:$0xff]
      %v3340 = vld [vmem:[%s8 + $0x50] sm:$0xff]
      %v3341 = vld [vmem:[%s8 + $0x58] sm:$0xff]
      %v3342 = vld [vmem:[%s8 + $0x60] sm:$0xff]
      %v3343 = vld [vmem:[%s8 + $0x68] sm:$0xff]
      %v3344 = vld [vmem:[%s8 + $0x70] sm:$0xff]
      %v3345 = vld [vmem:[%s8 + $0x78] sm:$0xff]
      %v3362 = vunpack.c.l.b16 %v3330
      %v3363 = vunpack.c.h.b16 %v3330
      %v3364 = vunpack.c.l.b16 %v3331
      %v3365 = vunpack.c.h.b16 %v3331
      %v3366 = vunpack.c.l.b16 %v3332
      %v3367 = vunpack.c.h.b16 %v3332
      %v3368 = vunpack.c.l.b16 %v3333
      %v3369 = vunpack.c.h.b16 %v3333
      %v3370 = vunpack.c.l.b16 %v3334
      %v3371 = vunpack.c.h.b16 %v3334
      %v3372 = vunpack.c.l.b16 %v3335
      %v3373 = vunpack.c.h.b16 %v3335
      %v3374 = vunpack.c.l.b16 %v3336
      %v3375 = vunpack.c.h.b16 %v3336
      %v3376 = vunpack.c.l.b16 %v3337
      %v3377 = vunpack.c.h.b16 %v3337
      %v3378 = vunpack.c.l.b16 %v3338
      %v3379 = vunpack.c.h.b16 %v3338
      %v3380 = vunpack.c.l.b16 %v3339
      %v3381 = vunpack.c.h.b16 %v3339
      %v3382 = vunpack.c.l.b16 %v3340
      %v3383 = vunpack.c.h.b16 %v3340
      %v3384 = vunpack.c.l.b16 %v3341
      %v3385 = vunpack.c.h.b16 %v3341
      %v3386 = vunpack.c.l.b16 %v3342
      %v3387 = vunpack.c.h.b16 %v3342
      %v3388 = vunpack.c.l.b16 %v3343
      %v3389 = vunpack.c.h.b16 %v3343
      %v3390 = vunpack.c.l.b16 %v3344
      %v3391 = vunpack.c.h.b16 %v3344
      %v3392 = vunpack.c.l.b16 %v3345
      %v3393 = vunpack.c.h.b16 %v3345
      %v3394 = vpack.c.b16 %v3364, %v3362
      %v3395 = vpack.c.b16 %v3365, %v3363
      %v3396 = vpack.c.b16 %v3368, %v3366
      %v3397 = vpack.c.b16 %v3369, %v3367
      %v3398 = vpack.c.b16 %v3372, %v3370
      %v3399 = vpack.c.b16 %v3373, %v3371
      %v3400 = vpack.c.b16 %v3376, %v3374
      %v3401 = vpack.c.b16 %v3377, %v3375
      %v3402 = vpack.c.b16 %v3380, %v3378
      %v3403 = vpack.c.b16 %v3381, %v3379
      %v3404 = vpack.c.b16 %v3384, %v3382
      %v3405 = vpack.c.b16 %v3385, %v3383
      %v3406 = vpack.c.b16 %v3388, %v3386
      %v3407 = vpack.c.b16 %v3389, %v3387
      %v3408 = vpack.c.b16 %v3392, %v3390
      %v3409 = vpack.c.b16 %v3393, %v3391
      %3426 = vmatprep.subr.bf16.mxu0 0
      %3427 = vmatpush1.bf16.msra.mxu0 %v3314
      %3428 = vmatprep.subr.bf16.mxu0 0
      %3429 = vmatpush1.bf16.msra.mxu0 %v3315
      %3430 = vmatprep.subr.bf16.mxu0 0
      %3431 = vmatpush1.bf16.msra.mxu0 %v3316
      %3432 = vmatprep.subr.bf16.mxu0 0
      %3433 = vmatpush1.bf16.msra.mxu0 %v3317
      %3434 = vmatprep.subr.bf16.mxu0 0
      %3435 = vmatpush1.bf16.msra.mxu0 %v3318
      %3436 = vmatprep.subr.bf16.mxu0 0
      %3437 = vmatpush1.bf16.msra.mxu0 %v3319
      %3438 = vmatprep.subr.bf16.mxu0 0
      %3439 = vmatpush1.bf16.msra.mxu0 %v3320
      %3440 = vmatprep.subr.bf16.mxu0 0
      %3441 = vmatpush1.bf16.msra.mxu0 %v3321
      %3442 = vmatprep.subr.bf16.mxu0 0
      %3443 = vmatpush1.bf16.msra.mxu0 %v3322
      %3444 = vmatprep.subr.bf16.mxu0 0
      %3445 = vmatpush1.bf16.msra.mxu0 %v3323
      %3446 = vmatprep.subr.bf16.mxu0 0
      %3447 = vmatpush1.bf16.msra.mxu0 %v3324
      %3448 = vmatprep.subr.bf16.mxu0 0
      %3449 = vmatpush1.bf16.msra.mxu0 %v3325
      %3450 = vmatprep.subr.bf16.mxu0 0
      %3451 = vmatpush1.bf16.msra.mxu0 %v3326
      %3452 = vmatprep.subr.bf16.mxu0 0
      %3453 = vmatpush1.bf16.msra.mxu0 %v3327
      %3454 = vmatprep.subr.bf16.mxu0 0
      %3455 = vmatpush1.bf16.msra.mxu0 %v3328
      %3456 = vmatprep.subr.bf16.mxu0 0
      %3457 = vmatpush1.bf16.msra.mxu0 %v3329
      %3458 = vmatprep.mubr.bf16.mxu0 %v3395
      %3459 = vmatmul.mubr.bf16.gmra.mrb[0].mxu0 %v3394
      %v3460 = vpop.f32.mrb[0].mxu0
      %v3461 = vadd.f32 0.0, %v3460
      %v3462 = vpop.f32.mrb[0].mxu0
      %v3463 = vpop.f32.mrb[0].mxu0
      %v3464 = vadd.f32 0.0, %v3463
      %v3465 = vpop.f32.mrb[0].mxu0
      %3466 = vmatprep.mubr.bf16.mxu0 %v3397
      %3467 = vmatmul.mubr.bf16.gmra.mrb[0].mxu0 %v3396
      %v3468 = vpop.f32.mrb[0].mxu0
      %v3469 = vadd.f32 0.0, %v3468
      %v3470 = vpop.f32.mrb[0].mxu0
      %v3471 = vpop.f32.mrb[0].mxu0
      %v3472 = vadd.f32 0.0, %v3471
      %v3473 = vpop.f32.mrb[0].mxu0
      %3474 = vmatprep.mubr.bf16.mxu0 %v3399
      %3475 = vmatmul.mubr.bf16.gmra.mrb[0].mxu0 %v3398
      %v3476 = vpop.f32.mrb[0].mxu0
      %v3477 = vadd.f32 0.0, %v3476
      %v3478 = vpop.f32.mrb[0].mxu0
      %v3479 = vpop.f32.mrb[0].mxu0
      %v3480 = vadd.f32 0.0, %v3479
      %v3481 = vpop.f32.mrb[0].mxu0
      %3482 = vmatprep.mubr.bf16.mxu0 %v3401
      %3483 = vmatmul.mubr.bf16.gmra.mrb[0].mxu0 %v3400
      %v3484 = vpop.f32.mrb[0].mxu0
      %v3485 = vadd.f32 0.0, %v3484
      %v3486 = vpop.f32.mrb[0].mxu0
      %v3487 = vpop.f32.mrb[0].mxu0
      %v3488 = vadd.f32 0.0, %v3487
      %v3489 = vpop.f32.mrb[0].mxu0
      %3490 = vmatprep.mubr.bf16.mxu0 %v3403
      %3491 = vmatmul.mubr.bf16.gmra.mrb[0].mxu0 %v3402
      %v3492 = vpop.f32.mrb[0].mxu0
      %v3493 = vadd.f32 0.0, %v3492
      %v3494 = vpop.f32.mrb[0].mxu0
      %v3495 = vpop.f32.mrb[0].mxu0
      %v3496 = vadd.f32 0.0, %v3495
      %v3497 = vpop.f32.mrb[0].mxu0
      %3498 = vmatprep.mubr.bf16.mxu0 %v3405
      %3499 = vmatmul.mubr.bf16.gmra.mrb[0].mxu0 %v3404
      %v3500 = vpop.f32.mrb[0].mxu0
      %v3501 = vadd.f32 0.0, %v3500
      %v3502 = vpop.f32.mrb[0].mxu0
      %v3503 = vpop.f32.mrb[0].mxu0
      %v3504 = vadd.f32 0.0, %v3503
      %v3505 = vpop.f32.mrb[0].mxu0
      %3506 = vmatprep.mubr.bf16.mxu0 %v3407
      %3507 = vmatmul.mubr.bf16.gmra.mrb[0].mxu0 %v3406
      %v3508 = vpop.f32.mrb[0].mxu0
      %v3509 = vadd.f32 0.0, %v3508
      %v3510 = vpop.f32.mrb[0].mxu0
      %v3511 = vpop.f32.mrb[0].mxu0
      %v3512 = vadd.f32 0.0, %v3511
      %v3513 = vpop.f32.mrb[0].mxu0
      %3514 = vmatprep.mubr.bf16.mxu0 %v3409
      %3515 = vmatmul.mubr.bf16.gmra.mrb[0].mxu0 %v3408
      %v3516 = vpop.f32.mrb[0].mxu0
      %v3517 = vadd.f32 0.0, %v3516
      %v3518 = vpop.f32.mrb[0].mxu0
      %v3519 = vpop.f32.mrb[0].mxu0
      %v3520 = vadd.f32 0.0, %v3519
      %v3521 = vpop.f32.mrb[0].mxu0
      %3522 = vdwg.mxu0
      %v3523 = vld [vmem:[%s9] sm:$0xff]
      %v3524 = vld [vmem:[%s9 + $0x8] sm:$0xff]
      %v3525 = vld [vmem:[%s9 + $0x10] sm:$0xff]
      %v3526 = vld [vmem:[%s9 + $0x18] sm:$0xff]
      %v3527 = vld [vmem:[%s9 + $0x20] sm:$0xff]
      %v3528 = vld [vmem:[%s9 + $0x28] sm:$0xff]
      %v3529 = vld [vmem:[%s9 + $0x30] sm:$0xff]
      %v3530 = vld [vmem:[%s9 + $0x38] sm:$0xff]
      %v3531 = vld [vmem:[%s9 + $0x40] sm:$0xff]
      %v3532 = vld [vmem:[%s9 + $0x48] sm:$0xff]
      %v3533 = vld [vmem:[%s9 + $0x50] sm:$0xff]
      %v3534 = vld [vmem:[%s9 + $0x58] sm:$0xff]
      %v3535 = vld [vmem:[%s9 + $0x60] sm:$0xff]
      %v3536 = vld [vmem:[%s9 + $0x68] sm:$0xff]
      %v3537 = vld [vmem:[%s9 + $0x70] sm:$0xff]
      %v3538 = vld [vmem:[%s9 + $0x78] sm:$0xff]
      %3540 = vset.pattern.permute.xlu0 0
      %3541 = vperm.xlu0 %3540, %v3523
      %v3542 = vpop.permute.xlu0 %3541
      %3545 = vset.pattern.permute.xlu0 0
      %3546 = vperm.xlu0 %3545, %v3524
      %v3547 = vpop.permute.xlu0 %3546
      %3550 = vset.pattern.permute.xlu0 0
      %3551 = vperm.xlu0 %3550, %v3525
      %v3552 = vpop.permute.xlu0 %3551
      %3555 = vset.pattern.permute.xlu0 0
      %3556 = vperm.xlu0 %3555, %v3526
      %v3557 = vpop.permute.xlu0 %3556
      %3560 = vset.pattern.permute.xlu0 0
      %3561 = vperm.xlu0 %3560, %v3527
      %v3562 = vpop.permute.xlu0 %3561
      %3565 = vset.pattern.permute.xlu0 0
      %3566 = vperm.xlu0 %3565, %v3528
      %v3567 = vpop.permute.xlu0 %3566
      %3570 = vset.pattern.permute.xlu0 0
      %3571 = vperm.xlu0 %3570, %v3529
      %v3572 = vpop.permute.xlu0 %3571
      %3575 = vset.pattern.permute.xlu0 0
      %3576 = vperm.xlu0 %3575, %v3530
      %v3577 = vpop.permute.xlu0 %3576
      %3580 = vset.pattern.permute.xlu0 0
      %3581 = vperm.xlu0 %3580, %v3531
      %v3582 = vpop.permute.xlu0 %3581
      %3585 = vset.pattern.permute.xlu0 0
      %3586 = vperm.xlu0 %3585, %v3532
      %v3587 = vpop.permute.xlu0 %3586
      %3590 = vset.pattern.permute.xlu0 0
      %3591 = vperm.xlu0 %3590, %v3533
      %v3592 = vpop.permute.xlu0 %3591
      %3595 = vset.pattern.permute.xlu0 0
      %3596 = vperm.xlu0 %3595, %v3534
      %v3597 = vpop.permute.xlu0 %3596
      %3600 = vset.pattern.permute.xlu0 0
      %3601 = vperm.xlu0 %3600, %v3535
      %v3602 = vpop.permute.xlu0 %3601
      %3605 = vset.pattern.permute.xlu0 0
      %3606 = vperm.xlu0 %3605, %v3536
      %v3607 = vpop.permute.xlu0 %3606
      %3610 = vset.pattern.permute.xlu0 0
      %3611 = vperm.xlu0 %3610, %v3537
      %v3612 = vpop.permute.xlu0 %3611
      %3615 = vset.pattern.permute.xlu0 0
      %3616 = vperm.xlu0 %3615, %v3538
      %v3617 = vpop.permute.xlu0 %3616
      %v3619 = vmul.f32 %v3461, %v3542
      %v3620 = vmul.f32 %v3464, %v3547
      %v3621 = vmul.f32 %v3469, %v3552
      %v3622 = vmul.f32 %v3472, %v3557
      %v3623 = vmul.f32 %v3477, %v3562
      %v3624 = vmul.f32 %v3480, %v3567
      %v3625 = vmul.f32 %v3485, %v3572
      %v3626 = vmul.f32 %v3488, %v3577
      %v3627 = vmul.f32 %v3493, %v3582
      %v3628 = vmul.f32 %v3496, %v3587
      %v3629 = vmul.f32 %v3501, %v3592
      %v3630 = vmul.f32 %v3504, %v3597
      %v3631 = vmul.f32 %v3509, %v3602
      %v3632 = vmul.f32 %v3512, %v3607
      %v3633 = vmul.f32 %v3517, %v3612
      %v3634 = vmul.f32 %v3520, %v3617
      %v3635 = vld [vmem:[%s10] sm:$0xff]
      %v3636 = vld [vmem:[%s10 + $0x8] sm:$0xff]
      %v3637 = vld [vmem:[%s10 + $0x10] sm:$0xff]
      %v3638 = vld [vmem:[%s10 + $0x18] sm:$0xff]
      %v3639 = vld [vmem:[%s10 + $0x20] sm:$0xff]
      %v3640 = vld [vmem:[%s10 + $0x28] sm:$0xff]
      %v3641 = vld [vmem:[%s10 + $0x30] sm:$0xff]
      %v3642 = vld [vmem:[%s10 + $0x38] sm:$0xff]
      %v3643 = vld [vmem:[%s10 + $0x40] sm:$0xff]
      %v3644 = vld [vmem:[%s10 + $0x48] sm:$0xff]
      %v3645 = vld [vmem:[%s10 + $0x50] sm:$0xff]
      %v3646 = vld [vmem:[%s10 + $0x58] sm:$0xff]
      %v3647 = vld [vmem:[%s10 + $0x60] sm:$0xff]
      %v3648 = vld [vmem:[%s10 + $0x68] sm:$0xff]
      %v3649 = vld [vmem:[%s10 + $0x70] sm:$0xff]
      %v3650 = vld [vmem:[%s10 + $0x78] sm:$0xff]
      %3652 = vset.pattern.permute.xlu0 0
      %3653 = vperm.xlu0 %3652, %v3635
      %v3654 = vpop.permute.xlu0 %3653
      %3657 = vset.pattern.permute.xlu0 0
      %3658 = vperm.xlu0 %3657, %v3636
      %v3659 = vpop.permute.xlu0 %3658
      %3662 = vset.pattern.permute.xlu0 0
      %3663 = vperm.xlu0 %3662, %v3637
      %v3664 = vpop.permute.xlu0 %3663
      %3667 = vset.pattern.permute.xlu0 0
      %3668 = vperm.xlu0 %3667, %v3638
      %v3669 = vpop.permute.xlu0 %3668
      %3672 = vset.pattern.permute.xlu0 0
      %3673 = vperm.xlu0 %3672, %v3639
      %v3674 = vpop.permute.xlu0 %3673
      %3677 = vset.pattern.permute.xlu0 0
      %3678 = vperm.xlu0 %3677, %v3640
      %v3679 = vpop.permute.xlu0 %3678
      %3682 = vset.pattern.permute.xlu0 0
      %3683 = vperm.xlu0 %3682, %v3641
      %v3684 = vpop.permute.xlu0 %3683
      %3687 = vset.pattern.permute.xlu0 0
      %3688 = vperm.xlu0 %3687, %v3642
      %v3689 = vpop.permute.xlu0 %3688
      %3692 = vset.pattern.permute.xlu0 0
      %3693 = vperm.xlu0 %3692, %v3643
      %v3694 = vpop.permute.xlu0 %3693
      %3697 = vset.pattern.permute.xlu0 0
      %3698 = vperm.xlu0 %3697, %v3644
      %v3699 = vpop.permute.xlu0 %3698
      %3702 = vset.pattern.permute.xlu0 0
      %3703 = vperm.xlu0 %3702, %v3645
      %v3704 = vpop.permute.xlu0 %3703
      %3707 = vset.pattern.permute.xlu0 0
      %3708 = vperm.xlu0 %3707, %v3646
      %v3709 = vpop.permute.xlu0 %3708
      %3712 = vset.pattern.permute.xlu0 0
      %3713 = vperm.xlu0 %3712, %v3647
      %v3714 = vpop.permute.xlu0 %3713
      %3717 = vset.pattern.permute.xlu0 0
      %3718 = vperm.xlu0 %3717, %v3648
      %v3719 = vpop.permute.xlu0 %3718
      %3722 = vset.pattern.permute.xlu0 0
      %3723 = vperm.xlu0 %3722, %v3649
      %v3724 = vpop.permute.xlu0 %3723
      %3727 = vset.pattern.permute.xlu0 0
      %3728 = vperm.xlu0 %3727, %v3650
      %v3729 = vpop.permute.xlu0 %3728
      %v3731 = vadd.f32 %v3619, %v3654
      %v3732 = vadd.f32 %v3620, %v3659
      %v3733 = vadd.f32 %v3621, %v3664
      %v3734 = vadd.f32 %v3622, %v3669
      %v3735 = vadd.f32 %v3623, %v3674
      %v3736 = vadd.f32 %v3624, %v3679
      %v3737 = vadd.f32 %v3625, %v3684
      %v3738 = vadd.f32 %v3626, %v3689
      %v3739 = vadd.f32 %v3627, %v3694
      %v3740 = vadd.f32 %v3628, %v3699
      %v3741 = vadd.f32 %v3629, %v3704
      %v3742 = vadd.f32 %v3630, %v3709
      %v3743 = vadd.f32 %v3631, %v3714
      %v3744 = vadd.f32 %v3632, %v3719
      %v3745 = vadd.f32 %v3633, %v3724
      %v3746 = vadd.f32 %v3634, %v3729
      %v3747 = vmax.f32 %v3731, 0.0
      %v3748 = vmax.f32 %v3732, 0.0
      %v3749 = vmax.f32 %v3733, 0.0
      %v3750 = vmax.f32 %v3734, 0.0
      %v3751 = vmax.f32 %v3735, 0.0
      %v3752 = vmax.f32 %v3736, 0.0
      %v3753 = vmax.f32 %v3737, 0.0
      %v3754 = vmax.f32 %v3738, 0.0
      %v3755 = vmax.f32 %v3739, 0.0
      %v3756 = vmax.f32 %v3740, 0.0
      %v3757 = vmax.f32 %v3741, 0.0
      %v3758 = vmax.f32 %v3742, 0.0
      %v3759 = vmax.f32 %v3743, 0.0
      %v3760 = vmax.f32 %v3744, 0.0
      %v3761 = vmax.f32 %v3745, 0.0
      %v3762 = vmax.f32 %v3746, 0.0
      %v3763 = vpack.c.bf16 %v3748, %v3747
      %v3764 = vpack.c.bf16 %v3750, %v3749
      %v3765 = vpack.c.bf16 %v3752, %v3751
      %v3766 = vpack.c.bf16 %v3754, %v3753
      %v3767 = vpack.c.bf16 %v3756, %v3755
      %v3768 = vpack.c.bf16 %v3758, %v3757
      %v3769 = vpack.c.bf16 %v3760, %v3759
      %v3770 = vpack.c.bf16 %v3762, %v3761
      %v3771 = vld [vmem:[%s11] sm:$0x7]
      %v3772 = vld [vmem:[%s12] sm:$0x1f]
      %3774 = vset.pattern.permute.xlu0 0
      %3775 = vperm.xlu0 %3774, %v3772
      %v3776 = vpop.permute.xlu0 %3775
      %3778 = vmatprep.subr.bf16.mxu0 0
      %3779 = vmatpush1.bf16.msra.mxu0 %v3763
      %3780 = vmatprep.subr.bf16.mxu0 0
      %3781 = vmatpush1.bf16.msra.mxu0 %v3764
      %3782 = vmatprep.subr.bf16.mxu0 0
      %3783 = vmatpush1.bf16.msra.mxu0 %v3765
      %3784 = vmatprep.subr.bf16.mxu0 0
      %3785 = vmatpush1.bf16.msra.mxu0 %v3766
      %3786 = vmatprep.subr.bf16.mxu0 0
      %3787 = vmatpush1.bf16.msra.mxu0 %v3767
      %3788 = vmatprep.subr.bf16.mxu0 0
      %3789 = vmatpush1.bf16.msra.mxu0 %v3768
      %3790 = vmatprep.subr.bf16.mxu0 0
      %3791 = vmatpush1.bf16.msra.mxu0 %v3769
      %3792 = vmatprep.subr.bf16.mxu0 0
      %3793 = vmatpush1.bf16.msra.mxu0 %v3770
      %3794 = vmatprep.subr.bf16.mxu0 0
      %3795 = vmatpush1.bf16.msra.mxu0 0
      %3796 = vmatprep.subr.bf16.mxu0 0
      %3797 = vmatpush1.bf16.msra.mxu0 0
      %3798 = vmatprep.subr.bf16.mxu0 0
      %3799 = vmatpush1.bf16.msra.mxu0 0
      %3800 = vmatprep.subr.bf16.mxu0 0
      %3801 = vmatpush1.bf16.msra.mxu0 0
      %3802 = vmatprep.subr.bf16.mxu0 0
      %3803 = vmatpush1.bf16.msra.mxu0 0
      %3804 = vmatprep.subr.bf16.mxu0 0
      %3805 = vmatpush1.bf16.msra.mxu0 0
      %3806 = vmatprep.subr.bf16.mxu0 0
      %3807 = vmatpush1.bf16.msra.mxu0 0
      %3808 = vmatprep.subr.bf16.mxu0 0
      %3809 = vmatpush1.bf16.msra.mxu0 0
      %3810 = vmatprep.mubr.bf16.mxu0 0
      %3811 = vmatmul.mubr.bf16.gmra.mrb[0].mxu0 %v3771
      %v3812 = vpop.f32.mrb[0].mxu0
      %v3813 = vadd.f32 %v3776, %v3812
      %v3814 = vpop.f32.mrb[0].mxu0
      %v3815 = vpop.f32.mrb[0].mxu0
      %v3816 = vpop.f32.mrb[0].mxu0
      %3817 = vdwg.mxu0
      %vm3818 = vcmask 126976
      %v3819 = vsel %vm3818, %v3813, -inf
      %v3820 = vrot.slane %v3819, 4
      %v3821 = vmax.f32 %v3819, %v3820
      %v3822 = vrot.slane %v3821, 2
      %v3823 = vmax.f32 %v3821, %v3822
      %v3824 = vrot.slane %v3823, 1
      %v3825 = vmax.f32 %v3823, %v3824
      %v3826 = vsub.f32 %v3813, %v3825
      %v3827 = vmul.f32 %v3826, 1.442695
      %v3828 = vpow.pop %v3827
      %v3829 = vsel %vm3818, %v3828, 0.0
      %v3830 = vrot.slane %v3829, 4
      %v3831 = vadd.f32 %v3829, %v3830
      %v3832 = vrot.slane %v3831, 2
      %v3833 = vadd.f32 %v3831, %v3832
      %v3834 = vrot.slane %v3833, 1
      %v3835 = vadd.f32 %v3833, %v3834
      %v3836 = vrcp.pop %v3835
      %v3837 = vmul.f32 %v3828, %v3836
      %3838 = vst.msk [vmem:[%s500] sm:$0x1f] %vm3818, %v3837
      %p3839 = scmp.lt.s32.totalorder %s28, 1
      %s3840 = scalar_select %p3839, %s28, 1
      %p3841 = scmp.lt.s32.totalorder %s29, 0
      %s3842 = scalar_select %p3841, %s29, 0
      %s3843 = sadd.s32 %s3842, %s3840
      %s3844 = smul.addr %s3843, 8
      %s3845 = scalar_lea.vmem %s13, %s3844
      // Predicated region
      $region73: #{ndnet_segmentation_forward.19} parent=71 // pred_check
        %p3846 = pneg %p343
      $region74: #{ndnet_segmentation_forward.19} parent=71 // pred_check_branch
        %3848 = sbr.rel (%p3846) target = $region76
      $region75: #{ndnet_segmentation_forward.19} parent=71 // pred_region
        _
      $region76: #{ndnet_segmentation_forward.19} parent=71 // pred_fallthru
        _
    $region72: #{ndnet_segmentation_forward.19} parent=5 // pred_fallthru
      _
    %p3849 = scmp.le.s32.totalorder 2, %s19
    // Predicated region
    $region77: #{ndnet_segmentation_forward.19} parent=5 // pred_check
      %p3850 = pneg %p3849
    $region78: #{ndnet_segmentation_forward.19} parent=5 // pred_check_branch
      %3852 = sbr.rel (%p3850) target = $region80
    $region79: #{ndnet_segmentation_forward.19} parent=5 // pred_region
      %s3853 = ssub.s32 %s19, 2
      // Predicated region
      $region81: #{ndnet_segmentation_forward.19} parent=79 // pred_check
        %p3854 = pneg %p349
      $region82: #{ndnet_segmentation_forward.19} parent=79 // pred_check_branch
        %3856 = sbr.rel (%p3854) target = $region84
      $region83: #{ndnet_segmentation_forward.19} parent=79 // pred_region
        %p3857 = scmp.lt.s32.totalorder %s30, 1
        %s3858 = scalar_select %p3857, %s30, 1
        %p3859 = scmp.lt.s32.totalorder %s31, 0
        %s3860 = scalar_select %p3859, %s31, 0
        %s3861 = sadd.s32 %s3860, %s3858
        %s3862 = smul.addr %s3861, 8
        %s3863 = scalar_lea.vmem %s13, %s3862
      $region84: #{ndnet_segmentation_forward.19} parent=79 // pred_fallthru
        _
    $region80: #{ndnet_segmentation_forward.19} parent=5 // pred_fallthru
      _
  $region6: #{ndnet_segmentation_forward.19} parent=0 // loop_footer
    %s23 = sadd.s32 1, %s19
  $region7: #{ndnet_segmentation_forward.19} parent=0 // loop_footer_branch
    %18 = sbr.rel target = $region3
  $region8: #{ndnet_segmentation_forward.19} parent=0 // loop_exit
    _

</llo_original>
